<compile_context>
chip_gen: v5e
topology: v5e:2x2
jax: 0.10.0
libtpu: 0.0.40
codegen_flags: <defaults>
</compile_context>

<pallas_src>
import functools

import jax
import jax.numpy as jnp
from jax.experimental import pallas as pl
from jax.experimental.pallas import tpu as pltpu

_LANE = 128      # vreg lane width
_SUBLANE = 8     # f32 sublane count
_NEG_INF = -1e30


def _round_up(x, m):
    return (x + m - 1) // m * m


# -----------------------------------------------------------------------------
# Pallas kernel: full sequence for one batch tile
# -----------------------------------------------------------------------------
def _lstm_speller_kernel(x_ref, h0_ref, c0_ref,
                         w0_ref, wr_ref, b_ref,
                         w_lin_ref, b_lin_ref,
                         out_ref,
                         *, num_layers, hidden_pad, seq_len):
    Hp = hidden_pad
    L = num_layers

    # Initial recurrent state, carried functionally through the time loop.
    h_init = tuple(h0_ref[l] for l in range(L))   # each (BT, Hp)
    c_init = tuple(c0_ref[l] for l in range(L))

    def step(t, carry):
        h, c = carry
        inp = x_ref[t]                            # (BT, Ip)
        hs, cs = [], []
        for l in range(L):                        # static unroll over layers
            w = w0_ref[...] if l == 0 else wr_ref[l - 1]   # (Ip+Hp | 2Hp, 4Hp)
            # Fused input/recurrent matmul: [x ; h_prev] @ [W_ih ; W_hh].
            xh = jnp.concatenate([inp, h[l]], axis=1)
            gates = (jnp.dot(xh, w, preferred_element_type=jnp.float32)
                     + b_ref[l])                   # (BT, 4Hp)

            # PyTorch gate order i, f, g, o; each gate block is 128-lane aligned.
            i_g = jax.nn.sigmoid(gates[:, 0 * Hp:1 * Hp])
            f_g = jax.nn.sigmoid(gates[:, 1 * Hp:2 * Hp])
            g_g = jnp.tanh(gates[:, 2 * Hp:3 * Hp])
            o_g = jax.nn.sigmoid(gates[:, 3 * Hp:4 * Hp])

            c_new = f_g * c[l] + i_g * g_g
            h_new = o_g * jnp.tanh(c_new)
            hs.append(h_new)
            cs.append(c_new)
            inp = h_new

        # Linear projection to (padded) vocab + softmax. Padded vocab lanes
        # carry a -1e30 bias, so exp() underflows to 0 there.
        logits = (jnp.dot(inp, w_lin_ref[...], preferred_element_type=jnp.float32)
                  + b_lin_ref[...])                # (BT, Vp)
        m = jnp.max(logits, axis=-1, keepdims=True)
        e = jnp.exp(logits - m)
        inv = pl.reciprocal(jnp.sum(e, axis=-1, keepdims=True), approx=True)
        out_ref[t] = e * inv                       # lane-dense (BT, 128) store
        return tuple(hs), tuple(cs)

    jax.lax.fori_loop(0, seq_len, step, (h_init, c_init), unroll=True)


# -----------------------------------------------------------------------------
# Padding helpers (wrapper-side, plain XLA)
# -----------------------------------------------------------------------------
def _pad_axis(a, axis, size):
    if a.shape[axis] == size:
        return a
    pad = [(0, 0)] * a.ndim
    pad[axis] = (0, size - a.shape[axis])
    return jnp.pad(a, pad)


def _pad_gate_cols(w, h, hp):
    """(..., 4h) -> (..., 4hp): zero-pad each of the 4 PyTorch gates to hp lanes."""
    if h == hp:
        return w
    lead = w.shape[:-1]
    w4 = w.reshape(lead + (4, h))
    w4 = jnp.pad(w4, [(0, 0)] * len(lead) + [(0, 0), (0, hp - h)])
    return w4.reshape(lead + (4 * hp,))


# -----------------------------------------------------------------------------
# Wrapper
# -----------------------------------------------------------------------------
def lstm_speller_pallas(inputs, h0, c0, params):
    """inputs: (T, B, I) f32; h0/c0: (L, B, H) f32; returns (T, B, V) f32."""
    T, B, I = inputs.shape
    L, _, H = h0.shape
    V = params["w_lin_t"].shape[1]

    Ip = _round_up(I, _LANE)
    Hp = _round_up(H, _LANE)
    Vp = _round_up(V, _LANE)
    Bp = _round_up(B, _SUBLANE)
    BT = _SUBLANE                 # batch tile; parallel grid axis -> megacore on v7x
    nbt = Bp // BT

    # ---- pad activations / state ----
    x_p = _pad_axis(_pad_axis(inputs, 1, Bp), 2, Ip)        # (T, Bp, Ip)
    h0_p = _pad_axis(_pad_axis(h0, 1, Bp), 2, Hp)           # (L, Bp, Hp)
    c0_p = _pad_axis(_pad_axis(c0, 1, Bp), 2, Hp)

    # ---- pad + fuse weights: one [x ; h] @ [W_ih ; W_hh] matmul per layer ----
    w_ih0 = _pad_axis(_pad_gate_cols(params["w_ih0_t"], H, Hp), 0, Ip)       # (Ip, 4Hp)
    w_hh = _pad_axis(_pad_gate_cols(params["w_hh_t"], H, Hp), 1, Hp)         # (L, Hp, 4Hp)
    w0 = jnp.concatenate([w_ih0, w_hh[0]], axis=0)                           # (Ip+Hp, 4Hp)
    if L > 1:
        w_ihr = _pad_axis(_pad_gate_cols(params["w_ihr_t"], H, Hp), 1, Hp)   # (L-1, Hp, 4Hp)
        wr = jnp.concatenate([w_ihr, w_hh[1:]], axis=1)                      # (L-1, 2Hp, 4Hp)
    else:
        wr = jnp.zeros((1, 2 * Hp, 4 * Hp), jnp.float32)                     # unused dummy

    b = _pad_gate_cols(params["b"], H, Hp)                                   # (L, 1, 4Hp)

    w_lin = _pad_axis(_pad_axis(params["w_lin_t"], 0, Hp), 1, Vp)            # (Hp, Vp)
    b_lin = params["b_lin"]                                                  # (1, V)
    if Vp > V:
        b_lin = jnp.concatenate(
            [b_lin, jnp.full((1, Vp - V), _NEG_INF, jnp.float32)], axis=1)   # (1, Vp)

    kernel = functools.partial(_lstm_speller_kernel,
                               num_layers=L, hidden_pad=Hp, seq_len=T)

    grid_spec = pltpu.PrefetchScalarGridSpec(
        num_scalar_prefetch=0,
        grid=(nbt,),
        in_specs=[
            pl.BlockSpec((T, BT, Ip), lambda bt: (0, bt, 0)),                # x
            pl.BlockSpec((L, BT, Hp), lambda bt: (0, bt, 0)),                # h0
            pl.BlockSpec((L, BT, Hp), lambda bt: (0, bt, 0)),                # c0
            pl.BlockSpec((Ip + Hp, 4 * Hp), lambda bt: (0, 0)),              # fused W layer 0
            pl.BlockSpec((max(L - 1, 1), 2 * Hp, 4 * Hp),
                         lambda bt: (0, 0, 0)),                              # fused W layers 1..L-1
            pl.BlockSpec((L, 1, 4 * Hp), lambda bt: (0, 0, 0)),              # b_ih + b_hh
            pl.BlockSpec((Hp, Vp), lambda bt: (0, 0)),                       # linear weight
            pl.BlockSpec((1, Vp), lambda bt: (0, 0)),                        # linear bias
        ],
        out_specs=pl.BlockSpec((T, BT, Vp), lambda bt: (0, bt, 0)),
    )

    out_p = pl.pallas_call(
        kernel,
        out_shape=jax.ShapeDtypeStruct((T, Bp, Vp), jnp.float32),
        grid_spec=grid_spec,
        compiler_params=pltpu.CompilerParams(
            dimension_semantics=("parallel",)),   # batch tiles are independent
    )(x_p, h0_p, c0_p, w0, wr, b, w_lin, b_lin)

    return out_p[:, :B, :V]


# -----------------------------------------------------------------------------
# Pure-JAX reference (mirrors torch.nn.LSTM + Linear + softmax semantics)
# -----------------------------------------------------------------------------
def lstm_speller_ref(inputs, h0, c0, params):
    L, _, H = h0.shape

    def step(carry, x_t):
        h, c = carry
        inp = x_t
        hs, cs = [], []
        for l in range(L):
            w_ih_t = params["w_ih0_t"] if l == 0 else params["w_ihr_t"][l - 1]
            gates = inp @ w_ih_t + h[l] @ params["w_hh_t"][l] + params["b"][l]
            i_g = jax.nn.sigmoid(gates[:, 0 * H:1 * H])
            f_g = jax.nn.sigmoid(gates[:, 1 * H:2 * H])
            g_g = jnp.tanh(gates[:, 2 * H:3 * H])
            o_g = jax.nn.sigmoid(gates[:, 3 * H:4 * H])
            c_new = f_g * c[l] + i_g * g_g
            h_new = o_g * jnp.tanh(c_new)
            hs.append(h_new)
            cs.append(c_new)
            inp = h_new
        return (jnp.stack(hs), jnp.stack(cs)), inp

    (_, _), top = jax.lax.scan(step, (h0, c0), inputs)
    logits = top @ params["w_lin_t"] + params["b_lin"]
    return jax.nn.softmax(logits, axis=2)


# -----------------------------------------------------------------------------
# Parameter construction (deterministic, PyTorch-style uniform init)
# -----------------------------------------------------------------------------
def make_params(key, input_size, hidden_size, vocab_size, num_layers):
    H = hidden_size
    k = 1.0 / jnp.sqrt(jnp.float32(H))
    keys = jax.random.split(key, 8)
    u = lambda kk, shape: jax.random.uniform(kk, shape, jnp.float32, -k, k)

    # LSTM weights, stored pre-transposed for in-kernel (x @ W^T) layout.
    w_ih0_t = u(keys[0], (input_size, 4 * H))
    w_ihr_t = u(keys[1], (max(num_layers - 1, 1), H, 4 * H))
    w_hh_t = u(keys[2], (num_layers, H, 4 * H))
    b_ih = u(keys[3], (num_layers, 4 * H))
    b_hh = u(keys[4], (num_layers, 4 * H))
    b = (b_ih + b_hh)[:, None, :]                      # (L, 1, 4H)

    # Linear(hidden_size, vocab_size)
    kl = 1.0 / jnp.sqrt(jnp.float32(H))
    w_lin_t = jax.random.uniform(keys[5], (H, vocab_size), jnp.float32, -kl, kl)
    b_lin = jax.random.uniform(keys[6], (1, vocab_size), jnp.float32, -kl, kl)

    return dict(w_ih0_t=w_ih0_t, w_ihr_t=w_ihr_t, w_hh_t=w_hh_t, b=b,
                w_lin_t=w_lin_t, b_lin=b_lin)


# -----------------------------------------------------------------------------
if __name__ == "__main__":
    INPUT_SIZE = 16
    HIDDEN_SIZE = 32
    VOCAB_SIZE = 24
    NUM_LAYERS = 2
    SEQ_LEN = 8
    BATCH = 4

    root = jax.random.PRNGKey(0)
    k_par, k_x, k_h, k_c = jax.random.split(root, 4)

    params = make_params(k_par, INPUT_SIZE, HIDDEN_SIZE, VOCAB_SIZE, NUM_LAYERS)
    x = jax.random.normal(k_x, (SEQ_LEN, BATCH, INPUT_SIZE), jnp.float32)
    h0 = jax.random.normal(k_h, (NUM_LAYERS, BATCH, HIDDEN_SIZE), jnp.float32)
    c0 = jax.random.normal(k_c, (NUM_LAYERS, BATCH, HIDDEN_SIZE), jnp.float32)

    out = lstm_speller_pallas(x, h0, c0, params)
    out = jax.block_until_ready(out)

    ref = jax.block_until_ready(lstm_speller_ref(x, h0, c0, params))

    assert out.shape == (SEQ_LEN, BATCH, VOCAB_SIZE), out.shape
    # Tolerance loosened slightly because the softmax denominator uses the
    # approximate EUP reciprocal (pl.reciprocal(approx=True), ~1e-4 relative).
    err = float(jnp.max(jnp.abs(out - ref)))
    assert err < 5e-3, f"max abs err {err}"
    # rows of softmax sum to ~1
    assert float(jnp.max(jnp.abs(out.sum(axis=2) - 1.0))) < 5e-3

    print("KERNEL_OK")
</pallas_src>

<mosaic_0001>
module attributes {stable_mosaic.version = 11 : i64} {
  func.func @_lstm_speller_kernel(%arg0: i32, %arg1: memref<8x8x128xf32, #tpu.memory_space<vmem>>, %arg2: memref<2x8x128xf32, #tpu.memory_space<vmem>>, %arg3: memref<2x8x128xf32, #tpu.memory_space<vmem>>, %arg4: memref<256x512xf32, #tpu.memory_space<vmem>>, %arg5: memref<1x256x512xf32, #tpu.memory_space<vmem>>, %arg6: memref<2x1x512xf32, #tpu.memory_space<vmem>>, %arg7: memref<128x128xf32, #tpu.memory_space<vmem>>, %arg8: memref<1x128xf32, #tpu.memory_space<vmem>>, %arg9: memref<8x8x128xf32, #tpu.memory_space<vmem>>) attributes {dimension_semantics = [#tpu.dimension_semantics<parallel>], iteration_bounds = array<i64: 1>, scalar_prefetch = 0 : i64, scratch_operands = 0 : i64, tpu.core_type = #tpu.core_type<tc>, window_params = [{transform_indices = @transform_0, window_bounds = array<i64: 8, 8, 128>}, {transform_indices = @transform_1, window_bounds = array<i64: 2, 8, 128>}, {transform_indices = @transform_2, window_bounds = array<i64: 2, 8, 128>}, {pipeline_mode = #tpu.pipeline_mode<synchronous>, transform_indices = @transform_3, window_bounds = array<i64: 256, 512>}, {pipeline_mode = #tpu.pipeline_mode<synchronous>, transform_indices = @transform_4, window_bounds = array<i64: 1, 256, 512>}, {pipeline_mode = #tpu.pipeline_mode<synchronous>, transform_indices = @transform_5, window_bounds = array<i64: 2, 1, 512>}, {pipeline_mode = #tpu.pipeline_mode<synchronous>, transform_indices = @transform_6, window_bounds = array<i64: 128, 128>}, {pipeline_mode = #tpu.pipeline_mode<synchronous>, transform_indices = @transform_7, window_bounds = array<i64: 1, 128>}, {transform_indices = @transform_8, window_bounds = array<i64: 8, 8, 128>}]} {
    %c0 = arith.constant 0 : index
    %c0_0 = arith.constant 0 : index
    %c0_1 = arith.constant 0 : index
    %0 = vector.load %arg2[%c0, %c0_0, %c0_1] : memref<2x8x128xf32, #tpu.memory_space<vmem>>, vector<1x8x128xf32>
    %1 = vector.shape_cast %0 : vector<1x8x128xf32> to vector<8x128xf32>
    %c1 = arith.constant 1 : index
    %c0_2 = arith.constant 0 : index
    %c0_3 = arith.constant 0 : index
    %2 = vector.load %arg2[%c1, %c0_2, %c0_3] : memref<2x8x128xf32, #tpu.memory_space<vmem>>, vector<1x8x128xf32>
    %3 = vector.shape_cast %2 : vector<1x8x128xf32> to vector<8x128xf32>
    %c0_4 = arith.constant 0 : index
    %c0_5 = arith.constant 0 : index
    %c0_6 = arith.constant 0 : index
    %4 = vector.load %arg3[%c0_4, %c0_5, %c0_6] : memref<2x8x128xf32, #tpu.memory_space<vmem>>, vector<1x8x128xf32>
    %5 = vector.shape_cast %4 : vector<1x8x128xf32> to vector<8x128xf32>
    %c1_7 = arith.constant 1 : index
    %c0_8 = arith.constant 0 : index
    %c0_9 = arith.constant 0 : index
    %6 = vector.load %arg3[%c1_7, %c0_8, %c0_9] : memref<2x8x128xf32, #tpu.memory_space<vmem>>, vector<1x8x128xf32>
    %7 = vector.shape_cast %6 : vector<1x8x128xf32> to vector<8x128xf32>
    %c0_i32 = arith.constant 0 : i32
    %8 = arith.index_cast %c0_i32 : i32 to index
    %c0_10 = arith.constant 0 : index
    %c0_11 = arith.constant 0 : index
    %9 = vector.load %arg1[%8, %c0_10, %c0_11] : memref<8x8x128xf32, #tpu.memory_space<vmem>>, vector<1x8x128xf32>
    %10 = vector.shape_cast %9 : vector<1x8x128xf32> to vector<8x128xf32>
    %c0_12 = arith.constant 0 : index
    %c0_13 = arith.constant 0 : index
    %11 = vector.load %arg4[%c0_12, %c0_13] : memref<256x512xf32, #tpu.memory_space<vmem>>, vector<256x512xf32>
    %12 = tpu.concatenate %10, %1 in 1 : vector<8x128xf32>, vector<8x128xf32> -> vector<8x256xf32>
    %cst = arith.constant dense<0.000000e+00> : vector<8x512xf32>
    %13 = tpu.matmul %12, %11, %cst {dimension_numbers = #tpu.dot_dimension_numbers<[1], [0], [0], [1], [0, 0, 1, 1], [], []>} : vector<8x256xf32>, vector<256x512xf32>, vector<8x512xf32> -> vector<8x512xf32>
    %c0_14 = arith.constant 0 : index
    %c0_15 = arith.constant 0 : index
    %c0_16 = arith.constant 0 : index
    %14 = vector.load %arg6[%c0_14, %c0_15, %c0_16] : memref<2x1x512xf32, #tpu.memory_space<vmem>>, vector<1x1x512xf32>
    %15 = vector.shape_cast %14 : vector<1x1x512xf32> to vector<1x512xf32>
    %16 = vector.broadcast %15 : vector<1x512xf32> to vector<8x512xf32>
    %17 = arith.addf %13, %16 : vector<8x512xf32>
    %18 = vector.extract_strided_slice %17 {offsets = [0, 0], sizes = [8, 128], strides = [1, 1]} : vector<8x512xf32> to vector<8x128xf32>
    %19 = arith.negf %18 : vector<8x128xf32>
    %20 = math.exp %19 : vector<8x128xf32>
    %cst_17 = arith.constant 1.000000e+00 : f32
    %21 = vector.broadcast %cst_17 : f32 to vector<8x128xf32>
    %22 = arith.addf %21, %20 : vector<8x128xf32>
    %23 = arith.divf %21, %22 : vector<8x128xf32>
    %24 = vector.extract_strided_slice %17 {offsets = [0, 128], sizes = [8, 128], strides = [1, 1]} : vector<8x512xf32> to vector<8x128xf32>
    %25 = arith.negf %24 : vector<8x128xf32>
    %26 = math.exp %25 : vector<8x128xf32>
    %cst_18 = arith.constant 1.000000e+00 : f32
    %27 = vector.broadcast %cst_18 : f32 to vector<8x128xf32>
    %28 = arith.addf %27, %26 : vector<8x128xf32>
    %29 = arith.divf %27, %28 : vector<8x128xf32>
    %30 = vector.extract_strided_slice %17 {offsets = [0, 256], sizes = [8, 128], strides = [1, 1]} : vector<8x512xf32> to vector<8x128xf32>
    %31 = math.tanh %30 : vector<8x128xf32>
    %32 = vector.extract_strided_slice %17 {offsets = [0, 384], sizes = [8, 128], strides = [1, 1]} : vector<8x512xf32> to vector<8x128xf32>
    %33 = arith.negf %32 : vector<8x128xf32>
    %34 = math.exp %33 : vector<8x128xf32>
    %cst_19 = arith.constant 1.000000e+00 : f32
    %35 = vector.broadcast %cst_19 : f32 to vector<8x128xf32>
    %36 = arith.addf %35, %34 : vector<8x128xf32>
    %37 = arith.divf %35, %36 : vector<8x128xf32>
    %38 = arith.mulf %29, %5 : vector<8x128xf32>
    %39 = arith.mulf %23, %31 : vector<8x128xf32>
    %40 = arith.addf %38, %39 : vector<8x128xf32>
    %41 = math.tanh %40 : vector<8x128xf32>
    %42 = arith.mulf %37, %41 : vector<8x128xf32>
    %c0_20 = arith.constant 0 : index
    %c0_21 = arith.constant 0 : index
    %c0_22 = arith.constant 0 : index
    %43 = vector.load %arg5[%c0_20, %c0_21, %c0_22] : memref<1x256x512xf32, #tpu.memory_space<vmem>>, vector<1x256x512xf32>
    %44 = vector.shape_cast %43 : vector<1x256x512xf32> to vector<256x512xf32>
    %45 = tpu.concatenate %42, %3 in 1 : vector<8x128xf32>, vector<8x128xf32> -> vector<8x256xf32>
    %cst_23 = arith.constant dense<0.000000e+00> : vector<8x512xf32>
    %46 = tpu.matmul %45, %44, %cst_23 {dimension_numbers = #tpu.dot_dimension_numbers<[1], [0], [0], [1], [0, 0, 1, 1], [], []>} : vector<8x256xf32>, vector<256x512xf32>, vector<8x512xf32> -> vector<8x512xf32>
    %c1_24 = arith.constant 1 : index
    %c0_25 = arith.constant 0 : index
    %c0_26 = arith.constant 0 : index
    %47 = vector.load %arg6[%c1_24, %c0_25, %c0_26] : memref<2x1x512xf32, #tpu.memory_space<vmem>>, vector<1x1x512xf32>
    %48 = vector.shape_cast %47 : vector<1x1x512xf32> to vector<1x512xf32>
    %49 = vector.broadcast %48 : vector<1x512xf32> to vector<8x512xf32>
    %50 = arith.addf %46, %49 : vector<8x512xf32>
    %51 = vector.extract_strided_slice %50 {offsets = [0, 0], sizes = [8, 128], strides = [1, 1]} : vector<8x512xf32> to vector<8x128xf32>
    %52 = arith.negf %51 : vector<8x128xf32>
    %53 = math.exp %52 : vector<8x128xf32>
    %cst_27 = arith.constant 1.000000e+00 : f32
    %54 = vector.broadcast %cst_27 : f32 to vector<8x128xf32>
    %55 = arith.addf %54, %53 : vector<8x128xf32>
    %56 = arith.divf %54, %55 : vector<8x128xf32>
    %57 = vector.extract_strided_slice %50 {offsets = [0, 128], sizes = [8, 128], strides = [1, 1]} : vector<8x512xf32> to vector<8x128xf32>
    %58 = arith.negf %57 : vector<8x128xf32>
    %59 = math.exp %58 : vector<8x128xf32>
    %cst_28 = arith.constant 1.000000e+00 : f32
    %60 = vector.broadcast %cst_28 : f32 to vector<8x128xf32>
    %61 = arith.addf %60, %59 : vector<8x128xf32>
    %62 = arith.divf %60, %61 : vector<8x128xf32>
    %63 = vector.extract_strided_slice %50 {offsets = [0, 256], sizes = [8, 128], strides = [1, 1]} : vector<8x512xf32> to vector<8x128xf32>
    %64 = math.tanh %63 : vector<8x128xf32>
    %65 = vector.extract_strided_slice %50 {offsets = [0, 384], sizes = [8, 128], strides = [1, 1]} : vector<8x512xf32> to vector<8x128xf32>
    %66 = arith.negf %65 : vector<8x128xf32>
    %67 = math.exp %66 : vector<8x128xf32>
    %cst_29 = arith.constant 1.000000e+00 : f32
    %68 = vector.broadcast %cst_29 : f32 to vector<8x128xf32>
    %69 = arith.addf %68, %67 : vector<8x128xf32>
    %70 = arith.divf %68, %69 : vector<8x128xf32>
    %71 = arith.mulf %62, %7 : vector<8x128xf32>
    %72 = arith.mulf %56, %64 : vector<8x128xf32>
    %73 = arith.addf %71, %72 : vector<8x128xf32>
    %74 = math.tanh %73 : vector<8x128xf32>
    %75 = arith.mulf %70, %74 : vector<8x128xf32>
    %c0_30 = arith.constant 0 : index
    %c0_31 = arith.constant 0 : index
    %76 = vector.load %arg7[%c0_30, %c0_31] : memref<128x128xf32, #tpu.memory_space<vmem>>, vector<128x128xf32>
    %cst_32 = arith.constant dense<0.000000e+00> : vector<8x128xf32>
    %77 = tpu.matmul %75, %76, %cst_32 {dimension_numbers = #tpu.dot_dimension_numbers<[1], [0], [0], [1], [0, 0, 1, 1], [], []>} : vector<8x128xf32>, vector<128x128xf32>, vector<8x128xf32> -> vector<8x128xf32>
    %c0_33 = arith.constant 0 : index
    %c0_34 = arith.constant 0 : index
    %78 = vector.load %arg8[%c0_33, %c0_34] : memref<1x128xf32, #tpu.memory_space<vmem>>, vector<1x128xf32>
    %79 = vector.broadcast %78 : vector<1x128xf32> to vector<8x128xf32>
    %80 = arith.addf %77, %79 : vector<8x128xf32>
    %cst_35 = arith.constant dense<0xFF800000> : vector<8xf32>
    %81 = vector.multi_reduction <maximumf>, %80, %cst_35 [1] : vector<8x128xf32> to vector<8xf32>
    %82 = vector.shape_cast %81 : vector<8xf32> to vector<8x1xf32>
    %83 = vector.broadcast %82 : vector<8x1xf32> to vector<8x128xf32>
    %84 = arith.subf %80, %83 : vector<8x128xf32>
    %85 = math.exp %84 : vector<8x128xf32>
    %cst_36 = arith.constant dense<0.000000e+00> : vector<8xf32>
    %86 = vector.multi_reduction <add>, %85, %cst_36 [1] : vector<8x128xf32> to vector<8xf32>
    %87 = vector.shape_cast %86 : vector<8xf32> to vector<8x1xf32>
    %88 = tpu.reciprocal %87 {approx = true} : vector<8x1xf32> -> vector<8x1xf32>
    %89 = vector.broadcast %88 : vector<8x1xf32> to vector<8x128xf32>
    %90 = arith.mulf %85, %89 : vector<8x128xf32>
    %91 = arith.index_cast %c0_i32 : i32 to index
    %c0_37 = arith.constant 0 : index
    %c0_38 = arith.constant 0 : index
    %92 = vector.load %arg9[%91, %c0_37, %c0_38] : memref<8x8x128xf32, #tpu.memory_space<vmem>>, vector<1x8x128xf32>
    %93 = vector.shape_cast %92 : vector<1x8x128xf32> to vector<8x128xf32>
    %94 = vector.shape_cast %90 : vector<8x128xf32> to vector<1x8x128xf32>
    tpu.vector_store %arg9[%91, %c0_37, %c0_38], %94 {strides = array<i32>} : memref<8x8x128xf32, #tpu.memory_space<vmem>>, vector<1x8x128xf32>,
    %c1_i32 = arith.constant 1 : i32
    %95 = arith.index_cast %c1_i32 : i32 to index
    %c0_39 = arith.constant 0 : index
    %c0_40 = arith.constant 0 : index
    %96 = vector.load %arg1[%95, %c0_39, %c0_40] : memref<8x8x128xf32, #tpu.memory_space<vmem>>, vector<1x8x128xf32>
    %97 = vector.shape_cast %96 : vector<1x8x128xf32> to vector<8x128xf32>
    %c0_41 = arith.constant 0 : index
    %c0_42 = arith.constant 0 : index
    %98 = vector.load %arg4[%c0_41, %c0_42] : memref<256x512xf32, #tpu.memory_space<vmem>>, vector<256x512xf32>
    %99 = tpu.concatenate %97, %42 in 1 : vector<8x128xf32>, vector<8x128xf32> -> vector<8x256xf32>
    %cst_43 = arith.constant dense<0.000000e+00> : vector<8x512xf32>
    %100 = tpu.matmul %99, %98, %cst_43 {dimension_numbers = #tpu.dot_dimension_numbers<[1], [0], [0], [1], [0, 0, 1, 1], [], []>} : vector<8x256xf32>, vector<256x512xf32>, vector<8x512xf32> -> vector<8x512xf32>
    %c0_44 = arith.constant 0 : index
    %c0_45 = arith.constant 0 : index
    %c0_46 = arith.constant 0 : index
    %101 = vector.load %arg6[%c0_44, %c0_45, %c0_46] : memref<2x1x512xf32, #tpu.memory_space<vmem>>, vector<1x1x512xf32>
    %102 = vector.shape_cast %101 : vector<1x1x512xf32> to vector<1x512xf32>
    %103 = vector.broadcast %102 : vector<1x512xf32> to vector<8x512xf32>
    %104 = arith.addf %100, %103 : vector<8x512xf32>
    %105 = vector.extract_strided_slice %104 {offsets = [0, 0], sizes = [8, 128], strides = [1, 1]} : vector<8x512xf32> to vector<8x128xf32>
    %106 = arith.negf %105 : vector<8x128xf32>
    %107 = math.exp %106 : vector<8x128xf32>
    %cst_47 = arith.constant 1.000000e+00 : f32
    %108 = vector.broadcast %cst_47 : f32 to vector<8x128xf32>
    %109 = arith.addf %108, %107 : vector<8x128xf32>
    %110 = arith.divf %108, %109 : vector<8x128xf32>
    %111 = vector.extract_strided_slice %104 {offsets = [0, 128], sizes = [8, 128], strides = [1, 1]} : vector<8x512xf32> to vector<8x128xf32>
    %112 = arith.negf %111 : vector<8x128xf32>
    %113 = math.exp %112 : vector<8x128xf32>
    %cst_48 = arith.constant 1.000000e+00 : f32
    %114 = vector.broadcast %cst_48 : f32 to vector<8x128xf32>
    %115 = arith.addf %114, %113 : vector<8x128xf32>
    %116 = arith.divf %114, %115 : vector<8x128xf32>
    %117 = vector.extract_strided_slice %104 {offsets = [0, 256], sizes = [8, 128], strides = [1, 1]} : vector<8x512xf32> to vector<8x128xf32>
    %118 = math.tanh %117 : vector<8x128xf32>
    %119 = vector.extract_strided_slice %104 {offsets = [0, 384], sizes = [8, 128], strides = [1, 1]} : vector<8x512xf32> to vector<8x128xf32>
    %120 = arith.negf %119 : vector<8x128xf32>
    %121 = math.exp %120 : vector<8x128xf32>
    %cst_49 = arith.constant 1.000000e+00 : f32
    %122 = vector.broadcast %cst_49 : f32 to vector<8x128xf32>
    %123 = arith.addf %122, %121 : vector<8x128xf32>
    %124 = arith.divf %122, %123 : vector<8x128xf32>
    %125 = arith.mulf %116, %40 : vector<8x128xf32>
    %126 = arith.mulf %110, %118 : vector<8x128xf32>
    %127 = arith.addf %125, %126 : vector<8x128xf32>
    %128 = math.tanh %127 : vector<8x128xf32>
    %129 = arith.mulf %124, %128 : vector<8x128xf32>
    %c0_50 = arith.constant 0 : index
    %c0_51 = arith.constant 0 : index
    %c0_52 = arith.constant 0 : index
    %130 = vector.load %arg5[%c0_50, %c0_51, %c0_52] : memref<1x256x512xf32, #tpu.memory_space<vmem>>, vector<1x256x512xf32>
    %131 = vector.shape_cast %130 : vector<1x256x512xf32> to vector<256x512xf32>
    %132 = tpu.concatenate %129, %75 in 1 : vector<8x128xf32>, vector<8x128xf32> -> vector<8x256xf32>
    %cst_53 = arith.constant dense<0.000000e+00> : vector<8x512xf32>
    %133 = tpu.matmul %132, %131, %cst_53 {dimension_numbers = #tpu.dot_dimension_numbers<[1], [0], [0], [1], [0, 0, 1, 1], [], []>} : vector<8x256xf32>, vector<256x512xf32>, vector<8x512xf32> -> vector<8x512xf32>
    %c1_54 = arith.constant 1 : index
    %c0_55 = arith.constant 0 : index
    %c0_56 = arith.constant 0 : index
    %134 = vector.load %arg6[%c1_54, %c0_55, %c0_56] : memref<2x1x512xf32, #tpu.memory_space<vmem>>, vector<1x1x512xf32>
    %135 = vector.shape_cast %134 : vector<1x1x512xf32> to vector<1x512xf32>
    %136 = vector.broadcast %135 : vector<1x512xf32> to vector<8x512xf32>
    %137 = arith.addf %133, %136 : vector<8x512xf32>
    %138 = vector.extract_strided_slice %137 {offsets = [0, 0], sizes = [8, 128], strides = [1, 1]} : vector<8x512xf32> to vector<8x128xf32>
    %139 = arith.negf %138 : vector<8x128xf32>
    %140 = math.exp %139 : vector<8x128xf32>
    %cst_57 = arith.constant 1.000000e+00 : f32
    %141 = vector.broadcast %cst_57 : f32 to vector<8x128xf32>
    %142 = arith.addf %141, %140 : vector<8x128xf32>
    %143 = arith.divf %141, %142 : vector<8x128xf32>
    %144 = vector.extract_strided_slice %137 {offsets = [0, 128], sizes = [8, 128], strides = [1, 1]} : vector<8x512xf32> to vector<8x128xf32>
    %145 = arith.negf %144 : vector<8x128xf32>
    %146 = math.exp %145 : vector<8x128xf32>
    %cst_58 = arith.constant 1.000000e+00 : f32
    %147 = vector.broadcast %cst_58 : f32 to vector<8x128xf32>
    %148 = arith.addf %147, %146 : vector<8x128xf32>
    %149 = arith.divf %147, %148 : vector<8x128xf32>
    %150 = vector.extract_strided_slice %137 {offsets = [0, 256], sizes = [8, 128], strides = [1, 1]} : vector<8x512xf32> to vector<8x128xf32>
    %151 = math.tanh %150 : vector<8x128xf32>
    %152 = vector.extract_strided_slice %137 {offsets = [0, 384], sizes = [8, 128], strides = [1, 1]} : vector<8x512xf32> to vector<8x128xf32>
    %153 = arith.negf %152 : vector<8x128xf32>
    %154 = math.exp %153 : vector<8x128xf32>
    %cst_59 = arith.constant 1.000000e+00 : f32
    %155 = vector.broadcast %cst_59 : f32 to vector<8x128xf32>
    %156 = arith.addf %155, %154 : vector<8x128xf32>
    %157 = arith.divf %155, %156 : vector<8x128xf32>
    %158 = arith.mulf %149, %73 : vector<8x128xf32>
    %159 = arith.mulf %143, %151 : vector<8x128xf32>
    %160 = arith.addf %158, %159 : vector<8x128xf32>
    %161 = math.tanh %160 : vector<8x128xf32>
    %162 = arith.mulf %157, %161 : vector<8x128xf32>
    %c0_60 = arith.constant 0 : index
    %c0_61 = arith.constant 0 : index
    %163 = vector.load %arg7[%c0_60, %c0_61] : memref<128x128xf32, #tpu.memory_space<vmem>>, vector<128x128xf32>
    %cst_62 = arith.constant dense<0.000000e+00> : vector<8x128xf32>
    %164 = tpu.matmul %162, %163, %cst_62 {dimension_numbers = #tpu.dot_dimension_numbers<[1], [0], [0], [1], [0, 0, 1, 1], [], []>} : vector<8x128xf32>, vector<128x128xf32>, vector<8x128xf32> -> vector<8x128xf32>
    %c0_63 = arith.constant 0 : index
    %c0_64 = arith.constant 0 : index
    %165 = vector.load %arg8[%c0_63, %c0_64] : memref<1x128xf32, #tpu.memory_space<vmem>>, vector<1x128xf32>
    %166 = vector.broadcast %165 : vector<1x128xf32> to vector<8x128xf32>
    %167 = arith.addf %164, %166 : vector<8x128xf32>
    %cst_65 = arith.constant dense<0xFF800000> : vector<8xf32>
    %168 = vector.multi_reduction <maximumf>, %167, %cst_65 [1] : vector<8x128xf32> to vector<8xf32>
    %169 = vector.shape_cast %168 : vector<8xf32> to vector<8x1xf32>
    %170 = vector.broadcast %169 : vector<8x1xf32> to vector<8x128xf32>
    %171 = arith.subf %167, %170 : vector<8x128xf32>
    %172 = math.exp %171 : vector<8x128xf32>
    %cst_66 = arith.constant dense<0.000000e+00> : vector<8xf32>
    %173 = vector.multi_reduction <add>, %172, %cst_66 [1] : vector<8x128xf32> to vector<8xf32>
    %174 = vector.shape_cast %173 : vector<8xf32> to vector<8x1xf32>
    %175 = tpu.reciprocal %174 {approx = true} : vector<8x1xf32> -> vector<8x1xf32>
    %176 = vector.broadcast %175 : vector<8x1xf32> to vector<8x128xf32>
    %177 = arith.mulf %172, %176 : vector<8x128xf32>
    %178 = arith.index_cast %c1_i32 : i32 to index
    %c0_67 = arith.constant 0 : index
    %c0_68 = arith.constant 0 : index
    %179 = vector.load %arg9[%178, %c0_67, %c0_68] : memref<8x8x128xf32, #tpu.memory_space<vmem>>, vector<1x8x128xf32>
    %180 = vector.shape_cast %179 : vector<1x8x128xf32> to vector<8x128xf32>
    %181 = vector.shape_cast %177 : vector<8x128xf32> to vector<1x8x128xf32>
    tpu.vector_store %arg9[%178, %c0_67, %c0_68], %181 {strides = array<i32>} : memref<8x8x128xf32, #tpu.memory_space<vmem>>, vector<1x8x128xf32>,
    %c2_i32 = arith.constant 2 : i32
    %182 = arith.index_cast %c2_i32 : i32 to index
    %c0_69 = arith.constant 0 : index
    %c0_70 = arith.constant 0 : index
    %183 = vector.load %arg1[%182, %c0_69, %c0_70] : memref<8x8x128xf32, #tpu.memory_space<vmem>>, vector<1x8x128xf32>
    %184 = vector.shape_cast %183 : vector<1x8x128xf32> to vector<8x128xf32>
    %c0_71 = arith.constant 0 : index
    %c0_72 = arith.constant 0 : index
    %185 = vector.load %arg4[%c0_71, %c0_72] : memref<256x512xf32, #tpu.memory_space<vmem>>, vector<256x512xf32>
    %186 = tpu.concatenate %184, %129 in 1 : vector<8x128xf32>, vector<8x128xf32> -> vector<8x256xf32>
    %cst_73 = arith.constant dense<0.000000e+00> : vector<8x512xf32>
    %187 = tpu.matmul %186, %185, %cst_73 {dimension_numbers = #tpu.dot_dimension_numbers<[1], [0], [0], [1], [0, 0, 1, 1], [], []>} : vector<8x256xf32>, vector<256x512xf32>, vector<8x512xf32> -> vector<8x512xf32>
    %c0_74 = arith.constant 0 : index
    %c0_75 = arith.constant 0 : index
    %c0_76 = arith.constant 0 : index
    %188 = vector.load %arg6[%c0_74, %c0_75, %c0_76] : memref<2x1x512xf32, #tpu.memory_space<vmem>>, vector<1x1x512xf32>
    %189 = vector.shape_cast %188 : vector<1x1x512xf32> to vector<1x512xf32>
    %190 = vector.broadcast %189 : vector<1x512xf32> to vector<8x512xf32>
    %191 = arith.addf %187, %190 : vector<8x512xf32>
    %192 = vector.extract_strided_slice %191 {offsets = [0, 0], sizes = [8, 128], strides = [1, 1]} : vector<8x512xf32> to vector<8x128xf32>
    %193 = arith.negf %192 : vector<8x128xf32>
    %194 = math.exp %193 : vector<8x128xf32>
    %cst_77 = arith.constant 1.000000e+00 : f32
    %195 = vector.broadcast %cst_77 : f32 to vector<8x128xf32>
    %196 = arith.addf %195, %194 : vector<8x128xf32>
    %197 = arith.divf %195, %196 : vector<8x128xf32>
    %198 = vector.extract_strided_slice %191 {offsets = [0, 128], sizes = [8, 128], strides = [1, 1]} : vector<8x512xf32> to vector<8x128xf32>
    %199 = arith.negf %198 : vector<8x128xf32>
    %200 = math.exp %199 : vector<8x128xf32>
    %cst_78 = arith.constant 1.000000e+00 : f32
    %201 = vector.broadcast %cst_78 : f32 to vector<8x128xf32>
    %202 = arith.addf %201, %200 : vector<8x128xf32>
    %203 = arith.divf %201, %202 : vector<8x128xf32>
    %204 = vector.extract_strided_slice %191 {offsets = [0, 256], sizes = [8, 128], strides = [1, 1]} : vector<8x512xf32> to vector<8x128xf32>
    %205 = math.tanh %204 : vector<8x128xf32>
    %206 = vector.extract_strided_slice %191 {offsets = [0, 384], sizes = [8, 128], strides = [1, 1]} : vector<8x512xf32> to vector<8x128xf32>
    %207 = arith.negf %206 : vector<8x128xf32>
    %208 = math.exp %207 : vector<8x128xf32>
    %cst_79 = arith.constant 1.000000e+00 : f32
    %209 = vector.broadcast %cst_79 : f32 to vector<8x128xf32>
    %210 = arith.addf %209, %208 : vector<8x128xf32>
    %211 = arith.divf %209, %210 : vector<8x128xf32>
    %212 = arith.mulf %203, %127 : vector<8x128xf32>
    %213 = arith.mulf %197, %205 : vector<8x128xf32>
    %214 = arith.addf %212, %213 : vector<8x128xf32>
    %215 = math.tanh %214 : vector<8x128xf32>
    %216 = arith.mulf %211, %215 : vector<8x128xf32>
    %c0_80 = arith.constant 0 : index
    %c0_81 = arith.constant 0 : index
    %c0_82 = arith.constant 0 : index
    %217 = vector.load %arg5[%c0_80, %c0_81, %c0_82] : memref<1x256x512xf32, #tpu.memory_space<vmem>>, vector<1x256x512xf32>
    %218 = vector.shape_cast %217 : vector<1x256x512xf32> to vector<256x512xf32>
    %219 = tpu.concatenate %216, %162 in 1 : vector<8x128xf32>, vector<8x128xf32> -> vector<8x256xf32>
    %cst_83 = arith.constant dense<0.000000e+00> : vector<8x512xf32>
    %220 = tpu.matmul %219, %218, %cst_83 {dimension_numbers = #tpu.dot_dimension_numbers<[1], [0], [0], [1], [0, 0, 1, 1], [], []>} : vector<8x256xf32>, vector<256x512xf32>, vector<8x512xf32> -> vector<8x512xf32>
    %c1_84 = arith.constant 1 : index
    %c0_85 = arith.constant 0 : index
    %c0_86 = arith.constant 0 : index
    %221 = vector.load %arg6[%c1_84, %c0_85, %c0_86] : memref<2x1x512xf32, #tpu.memory_space<vmem>>, vector<1x1x512xf32>
    %222 = vector.shape_cast %221 : vector<1x1x512xf32> to vector<1x512xf32>
    %223 = vector.broadcast %222 : vector<1x512xf32> to vector<8x512xf32>
    %224 = arith.addf %220, %223 : vector<8x512xf32>
    %225 = vector.extract_strided_slice %224 {offsets = [0, 0], sizes = [8, 128], strides = [1, 1]} : vector<8x512xf32> to vector<8x128xf32>
    %226 = arith.negf %225 : vector<8x128xf32>
    %227 = math.exp %226 : vector<8x128xf32>
    %cst_87 = arith.constant 1.000000e+00 : f32
    %228 = vector.broadcast %cst_87 : f32 to vector<8x128xf32>
    %229 = arith.addf %228, %227 : vector<8x128xf32>
    %230 = arith.divf %228, %229 : vector<8x128xf32>
    %231 = vector.extract_strided_slice %224 {offsets = [0, 128], sizes = [8, 128], strides = [1, 1]} : vector<8x512xf32> to vector<8x128xf32>
    %232 = arith.negf %231 : vector<8x128xf32>
    %233 = math.exp %232 : vector<8x128xf32>
    %cst_88 = arith.constant 1.000000e+00 : f32
    %234 = vector.broadcast %cst_88 : f32 to vector<8x128xf32>
    %235 = arith.addf %234, %233 : vector<8x128xf32>
    %236 = arith.divf %234, %235 : vector<8x128xf32>
    %237 = vector.extract_strided_slice %224 {offsets = [0, 256], sizes = [8, 128], strides = [1, 1]} : vector<8x512xf32> to vector<8x128xf32>
    %238 = math.tanh %237 : vector<8x128xf32>
    %239 = vector.extract_strided_slice %224 {offsets = [0, 384], sizes = [8, 128], strides = [1, 1]} : vector<8x512xf32> to vector<8x128xf32>
    %240 = arith.negf %239 : vector<8x128xf32>
    %241 = math.exp %240 : vector<8x128xf32>
    %cst_89 = arith.constant 1.000000e+00 : f32
    %242 = vector.broadcast %cst_89 : f32 to vector<8x128xf32>
    %243 = arith.addf %242, %241 : vector<8x128xf32>
    %244 = arith.divf %242, %243 : vector<8x128xf32>
    %245 = arith.mulf %236, %160 : vector<8x128xf32>
    %246 = arith.mulf %230, %238 : vector<8x128xf32>
    %247 = arith.addf %245, %246 : vector<8x128xf32>
    %248 = math.tanh %247 : vector<8x128xf32>
    %249 = arith.mulf %244, %248 : vector<8x128xf32>
    %c0_90 = arith.constant 0 : index
    %c0_91 = arith.constant 0 : index
    %250 = vector.load %arg7[%c0_90, %c0_91] : memref<128x128xf32, #tpu.memory_space<vmem>>, vector<128x128xf32>
    %cst_92 = arith.constant dense<0.000000e+00> : vector<8x128xf32>
    %251 = tpu.matmul %249, %250, %cst_92 {dimension_numbers = #tpu.dot_dimension_numbers<[1], [0], [0], [1], [0, 0, 1, 1], [], []>} : vector<8x128xf32>, vector<128x128xf32>, vector<8x128xf32> -> vector<8x128xf32>
    %c0_93 = arith.constant 0 : index
    %c0_94 = arith.constant 0 : index
    %252 = vector.load %arg8[%c0_93, %c0_94] : memref<1x128xf32, #tpu.memory_space<vmem>>, vector<1x128xf32>
    %253 = vector.broadcast %252 : vector<1x128xf32> to vector<8x128xf32>
    %254 = arith.addf %251, %253 : vector<8x128xf32>
    %cst_95 = arith.constant dense<0xFF800000> : vector<8xf32>
    %255 = vector.multi_reduction <maximumf>, %254, %cst_95 [1] : vector<8x128xf32> to vector<8xf32>
    %256 = vector.shape_cast %255 : vector<8xf32> to vector<8x1xf32>
    %257 = vector.broadcast %256 : vector<8x1xf32> to vector<8x128xf32>
    %258 = arith.subf %254, %257 : vector<8x128xf32>
    %259 = math.exp %258 : vector<8x128xf32>
    %cst_96 = arith.constant dense<0.000000e+00> : vector<8xf32>
    %260 = vector.multi_reduction <add>, %259, %cst_96 [1] : vector<8x128xf32> to vector<8xf32>
    %261 = vector.shape_cast %260 : vector<8xf32> to vector<8x1xf32>
    %262 = tpu.reciprocal %261 {approx = true} : vector<8x1xf32> -> vector<8x1xf32>
    %263 = vector.broadcast %262 : vector<8x1xf32> to vector<8x128xf32>
    %264 = arith.mulf %259, %263 : vector<8x128xf32>
    %265 = arith.index_cast %c2_i32 : i32 to index
    %c0_97 = arith.constant 0 : index
    %c0_98 = arith.constant 0 : index
    %266 = vector.load %arg9[%265, %c0_97, %c0_98] : memref<8x8x128xf32, #tpu.memory_space<vmem>>, vector<1x8x128xf32>
    %267 = vector.shape_cast %266 : vector<1x8x128xf32> to vector<8x128xf32>
    %268 = vector.shape_cast %264 : vector<8x128xf32> to vector<1x8x128xf32>
    tpu.vector_store %arg9[%265, %c0_97, %c0_98], %268 {strides = array<i32>} : memref<8x8x128xf32, #tpu.memory_space<vmem>>, vector<1x8x128xf32>,
    %c3_i32 = arith.constant 3 : i32
    %269 = arith.index_cast %c3_i32 : i32 to index
    %c0_99 = arith.constant 0 : index
    %c0_100 = arith.constant 0 : index
    %270 = vector.load %arg1[%269, %c0_99, %c0_100] : memref<8x8x128xf32, #tpu.memory_space<vmem>>, vector<1x8x128xf32>
    %271 = vector.shape_cast %270 : vector<1x8x128xf32> to vector<8x128xf32>
    %c0_101 = arith.constant 0 : index
    %c0_102 = arith.constant 0 : index
    %272 = vector.load %arg4[%c0_101, %c0_102] : memref<256x512xf32, #tpu.memory_space<vmem>>, vector<256x512xf32>
    %273 = tpu.concatenate %271, %216 in 1 : vector<8x128xf32>, vector<8x128xf32> -> vector<8x256xf32>
    %cst_103 = arith.constant dense<0.000000e+00> : vector<8x512xf32>
    %274 = tpu.matmul %273, %272, %cst_103 {dimension_numbers = #tpu.dot_dimension_numbers<[1], [0], [0], [1], [0, 0, 1, 1], [], []>} : vector<8x256xf32>, vector<256x512xf32>, vector<8x512xf32> -> vector<8x512xf32>
    %c0_104 = arith.constant 0 : index
    %c0_105 = arith.constant 0 : index
    %c0_106 = arith.constant 0 : index
    %275 = vector.load %arg6[%c0_104, %c0_105, %c0_106] : memref<2x1x512xf32, #tpu.memory_space<vmem>>, vector<1x1x512xf32>
    %276 = vector.shape_cast %275 : vector<1x1x512xf32> to vector<1x512xf32>
    %277 = vector.broadcast %276 : vector<1x512xf32> to vector<8x512xf32>
    %278 = arith.addf %274, %277 : vector<8x512xf32>
    %279 = vector.extract_strided_slice %278 {offsets = [0, 0], sizes = [8, 128], strides = [1, 1]} : vector<8x512xf32> to vector<8x128xf32>
    %280 = arith.negf %279 : vector<8x128xf32>
    %281 = math.exp %280 : vector<8x128xf32>
    %cst_107 = arith.constant 1.000000e+00 : f32
    %282 = vector.broadcast %cst_107 : f32 to vector<8x128xf32>
    %283 = arith.addf %282, %281 : vector<8x128xf32>
    %284 = arith.divf %282, %283 : vector<8x128xf32>
    %285 = vector.extract_strided_slice %278 {offsets = [0, 128], sizes = [8, 128], strides = [1, 1]} : vector<8x512xf32> to vector<8x128xf32>
    %286 = arith.negf %285 : vector<8x128xf32>
    %287 = math.exp %286 : vector<8x128xf32>
    %cst_108 = arith.constant 1.000000e+00 : f32
    %288 = vector.broadcast %cst_108 : f32 to vector<8x128xf32>
    %289 = arith.addf %288, %287 : vector<8x128xf32>
    %290 = arith.divf %288, %289 : vector<8x128xf32>
    %291 = vector.extract_strided_slice %278 {offsets = [0, 256], sizes = [8, 128], strides = [1, 1]} : vector<8x512xf32> to vector<8x128xf32>
    %292 = math.tanh %291 : vector<8x128xf32>
    %293 = vector.extract_strided_slice %278 {offsets = [0, 384], sizes = [8, 128], strides = [1, 1]} : vector<8x512xf32> to vector<8x128xf32>
    %294 = arith.negf %293 : vector<8x128xf32>
    %295 = math.exp %294 : vector<8x128xf32>
    %cst_109 = arith.constant 1.000000e+00 : f32
    %296 = vector.broadcast %cst_109 : f32 to vector<8x128xf32>
    %297 = arith.addf %296, %295 : vector<8x128xf32>
    %298 = arith.divf %296, %297 : vector<8x128xf32>
    %299 = arith.mulf %290, %214 : vector<8x128xf32>
    %300 = arith.mulf %284, %292 : vector<8x128xf32>
    %301 = arith.addf %299, %300 : vector<8x128xf32>
    %302 = math.tanh %301 : vector<8x128xf32>
    %303 = arith.mulf %298, %302 : vector<8x128xf32>
    %c0_110 = arith.constant 0 : index
    %c0_111 = arith.constant 0 : index
    %c0_112 = arith.constant 0 : index
    %304 = vector.load %arg5[%c0_110, %c0_111, %c0_112] : memref<1x256x512xf32, #tpu.memory_space<vmem>>, vector<1x256x512xf32>
    %305 = vector.shape_cast %304 : vector<1x256x512xf32> to vector<256x512xf32>
    %306 = tpu.concatenate %303, %249 in 1 : vector<8x128xf32>, vector<8x128xf32> -> vector<8x256xf32>
    %cst_113 = arith.constant dense<0.000000e+00> : vector<8x512xf32>
    %307 = tpu.matmul %306, %305, %cst_113 {dimension_numbers = #tpu.dot_dimension_numbers<[1], [0], [0], [1], [0, 0, 1, 1], [], []>} : vector<8x256xf32>, vector<256x512xf32>, vector<8x512xf32> -> vector<8x512xf32>
    %c1_114 = arith.constant 1 : index
    %c0_115 = arith.constant 0 : index
    %c0_116 = arith.constant 0 : index
    %308 = vector.load %arg6[%c1_114, %c0_115, %c0_116] : memref<2x1x512xf32, #tpu.memory_space<vmem>>, vector<1x1x512xf32>
    %309 = vector.shape_cast %308 : vector<1x1x512xf32> to vector<1x512xf32>
    %310 = vector.broadcast %309 : vector<1x512xf32> to vector<8x512xf32>
    %311 = arith.addf %307, %310 : vector<8x512xf32>
    %312 = vector.extract_strided_slice %311 {offsets = [0, 0], sizes = [8, 128], strides = [1, 1]} : vector<8x512xf32> to vector<8x128xf32>
    %313 = arith.negf %312 : vector<8x128xf32>
    %314 = math.exp %313 : vector<8x128xf32>
    %cst_117 = arith.constant 1.000000e+00 : f32
    %315 = vector.broadcast %cst_117 : f32 to vector<8x128xf32>
    %316 = arith.addf %315, %314 : vector<8x128xf32>
    %317 = arith.divf %315, %316 : vector<8x128xf32>
    %318 = vector.extract_strided_slice %311 {offsets = [0, 128], sizes = [8, 128], strides = [1, 1]} : vector<8x512xf32> to vector<8x128xf32>
    %319 = arith.negf %318 : vector<8x128xf32>
    %320 = math.exp %319 : vector<8x128xf32>
    %cst_118 = arith.constant 1.000000e+00 : f32
    %321 = vector.broadcast %cst_118 : f32 to vector<8x128xf32>
    %322 = arith.addf %321, %320 : vector<8x128xf32>
    %323 = arith.divf %321, %322 : vector<8x128xf32>
    %324 = vector.extract_strided_slice %311 {offsets = [0, 256], sizes = [8, 128], strides = [1, 1]} : vector<8x512xf32> to vector<8x128xf32>
    %325 = math.tanh %324 : vector<8x128xf32>
    %326 = vector.extract_strided_slice %311 {offsets = [0, 384], sizes = [8, 128], strides = [1, 1]} : vector<8x512xf32> to vector<8x128xf32>
    %327 = arith.negf %326 : vector<8x128xf32>
    %328 = math.exp %327 : vector<8x128xf32>
    %cst_119 = arith.constant 1.000000e+00 : f32
    %329 = vector.broadcast %cst_119 : f32 to vector<8x128xf32>
    %330 = arith.addf %329, %328 : vector<8x128xf32>
    %331 = arith.divf %329, %330 : vector<8x128xf32>
    %332 = arith.mulf %323, %247 : vector<8x128xf32>
    %333 = arith.mulf %317, %325 : vector<8x128xf32>
    %334 = arith.addf %332, %333 : vector<8x128xf32>
    %335 = math.tanh %334 : vector<8x128xf32>
    %336 = arith.mulf %331, %335 : vector<8x128xf32>
    %c0_120 = arith.constant 0 : index
    %c0_121 = arith.constant 0 : index
    %337 = vector.load %arg7[%c0_120, %c0_121] : memref<128x128xf32, #tpu.memory_space<vmem>>, vector<128x128xf32>
    %cst_122 = arith.constant dense<0.000000e+00> : vector<8x128xf32>
    %338 = tpu.matmul %336, %337, %cst_122 {dimension_numbers = #tpu.dot_dimension_numbers<[1], [0], [0], [1], [0, 0, 1, 1], [], []>} : vector<8x128xf32>, vector<128x128xf32>, vector<8x128xf32> -> vector<8x128xf32>
    %c0_123 = arith.constant 0 : index
    %c0_124 = arith.constant 0 : index
    %339 = vector.load %arg8[%c0_123, %c0_124] : memref<1x128xf32, #tpu.memory_space<vmem>>, vector<1x128xf32>
    %340 = vector.broadcast %339 : vector<1x128xf32> to vector<8x128xf32>
    %341 = arith.addf %338, %340 : vector<8x128xf32>
    %cst_125 = arith.constant dense<0xFF800000> : vector<8xf32>
    %342 = vector.multi_reduction <maximumf>, %341, %cst_125 [1] : vector<8x128xf32> to vector<8xf32>
    %343 = vector.shape_cast %342 : vector<8xf32> to vector<8x1xf32>
    %344 = vector.broadcast %343 : vector<8x1xf32> to vector<8x128xf32>
    %345 = arith.subf %341, %344 : vector<8x128xf32>
    %346 = math.exp %345 : vector<8x128xf32>
    %cst_126 = arith.constant dense<0.000000e+00> : vector<8xf32>
    %347 = vector.multi_reduction <add>, %346, %cst_126 [1] : vector<8x128xf32> to vector<8xf32>
    %348 = vector.shape_cast %347 : vector<8xf32> to vector<8x1xf32>
    %349 = tpu.reciprocal %348 {approx = true} : vector<8x1xf32> -> vector<8x1xf32>
    %350 = vector.broadcast %349 : vector<8x1xf32> to vector<8x128xf32>
    %351 = arith.mulf %346, %350 : vector<8x128xf32>
    %352 = arith.index_cast %c3_i32 : i32 to index
    %c0_127 = arith.constant 0 : index
    %c0_128 = arith.constant 0 : index
    %353 = vector.load %arg9[%352, %c0_127, %c0_128] : memref<8x8x128xf32, #tpu.memory_space<vmem>>, vector<1x8x128xf32>
    %354 = vector.shape_cast %353 : vector<1x8x128xf32> to vector<8x128xf32>
    %355 = vector.shape_cast %351 : vector<8x128xf32> to vector<1x8x128xf32>
    tpu.vector_store %arg9[%352, %c0_127, %c0_128], %355 {strides = array<i32>} : memref<8x8x128xf32, #tpu.memory_space<vmem>>, vector<1x8x128xf32>,
    %c4_i32 = arith.constant 4 : i32
    %356 = arith.index_cast %c4_i32 : i32 to index
    %c0_129 = arith.constant 0 : index
    %c0_130 = arith.constant 0 : index
    %357 = vector.load %arg1[%356, %c0_129, %c0_130] : memref<8x8x128xf32, #tpu.memory_space<vmem>>, vector<1x8x128xf32>
    %358 = vector.shape_cast %357 : vector<1x8x128xf32> to vector<8x128xf32>
    %c0_131 = arith.constant 0 : index
    %c0_132 = arith.constant 0 : index
    %359 = vector.load %arg4[%c0_131, %c0_132] : memref<256x512xf32, #tpu.memory_space<vmem>>, vector<256x512xf32>
    %360 = tpu.concatenate %358, %303 in 1 : vector<8x128xf32>, vector<8x128xf32> -> vector<8x256xf32>
    %cst_133 = arith.constant dense<0.000000e+00> : vector<8x512xf32>
    %361 = tpu.matmul %360, %359, %cst_133 {dimension_numbers = #tpu.dot_dimension_numbers<[1], [0], [0], [1], [0, 0, 1, 1], [], []>} : vector<8x256xf32>, vector<256x512xf32>, vector<8x512xf32> -> vector<8x512xf32>
    %c0_134 = arith.constant 0 : index
    %c0_135 = arith.constant 0 : index
    %c0_136 = arith.constant 0 : index
    %362 = vector.load %arg6[%c0_134, %c0_135, %c0_136] : memref<2x1x512xf32, #tpu.memory_space<vmem>>, vector<1x1x512xf32>
    %363 = vector.shape_cast %362 : vector<1x1x512xf32> to vector<1x512xf32>
    %364 = vector.broadcast %363 : vector<1x512xf32> to vector<8x512xf32>
    %365 = arith.addf %361, %364 : vector<8x512xf32>
    %366 = vector.extract_strided_slice %365 {offsets = [0, 0], sizes = [8, 128], strides = [1, 1]} : vector<8x512xf32> to vector<8x128xf32>
    %367 = arith.negf %366 : vector<8x128xf32>
    %368 = math.exp %367 : vector<8x128xf32>
    %cst_137 = arith.constant 1.000000e+00 : f32
    %369 = vector.broadcast %cst_137 : f32 to vector<8x128xf32>
    %370 = arith.addf %369, %368 : vector<8x128xf32>
    %371 = arith.divf %369, %370 : vector<8x128xf32>
    %372 = vector.extract_strided_slice %365 {offsets = [0, 128], sizes = [8, 128], strides = [1, 1]} : vector<8x512xf32> to vector<8x128xf32>
    %373 = arith.negf %372 : vector<8x128xf32>
    %374 = math.exp %373 : vector<8x128xf32>
    %cst_138 = arith.constant 1.000000e+00 : f32
    %375 = vector.broadcast %cst_138 : f32 to vector<8x128xf32>
    %376 = arith.addf %375, %374 : vector<8x128xf32>
    %377 = arith.divf %375, %376 : vector<8x128xf32>
    %378 = vector.extract_strided_slice %365 {offsets = [0, 256], sizes = [8, 128], strides = [1, 1]} : vector<8x512xf32> to vector<8x128xf32>
    %379 = math.tanh %378 : vector<8x128xf32>
    %380 = vector.extract_strided_slice %365 {offsets = [0, 384], sizes = [8, 128], strides = [1, 1]} : vector<8x512xf32> to vector<8x128xf32>
    %381 = arith.negf %380 : vector<8x128xf32>
    %382 = math.exp %381 : vector<8x128xf32>
    %cst_139 = arith.constant 1.000000e+00 : f32
    %383 = vector.broadcast %cst_139 : f32 to vector<8x128xf32>
    %384 = arith.addf %383, %382 : vector<8x128xf32>
    %385 = arith.divf %383, %384 : vector<8x128xf32>
    %386 = arith.mulf %377, %301 : vector<8x128xf32>
    %387 = arith.mulf %371, %379 : vector<8x128xf32>
    %388 = arith.addf %386, %387 : vector<8x128xf32>
    %389 = math.tanh %388 : vector<8x128xf32>
    %390 = arith.mulf %385, %389 : vector<8x128xf32>
    %c0_140 = arith.constant 0 : index
    %c0_141 = arith.constant 0 : index
    %c0_142 = arith.constant 0 : index
    %391 = vector.load %arg5[%c0_140, %c0_141, %c0_142] : memref<1x256x512xf32, #tpu.memory_space<vmem>>, vector<1x256x512xf32>
    %392 = vector.shape_cast %391 : vector<1x256x512xf32> to vector<256x512xf32>
    %393 = tpu.concatenate %390, %336 in 1 : vector<8x128xf32>, vector<8x128xf32> -> vector<8x256xf32>
    %cst_143 = arith.constant dense<0.000000e+00> : vector<8x512xf32>
    %394 = tpu.matmul %393, %392, %cst_143 {dimension_numbers = #tpu.dot_dimension_numbers<[1], [0], [0], [1], [0, 0, 1, 1], [], []>} : vector<8x256xf32>, vector<256x512xf32>, vector<8x512xf32> -> vector<8x512xf32>
    %c1_144 = arith.constant 1 : index
    %c0_145 = arith.constant 0 : index
    %c0_146 = arith.constant 0 : index
    %395 = vector.load %arg6[%c1_144, %c0_145, %c0_146] : memref<2x1x512xf32, #tpu.memory_space<vmem>>, vector<1x1x512xf32>
    %396 = vector.shape_cast %395 : vector<1x1x512xf32> to vector<1x512xf32>
    %397 = vector.broadcast %396 : vector<1x512xf32> to vector<8x512xf32>
    %398 = arith.addf %394, %397 : vector<8x512xf32>
    %399 = vector.extract_strided_slice %398 {offsets = [0, 0], sizes = [8, 128], strides = [1, 1]} : vector<8x512xf32> to vector<8x128xf32>
    %400 = arith.negf %399 : vector<8x128xf32>
    %401 = math.exp %400 : vector<8x128xf32>
    %cst_147 = arith.constant 1.000000e+00 : f32
    %402 = vector.broadcast %cst_147 : f32 to vector<8x128xf32>
    %403 = arith.addf %402, %401 : vector<8x128xf32>
    %404 = arith.divf %402, %403 : vector<8x128xf32>
    %405 = vector.extract_strided_slice %398 {offsets = [0, 128], sizes = [8, 128], strides = [1, 1]} : vector<8x512xf32> to vector<8x128xf32>
    %406 = arith.negf %405 : vector<8x128xf32>
    %407 = math.exp %406 : vector<8x128xf32>
    %cst_148 = arith.constant 1.000000e+00 : f32
    %408 = vector.broadcast %cst_148 : f32 to vector<8x128xf32>
    %409 = arith.addf %408, %407 : vector<8x128xf32>
    %410 = arith.divf %408, %409 : vector<8x128xf32>
    %411 = vector.extract_strided_slice %398 {offsets = [0, 256], sizes = [8, 128], strides = [1, 1]} : vector<8x512xf32> to vector<8x128xf32>
    %412 = math.tanh %411 : vector<8x128xf32>
    %413 = vector.extract_strided_slice %398 {offsets = [0, 384], sizes = [8, 128], strides = [1, 1]} : vector<8x512xf32> to vector<8x128xf32>
    %414 = arith.negf %413 : vector<8x128xf32>
    %415 = math.exp %414 : vector<8x128xf32>
    %cst_149 = arith.constant 1.000000e+00 : f32
    %416 = vector.broadcast %cst_149 : f32 to vector<8x128xf32>
    %417 = arith.addf %416, %415 : vector<8x128xf32>
    %418 = arith.divf %416, %417 : vector<8x128xf32>
    %419 = arith.mulf %410, %334 : vector<8x128xf32>
    %420 = arith.mulf %404, %412 : vector<8x128xf32>
    %421 = arith.addf %419, %420 : vector<8x128xf32>
    %422 = math.tanh %421 : vector<8x128xf32>
    %423 = arith.mulf %418, %422 : vector<8x128xf32>
    %c0_150 = arith.constant 0 : index
    %c0_151 = arith.constant 0 : index
    %424 = vector.load %arg7[%c0_150, %c0_151] : memref<128x128xf32, #tpu.memory_space<vmem>>, vector<128x128xf32>
    %cst_152 = arith.constant dense<0.000000e+00> : vector<8x128xf32>
    %425 = tpu.matmul %423, %424, %cst_152 {dimension_numbers = #tpu.dot_dimension_numbers<[1], [0], [0], [1], [0, 0, 1, 1], [], []>} : vector<8x128xf32>, vector<128x128xf32>, vector<8x128xf32> -> vector<8x128xf32>
    %c0_153 = arith.constant 0 : index
    %c0_154 = arith.constant 0 : index
    %426 = vector.load %arg8[%c0_153, %c0_154] : memref<1x128xf32, #tpu.memory_space<vmem>>, vector<1x128xf32>
    %427 = vector.broadcast %426 : vector<1x128xf32> to vector<8x128xf32>
    %428 = arith.addf %425, %427 : vector<8x128xf32>
    %cst_155 = arith.constant dense<0xFF800000> : vector<8xf32>
    %429 = vector.multi_reduction <maximumf>, %428, %cst_155 [1] : vector<8x128xf32> to vector<8xf32>
    %430 = vector.shape_cast %429 : vector<8xf32> to vector<8x1xf32>
    %431 = vector.broadcast %430 : vector<8x1xf32> to vector<8x128xf32>
    %432 = arith.subf %428, %431 : vector<8x128xf32>
    %433 = math.exp %432 : vector<8x128xf32>
    %cst_156 = arith.constant dense<0.000000e+00> : vector<8xf32>
    %434 = vector.multi_reduction <add>, %433, %cst_156 [1] : vector<8x128xf32> to vector<8xf32>
    %435 = vector.shape_cast %434 : vector<8xf32> to vector<8x1xf32>
    %436 = tpu.reciprocal %435 {approx = true} : vector<8x1xf32> -> vector<8x1xf32>
    %437 = vector.broadcast %436 : vector<8x1xf32> to vector<8x128xf32>
    %438 = arith.mulf %433, %437 : vector<8x128xf32>
    %439 = arith.index_cast %c4_i32 : i32 to index
    %c0_157 = arith.constant 0 : index
    %c0_158 = arith.constant 0 : index
    %440 = vector.load %arg9[%439, %c0_157, %c0_158] : memref<8x8x128xf32, #tpu.memory_space<vmem>>, vector<1x8x128xf32>
    %441 = vector.shape_cast %440 : vector<1x8x128xf32> to vector<8x128xf32>
    %442 = vector.shape_cast %438 : vector<8x128xf32> to vector<1x8x128xf32>
    tpu.vector_store %arg9[%439, %c0_157, %c0_158], %442 {strides = array<i32>} : memref<8x8x128xf32, #tpu.memory_space<vmem>>, vector<1x8x128xf32>,
    %c5_i32 = arith.constant 5 : i32
    %443 = arith.index_cast %c5_i32 : i32 to index
    %c0_159 = arith.constant 0 : index
    %c0_160 = arith.constant 0 : index
    %444 = vector.load %arg1[%443, %c0_159, %c0_160] : memref<8x8x128xf32, #tpu.memory_space<vmem>>, vector<1x8x128xf32>
    %445 = vector.shape_cast %444 : vector<1x8x128xf32> to vector<8x128xf32>
    %c0_161 = arith.constant 0 : index
    %c0_162 = arith.constant 0 : index
    %446 = vector.load %arg4[%c0_161, %c0_162] : memref<256x512xf32, #tpu.memory_space<vmem>>, vector<256x512xf32>
    %447 = tpu.concatenate %445, %390 in 1 : vector<8x128xf32>, vector<8x128xf32> -> vector<8x256xf32>
    %cst_163 = arith.constant dense<0.000000e+00> : vector<8x512xf32>
    %448 = tpu.matmul %447, %446, %cst_163 {dimension_numbers = #tpu.dot_dimension_numbers<[1], [0], [0], [1], [0, 0, 1, 1], [], []>} : vector<8x256xf32>, vector<256x512xf32>, vector<8x512xf32> -> vector<8x512xf32>
    %c0_164 = arith.constant 0 : index
    %c0_165 = arith.constant 0 : index
    %c0_166 = arith.constant 0 : index
    %449 = vector.load %arg6[%c0_164, %c0_165, %c0_166] : memref<2x1x512xf32, #tpu.memory_space<vmem>>, vector<1x1x512xf32>
    %450 = vector.shape_cast %449 : vector<1x1x512xf32> to vector<1x512xf32>
    %451 = vector.broadcast %450 : vector<1x512xf32> to vector<8x512xf32>
    %452 = arith.addf %448, %451 : vector<8x512xf32>
    %453 = vector.extract_strided_slice %452 {offsets = [0, 0], sizes = [8, 128], strides = [1, 1]} : vector<8x512xf32> to vector<8x128xf32>
    %454 = arith.negf %453 : vector<8x128xf32>
    %455 = math.exp %454 : vector<8x128xf32>
    %cst_167 = arith.constant 1.000000e+00 : f32
    %456 = vector.broadcast %cst_167 : f32 to vector<8x128xf32>
    %457 = arith.addf %456, %455 : vector<8x128xf32>
    %458 = arith.divf %456, %457 : vector<8x128xf32>
    %459 = vector.extract_strided_slice %452 {offsets = [0, 128], sizes = [8, 128], strides = [1, 1]} : vector<8x512xf32> to vector<8x128xf32>
    %460 = arith.negf %459 : vector<8x128xf32>
    %461 = math.exp %460 : vector<8x128xf32>
    %cst_168 = arith.constant 1.000000e+00 : f32
    %462 = vector.broadcast %cst_168 : f32 to vector<8x128xf32>
    %463 = arith.addf %462, %461 : vector<8x128xf32>
    %464 = arith.divf %462, %463 : vector<8x128xf32>
    %465 = vector.extract_strided_slice %452 {offsets = [0, 256], sizes = [8, 128], strides = [1, 1]} : vector<8x512xf32> to vector<8x128xf32>
    %466 = math.tanh %465 : vector<8x128xf32>
    %467 = vector.extract_strided_slice %452 {offsets = [0, 384], sizes = [8, 128], strides = [1, 1]} : vector<8x512xf32> to vector<8x128xf32>
    %468 = arith.negf %467 : vector<8x128xf32>
    %469 = math.exp %468 : vector<8x128xf32>
    %cst_169 = arith.constant 1.000000e+00 : f32
    %470 = vector.broadcast %cst_169 : f32 to vector<8x128xf32>
    %471 = arith.addf %470, %469 : vector<8x128xf32>
    %472 = arith.divf %470, %471 : vector<8x128xf32>
    %473 = arith.mulf %464, %388 : vector<8x128xf32>
    %474 = arith.mulf %458, %466 : vector<8x128xf32>
    %475 = arith.addf %473, %474 : vector<8x128xf32>
    %476 = math.tanh %475 : vector<8x128xf32>
    %477 = arith.mulf %472, %476 : vector<8x128xf32>
    %c0_170 = arith.constant 0 : index
    %c0_171 = arith.constant 0 : index
    %c0_172 = arith.constant 0 : index
    %478 = vector.load %arg5[%c0_170, %c0_171, %c0_172] : memref<1x256x512xf32, #tpu.memory_space<vmem>>, vector<1x256x512xf32>
    %479 = vector.shape_cast %478 : vector<1x256x512xf32> to vector<256x512xf32>
    %480 = tpu.concatenate %477, %423 in 1 : vector<8x128xf32>, vector<8x128xf32> -> vector<8x256xf32>
    %cst_173 = arith.constant dense<0.000000e+00> : vector<8x512xf32>
    %481 = tpu.matmul %480, %479, %cst_173 {dimension_numbers = #tpu.dot_dimension_numbers<[1], [0], [0], [1], [0, 0, 1, 1], [], []>} : vector<8x256xf32>, vector<256x512xf32>, vector<8x512xf32> -> vector<8x512xf32>
    %c1_174 = arith.constant 1 : index
    %c0_175 = arith.constant 0 : index
    %c0_176 = arith.constant 0 : index
    %482 = vector.load %arg6[%c1_174, %c0_175, %c0_176] : memref<2x1x512xf32, #tpu.memory_space<vmem>>, vector<1x1x512xf32>
    %483 = vector.shape_cast %482 : vector<1x1x512xf32> to vector<1x512xf32>
    %484 = vector.broadcast %483 : vector<1x512xf32> to vector<8x512xf32>
    %485 = arith.addf %481, %484 : vector<8x512xf32>
    %486 = vector.extract_strided_slice %485 {offsets = [0, 0], sizes = [8, 128], strides = [1, 1]} : vector<8x512xf32> to vector<8x128xf32>
    %487 = arith.negf %486 : vector<8x128xf32>
    %488 = math.exp %487 : vector<8x128xf32>
    %cst_177 = arith.constant 1.000000e+00 : f32
    %489 = vector.broadcast %cst_177 : f32 to vector<8x128xf32>
    %490 = arith.addf %489, %488 : vector<8x128xf32>
    %491 = arith.divf %489, %490 : vector<8x128xf32>
    %492 = vector.extract_strided_slice %485 {offsets = [0, 128], sizes = [8, 128], strides = [1, 1]} : vector<8x512xf32> to vector<8x128xf32>
    %493 = arith.negf %492 : vector<8x128xf32>
    %494 = math.exp %493 : vector<8x128xf32>
    %cst_178 = arith.constant 1.000000e+00 : f32
    %495 = vector.broadcast %cst_178 : f32 to vector<8x128xf32>
    %496 = arith.addf %495, %494 : vector<8x128xf32>
    %497 = arith.divf %495, %496 : vector<8x128xf32>
    %498 = vector.extract_strided_slice %485 {offsets = [0, 256], sizes = [8, 128], strides = [1, 1]} : vector<8x512xf32> to vector<8x128xf32>
    %499 = math.tanh %498 : vector<8x128xf32>
    %500 = vector.extract_strided_slice %485 {offsets = [0, 384], sizes = [8, 128], strides = [1, 1]} : vector<8x512xf32> to vector<8x128xf32>
    %501 = arith.negf %500 : vector<8x128xf32>
    %502 = math.exp %501 : vector<8x128xf32>
    %cst_179 = arith.constant 1.000000e+00 : f32
    %503 = vector.broadcast %cst_179 : f32 to vector<8x128xf32>
    %504 = arith.addf %503, %502 : vector<8x128xf32>
    %505 = arith.divf %503, %504 : vector<8x128xf32>
    %506 = arith.mulf %497, %421 : vector<8x128xf32>
    %507 = arith.mulf %491, %499 : vector<8x128xf32>
    %508 = arith.addf %506, %507 : vector<8x128xf32>
    %509 = math.tanh %508 : vector<8x128xf32>
    %510 = arith.mulf %505, %509 : vector<8x128xf32>
    %c0_180 = arith.constant 0 : index
    %c0_181 = arith.constant 0 : index
    %511 = vector.load %arg7[%c0_180, %c0_181] : memref<128x128xf32, #tpu.memory_space<vmem>>, vector<128x128xf32>
    %cst_182 = arith.constant dense<0.000000e+00> : vector<8x128xf32>
    %512 = tpu.matmul %510, %511, %cst_182 {dimension_numbers = #tpu.dot_dimension_numbers<[1], [0], [0], [1], [0, 0, 1, 1], [], []>} : vector<8x128xf32>, vector<128x128xf32>, vector<8x128xf32> -> vector<8x128xf32>
    %c0_183 = arith.constant 0 : index
    %c0_184 = arith.constant 0 : index
    %513 = vector.load %arg8[%c0_183, %c0_184] : memref<1x128xf32, #tpu.memory_space<vmem>>, vector<1x128xf32>
    %514 = vector.broadcast %513 : vector<1x128xf32> to vector<8x128xf32>
    %515 = arith.addf %512, %514 : vector<8x128xf32>
    %cst_185 = arith.constant dense<0xFF800000> : vector<8xf32>
    %516 = vector.multi_reduction <maximumf>, %515, %cst_185 [1] : vector<8x128xf32> to vector<8xf32>
    %517 = vector.shape_cast %516 : vector<8xf32> to vector<8x1xf32>
    %518 = vector.broadcast %517 : vector<8x1xf32> to vector<8x128xf32>
    %519 = arith.subf %515, %518 : vector<8x128xf32>
    %520 = math.exp %519 : vector<8x128xf32>
    %cst_186 = arith.constant dense<0.000000e+00> : vector<8xf32>
    %521 = vector.multi_reduction <add>, %520, %cst_186 [1] : vector<8x128xf32> to vector<8xf32>
    %522 = vector.shape_cast %521 : vector<8xf32> to vector<8x1xf32>
    %523 = tpu.reciprocal %522 {approx = true} : vector<8x1xf32> -> vector<8x1xf32>
    %524 = vector.broadcast %523 : vector<8x1xf32> to vector<8x128xf32>
    %525 = arith.mulf %520, %524 : vector<8x128xf32>
    %526 = arith.index_cast %c5_i32 : i32 to index
    %c0_187 = arith.constant 0 : index
    %c0_188 = arith.constant 0 : index
    %527 = vector.load %arg9[%526, %c0_187, %c0_188] : memref<8x8x128xf32, #tpu.memory_space<vmem>>, vector<1x8x128xf32>
    %528 = vector.shape_cast %527 : vector<1x8x128xf32> to vector<8x128xf32>
    %529 = vector.shape_cast %525 : vector<8x128xf32> to vector<1x8x128xf32>
    tpu.vector_store %arg9[%526, %c0_187, %c0_188], %529 {strides = array<i32>} : memref<8x8x128xf32, #tpu.memory_space<vmem>>, vector<1x8x128xf32>,
    %c6_i32 = arith.constant 6 : i32
    %530 = arith.index_cast %c6_i32 : i32 to index
    %c0_189 = arith.constant 0 : index
    %c0_190 = arith.constant 0 : index
    %531 = vector.load %arg1[%530, %c0_189, %c0_190] : memref<8x8x128xf32, #tpu.memory_space<vmem>>, vector<1x8x128xf32>
    %532 = vector.shape_cast %531 : vector<1x8x128xf32> to vector<8x128xf32>
    %c0_191 = arith.constant 0 : index
    %c0_192 = arith.constant 0 : index
    %533 = vector.load %arg4[%c0_191, %c0_192] : memref<256x512xf32, #tpu.memory_space<vmem>>, vector<256x512xf32>
    %534 = tpu.concatenate %532, %477 in 1 : vector<8x128xf32>, vector<8x128xf32> -> vector<8x256xf32>
    %cst_193 = arith.constant dense<0.000000e+00> : vector<8x512xf32>
    %535 = tpu.matmul %534, %533, %cst_193 {dimension_numbers = #tpu.dot_dimension_numbers<[1], [0], [0], [1], [0, 0, 1, 1], [], []>} : vector<8x256xf32>, vector<256x512xf32>, vector<8x512xf32> -> vector<8x512xf32>
    %c0_194 = arith.constant 0 : index
    %c0_195 = arith.constant 0 : index
    %c0_196 = arith.constant 0 : index
    %536 = vector.load %arg6[%c0_194, %c0_195, %c0_196] : memref<2x1x512xf32, #tpu.memory_space<vmem>>, vector<1x1x512xf32>
    %537 = vector.shape_cast %536 : vector<1x1x512xf32> to vector<1x512xf32>
    %538 = vector.broadcast %537 : vector<1x512xf32> to vector<8x512xf32>
    %539 = arith.addf %535, %538 : vector<8x512xf32>
    %540 = vector.extract_strided_slice %539 {offsets = [0, 0], sizes = [8, 128], strides = [1, 1]} : vector<8x512xf32> to vector<8x128xf32>
    %541 = arith.negf %540 : vector<8x128xf32>
    %542 = math.exp %541 : vector<8x128xf32>
    %cst_197 = arith.constant 1.000000e+00 : f32
    %543 = vector.broadcast %cst_197 : f32 to vector<8x128xf32>
    %544 = arith.addf %543, %542 : vector<8x128xf32>
    %545 = arith.divf %543, %544 : vector<8x128xf32>
    %546 = vector.extract_strided_slice %539 {offsets = [0, 128], sizes = [8, 128], strides = [1, 1]} : vector<8x512xf32> to vector<8x128xf32>
    %547 = arith.negf %546 : vector<8x128xf32>
    %548 = math.exp %547 : vector<8x128xf32>
    %cst_198 = arith.constant 1.000000e+00 : f32
    %549 = vector.broadcast %cst_198 : f32 to vector<8x128xf32>
    %550 = arith.addf %549, %548 : vector<8x128xf32>
    %551 = arith.divf %549, %550 : vector<8x128xf32>
    %552 = vector.extract_strided_slice %539 {offsets = [0, 256], sizes = [8, 128], strides = [1, 1]} : vector<8x512xf32> to vector<8x128xf32>
    %553 = math.tanh %552 : vector<8x128xf32>
    %554 = vector.extract_strided_slice %539 {offsets = [0, 384], sizes = [8, 128], strides = [1, 1]} : vector<8x512xf32> to vector<8x128xf32>
    %555 = arith.negf %554 : vector<8x128xf32>
    %556 = math.exp %555 : vector<8x128xf32>
    %cst_199 = arith.constant 1.000000e+00 : f32
    %557 = vector.broadcast %cst_199 : f32 to vector<8x128xf32>
    %558 = arith.addf %557, %556 : vector<8x128xf32>
    %559 = arith.divf %557, %558 : vector<8x128xf32>
    %560 = arith.mulf %551, %475 : vector<8x128xf32>
    %561 = arith.mulf %545, %553 : vector<8x128xf32>
    %562 = arith.addf %560, %561 : vector<8x128xf32>
    %563 = math.tanh %562 : vector<8x128xf32>
    %564 = arith.mulf %559, %563 : vector<8x128xf32>
    %c0_200 = arith.constant 0 : index
    %c0_201 = arith.constant 0 : index
    %c0_202 = arith.constant 0 : index
    %565 = vector.load %arg5[%c0_200, %c0_201, %c0_202] : memref<1x256x512xf32, #tpu.memory_space<vmem>>, vector<1x256x512xf32>
    %566 = vector.shape_cast %565 : vector<1x256x512xf32> to vector<256x512xf32>
    %567 = tpu.concatenate %564, %510 in 1 : vector<8x128xf32>, vector<8x128xf32> -> vector<8x256xf32>
    %cst_203 = arith.constant dense<0.000000e+00> : vector<8x512xf32>
    %568 = tpu.matmul %567, %566, %cst_203 {dimension_numbers = #tpu.dot_dimension_numbers<[1], [0], [0], [1], [0, 0, 1, 1], [], []>} : vector<8x256xf32>, vector<256x512xf32>, vector<8x512xf32> -> vector<8x512xf32>
    %c1_204 = arith.constant 1 : index
    %c0_205 = arith.constant 0 : index
    %c0_206 = arith.constant 0 : index
    %569 = vector.load %arg6[%c1_204, %c0_205, %c0_206] : memref<2x1x512xf32, #tpu.memory_space<vmem>>, vector<1x1x512xf32>
    %570 = vector.shape_cast %569 : vector<1x1x512xf32> to vector<1x512xf32>
    %571 = vector.broadcast %570 : vector<1x512xf32> to vector<8x512xf32>
    %572 = arith.addf %568, %571 : vector<8x512xf32>
    %573 = vector.extract_strided_slice %572 {offsets = [0, 0], sizes = [8, 128], strides = [1, 1]} : vector<8x512xf32> to vector<8x128xf32>
    %574 = arith.negf %573 : vector<8x128xf32>
    %575 = math.exp %574 : vector<8x128xf32>
    %cst_207 = arith.constant 1.000000e+00 : f32
    %576 = vector.broadcast %cst_207 : f32 to vector<8x128xf32>
    %577 = arith.addf %576, %575 : vector<8x128xf32>
    %578 = arith.divf %576, %577 : vector<8x128xf32>
    %579 = vector.extract_strided_slice %572 {offsets = [0, 128], sizes = [8, 128], strides = [1, 1]} : vector<8x512xf32> to vector<8x128xf32>
    %580 = arith.negf %579 : vector<8x128xf32>
    %581 = math.exp %580 : vector<8x128xf32>
    %cst_208 = arith.constant 1.000000e+00 : f32
    %582 = vector.broadcast %cst_208 : f32 to vector<8x128xf32>
    %583 = arith.addf %582, %581 : vector<8x128xf32>
    %584 = arith.divf %582, %583 : vector<8x128xf32>
    %585 = vector.extract_strided_slice %572 {offsets = [0, 256], sizes = [8, 128], strides = [1, 1]} : vector<8x512xf32> to vector<8x128xf32>
    %586 = math.tanh %585 : vector<8x128xf32>
    %587 = vector.extract_strided_slice %572 {offsets = [0, 384], sizes = [8, 128], strides = [1, 1]} : vector<8x512xf32> to vector<8x128xf32>
    %588 = arith.negf %587 : vector<8x128xf32>
    %589 = math.exp %588 : vector<8x128xf32>
    %cst_209 = arith.constant 1.000000e+00 : f32
    %590 = vector.broadcast %cst_209 : f32 to vector<8x128xf32>
    %591 = arith.addf %590, %589 : vector<8x128xf32>
    %592 = arith.divf %590, %591 : vector<8x128xf32>
    %593 = arith.mulf %584, %508 : vector<8x128xf32>
    %594 = arith.mulf %578, %586 : vector<8x128xf32>
    %595 = arith.addf %593, %594 : vector<8x128xf32>
    %596 = math.tanh %595 : vector<8x128xf32>
    %597 = arith.mulf %592, %596 : vector<8x128xf32>
    %c0_210 = arith.constant 0 : index
    %c0_211 = arith.constant 0 : index
    %598 = vector.load %arg7[%c0_210, %c0_211] : memref<128x128xf32, #tpu.memory_space<vmem>>, vector<128x128xf32>
    %cst_212 = arith.constant dense<0.000000e+00> : vector<8x128xf32>
    %599 = tpu.matmul %597, %598, %cst_212 {dimension_numbers = #tpu.dot_dimension_numbers<[1], [0], [0], [1], [0, 0, 1, 1], [], []>} : vector<8x128xf32>, vector<128x128xf32>, vector<8x128xf32> -> vector<8x128xf32>
    %c0_213 = arith.constant 0 : index
    %c0_214 = arith.constant 0 : index
    %600 = vector.load %arg8[%c0_213, %c0_214] : memref<1x128xf32, #tpu.memory_space<vmem>>, vector<1x128xf32>
    %601 = vector.broadcast %600 : vector<1x128xf32> to vector<8x128xf32>
    %602 = arith.addf %599, %601 : vector<8x128xf32>
    %cst_215 = arith.constant dense<0xFF800000> : vector<8xf32>
    %603 = vector.multi_reduction <maximumf>, %602, %cst_215 [1] : vector<8x128xf32> to vector<8xf32>
    %604 = vector.shape_cast %603 : vector<8xf32> to vector<8x1xf32>
    %605 = vector.broadcast %604 : vector<8x1xf32> to vector<8x128xf32>
    %606 = arith.subf %602, %605 : vector<8x128xf32>
    %607 = math.exp %606 : vector<8x128xf32>
    %cst_216 = arith.constant dense<0.000000e+00> : vector<8xf32>
    %608 = vector.multi_reduction <add>, %607, %cst_216 [1] : vector<8x128xf32> to vector<8xf32>
    %609 = vector.shape_cast %608 : vector<8xf32> to vector<8x1xf32>
    %610 = tpu.reciprocal %609 {approx = true} : vector<8x1xf32> -> vector<8x1xf32>
    %611 = vector.broadcast %610 : vector<8x1xf32> to vector<8x128xf32>
    %612 = arith.mulf %607, %611 : vector<8x128xf32>
    %613 = arith.index_cast %c6_i32 : i32 to index
    %c0_217 = arith.constant 0 : index
    %c0_218 = arith.constant 0 : index
    %614 = vector.load %arg9[%613, %c0_217, %c0_218] : memref<8x8x128xf32, #tpu.memory_space<vmem>>, vector<1x8x128xf32>
    %615 = vector.shape_cast %614 : vector<1x8x128xf32> to vector<8x128xf32>
    %616 = vector.shape_cast %612 : vector<8x128xf32> to vector<1x8x128xf32>
    tpu.vector_store %arg9[%613, %c0_217, %c0_218], %616 {strides = array<i32>} : memref<8x8x128xf32, #tpu.memory_space<vmem>>, vector<1x8x128xf32>,
    %c7_i32 = arith.constant 7 : i32
    %617 = arith.index_cast %c7_i32 : i32 to index
    %c0_219 = arith.constant 0 : index
    %c0_220 = arith.constant 0 : index
    %618 = vector.load %arg1[%617, %c0_219, %c0_220] : memref<8x8x128xf32, #tpu.memory_space<vmem>>, vector<1x8x128xf32>
    %619 = vector.shape_cast %618 : vector<1x8x128xf32> to vector<8x128xf32>
    %c0_221 = arith.constant 0 : index
    %c0_222 = arith.constant 0 : index
    %620 = vector.load %arg4[%c0_221, %c0_222] : memref<256x512xf32, #tpu.memory_space<vmem>>, vector<256x512xf32>
    %621 = tpu.concatenate %619, %564 in 1 : vector<8x128xf32>, vector<8x128xf32> -> vector<8x256xf32>
    %cst_223 = arith.constant dense<0.000000e+00> : vector<8x512xf32>
    %622 = tpu.matmul %621, %620, %cst_223 {dimension_numbers = #tpu.dot_dimension_numbers<[1], [0], [0], [1], [0, 0, 1, 1], [], []>} : vector<8x256xf32>, vector<256x512xf32>, vector<8x512xf32> -> vector<8x512xf32>
    %c0_224 = arith.constant 0 : index
    %c0_225 = arith.constant 0 : index
    %c0_226 = arith.constant 0 : index
    %623 = vector.load %arg6[%c0_224, %c0_225, %c0_226] : memref<2x1x512xf32, #tpu.memory_space<vmem>>, vector<1x1x512xf32>
    %624 = vector.shape_cast %623 : vector<1x1x512xf32> to vector<1x512xf32>
    %625 = vector.broadcast %624 : vector<1x512xf32> to vector<8x512xf32>
    %626 = arith.addf %622, %625 : vector<8x512xf32>
    %627 = vector.extract_strided_slice %626 {offsets = [0, 0], sizes = [8, 128], strides = [1, 1]} : vector<8x512xf32> to vector<8x128xf32>
    %628 = arith.negf %627 : vector<8x128xf32>
    %629 = math.exp %628 : vector<8x128xf32>
    %cst_227 = arith.constant 1.000000e+00 : f32
    %630 = vector.broadcast %cst_227 : f32 to vector<8x128xf32>
    %631 = arith.addf %630, %629 : vector<8x128xf32>
    %632 = arith.divf %630, %631 : vector<8x128xf32>
    %633 = vector.extract_strided_slice %626 {offsets = [0, 128], sizes = [8, 128], strides = [1, 1]} : vector<8x512xf32> to vector<8x128xf32>
    %634 = arith.negf %633 : vector<8x128xf32>
    %635 = math.exp %634 : vector<8x128xf32>
    %cst_228 = arith.constant 1.000000e+00 : f32
    %636 = vector.broadcast %cst_228 : f32 to vector<8x128xf32>
    %637 = arith.addf %636, %635 : vector<8x128xf32>
    %638 = arith.divf %636, %637 : vector<8x128xf32>
    %639 = vector.extract_strided_slice %626 {offsets = [0, 256], sizes = [8, 128], strides = [1, 1]} : vector<8x512xf32> to vector<8x128xf32>
    %640 = math.tanh %639 : vector<8x128xf32>
    %641 = vector.extract_strided_slice %626 {offsets = [0, 384], sizes = [8, 128], strides = [1, 1]} : vector<8x512xf32> to vector<8x128xf32>
    %642 = arith.negf %641 : vector<8x128xf32>
    %643 = math.exp %642 : vector<8x128xf32>
    %cst_229 = arith.constant 1.000000e+00 : f32
    %644 = vector.broadcast %cst_229 : f32 to vector<8x128xf32>
    %645 = arith.addf %644, %643 : vector<8x128xf32>
    %646 = arith.divf %644, %645 : vector<8x128xf32>
    %647 = arith.mulf %638, %562 : vector<8x128xf32>
    %648 = arith.mulf %632, %640 : vector<8x128xf32>
    %649 = arith.addf %647, %648 : vector<8x128xf32>
    %650 = math.tanh %649 : vector<8x128xf32>
    %651 = arith.mulf %646, %650 : vector<8x128xf32>
    %c0_230 = arith.constant 0 : index
    %c0_231 = arith.constant 0 : index
    %c0_232 = arith.constant 0 : index
    %652 = vector.load %arg5[%c0_230, %c0_231, %c0_232] : memref<1x256x512xf32, #tpu.memory_space<vmem>>, vector<1x256x512xf32>
    %653 = vector.shape_cast %652 : vector<1x256x512xf32> to vector<256x512xf32>
    %654 = tpu.concatenate %651, %597 in 1 : vector<8x128xf32>, vector<8x128xf32> -> vector<8x256xf32>
    %cst_233 = arith.constant dense<0.000000e+00> : vector<8x512xf32>
    %655 = tpu.matmul %654, %653, %cst_233 {dimension_numbers = #tpu.dot_dimension_numbers<[1], [0], [0], [1], [0, 0, 1, 1], [], []>} : vector<8x256xf32>, vector<256x512xf32>, vector<8x512xf32> -> vector<8x512xf32>
    %c1_234 = arith.constant 1 : index
    %c0_235 = arith.constant 0 : index
    %c0_236 = arith.constant 0 : index
    %656 = vector.load %arg6[%c1_234, %c0_235, %c0_236] : memref<2x1x512xf32, #tpu.memory_space<vmem>>, vector<1x1x512xf32>
    %657 = vector.shape_cast %656 : vector<1x1x512xf32> to vector<1x512xf32>
    %658 = vector.broadcast %657 : vector<1x512xf32> to vector<8x512xf32>
    %659 = arith.addf %655, %658 : vector<8x512xf32>
    %660 = vector.extract_strided_slice %659 {offsets = [0, 0], sizes = [8, 128], strides = [1, 1]} : vector<8x512xf32> to vector<8x128xf32>
    %661 = arith.negf %660 : vector<8x128xf32>
    %662 = math.exp %661 : vector<8x128xf32>
    %cst_237 = arith.constant 1.000000e+00 : f32
    %663 = vector.broadcast %cst_237 : f32 to vector<8x128xf32>
    %664 = arith.addf %663, %662 : vector<8x128xf32>
    %665 = arith.divf %663, %664 : vector<8x128xf32>
    %666 = vector.extract_strided_slice %659 {offsets = [0, 128], sizes = [8, 128], strides = [1, 1]} : vector<8x512xf32> to vector<8x128xf32>
    %667 = arith.negf %666 : vector<8x128xf32>
    %668 = math.exp %667 : vector<8x128xf32>
    %cst_238 = arith.constant 1.000000e+00 : f32
    %669 = vector.broadcast %cst_238 : f32 to vector<8x128xf32>
    %670 = arith.addf %669, %668 : vector<8x128xf32>
    %671 = arith.divf %669, %670 : vector<8x128xf32>
    %672 = vector.extract_strided_slice %659 {offsets = [0, 256], sizes = [8, 128], strides = [1, 1]} : vector<8x512xf32> to vector<8x128xf32>
    %673 = math.tanh %672 : vector<8x128xf32>
    %674 = vector.extract_strided_slice %659 {offsets = [0, 384], sizes = [8, 128], strides = [1, 1]} : vector<8x512xf32> to vector<8x128xf32>
    %675 = arith.negf %674 : vector<8x128xf32>
    %676 = math.exp %675 : vector<8x128xf32>
    %cst_239 = arith.constant 1.000000e+00 : f32
    %677 = vector.broadcast %cst_239 : f32 to vector<8x128xf32>
    %678 = arith.addf %677, %676 : vector<8x128xf32>
    %679 = arith.divf %677, %678 : vector<8x128xf32>
    %680 = arith.mulf %671, %595 : vector<8x128xf32>
    %681 = arith.mulf %665, %673 : vector<8x128xf32>
    %682 = arith.addf %680, %681 : vector<8x128xf32>
    %683 = math.tanh %682 : vector<8x128xf32>
    %684 = arith.mulf %679, %683 : vector<8x128xf32>
    %c0_240 = arith.constant 0 : index
    %c0_241 = arith.constant 0 : index
    %685 = vector.load %arg7[%c0_240, %c0_241] : memref<128x128xf32, #tpu.memory_space<vmem>>, vector<128x128xf32>
    %cst_242 = arith.constant dense<0.000000e+00> : vector<8x128xf32>
    %686 = tpu.matmul %684, %685, %cst_242 {dimension_numbers = #tpu.dot_dimension_numbers<[1], [0], [0], [1], [0, 0, 1, 1], [], []>} : vector<8x128xf32>, vector<128x128xf32>, vector<8x128xf32> -> vector<8x128xf32>
    %c0_243 = arith.constant 0 : index
    %c0_244 = arith.constant 0 : index
    %687 = vector.load %arg8[%c0_243, %c0_244] : memref<1x128xf32, #tpu.memory_space<vmem>>, vector<1x128xf32>
    %688 = vector.broadcast %687 : vector<1x128xf32> to vector<8x128xf32>
    %689 = arith.addf %686, %688 : vector<8x128xf32>
    %cst_245 = arith.constant dense<0xFF800000> : vector<8xf32>
    %690 = vector.multi_reduction <maximumf>, %689, %cst_245 [1] : vector<8x128xf32> to vector<8xf32>
    %691 = vector.shape_cast %690 : vector<8xf32> to vector<8x1xf32>
    %692 = vector.broadcast %691 : vector<8x1xf32> to vector<8x128xf32>
    %693 = arith.subf %689, %692 : vector<8x128xf32>
    %694 = math.exp %693 : vector<8x128xf32>
    %cst_246 = arith.constant dense<0.000000e+00> : vector<8xf32>
    %695 = vector.multi_reduction <add>, %694, %cst_246 [1] : vector<8x128xf32> to vector<8xf32>
    %696 = vector.shape_cast %695 : vector<8xf32> to vector<8x1xf32>
    %697 = tpu.reciprocal %696 {approx = true} : vector<8x1xf32> -> vector<8x1xf32>
    %698 = vector.broadcast %697 : vector<8x1xf32> to vector<8x128xf32>
    %699 = arith.mulf %694, %698 : vector<8x128xf32>
    %700 = arith.index_cast %c7_i32 : i32 to index
    %c0_247 = arith.constant 0 : index
    %c0_248 = arith.constant 0 : index
    %701 = vector.load %arg9[%700, %c0_247, %c0_248] : memref<8x8x128xf32, #tpu.memory_space<vmem>>, vector<1x8x128xf32>
    %702 = vector.shape_cast %701 : vector<1x8x128xf32> to vector<8x128xf32>
    %703 = vector.shape_cast %699 : vector<8x128xf32> to vector<1x8x128xf32>
    tpu.vector_store %arg9[%700, %c0_247, %c0_248], %703 {strides = array<i32>} : memref<8x8x128xf32, #tpu.memory_space<vmem>>, vector<1x8x128xf32>,
    %c8_i32 = arith.constant 8 : i32
    return
  }
  func.func @transform_0(%arg0: i32) -> (i32, i32, i32) {
    %c0_i32 = arith.constant 0 : i32
    %c0_i32_0 = arith.constant 0 : i32
    %c0_i32_1 = arith.constant 0 : i32
    return %c0_i32, %arg0, %c0_i32_0 : i32, i32, i32
  }
  func.func @transform_1(%arg0: i32) -> (i32, i32, i32) {
    %c0_i32 = arith.constant 0 : i32
    %c0_i32_0 = arith.constant 0 : i32
    %c0_i32_1 = arith.constant 0 : i32
    return %c0_i32, %arg0, %c0_i32_0 : i32, i32, i32
  }
  func.func @transform_2(%arg0: i32) -> (i32, i32, i32) {
    %c0_i32 = arith.constant 0 : i32
    %c0_i32_0 = arith.constant 0 : i32
    %c0_i32_1 = arith.constant 0 : i32
    return %c0_i32, %arg0, %c0_i32_0 : i32, i32, i32
  }
  func.func @transform_3(%arg0: i32) -> (i32, i32) {
    %c0_i32 = arith.constant 0 : i32
    %c0_i32_0 = arith.constant 0 : i32
    %c0_i32_1 = arith.constant 0 : i32
    return %c0_i32, %c0_i32_0 : i32, i32
  }
  func.func @transform_4(%arg0: i32) -> (i32, i32, i32) {
    %c0_i32 = arith.constant 0 : i32
    %c0_i32_0 = arith.constant 0 : i32
    %c0_i32_1 = arith.constant 0 : i32
    %c0_i32_2 = arith.constant 0 : i32
    return %c0_i32, %c0_i32_0, %c0_i32_1 : i32, i32, i32
  }
  func.func @transform_5(%arg0: i32) -> (i32, i32, i32) {
    %c0_i32 = arith.constant 0 : i32
    %c0_i32_0 = arith.constant 0 : i32
    %c0_i32_1 = arith.constant 0 : i32
    %c0_i32_2 = arith.constant 0 : i32
    return %c0_i32, %c0_i32_0, %c0_i32_1 : i32, i32, i32
  }
  func.func @transform_6(%arg0: i32) -> (i32, i32) {
    %c0_i32 = arith.constant 0 : i32
    %c0_i32_0 = arith.constant 0 : i32
    %c0_i32_1 = arith.constant 0 : i32
    return %c0_i32, %c0_i32_0 : i32, i32
  }
  func.func @transform_7(%arg0: i32) -> (i32, i32) {
    %c0_i32 = arith.constant 0 : i32
    %c0_i32_0 = arith.constant 0 : i32
    %c0_i32_1 = arith.constant 0 : i32
    return %c0_i32, %c0_i32_0 : i32, i32
  }
  func.func @transform_8(%arg0: i32) -> (i32, i32, i32) {
    %c0_i32 = arith.constant 0 : i32
    %c0_i32_0 = arith.constant 0 : i32
    %c0_i32_1 = arith.constant 0 : i32
    return %c0_i32, %arg0, %c0_i32_0 : i32, i32, i32
  }
}

</mosaic_0001>

<llo_original>
// kernel: tpu_custom_call.1
$region0: #{tpu_custom_call.1}
  #allocation0 [shape = 'u32[]', space=smem, size = 0x4, offset = 0x4, fixed_abs, tag = 'smem constant byte address 0x4 - core index']
  #allocation1 [shape = 'u32[72,128]{1,0:T(1,128)}', space=vmem, size = 0x9000, scoped, tag = 'internal scratch']
  %s0 = inlined_call_operand.hbm [shape: f32[8,8,128], index: 0, kind: input, shape index: {}]
  %s1 = inlined_call_operand.hbm [shape: f32[2,8,128], index: 1, kind: input, shape index: {}]
  %s2 = inlined_call_operand.hbm [shape: f32[2,8,128], index: 2, kind: input, shape index: {}]
  %s3 = inlined_call_operand.hbm [shape: f32[256,512], index: 3, kind: input, shape index: {}]
  %s4 = inlined_call_operand.hbm [shape: f32[1,256,512], index: 4, kind: input, shape index: {}]
  %s5 = inlined_call_operand.hbm [shape: f32[2,1,512], index: 5, kind: input, shape index: {}]
  %s6 = inlined_call_operand.hbm [shape: f32[128,128], index: 6, kind: input, shape index: {}]
  %s7 = inlined_call_operand.vmem [shape: f32[1,128], index: 7, kind: input, shape index: {}]
  %s8 = inlined_call_operand.hbm [shape: f32[8,8,128], index: 8, kind: output, shape index: {}]
  %s9 = sld [smem:[#allocation0]]
  $region70: #{tpu_custom_call.1} parent=0
    _
  %s11 = ssub.s32 1, %s9
  %s12 = scalar_select 0, %s11, %s9
  $region1: #{tpu_custom_call.1} parent=0
    #allocation2 [shape = 'u8[32768]{0}', space=vmem, size = 0x8000, scoped, tag = 'input window, operand 0, single buffered']
    #allocation3 [shape = 's32[1]{0}', space=sflag, size = 0x4, scoped, tag = 'scoped memory for tpu_custom_call.1']
    #allocation4 [shape = 's32[1]{0}', space=sflag, size = 0x4, scoped, tag = 'scoped memory for tpu_custom_call.1']
    #allocation5 [shape = 'u8[8192]{0}', space=vmem, size = 0x2000, scoped, tag = 'input window, operand 1, single buffered']
    #allocation6 [shape = 's32[1]{0}', space=sflag, size = 0x4, scoped, tag = 'scoped memory for tpu_custom_call.1']
    #allocation7 [shape = 'u8[8192]{0}', space=vmem, size = 0x2000, scoped, tag = 'input window, operand 2, single buffered']
    #allocation8 [shape = 'u8[524288]{0}', space=vmem, size = 0x80000, scoped, tag = 'input window, operand 3, single buffered']
    #allocation9 [shape = 's32[1]{0}', space=sflag, size = 0x4, scoped, tag = 'scoped memory for tpu_custom_call.1']
    #allocation10 [shape = 'u8[524288]{0}', space=vmem, size = 0x80000, scoped, tag = 'input window, operand 4, single buffered']
    #allocation11 [shape = 'u8[4096]{0}', space=vmem, size = 0x1000, scoped, tag = 'input window, operand 5, single buffered']
    #allocation12 [shape = 's32[1]{0}', space=sflag, size = 0x4, scoped, tag = 'scoped memory for tpu_custom_call.1']
    #allocation13 [shape = 'u8[65536]{0}', space=vmem, size = 0x10000, scoped, tag = 'input window, operand 6, single buffered']
    #allocation14 [shape = 'u8[32768]{0}', space=vmem, size = 0x8000, scoped, tag = 'output window, operand 0, single buffered']
    %13 = vsyncpa [#allocation3], 0
    %14 = vsyncpa [#allocation6], 0
    %15 = vsyncpa [#allocation9], 0
    %16 = vsyncpa [#allocation12], 0
    %17 = vsyncpa [#allocation4], 0
    // Predicated region
    $region2: #{tpu_custom_call.1} parent=1 // pred_check
      _
    $region3: #{tpu_custom_call.1} parent=1 // pred_check_branch
      %19 = sbr.rel (0) target = $region5
    $region4: #{tpu_custom_call.1} parent=1 // pred_region
      %21 = vsyncadd [#allocation3], 0
      %s22 = sshll.u32 %s0, 4
      %s23 = int_to_ptr.hbm [resolvable:$true] %s22
      %s24 = sshll.u32 [#allocation2], 4
      %s25 = int_to_ptr.vmem [resolvable:$true] %s24
      %30 = dma.hbm_to_vmem [thread:$0]  %s23, 1024, %s25, [#allocation3], 128, 128, 8
    $region5: #{tpu_custom_call.1} parent=1 // pred_fallthru
      _
    // Predicated region
    $region6: #{tpu_custom_call.1} parent=1 // pred_check
      _
    $region7: #{tpu_custom_call.1} parent=1 // pred_check_branch
      %32 = sbr.rel (0) target = $region9
    $region8: #{tpu_custom_call.1} parent=1 // pred_region
      %34 = vsyncadd [#allocation6], 0
      %s35 = sshll.u32 %s1, 4
      %s36 = int_to_ptr.hbm [resolvable:$true] %s35
      %s37 = sshll.u32 [#allocation5], 4
      %s38 = int_to_ptr.vmem [resolvable:$true] %s37
      %43 = dma.hbm_to_vmem [thread:$0]  %s36, 256, %s38, [#allocation6], 128, 128, 8
    $region9: #{tpu_custom_call.1} parent=1 // pred_fallthru
      _
    // Predicated region
    $region10: #{tpu_custom_call.1} parent=1 // pred_check
      _
    $region11: #{tpu_custom_call.1} parent=1 // pred_check_branch
      %45 = sbr.rel (0) target = $region13
    $region12: #{tpu_custom_call.1} parent=1 // pred_region
      %47 = vsyncadd [#allocation6], 0
      %s48 = sshll.u32 %s2, 4
      %s49 = int_to_ptr.hbm [resolvable:$true] %s48
      %s50 = sshll.u32 [#allocation7], 4
      %s51 = int_to_ptr.vmem [resolvable:$true] %s50
      %56 = dma.hbm_to_vmem [thread:$0]  %s49, 256, %s51, [#allocation6], 128, 128, 8
    $region13: #{tpu_custom_call.1} parent=1 // pred_fallthru
      _
    // Predicated region
    $region14: #{tpu_custom_call.1} parent=1 // pred_check
      _
    $region15: #{tpu_custom_call.1} parent=1 // pred_check_branch
      %58 = sbr.rel (0) target = $region17
    $region16: #{tpu_custom_call.1} parent=1 // pred_region
      %60 = vsyncadd [#allocation9], 0
      %s61 = sshll.u32 %s3, 4
      %s62 = int_to_ptr.hbm [resolvable:$true] %s61
      %s63 = sshll.u32 [#allocation8], 4
      %s64 = int_to_ptr.vmem [resolvable:$true] %s63
      %69 = dma.hbm_to_vmem [thread:$0]  %s62, 16384, %s64, [#allocation9], 512, 512, 32
    $region17: #{tpu_custom_call.1} parent=1 // pred_fallthru
      _
    // Predicated region
    $region18: #{tpu_custom_call.1} parent=1 // pred_check
      _
    $region19: #{tpu_custom_call.1} parent=1 // pred_check_branch
      %71 = sbr.rel (0) target = $region21
    $region20: #{tpu_custom_call.1} parent=1 // pred_region
      %73 = vsyncadd [#allocation9], 0
      %s74 = sshll.u32 %s4, 4
      %s75 = int_to_ptr.hbm [resolvable:$true] %s74
      %s76 = sshll.u32 [#allocation10], 4
      %s77 = int_to_ptr.vmem [resolvable:$true] %s76
      %82 = dma.hbm_to_vmem [thread:$0]  %s75, 16384, %s77, [#allocation9], 512, 512, 32
    $region21: #{tpu_custom_call.1} parent=1 // pred_fallthru
      _
    // Predicated region
    $region22: #{tpu_custom_call.1} parent=1 // pred_check
      _
    $region23: #{tpu_custom_call.1} parent=1 // pred_check_branch
      %84 = sbr.rel (0) target = $region25
    $region24: #{tpu_custom_call.1} parent=1 // pred_region
      %86 = vsyncadd [#allocation12], 0
      %s87 = sshll.u32 %s5, 4
      %s88 = int_to_ptr.hbm [resolvable:$true] %s87
      %s89 = sshll.u32 [#allocation11], 4
      %s90 = int_to_ptr.vmem [resolvable:$true] %s89
      %95 = dma.hbm_to_vmem [thread:$0]  %s88, 128, %s90, [#allocation12], 64, 64, 4
    $region25: #{tpu_custom_call.1} parent=1 // pred_fallthru
      _
    // Predicated region
    $region26: #{tpu_custom_call.1} parent=1 // pred_check
      _
    $region27: #{tpu_custom_call.1} parent=1 // pred_check_branch
      %97 = sbr.rel (0) target = $region29
    $region28: #{tpu_custom_call.1} parent=1 // pred_region
      %99 = vsyncadd [#allocation12], 0
      %s100 = sshll.u32 %s6, 4
      %s101 = int_to_ptr.hbm [resolvable:$true] %s100
      %s102 = sshll.u32 [#allocation13], 4
      %s103 = int_to_ptr.vmem [resolvable:$true] %s102
      %108 = dma.hbm_to_vmem [thread:$0]  %s101, 2048, %s103, [#allocation12], 128, 128, 8
    $region29: #{tpu_custom_call.1} parent=1 // pred_fallthru
      _
    // Predicated region
    $region30: #{tpu_custom_call.1} parent=1 // pred_check
      _
    $region31: #{tpu_custom_call.1} parent=1 // pred_check_branch
      %110 = sbr.rel (0) target = $region33
    $region32: #{tpu_custom_call.1} parent=1 // pred_region
      _
    $region33: #{tpu_custom_call.1} parent=1 // pred_fallthru
      _
    // Predicated region
    $region34: #{tpu_custom_call.1} parent=1 // pred_check
      _
    $region35: #{tpu_custom_call.1} parent=1 // pred_check_branch
      %112 = sbr.rel (0) target = $region37
    $region36: #{tpu_custom_call.1} parent=1 // pred_region
      %114 = dma.done [#allocation3], 1024
    $region37: #{tpu_custom_call.1} parent=1 // pred_fallthru
      _
    // Predicated region
    $region38: #{tpu_custom_call.1} parent=1 // pred_check
      _
    $region39: #{tpu_custom_call.1} parent=1 // pred_check_branch
      %116 = sbr.rel (0) target = $region41
    $region40: #{tpu_custom_call.1} parent=1 // pred_region
      %118 = dma.done [#allocation6], 256
    $region41: #{tpu_custom_call.1} parent=1 // pred_fallthru
      _
    // Predicated region
    $region42: #{tpu_custom_call.1} parent=1 // pred_check
      _
    $region43: #{tpu_custom_call.1} parent=1 // pred_check_branch
      %120 = sbr.rel (0) target = $region45
    $region44: #{tpu_custom_call.1} parent=1 // pred_region
      %122 = dma.done [#allocation6], 256
    $region45: #{tpu_custom_call.1} parent=1 // pred_fallthru
      _
    // Predicated region
    $region46: #{tpu_custom_call.1} parent=1 // pred_check
      _
    $region47: #{tpu_custom_call.1} parent=1 // pred_check_branch
      %124 = sbr.rel (0) target = $region49
    $region48: #{tpu_custom_call.1} parent=1 // pred_region
      %126 = dma.done [#allocation9], 16384
    $region49: #{tpu_custom_call.1} parent=1 // pred_fallthru
      _
    // Predicated region
    $region50: #{tpu_custom_call.1} parent=1 // pred_check
      _
    $region51: #{tpu_custom_call.1} parent=1 // pred_check_branch
      %128 = sbr.rel (0) target = $region53
    $region52: #{tpu_custom_call.1} parent=1 // pred_region
      %130 = dma.done [#allocation9], 16384
    $region53: #{tpu_custom_call.1} parent=1 // pred_fallthru
      _
    // Predicated region
    $region54: #{tpu_custom_call.1} parent=1 // pred_check
      _
    $region55: #{tpu_custom_call.1} parent=1 // pred_check_branch
      %132 = sbr.rel (0) target = $region57
    $region56: #{tpu_custom_call.1} parent=1 // pred_region
      %134 = dma.done [#allocation12], 128
    $region57: #{tpu_custom_call.1} parent=1 // pred_fallthru
      _
    // Predicated region
    $region58: #{tpu_custom_call.1} parent=1 // pred_check
      _
    $region59: #{tpu_custom_call.1} parent=1 // pred_check_branch
      %136 = sbr.rel (0) target = $region61
    $region60: #{tpu_custom_call.1} parent=1 // pred_region
      %138 = dma.done [#allocation12], 2048
    $region61: #{tpu_custom_call.1} parent=1 // pred_fallthru
      _
    %v139 = vld [vmem:[#allocation5] sm:$0xff]
    %s140 = scalar_lea.vmem [#allocation5], 8
    %v141 = vld [vmem:[%s140] sm:$0xff]
    %v142 = vld [vmem:[#allocation7] sm:$0xff]
    %s143 = scalar_lea.vmem [#allocation7], 8
    %v144 = vld [vmem:[%s143] sm:$0xff]
    %v145 = vld [vmem:[#allocation2] sm:$0xff]
    %v146 = vld [vmem:[#allocation8] sm:$0xff]
    %v147 = vld [vmem:[#allocation8 + $0x8] sm:$0xff]
    %v148 = vld [vmem:[#allocation8 + $0x10] sm:$0xff]
    %v149 = vld [vmem:[#allocation8 + $0x18] sm:$0xff]
    %v150 = vld [vmem:[#allocation8 + $0x20] sm:$0xff]
    %v151 = vld [vmem:[#allocation8 + $0x28] sm:$0xff]
    %v152 = vld [vmem:[#allocation8 + $0x30] sm:$0xff]
    %v153 = vld [vmem:[#allocation8 + $0x38] sm:$0xff]
    %v154 = vld [vmem:[#allocation8 + $0x40] sm:$0xff]
    %v155 = vld [vmem:[#allocation8 + $0x48] sm:$0xff]
    %v156 = vld [vmem:[#allocation8 + $0x50] sm:$0xff]
    %v157 = vld [vmem:[#allocation8 + $0x58] sm:$0xff]
    %v158 = vld [vmem:[#allocation8 + $0x60] sm:$0xff]
    %v159 = vld [vmem:[#allocation8 + $0x68] sm:$0xff]
    %v160 = vld [vmem:[#allocation8 + $0x70] sm:$0xff]
    %v161 = vld [vmem:[#allocation8 + $0x78] sm:$0xff]
    %v162 = vld [vmem:[#allocation8 + $0x80] sm:$0xff]
    %v163 = vld [vmem:[#allocation8 + $0x88] sm:$0xff]
    %v164 = vld [vmem:[#allocation8 + $0x90] sm:$0xff]
    %v165 = vld [vmem:[#allocation8 + $0x98] sm:$0xff]
    %v166 = vld [vmem:[#allocation8 + $0xa0] sm:$0xff]
    %v167 = vld [vmem:[#allocation8 + $0xa8] sm:$0xff]
    %v168 = vld [vmem:[#allocation8 + $0xb0] sm:$0xff]
    %v169 = vld [vmem:[#allocation8 + $0xb8] sm:$0xff]
    %v170 = vld [vmem:[#allocation8 + $0xc0] sm:$0xff]
    %v171 = vld [vmem:[#allocation8 + $0xc8] sm:$0xff]
    %v172 = vld [vmem:[#allocation8 + $0xd0] sm:$0xff]
    %v173 = vld [vmem:[#allocation8 + $0xd8] sm:$0xff]
    %v174 = vld [vmem:[#allocation8 + $0xe0] sm:$0xff]
    %v175 = vld [vmem:[#allocation8 + $0xe8] sm:$0xff]
    %v176 = vld [vmem:[#allocation8 + $0xf0] sm:$0xff]
    %v177 = vld [vmem:[#allocation8 + $0xf8] sm:$0xff]
    %v178 = vld [vmem:[#allocation8 + $0x100] sm:$0xff]
    %v179 = vld [vmem:[#allocation8 + $0x108] sm:$0xff]
    %v180 = vld [vmem:[#allocation8 + $0x110] sm:$0xff]
    %v181 = vld [vmem:[#allocation8 + $0x118] sm:$0xff]
    %v182 = vld [vmem:[#allocation8 + $0x120] sm:$0xff]
    %v183 = vld [vmem:[#allocation8 + $0x128] sm:$0xff]
    %v184 = vld [vmem:[#allocation8 + $0x130] sm:$0xff]
    %v185 = vld [vmem:[#allocation8 + $0x138] sm:$0xff]
    %v186 = vld [vmem:[#allocation8 + $0x140] sm:$0xff]
    %v187 = vld [vmem:[#allocation8 + $0x148] sm:$0xff]
    %v188 = vld [vmem:[#allocation8 + $0x150] sm:$0xff]
    %v189 = vld [vmem:[#allocation8 + $0x158] sm:$0xff]
    %v190 = vld [vmem:[#allocation8 + $0x160] sm:$0xff]
    %v191 = vld [vmem:[#allocation8 + $0x168] sm:$0xff]
    %v192 = vld [vmem:[#allocation8 + $0x170] sm:$0xff]
    %v193 = vld [vmem:[#allocation8 + $0x178] sm:$0xff]
    %v194 = vld [vmem:[#allocation8 + $0x180] sm:$0xff]
    %v195 = vld [vmem:[#allocation8 + $0x188] sm:$0xff]
    %v196 = vld [vmem:[#allocation8 + $0x190] sm:$0xff]
    %v197 = vld [vmem:[#allocation8 + $0x198] sm:$0xff]
    %v198 = vld [vmem:[#allocation8 + $0x1a0] sm:$0xff]
    %v199 = vld [vmem:[#allocation8 + $0x1a8] sm:$0xff]
    %v200 = vld [vmem:[#allocation8 + $0x1b0] sm:$0xff]
    %v201 = vld [vmem:[#allocation8 + $0x1b8] sm:$0xff]
    %v202 = vld [vmem:[#allocation8 + $0x1c0] sm:$0xff]
    %v203 = vld [vmem:[#allocation8 + $0x1c8] sm:$0xff]
    %v204 = vld [vmem:[#allocation8 + $0x1d0] sm:$0xff]
    %v205 = vld [vmem:[#allocation8 + $0x1d8] sm:$0xff]
    %v206 = vld [vmem:[#allocation8 + $0x1e0] sm:$0xff]
    %v207 = vld [vmem:[#allocation8 + $0x1e8] sm:$0xff]
    %v208 = vld [vmem:[#allocation8 + $0x1f0] sm:$0xff]
    %v209 = vld [vmem:[#allocation8 + $0x1f8] sm:$0xff]
    %v210 = vld [vmem:[#allocation8 + $0x200] sm:$0xff]
    %v211 = vld [vmem:[#allocation8 + $0x208] sm:$0xff]
    %v212 = vld [vmem:[#allocation8 + $0x210] sm:$0xff]
    %v213 = vld [vmem:[#allocation8 + $0x218] sm:$0xff]
    %v214 = vld [vmem:[#allocation8 + $0x220] sm:$0xff]
    %v215 = vld [vmem:[#allocation8 + $0x228] sm:$0xff]
    %v216 = vld [vmem:[#allocation8 + $0x230] sm:$0xff]
    %v217 = vld [vmem:[#allocation8 + $0x238] sm:$0xff]
    %v218 = vld [vmem:[#allocation8 + $0x240] sm:$0xff]
    %v219 = vld [vmem:[#allocation8 + $0x248] sm:$0xff]
    %v220 = vld [vmem:[#allocation8 + $0x250] sm:$0xff]
    %v221 = vld [vmem:[#allocation8 + $0x258] sm:$0xff]
    %v222 = vld [vmem:[#allocation8 + $0x260] sm:$0xff]
    %v223 = vld [vmem:[#allocation8 + $0x268] sm:$0xff]
    %v224 = vld [vmem:[#allocation8 + $0x270] sm:$0xff]
    %v225 = vld [vmem:[#allocation8 + $0x278] sm:$0xff]
    %v226 = vld [vmem:[#allocation8 + $0x280] sm:$0xff]
    %v227 = vld [vmem:[#allocation8 + $0x288] sm:$0xff]
    %v228 = vld [vmem:[#allocation8 + $0x290] sm:$0xff]
    %v229 = vld [vmem:[#allocation8 + $0x298] sm:$0xff]
    %v230 = vld [vmem:[#allocation8 + $0x2a0] sm:$0xff]
    %v231 = vld [vmem:[#allocation8 + $0x2a8] sm:$0xff]
    %v232 = vld [vmem:[#allocation8 + $0x2b0] sm:$0xff]
    %v233 = vld [vmem:[#allocation8 + $0x2b8] sm:$0xff]
    %v234 = vld [vmem:[#allocation8 + $0x2c0] sm:$0xff]
    %v235 = vld [vmem:[#allocation8 + $0x2c8] sm:$0xff]
    %v236 = vld [vmem:[#allocation8 + $0x2d0] sm:$0xff]
    %v237 = vld [vmem:[#allocation8 + $0x2d8] sm:$0xff]
    %v238 = vld [vmem:[#allocation8 + $0x2e0] sm:$0xff]
    %v239 = vld [vmem:[#allocation8 + $0x2e8] sm:$0xff]
    %v240 = vld [vmem:[#allocation8 + $0x2f0] sm:$0xff]
    %v241 = vld [vmem:[#allocation8 + $0x2f8] sm:$0xff]
    %v242 = vld [vmem:[#allocation8 + $0x300] sm:$0xff]
    %v243 = vld [vmem:[#allocation8 + $0x308] sm:$0xff]
    %v244 = vld [vmem:[#allocation8 + $0x310] sm:$0xff]
    %v245 = vld [vmem:[#allocation8 + $0x318] sm:$0xff]
    %v246 = vld [vmem:[#allocation8 + $0x320] sm:$0xff]
    %v247 = vld [vmem:[#allocation8 + $0x328] sm:$0xff]
    %v248 = vld [vmem:[#allocation8 + $0x330] sm:$0xff]
    %v249 = vld [vmem:[#allocation8 + $0x338] sm:$0xff]
    %v250 = vld [vmem:[#allocation8 + $0x340] sm:$0xff]
    %v251 = vld [vmem:[#allocation8 + $0x348] sm:$0xff]
    %v252 = vld [vmem:[#allocation8 + $0x350] sm:$0xff]
    %v253 = vld [vmem:[#allocation8 + $0x358] sm:$0xff]
    %v254 = vld [vmem:[#allocation8 + $0x360] sm:$0xff]
    %v255 = vld [vmem:[#allocation8 + $0x368] sm:$0xff]
    %v256 = vld [vmem:[#allocation8 + $0x370] sm:$0xff]
    %v257 = vld [vmem:[#allocation8 + $0x378] sm:$0xff]
    %v258 = vld [vmem:[#allocation8 + $0x380] sm:$0xff]
    %v259 = vld [vmem:[#allocation8 + $0x388] sm:$0xff]
    %v260 = vld [vmem:[#allocation8 + $0x390] sm:$0xff]
    %v261 = vld [vmem:[#allocation8 + $0x398] sm:$0xff]
    %v262 = vld [vmem:[#allocation8 + $0x3a0] sm:$0xff]
    %v263 = vld [vmem:[#allocation8 + $0x3a8] sm:$0xff]
    %v264 = vld [vmem:[#allocation8 + $0x3b0] sm:$0xff]
    %v265 = vld [vmem:[#allocation8 + $0x3b8] sm:$0xff]
    %v266 = vld [vmem:[#allocation8 + $0x3c0] sm:$0xff]
    %v267 = vld [vmem:[#allocation8 + $0x3c8] sm:$0xff]
    %v268 = vld [vmem:[#allocation8 + $0x3d0] sm:$0xff]
    %v269 = vld [vmem:[#allocation8 + $0x3d8] sm:$0xff]
    %v270 = vld [vmem:[#allocation8 + $0x3e0] sm:$0xff]
    %v271 = vld [vmem:[#allocation8 + $0x3e8] sm:$0xff]
    %v272 = vld [vmem:[#allocation8 + $0x3f0] sm:$0xff]
    %v273 = vld [vmem:[#allocation8 + $0x3f8] sm:$0xff]
    %v274 = vld [vmem:[#allocation11] sm:$0xf]
    %v276 = vperm.slane %v274, 0
    %v277 = vperm.slane %v274, 1
    %v278 = vperm.slane %v274, 2
    %v279 = vperm.slane %v274, 3
    %284 = vmatpush.msra.mxu0 %v206
    %285 = vmatpush.msra.mxu0 %v202
    %286 = vmatpush.msra.mxu0 %v198
    %287 = vmatpush.msra.mxu0 %v194
    %288 = vmatpush.msra.mxu0 %v190
    %289 = vmatpush.msra.mxu0 %v186
    %290 = vmatpush.msra.mxu0 %v182
    %291 = vmatpush.msra.mxu0 %v178
    %292 = vmatpush.msra.mxu0 %v174
    %293 = vmatpush.msra.mxu0 %v170
    %294 = vmatpush.msra.mxu0 %v166
    %295 = vmatpush.msra.mxu0 %v162
    %296 = vmatpush.msra.mxu0 %v158
    %297 = vmatpush.msra.mxu0 %v154
    %298 = vmatpush.msra.mxu0 %v150
    %299 = vmatpush.msra.mxu0 %v146
    %300 = vmatmul.f32.gmra.mxu0 %v145
    %v301 = vpop.f32.mrf.mxu0
    %v302 = vadd.f32 %v276, %v301
    %303 = vdwg.mxu0
    %304 = vmatpush.msra.mxu0 %v270
    %305 = vmatpush.msra.mxu0 %v266
    %306 = vmatpush.msra.mxu0 %v262
    %307 = vmatpush.msra.mxu0 %v258
    %308 = vmatpush.msra.mxu0 %v254
    %309 = vmatpush.msra.mxu0 %v250
    %310 = vmatpush.msra.mxu0 %v246
    %311 = vmatpush.msra.mxu0 %v242
    %312 = vmatpush.msra.mxu0 %v238
    %313 = vmatpush.msra.mxu0 %v234
    %314 = vmatpush.msra.mxu0 %v230
    %315 = vmatpush.msra.mxu0 %v226
    %316 = vmatpush.msra.mxu0 %v222
    %317 = vmatpush.msra.mxu0 %v218
    %318 = vmatpush.msra.mxu0 %v214
    %319 = vmatpush.msra.mxu0 %v210
    %320 = vmatmul.f32.gmra.mxu0 %v139
    %v321 = vpop.f32.mrf.mxu0
    %v322 = vadd.f32 %v302, %v321
    %323 = vdwg.mxu0
    %324 = vmatpush.msra.mxu0 %v207
    %325 = vmatpush.msra.mxu0 %v203
    %326 = vmatpush.msra.mxu0 %v199
    %327 = vmatpush.msra.mxu0 %v195
    %328 = vmatpush.msra.mxu0 %v191
    %329 = vmatpush.msra.mxu0 %v187
    %330 = vmatpush.msra.mxu0 %v183
    %331 = vmatpush.msra.mxu0 %v179
    %332 = vmatpush.msra.mxu0 %v175
    %333 = vmatpush.msra.mxu0 %v171
    %334 = vmatpush.msra.mxu0 %v167
    %335 = vmatpush.msra.mxu0 %v163
    %336 = vmatpush.msra.mxu0 %v159
    %337 = vmatpush.msra.mxu0 %v155
    %338 = vmatpush.msra.mxu0 %v151
    %339 = vmatpush.msra.mxu0 %v147
    %340 = vmatmul.f32.gmra.mxu0 %v145
    %v341 = vpop.f32.mrf.mxu0
    %v342 = vadd.f32 %v277, %v341
    %343 = vdwg.mxu0
    %344 = vmatpush.msra.mxu0 %v271
    %345 = vmatpush.msra.mxu0 %v267
    %346 = vmatpush.msra.mxu0 %v263
    %347 = vmatpush.msra.mxu0 %v259
    %348 = vmatpush.msra.mxu0 %v255
    %349 = vmatpush.msra.mxu0 %v251
    %350 = vmatpush.msra.mxu0 %v247
    %351 = vmatpush.msra.mxu0 %v243
    %352 = vmatpush.msra.mxu0 %v239
    %353 = vmatpush.msra.mxu0 %v235
    %354 = vmatpush.msra.mxu0 %v231
    %355 = vmatpush.msra.mxu0 %v227
    %356 = vmatpush.msra.mxu0 %v223
    %357 = vmatpush.msra.mxu0 %v219
    %358 = vmatpush.msra.mxu0 %v215
    %359 = vmatpush.msra.mxu0 %v211
    %360 = vmatmul.f32.gmra.mxu0 %v139
    %v361 = vpop.f32.mrf.mxu0
    %v362 = vadd.f32 %v342, %v361
    %363 = vdwg.mxu0
    %364 = vmatpush.msra.mxu0 %v208
    %365 = vmatpush.msra.mxu0 %v204
    %366 = vmatpush.msra.mxu0 %v200
    %367 = vmatpush.msra.mxu0 %v196
    %368 = vmatpush.msra.mxu0 %v192
    %369 = vmatpush.msra.mxu0 %v188
    %370 = vmatpush.msra.mxu0 %v184
    %371 = vmatpush.msra.mxu0 %v180
    %372 = vmatpush.msra.mxu0 %v176
    %373 = vmatpush.msra.mxu0 %v172
    %374 = vmatpush.msra.mxu0 %v168
    %375 = vmatpush.msra.mxu0 %v164
    %376 = vmatpush.msra.mxu0 %v160
    %377 = vmatpush.msra.mxu0 %v156
    %378 = vmatpush.msra.mxu0 %v152
    %379 = vmatpush.msra.mxu0 %v148
    %380 = vmatmul.f32.gmra.mxu0 %v145
    %v381 = vpop.f32.mrf.mxu0
    %v382 = vadd.f32 %v278, %v381
    %383 = vdwg.mxu0
    %384 = vmatpush.msra.mxu0 %v272
    %385 = vmatpush.msra.mxu0 %v268
    %386 = vmatpush.msra.mxu0 %v264
    %387 = vmatpush.msra.mxu0 %v260
    %388 = vmatpush.msra.mxu0 %v256
    %389 = vmatpush.msra.mxu0 %v252
    %390 = vmatpush.msra.mxu0 %v248
    %391 = vmatpush.msra.mxu0 %v244
    %392 = vmatpush.msra.mxu0 %v240
    %393 = vmatpush.msra.mxu0 %v236
    %394 = vmatpush.msra.mxu0 %v232
    %395 = vmatpush.msra.mxu0 %v228
    %396 = vmatpush.msra.mxu0 %v224
    %397 = vmatpush.msra.mxu0 %v220
    %398 = vmatpush.msra.mxu0 %v216
    %399 = vmatpush.msra.mxu0 %v212
    %400 = vmatmul.f32.gmra.mxu0 %v139
    %v401 = vpop.f32.mrf.mxu0
    %v402 = vadd.f32 %v382, %v401
    %403 = vdwg.mxu0
    %404 = vmatpush.msra.mxu0 %v209
    %405 = vmatpush.msra.mxu0 %v205
    %406 = vmatpush.msra.mxu0 %v201
    %407 = vmatpush.msra.mxu0 %v197
    %408 = vmatpush.msra.mxu0 %v193
    %409 = vmatpush.msra.mxu0 %v189
    %410 = vmatpush.msra.mxu0 %v185
    %411 = vmatpush.msra.mxu0 %v181
    %412 = vmatpush.msra.mxu0 %v177
    %413 = vmatpush.msra.mxu0 %v173
    %414 = vmatpush.msra.mxu0 %v169
    %415 = vmatpush.msra.mxu0 %v165
    %416 = vmatpush.msra.mxu0 %v161
    %417 = vmatpush.msra.mxu0 %v157
    %418 = vmatpush.msra.mxu0 %v153
    %419 = vmatpush.msra.mxu0 %v149
    %420 = vmatmul.f32.gmra.mxu0 %v145
    %v421 = vpop.f32.mrf.mxu0
    %v422 = vadd.f32 %v279, %v421
    %423 = vdwg.mxu0
    %424 = vmatpush.msra.mxu0 %v273
    %425 = vmatpush.msra.mxu0 %v269
    %426 = vmatpush.msra.mxu0 %v265
    %427 = vmatpush.msra.mxu0 %v261
    %428 = vmatpush.msra.mxu0 %v257
    %429 = vmatpush.msra.mxu0 %v253
    %430 = vmatpush.msra.mxu0 %v249
    %431 = vmatpush.msra.mxu0 %v245
    %432 = vmatpush.msra.mxu0 %v241
    %433 = vmatpush.msra.mxu0 %v237
    %434 = vmatpush.msra.mxu0 %v233
    %435 = vmatpush.msra.mxu0 %v229
    %436 = vmatpush.msra.mxu0 %v225
    %437 = vmatpush.msra.mxu0 %v221
    %438 = vmatpush.msra.mxu0 %v217
    %439 = vmatpush.msra.mxu0 %v213
    %440 = vmatmul.f32.gmra.mxu0 %v139
    %v441 = vpop.f32.mrf.mxu0
    %v442 = vadd.f32 %v422, %v441
    %443 = vdwg.mxu0
    %v444 = vxor.u32 %v322, 2147483648
    %v445 = vmul.f32 %v444, 1.442695
    %v446 = vpow.pop %v445
    %v447 = vadd.f32 %v446, 1.0
    %v448 = vrcp.pop %v447
    %v449 = vmul.f32 %v447, %v448
    %v450 = vsub.f32 1.0, %v449
    %v451 = vmul.f32 %v448, %v450
    %v452 = vadd.f32 %v448, %v451
    %vm453 = vweird.f32 %v447
    %vm454 = vweird.f32 %v448
    %vm455 = vmor %vm453, %vm454
    %v456 = vsel %vm455, %v448, %v452
    %v457 = vand.u32 2147483647, %v447
    %vm458 = vcmp.eq.f32.partialorder %v457, 8.507059e+37
    %v459 = vand.u32 %v447, 2147483648
    %v460 = vor.u32 1.1754944e-38, %v459
    %v461 = vsel %vm458, %v460, %v456
    %v462 = vmul.f32 1.0, %v461
    %v463 = vxor.u32 %v362, 2147483648
    %v464 = vmul.f32 %v463, 1.442695
    %v465 = vpow.pop %v464
    %v466 = vadd.f32 %v465, 1.0
    %v467 = vrcp.pop %v466
    %v468 = vmul.f32 %v466, %v467
    %v469 = vsub.f32 1.0, %v468
    %v470 = vmul.f32 %v467, %v469
    %v471 = vadd.f32 %v467, %v470
    %vm472 = vweird.f32 %v466
    %vm473 = vweird.f32 %v467
    %vm474 = vmor %vm472, %vm473
    %v475 = vsel %vm474, %v467, %v471
    %v476 = vand.u32 2147483647, %v466
    %vm477 = vcmp.eq.f32.partialorder %v476, 8.507059e+37
    %v478 = vand.u32 %v466, 2147483648
    %v479 = vor.u32 1.1754944e-38, %v478
    %v480 = vsel %vm477, %v479, %v475
    %v481 = vmul.f32 1.0, %v480
    %v482 = vtanh.pop %v402
    %v483 = vxor.u32 %v442, 2147483648
    %v484 = vmul.f32 %v483, 1.442695
    %v485 = vpow.pop %v484
    %v486 = vadd.f32 %v485, 1.0
    %v487 = vrcp.pop %v486
    %v488 = vmul.f32 %v486, %v487
    %v489 = vsub.f32 1.0, %v488
    %v490 = vmul.f32 %v487, %v489
    %v491 = vadd.f32 %v487, %v490
    %vm492 = vweird.f32 %v486
    %vm493 = vweird.f32 %v487
    %vm494 = vmor %vm492, %vm493
    %v495 = vsel %vm494, %v487, %v491
    %v496 = vand.u32 2147483647, %v486
    %vm497 = vcmp.eq.f32.partialorder %v496, 8.507059e+37
    %v498 = vand.u32 %v486, 2147483648
    %v499 = vor.u32 1.1754944e-38, %v498
    %v500 = vsel %vm497, %v499, %v495
    %v501 = vmul.f32 1.0, %v500
    %v502 = vmul.f32 %v481, %v142
    %v503 = vmul.f32 %v462, %v482
    %v504 = vadd.f32 %v502, %v503
    %v505 = vtanh.pop %v504
    %v506 = vmul.f32 %v501, %v505
    %v507 = vld [vmem:[#allocation10] sm:$0xff]
    %v508 = vld [vmem:[#allocation10 + $0x8] sm:$0xff]
    %v509 = vld [vmem:[#allocation10 + $0x10] sm:$0xff]
    %v510 = vld [vmem:[#allocation10 + $0x18] sm:$0xff]
    %v511 = vld [vmem:[#allocation10 + $0x20] sm:$0xff]
    %v512 = vld [vmem:[#allocation10 + $0x28] sm:$0xff]
    %v513 = vld [vmem:[#allocation10 + $0x30] sm:$0xff]
    %v514 = vld [vmem:[#allocation10 + $0x38] sm:$0xff]
    %v515 = vld [vmem:[#allocation10 + $0x40] sm:$0xff]
    %v516 = vld [vmem:[#allocation10 + $0x48] sm:$0xff]
    %v517 = vld [vmem:[#allocation10 + $0x50] sm:$0xff]
    %v518 = vld [vmem:[#allocation10 + $0x58] sm:$0xff]
    %v519 = vld [vmem:[#allocation10 + $0x60] sm:$0xff]
    %v520 = vld [vmem:[#allocation10 + $0x68] sm:$0xff]
    %v521 = vld [vmem:[#allocation10 + $0x70] sm:$0xff]
    %v522 = vld [vmem:[#allocation10 + $0x78] sm:$0xff]
    %v523 = vld [vmem:[#allocation10 + $0x80] sm:$0xff]
    %v524 = vld [vmem:[#allocation10 + $0x88] sm:$0xff]
    %v525 = vld [vmem:[#allocation10 + $0x90] sm:$0xff]
    %v526 = vld [vmem:[#allocation10 + $0x98] sm:$0xff]
    %v527 = vld [vmem:[#allocation10 + $0xa0] sm:$0xff]
    %v528 = vld [vmem:[#allocation10 + $0xa8] sm:$0xff]
    %v529 = vld [vmem:[#allocation10 + $0xb0] sm:$0xff]
    %v530 = vld [vmem:[#allocation10 + $0xb8] sm:$0xff]
    %v531 = vld [vmem:[#allocation10 + $0xc0] sm:$0xff]
    %v532 = vld [vmem:[#allocation10 + $0xc8] sm:$0xff]
    %v533 = vld [vmem:[#allocation10 + $0xd0] sm:$0xff]
    %v534 = vld [vmem:[#allocation10 + $0xd8] sm:$0xff]
    %v535 = vld [vmem:[#allocation10 + $0xe0] sm:$0xff]
    %v536 = vld [vmem:[#allocation10 + $0xe8] sm:$0xff]
    %v537 = vld [vmem:[#allocation10 + $0xf0] sm:$0xff]
    %v538 = vld [vmem:[#allocation10 + $0xf8] sm:$0xff]
    %v539 = vld [vmem:[#allocation10 + $0x100] sm:$0xff]
    %v540 = vld [vmem:[#allocation10 + $0x108] sm:$0xff]
    %v541 = vld [vmem:[#allocation10 + $0x110] sm:$0xff]
    %v542 = vld [vmem:[#allocation10 + $0x118] sm:$0xff]
    %v543 = vld [vmem:[#allocation10 + $0x120] sm:$0xff]
    %v544 = vld [vmem:[#allocation10 + $0x128] sm:$0xff]
    %v545 = vld [vmem:[#allocation10 + $0x130] sm:$0xff]
    %v546 = vld [vmem:[#allocation10 + $0x138] sm:$0xff]
    %v547 = vld [vmem:[#allocation10 + $0x140] sm:$0xff]
    %v548 = vld [vmem:[#allocation10 + $0x148] sm:$0xff]
    %v549 = vld [vmem:[#allocation10 + $0x150] sm:$0xff]
    %v550 = vld [vmem:[#allocation10 + $0x158] sm:$0xff]
    %v551 = vld [vmem:[#allocation10 + $0x160] sm:$0xff]
    %v552 = vld [vmem:[#allocation10 + $0x168] sm:$0xff]
    %v553 = vld [vmem:[#allocation10 + $0x170] sm:$0xff]
    %v554 = vld [vmem:[#allocation10 + $0x178] sm:$0xff]
    %v555 = vld [vmem:[#allocation10 + $0x180] sm:$0xff]
    %v556 = vld [vmem:[#allocation10 + $0x188] sm:$0xff]
    %v557 = vld [vmem:[#allocation10 + $0x190] sm:$0xff]
    %v558 = vld [vmem:[#allocation10 + $0x198] sm:$0xff]
    %v559 = vld [vmem:[#allocation10 + $0x1a0] sm:$0xff]
    %v560 = vld [vmem:[#allocation10 + $0x1a8] sm:$0xff]
    %v561 = vld [vmem:[#allocation10 + $0x1b0] sm:$0xff]
    %v562 = vld [vmem:[#allocation10 + $0x1b8] sm:$0xff]
    %v563 = vld [vmem:[#allocation10 + $0x1c0] sm:$0xff]
    %v564 = vld [vmem:[#allocation10 + $0x1c8] sm:$0xff]
    %v565 = vld [vmem:[#allocation10 + $0x1d0] sm:$0xff]
    %v566 = vld [vmem:[#allocation10 + $0x1d8] sm:$0xff]
    %v567 = vld [vmem:[#allocation10 + $0x1e0] sm:$0xff]
    %v568 = vld [vmem:[#allocation10 + $0x1e8] sm:$0xff]
    %v569 = vld [vmem:[#allocation10 + $0x1f0] sm:$0xff]
    %v570 = vld [vmem:[#allocation10 + $0x1f8] sm:$0xff]
    %v571 = vld [vmem:[#allocation10 + $0x200] sm:$0xff]
    %v572 = vld [vmem:[#allocation10 + $0x208] sm:$0xff]
    %v573 = vld [vmem:[#allocation10 + $0x210] sm:$0xff]
    %v574 = vld [vmem:[#allocation10 + $0x218] sm:$0xff]
    %v575 = vld [vmem:[#allocation10 + $0x220] sm:$0xff]
    %v576 = vld [vmem:[#allocation10 + $0x228] sm:$0xff]
    %v577 = vld [vmem:[#allocation10 + $0x230] sm:$0xff]
    %v578 = vld [vmem:[#allocation10 + $0x238] sm:$0xff]
    %v579 = vld [vmem:[#allocation10 + $0x240] sm:$0xff]
    %v580 = vld [vmem:[#allocation10 + $0x248] sm:$0xff]
    %v581 = vld [vmem:[#allocation10 + $0x250] sm:$0xff]
    %v582 = vld [vmem:[#allocation10 + $0x258] sm:$0xff]
    %v583 = vld [vmem:[#allocation10 + $0x260] sm:$0xff]
    %v584 = vld [vmem:[#allocation10 + $0x268] sm:$0xff]
    %v585 = vld [vmem:[#allocation10 + $0x270] sm:$0xff]
    %v586 = vld [vmem:[#allocation10 + $0x278] sm:$0xff]
    %v587 = vld [vmem:[#allocation10 + $0x280] sm:$0xff]
    %v588 = vld [vmem:[#allocation10 + $0x288] sm:$0xff]
    %v589 = vld [vmem:[#allocation10 + $0x290] sm:$0xff]
    %v590 = vld [vmem:[#allocation10 + $0x298] sm:$0xff]
    %v591 = vld [vmem:[#allocation10 + $0x2a0] sm:$0xff]
    %v592 = vld [vmem:[#allocation10 + $0x2a8] sm:$0xff]
    %v593 = vld [vmem:[#allocation10 + $0x2b0] sm:$0xff]
    %v594 = vld [vmem:[#allocation10 + $0x2b8] sm:$0xff]
    %v595 = vld [vmem:[#allocation10 + $0x2c0] sm:$0xff]
    %v596 = vld [vmem:[#allocation10 + $0x2c8] sm:$0xff]
    %v597 = vld [vmem:[#allocation10 + $0x2d0] sm:$0xff]
    %v598 = vld [vmem:[#allocation10 + $0x2d8] sm:$0xff]
    %v599 = vld [vmem:[#allocation10 + $0x2e0] sm:$0xff]
    %v600 = vld [vmem:[#allocation10 + $0x2e8] sm:$0xff]
    %v601 = vld [vmem:[#allocation10 + $0x2f0] sm:$0xff]
    %v602 = vld [vmem:[#allocation10 + $0x2f8] sm:$0xff]
    %v603 = vld [vmem:[#allocation10 + $0x300] sm:$0xff]
    %v604 = vld [vmem:[#allocation10 + $0x308] sm:$0xff]
    %v605 = vld [vmem:[#allocation10 + $0x310] sm:$0xff]
    %v606 = vld [vmem:[#allocation10 + $0x318] sm:$0xff]
    %v607 = vld [vmem:[#allocation10 + $0x320] sm:$0xff]
    %v608 = vld [vmem:[#allocation10 + $0x328] sm:$0xff]
    %v609 = vld [vmem:[#allocation10 + $0x330] sm:$0xff]
    %v610 = vld [vmem:[#allocation10 + $0x338] sm:$0xff]
    %v611 = vld [vmem:[#allocation10 + $0x340] sm:$0xff]
    %v612 = vld [vmem:[#allocation10 + $0x348] sm:$0xff]
    %v613 = vld [vmem:[#allocation10 + $0x350] sm:$0xff]
    %v614 = vld [vmem:[#allocation10 + $0x358] sm:$0xff]
    %v615 = vld [vmem:[#allocation10 + $0x360] sm:$0xff]
    %v616 = vld [vmem:[#allocation10 + $0x368] sm:$0xff]
    %v617 = vld [vmem:[#allocation10 + $0x370] sm:$0xff]
    %v618 = vld [vmem:[#allocation10 + $0x378] sm:$0xff]
    %v619 = vld [vmem:[#allocation10 + $0x380] sm:$0xff]
    %v620 = vld [vmem:[#allocation10 + $0x388] sm:$0xff]
    %v621 = vld [vmem:[#allocation10 + $0x390] sm:$0xff]
    %v622 = vld [vmem:[#allocation10 + $0x398] sm:$0xff]
    %v623 = vld [vmem:[#allocation10 + $0x3a0] sm:$0xff]
    %v624 = vld [vmem:[#allocation10 + $0x3a8] sm:$0xff]
    %v625 = vld [vmem:[#allocation10 + $0x3b0] sm:$0xff]
    %v626 = vld [vmem:[#allocation10 + $0x3b8] sm:$0xff]
    %v627 = vld [vmem:[#allocation10 + $0x3c0] sm:$0xff]
    %v628 = vld [vmem:[#allocation10 + $0x3c8] sm:$0xff]
    %v629 = vld [vmem:[#allocation10 + $0x3d0] sm:$0xff]
    %v630 = vld [vmem:[#allocation10 + $0x3d8] sm:$0xff]
    %v631 = vld [vmem:[#allocation10 + $0x3e0] sm:$0xff]
    %v632 = vld [vmem:[#allocation10 + $0x3e8] sm:$0xff]
    %v633 = vld [vmem:[#allocation10 + $0x3f0] sm:$0xff]
    %v634 = vld [vmem:[#allocation10 + $0x3f8] sm:$0xff]
    %s635 = scalar_lea.vmem [#allocation11], 4
    %v636 = vld [vmem:[%s635] sm:$0xf]
    %v638 = vperm.slane %v636, 0
    %v639 = vperm.slane %v636, 1
    %v640 = vperm.slane %v636, 2
    %v641 = vperm.slane %v636, 3
    %646 = vmatpush.msra.mxu0 %v567
    %647 = vmatpush.msra.mxu0 %v563
    %648 = vmatpush.msra.mxu0 %v559
    %649 = vmatpush.msra.mxu0 %v555
    %650 = vmatpush.msra.mxu0 %v551
    %651 = vmatpush.msra.mxu0 %v547
    %652 = vmatpush.msra.mxu0 %v543
    %653 = vmatpush.msra.mxu0 %v539
    %654 = vmatpush.msra.mxu0 %v535
    %655 = vmatpush.msra.mxu0 %v531
    %656 = vmatpush.msra.mxu0 %v527
    %657 = vmatpush.msra.mxu0 %v523
    %658 = vmatpush.msra.mxu0 %v519
    %659 = vmatpush.msra.mxu0 %v515
    %660 = vmatpush.msra.mxu0 %v511
    %661 = vmatpush.msra.mxu0 %v507
    %662 = vmatmul.f32.gmra.mxu0 %v506
    %v663 = vpop.f32.mrf.mxu0
    %v664 = vadd.f32 %v638, %v663
    %665 = vdwg.mxu0
    %666 = vmatpush.msra.mxu0 %v631
    %667 = vmatpush.msra.mxu0 %v627
    %668 = vmatpush.msra.mxu0 %v623
    %669 = vmatpush.msra.mxu0 %v619
    %670 = vmatpush.msra.mxu0 %v615
    %671 = vmatpush.msra.mxu0 %v611
    %672 = vmatpush.msra.mxu0 %v607
    %673 = vmatpush.msra.mxu0 %v603
    %674 = vmatpush.msra.mxu0 %v599
    %675 = vmatpush.msra.mxu0 %v595
    %676 = vmatpush.msra.mxu0 %v591
    %677 = vmatpush.msra.mxu0 %v587
    %678 = vmatpush.msra.mxu0 %v583
    %679 = vmatpush.msra.mxu0 %v579
    %680 = vmatpush.msra.mxu0 %v575
    %681 = vmatpush.msra.mxu0 %v571
    %682 = vmatmul.f32.gmra.mxu0 %v141
    %v683 = vpop.f32.mrf.mxu0
    %v684 = vadd.f32 %v664, %v683
    %685 = vdwg.mxu0
    %686 = vmatpush.msra.mxu0 %v568
    %687 = vmatpush.msra.mxu0 %v564
    %688 = vmatpush.msra.mxu0 %v560
    %689 = vmatpush.msra.mxu0 %v556
    %690 = vmatpush.msra.mxu0 %v552
    %691 = vmatpush.msra.mxu0 %v548
    %692 = vmatpush.msra.mxu0 %v544
    %693 = vmatpush.msra.mxu0 %v540
    %694 = vmatpush.msra.mxu0 %v536
    %695 = vmatpush.msra.mxu0 %v532
    %696 = vmatpush.msra.mxu0 %v528
    %697 = vmatpush.msra.mxu0 %v524
    %698 = vmatpush.msra.mxu0 %v520
    %699 = vmatpush.msra.mxu0 %v516
    %700 = vmatpush.msra.mxu0 %v512
    %701 = vmatpush.msra.mxu0 %v508
    %702 = vmatmul.f32.gmra.mxu0 %v506
    %v703 = vpop.f32.mrf.mxu0
    %v704 = vadd.f32 %v639, %v703
    %705 = vdwg.mxu0
    %706 = vmatpush.msra.mxu0 %v632
    %707 = vmatpush.msra.mxu0 %v628
    %708 = vmatpush.msra.mxu0 %v624
    %709 = vmatpush.msra.mxu0 %v620
    %710 = vmatpush.msra.mxu0 %v616
    %711 = vmatpush.msra.mxu0 %v612
    %712 = vmatpush.msra.mxu0 %v608
    %713 = vmatpush.msra.mxu0 %v604
    %714 = vmatpush.msra.mxu0 %v600
    %715 = vmatpush.msra.mxu0 %v596
    %716 = vmatpush.msra.mxu0 %v592
    %717 = vmatpush.msra.mxu0 %v588
    %718 = vmatpush.msra.mxu0 %v584
    %719 = vmatpush.msra.mxu0 %v580
    %720 = vmatpush.msra.mxu0 %v576
    %721 = vmatpush.msra.mxu0 %v572
    %722 = vmatmul.f32.gmra.mxu0 %v141
    %v723 = vpop.f32.mrf.mxu0
    %v724 = vadd.f32 %v704, %v723
    %725 = vdwg.mxu0
    %726 = vmatpush.msra.mxu0 %v569
    %727 = vmatpush.msra.mxu0 %v565
    %728 = vmatpush.msra.mxu0 %v561
    %729 = vmatpush.msra.mxu0 %v557
    %730 = vmatpush.msra.mxu0 %v553
    %731 = vmatpush.msra.mxu0 %v549
    %732 = vmatpush.msra.mxu0 %v545
    %733 = vmatpush.msra.mxu0 %v541
    %734 = vmatpush.msra.mxu0 %v537
    %735 = vmatpush.msra.mxu0 %v533
    %736 = vmatpush.msra.mxu0 %v529
    %737 = vmatpush.msra.mxu0 %v525
    %738 = vmatpush.msra.mxu0 %v521
    %739 = vmatpush.msra.mxu0 %v517
    %740 = vmatpush.msra.mxu0 %v513
    %741 = vmatpush.msra.mxu0 %v509
    %742 = vmatmul.f32.gmra.mxu0 %v506
    %v743 = vpop.f32.mrf.mxu0
    %v744 = vadd.f32 %v640, %v743
    %745 = vdwg.mxu0
    %746 = vmatpush.msra.mxu0 %v633
    %747 = vmatpush.msra.mxu0 %v629
    %748 = vmatpush.msra.mxu0 %v625
    %749 = vmatpush.msra.mxu0 %v621
    %750 = vmatpush.msra.mxu0 %v617
    %751 = vmatpush.msra.mxu0 %v613
    %752 = vmatpush.msra.mxu0 %v609
    %753 = vmatpush.msra.mxu0 %v605
    %754 = vmatpush.msra.mxu0 %v601
    %755 = vmatpush.msra.mxu0 %v597
    %756 = vmatpush.msra.mxu0 %v593
    %757 = vmatpush.msra.mxu0 %v589
    %758 = vmatpush.msra.mxu0 %v585
    %759 = vmatpush.msra.mxu0 %v581
    %760 = vmatpush.msra.mxu0 %v577
    %761 = vmatpush.msra.mxu0 %v573
    %762 = vmatmul.f32.gmra.mxu0 %v141
    %v763 = vpop.f32.mrf.mxu0
    %v764 = vadd.f32 %v744, %v763
    %765 = vdwg.mxu0
    %766 = vmatpush.msra.mxu0 %v570
    %767 = vmatpush.msra.mxu0 %v566
    %768 = vmatpush.msra.mxu0 %v562
    %769 = vmatpush.msra.mxu0 %v558
    %770 = vmatpush.msra.mxu0 %v554
    %771 = vmatpush.msra.mxu0 %v550
    %772 = vmatpush.msra.mxu0 %v546
    %773 = vmatpush.msra.mxu0 %v542
    %774 = vmatpush.msra.mxu0 %v538
    %775 = vmatpush.msra.mxu0 %v534
    %776 = vmatpush.msra.mxu0 %v530
    %777 = vmatpush.msra.mxu0 %v526
    %778 = vmatpush.msra.mxu0 %v522
    %779 = vmatpush.msra.mxu0 %v518
    %780 = vmatpush.msra.mxu0 %v514
    %781 = vmatpush.msra.mxu0 %v510
    %782 = vmatmul.f32.gmra.mxu0 %v506
    %v783 = vpop.f32.mrf.mxu0
    %v784 = vadd.f32 %v641, %v783
    %785 = vdwg.mxu0
    %786 = vmatpush.msra.mxu0 %v634
    %787 = vmatpush.msra.mxu0 %v630
    %788 = vmatpush.msra.mxu0 %v626
    %789 = vmatpush.msra.mxu0 %v622
    %790 = vmatpush.msra.mxu0 %v618
    %791 = vmatpush.msra.mxu0 %v614
    %792 = vmatpush.msra.mxu0 %v610
    %793 = vmatpush.msra.mxu0 %v606
    %794 = vmatpush.msra.mxu0 %v602
    %795 = vmatpush.msra.mxu0 %v598
    %796 = vmatpush.msra.mxu0 %v594
    %797 = vmatpush.msra.mxu0 %v590
    %798 = vmatpush.msra.mxu0 %v586
    %799 = vmatpush.msra.mxu0 %v582
    %800 = vmatpush.msra.mxu0 %v578
    %801 = vmatpush.msra.mxu0 %v574
    %802 = vmatmul.f32.gmra.mxu0 %v141
    %v803 = vpop.f32.mrf.mxu0
    %v804 = vadd.f32 %v784, %v803
    %805 = vdwg.mxu0
    %v806 = vxor.u32 %v684, 2147483648
    %v807 = vmul.f32 %v806, 1.442695
    %v808 = vpow.pop %v807
    %v809 = vadd.f32 %v808, 1.0
    %v810 = vrcp.pop %v809
    %v811 = vmul.f32 %v809, %v810
    %v812 = vsub.f32 1.0, %v811
    %v813 = vmul.f32 %v810, %v812
    %v814 = vadd.f32 %v810, %v813
    %vm815 = vweird.f32 %v809
    %vm816 = vweird.f32 %v810
    %vm817 = vmor %vm815, %vm816
    %v818 = vsel %vm817, %v810, %v814
    %v819 = vand.u32 2147483647, %v809
    %vm820 = vcmp.eq.f32.partialorder %v819, 8.507059e+37
    %v821 = vand.u32 %v809, 2147483648
    %v822 = vor.u32 1.1754944e-38, %v821
    %v823 = vsel %vm820, %v822, %v818
    %v824 = vmul.f32 1.0, %v823
    %v825 = vxor.u32 %v724, 2147483648
    %v826 = vmul.f32 %v825, 1.442695
    %v827 = vpow.pop %v826
    %v828 = vadd.f32 %v827, 1.0
    %v829 = vrcp.pop %v828
    %v830 = vmul.f32 %v828, %v829
    %v831 = vsub.f32 1.0, %v830
    %v832 = vmul.f32 %v829, %v831
    %v833 = vadd.f32 %v829, %v832
    %vm834 = vweird.f32 %v828
    %vm835 = vweird.f32 %v829
    %vm836 = vmor %vm834, %vm835
    %v837 = vsel %vm836, %v829, %v833
    %v838 = vand.u32 2147483647, %v828
    %vm839 = vcmp.eq.f32.partialorder %v838, 8.507059e+37
    %v840 = vand.u32 %v828, 2147483648
    %v841 = vor.u32 1.1754944e-38, %v840
    %v842 = vsel %vm839, %v841, %v837
    %v843 = vmul.f32 1.0, %v842
    %v844 = vtanh.pop %v764
    %v845 = vxor.u32 %v804, 2147483648
    %v846 = vmul.f32 %v845, 1.442695
    %v847 = vpow.pop %v846
    %v848 = vadd.f32 %v847, 1.0
    %v849 = vrcp.pop %v848
    %v850 = vmul.f32 %v848, %v849
    %v851 = vsub.f32 1.0, %v850
    %v852 = vmul.f32 %v849, %v851
    %v853 = vadd.f32 %v849, %v852
    %vm854 = vweird.f32 %v848
    %vm855 = vweird.f32 %v849
    %vm856 = vmor %vm854, %vm855
    %v857 = vsel %vm856, %v849, %v853
    %v858 = vand.u32 2147483647, %v848
    %vm859 = vcmp.eq.f32.partialorder %v858, 8.507059e+37
    %v860 = vand.u32 %v848, 2147483648
    %v861 = vor.u32 1.1754944e-38, %v860
    %v862 = vsel %vm859, %v861, %v857
    %v863 = vmul.f32 1.0, %v862
    %v864 = vmul.f32 %v843, %v144
    %v865 = vmul.f32 %v824, %v844
    %v866 = vadd.f32 %v864, %v865
    %v867 = vtanh.pop %v866
    %v868 = vmul.f32 %v863, %v867
    %v869 = vld [vmem:[#allocation13] sm:$0xff]
    %v870 = vld [vmem:[#allocation13 + $0x8] sm:$0xff]
    %v871 = vld [vmem:[#allocation13 + $0x10] sm:$0xff]
    %v872 = vld [vmem:[#allocation13 + $0x18] sm:$0xff]
    %v873 = vld [vmem:[#allocation13 + $0x20] sm:$0xff]
    %v874 = vld [vmem:[#allocation13 + $0x28] sm:$0xff]
    %v875 = vld [vmem:[#allocation13 + $0x30] sm:$0xff]
    %v876 = vld [vmem:[#allocation13 + $0x38] sm:$0xff]
    %v877 = vld [vmem:[#allocation13 + $0x40] sm:$0xff]
    %v878 = vld [vmem:[#allocation13 + $0x48] sm:$0xff]
    %v879 = vld [vmem:[#allocation13 + $0x50] sm:$0xff]
    %v880 = vld [vmem:[#allocation13 + $0x58] sm:$0xff]
    %v881 = vld [vmem:[#allocation13 + $0x60] sm:$0xff]
    %v882 = vld [vmem:[#allocation13 + $0x68] sm:$0xff]
    %v883 = vld [vmem:[#allocation13 + $0x70] sm:$0xff]
    %v884 = vld [vmem:[#allocation13 + $0x78] sm:$0xff]
    %v885 = vld [vmem:[%s7] sm:$0x1]
    %v887 = vperm.slane %v885, 0
    %889 = vmatpush.msra.mxu0 %v884
    %890 = vmatpush.msra.mxu0 %v883
    %891 = vmatpush.msra.mxu0 %v882
    %892 = vmatpush.msra.mxu0 %v881
    %893 = vmatpush.msra.mxu0 %v880
    %894 = vmatpush.msra.mxu0 %v879
    %895 = vmatpush.msra.mxu0 %v878
    %896 = vmatpush.msra.mxu0 %v877
    %897 = vmatpush.msra.mxu0 %v876
    %898 = vmatpush.msra.mxu0 %v875
    %899 = vmatpush.msra.mxu0 %v874
    %900 = vmatpush.msra.mxu0 %v873
    %901 = vmatpush.msra.mxu0 %v872
    %902 = vmatpush.msra.mxu0 %v871
    %903 = vmatpush.msra.mxu0 %v870
    %904 = vmatpush.msra.mxu0 %v869
    %905 = vmatmul.f32.gmra.mxu0 %v868
    %v906 = vpop.f32.mrf.mxu0
    %v907 = vadd.f32 %v887, %v906
    %908 = vdwg.mxu0
    %909 = vmax.xlane.f32.xlu0 %v907
    %v910 = vpop.xlane.xlu0 %909
    %v911 = vsub.f32 %v907, %v910
    %v912 = vmul.f32 %v911, 1.442695
    %v913 = vpow.pop %v912
    %914 = vadd.xlane.f32.xlu0 %v913
    %v915 = vpop.xlane.xlu0 %914
    %v916 = vrcp.pop %v915
    %v917 = vmul.f32 %v913, %v916
    %918 = vst [vmem:[#allocation14] sm:$0xff] %v917
    %s919 = scalar_lea.vmem [#allocation2], 8
    %v920 = vld [vmem:[%s919] sm:$0xff]
    %v921 = vld [vmem:[#allocation8] sm:$0xff]
    %v922 = vld [vmem:[#allocation8 + $0x8] sm:$0xff]
    %v923 = vld [vmem:[#allocation8 + $0x10] sm:$0xff]
    %v924 = vld [vmem:[#allocation8 + $0x18] sm:$0xff]
    %v925 = vld [vmem:[#allocation8 + $0x20] sm:$0xff]
    %v926 = vld [vmem:[#allocation8 + $0x28] sm:$0xff]
    %v927 = vld [vmem:[#allocation8 + $0x30] sm:$0xff]
    %v928 = vld [vmem:[#allocation8 + $0x38] sm:$0xff]
    %v929 = vld [vmem:[#allocation8 + $0x40] sm:$0xff]
    %v930 = vld [vmem:[#allocation8 + $0x48] sm:$0xff]
    %v931 = vld [vmem:[#allocation8 + $0x50] sm:$0xff]
    %v932 = vld [vmem:[#allocation8 + $0x58] sm:$0xff]
    %v933 = vld [vmem:[#allocation8 + $0x60] sm:$0xff]
    %v934 = vld [vmem:[#allocation8 + $0x68] sm:$0xff]
    %v935 = vld [vmem:[#allocation8 + $0x70] sm:$0xff]
    %v936 = vld [vmem:[#allocation8 + $0x78] sm:$0xff]
    %v937 = vld [vmem:[#allocation8 + $0x80] sm:$0xff]
    %v938 = vld [vmem:[#allocation8 + $0x88] sm:$0xff]
    %v939 = vld [vmem:[#allocation8 + $0x90] sm:$0xff]
    %v940 = vld [vmem:[#allocation8 + $0x98] sm:$0xff]
    %v941 = vld [vmem:[#allocation8 + $0xa0] sm:$0xff]
    %v942 = vld [vmem:[#allocation8 + $0xa8] sm:$0xff]
    %v943 = vld [vmem:[#allocation8 + $0xb0] sm:$0xff]
    %v944 = vld [vmem:[#allocation8 + $0xb8] sm:$0xff]
    %v945 = vld [vmem:[#allocation8 + $0xc0] sm:$0xff]
    %v946 = vld [vmem:[#allocation8 + $0xc8] sm:$0xff]
    %v947 = vld [vmem:[#allocation8 + $0xd0] sm:$0xff]
    %v948 = vld [vmem:[#allocation8 + $0xd8] sm:$0xff]
    %v949 = vld [vmem:[#allocation8 + $0xe0] sm:$0xff]
    %v950 = vld [vmem:[#allocation8 + $0xe8] sm:$0xff]
    %v951 = vld [vmem:[#allocation8 + $0xf0] sm:$0xff]
    %v952 = vld [vmem:[#allocation8 + $0xf8] sm:$0xff]
    %v953 = vld [vmem:[#allocation8 + $0x100] sm:$0xff]
    %v954 = vld [vmem:[#allocation8 + $0x108] sm:$0xff]
    %v955 = vld [vmem:[#allocation8 + $0x110] sm:$0xff]
    %v956 = vld [vmem:[#allocation8 + $0x118] sm:$0xff]
    %v957 = vld [vmem:[#allocation8 + $0x120] sm:$0xff]
    %v958 = vld [vmem:[#allocation8 + $0x128] sm:$0xff]
    %v959 = vld [vmem:[#allocation8 + $0x130] sm:$0xff]
    %v960 = vld [vmem:[#allocation8 + $0x138] sm:$0xff]
    %v961 = vld [vmem:[#allocation8 + $0x140] sm:$0xff]
    %v962 = vld [vmem:[#allocation8 + $0x148] sm:$0xff]
    %v963 = vld [vmem:[#allocation8 + $0x150] sm:$0xff]
    %v964 = vld [vmem:[#allocation8 + $0x158] sm:$0xff]
    %v965 = vld [vmem:[#allocation8 + $0x160] sm:$0xff]
    %v966 = vld [vmem:[#allocation8 + $0x168] sm:$0xff]
    %v967 = vld [vmem:[#allocation8 + $0x170] sm:$0xff]
    %v968 = vld [vmem:[#allocation8 + $0x178] sm:$0xff]
    %v969 = vld [vmem:[#allocation8 + $0x180] sm:$0xff]
    %v970 = vld [vmem:[#allocation8 + $0x188] sm:$0xff]
    %v971 = vld [vmem:[#allocation8 + $0x190] sm:$0xff]
    %v972 = vld [vmem:[#allocation8 + $0x198] sm:$0xff]
    %v973 = vld [vmem:[#allocation8 + $0x1a0] sm:$0xff]
    %v974 = vld [vmem:[#allocation8 + $0x1a8] sm:$0xff]
    %v975 = vld [vmem:[#allocation8 + $0x1b0] sm:$0xff]
    %v976 = vld [vmem:[#allocation8 + $0x1b8] sm:$0xff]
    %v977 = vld [vmem:[#allocation8 + $0x1c0] sm:$0xff]
    %v978 = vld [vmem:[#allocation8 + $0x1c8] sm:$0xff]
    %v979 = vld [vmem:[#allocation8 + $0x1d0] sm:$0xff]
    %v980 = vld [vmem:[#allocation8 + $0x1d8] sm:$0xff]
    %v981 = vld [vmem:[#allocation8 + $0x1e0] sm:$0xff]
    %v982 = vld [vmem:[#allocation8 + $0x1e8] sm:$0xff]
    %v983 = vld [vmem:[#allocation8 + $0x1f0] sm:$0xff]
    %v984 = vld [vmem:[#allocation8 + $0x1f8] sm:$0xff]
    %v985 = vld [vmem:[#allocation8 + $0x200] sm:$0xff]
    %v986 = vld [vmem:[#allocation8 + $0x208] sm:$0xff]
    %v987 = vld [vmem:[#allocation8 + $0x210] sm:$0xff]
    %v988 = vld [vmem:[#allocation8 + $0x218] sm:$0xff]
    %v989 = vld [vmem:[#allocation8 + $0x220] sm:$0xff]
    %v990 = vld [vmem:[#allocation8 + $0x228] sm:$0xff]
    %v991 = vld [vmem:[#allocation8 + $0x230] sm:$0xff]
    %v992 = vld [vmem:[#allocation8 + $0x238] sm:$0xff]
    %v993 = vld [vmem:[#allocation8 + $0x240] sm:$0xff]
    %v994 = vld [vmem:[#allocation8 + $0x248] sm:$0xff]
    %v995 = vld [vmem:[#allocation8 + $0x250] sm:$0xff]
    %v996 = vld [vmem:[#allocation8 + $0x258] sm:$0xff]
    %v997 = vld [vmem:[#allocation8 + $0x260] sm:$0xff]
    %v998 = vld [vmem:[#allocation8 + $0x268] sm:$0xff]
    %v999 = vld [vmem:[#allocation8 + $0x270] sm:$0xff]
    %v1000 = vld [vmem:[#allocation8 + $0x278] sm:$0xff]
    %v1001 = vld [vmem:[#allocation8 + $0x280] sm:$0xff]
    %v1002 = vld [vmem:[#allocation8 + $0x288] sm:$0xff]
    %v1003 = vld [vmem:[#allocation8 + $0x290] sm:$0xff]
    %v1004 = vld [vmem:[#allocation8 + $0x298] sm:$0xff]
    %v1005 = vld [vmem:[#allocation8 + $0x2a0] sm:$0xff]
    %v1006 = vld [vmem:[#allocation8 + $0x2a8] sm:$0xff]
    %v1007 = vld [vmem:[#allocation8 + $0x2b0] sm:$0xff]
    %v1008 = vld [vmem:[#allocation8 + $0x2b8] sm:$0xff]
    %v1009 = vld [vmem:[#allocation8 + $0x2c0] sm:$0xff]
    %v1010 = vld [vmem:[#allocation8 + $0x2c8] sm:$0xff]
    %v1011 = vld [vmem:[#allocation8 + $0x2d0] sm:$0xff]
    %v1012 = vld [vmem:[#allocation8 + $0x2d8] sm:$0xff]
    %v1013 = vld [vmem:[#allocation8 + $0x2e0] sm:$0xff]
    %v1014 = vld [vmem:[#allocation8 + $0x2e8] sm:$0xff]
    %v1015 = vld [vmem:[#allocation8 + $0x2f0] sm:$0xff]
    %v1016 = vld [vmem:[#allocation8 + $0x2f8] sm:$0xff]
    %v1017 = vld [vmem:[#allocation8 + $0x300] sm:$0xff]
    %v1018 = vld [vmem:[#allocation8 + $0x308] sm:$0xff]
    %v1019 = vld [vmem:[#allocation8 + $0x310] sm:$0xff]
    %v1020 = vld [vmem:[#allocation8 + $0x318] sm:$0xff]
    %v1021 = vld [vmem:[#allocation8 + $0x320] sm:$0xff]
    %v1022 = vld [vmem:[#allocation8 + $0x328] sm:$0xff]
    %v1023 = vld [vmem:[#allocation8 + $0x330] sm:$0xff]
    %v1024 = vld [vmem:[#allocation8 + $0x338] sm:$0xff]
    %v1025 = vld [vmem:[#allocation8 + $0x340] sm:$0xff]
    %v1026 = vld [vmem:[#allocation8 + $0x348] sm:$0xff]
    %v1027 = vld [vmem:[#allocation8 + $0x350] sm:$0xff]
    %v1028 = vld [vmem:[#allocation8 + $0x358] sm:$0xff]
    %v1029 = vld [vmem:[#allocation8 + $0x360] sm:$0xff]
    %v1030 = vld [vmem:[#allocation8 + $0x368] sm:$0xff]
    %v1031 = vld [vmem:[#allocation8 + $0x370] sm:$0xff]
    %v1032 = vld [vmem:[#allocation8 + $0x378] sm:$0xff]
    %v1033 = vld [vmem:[#allocation8 + $0x380] sm:$0xff]
    %v1034 = vld [vmem:[#allocation8 + $0x388] sm:$0xff]
    %v1035 = vld [vmem:[#allocation8 + $0x390] sm:$0xff]
    %v1036 = vld [vmem:[#allocation8 + $0x398] sm:$0xff]
    %v1037 = vld [vmem:[#allocation8 + $0x3a0] sm:$0xff]
    %v1038 = vld [vmem:[#allocation8 + $0x3a8] sm:$0xff]
    %v1039 = vld [vmem:[#allocation8 + $0x3b0] sm:$0xff]
    %v1040 = vld [vmem:[#allocation8 + $0x3b8] sm:$0xff]
    %v1041 = vld [vmem:[#allocation8 + $0x3c0] sm:$0xff]
    %v1042 = vld [vmem:[#allocation8 + $0x3c8] sm:$0xff]
    %v1043 = vld [vmem:[#allocation8 + $0x3d0] sm:$0xff]
    %v1044 = vld [vmem:[#allocation8 + $0x3d8] sm:$0xff]
    %v1045 = vld [vmem:[#allocation8 + $0x3e0] sm:$0xff]
    %v1046 = vld [vmem:[#allocation8 + $0x3e8] sm:$0xff]
    %v1047 = vld [vmem:[#allocation8 + $0x3f0] sm:$0xff]
    %v1048 = vld [vmem:[#allocation8 + $0x3f8] sm:$0xff]
    %v1049 = vld [vmem:[#allocation11] sm:$0xf]
    %v1051 = vperm.slane %v1049, 0
    %v1052 = vperm.slane %v1049, 1
    %v1053 = vperm.slane %v1049, 2
    %v1054 = vperm.slane %v1049, 3
    %1059 = vmatpush.msra.mxu0 %v981
    %1060 = vmatpush.msra.mxu0 %v977
    %1061 = vmatpush.msra.mxu0 %v973
    %1062 = vmatpush.msra.mxu0 %v969
    %1063 = vmatpush.msra.mxu0 %v965
    %1064 = vmatpush.msra.mxu0 %v961
    %1065 = vmatpush.msra.mxu0 %v957
    %1066 = vmatpush.msra.mxu0 %v953
    %1067 = vmatpush.msra.mxu0 %v949
    %1068 = vmatpush.msra.mxu0 %v945
    %1069 = vmatpush.msra.mxu0 %v941
    %1070 = vmatpush.msra.mxu0 %v937
    %1071 = vmatpush.msra.mxu0 %v933
    %1072 = vmatpush.msra.mxu0 %v929
    %1073 = vmatpush.msra.mxu0 %v925
    %1074 = vmatpush.msra.mxu0 %v921
    %1075 = vmatmul.f32.gmra.mxu0 %v920
    %v1076 = vpop.f32.mrf.mxu0
    %v1077 = vadd.f32 %v1051, %v1076
    %1078 = vdwg.mxu0
    %1079 = vmatpush.msra.mxu0 %v1045
    %1080 = vmatpush.msra.mxu0 %v1041
    %1081 = vmatpush.msra.mxu0 %v1037
    %1082 = vmatpush.msra.mxu0 %v1033
    %1083 = vmatpush.msra.mxu0 %v1029
    %1084 = vmatpush.msra.mxu0 %v1025
    %1085 = vmatpush.msra.mxu0 %v1021
    %1086 = vmatpush.msra.mxu0 %v1017
    %1087 = vmatpush.msra.mxu0 %v1013
    %1088 = vmatpush.msra.mxu0 %v1009
    %1089 = vmatpush.msra.mxu0 %v1005
    %1090 = vmatpush.msra.mxu0 %v1001
    %1091 = vmatpush.msra.mxu0 %v997
    %1092 = vmatpush.msra.mxu0 %v993
    %1093 = vmatpush.msra.mxu0 %v989
    %1094 = vmatpush.msra.mxu0 %v985
    %1095 = vmatmul.f32.gmra.mxu0 %v506
    %v1096 = vpop.f32.mrf.mxu0
    %v1097 = vadd.f32 %v1077, %v1096
    %1098 = vdwg.mxu0
    %1099 = vmatpush.msra.mxu0 %v982
    %1100 = vmatpush.msra.mxu0 %v978
    %1101 = vmatpush.msra.mxu0 %v974
    %1102 = vmatpush.msra.mxu0 %v970
    %1103 = vmatpush.msra.mxu0 %v966
    %1104 = vmatpush.msra.mxu0 %v962
    %1105 = vmatpush.msra.mxu0 %v958
    %1106 = vmatpush.msra.mxu0 %v954
    %1107 = vmatpush.msra.mxu0 %v950
    %1108 = vmatpush.msra.mxu0 %v946
    %1109 = vmatpush.msra.mxu0 %v942
    %1110 = vmatpush.msra.mxu0 %v938
    %1111 = vmatpush.msra.mxu0 %v934
    %1112 = vmatpush.msra.mxu0 %v930
    %1113 = vmatpush.msra.mxu0 %v926
    %1114 = vmatpush.msra.mxu0 %v922
    %1115 = vmatmul.f32.gmra.mxu0 %v920
    %v1116 = vpop.f32.mrf.mxu0
    %v1117 = vadd.f32 %v1052, %v1116
    %1118 = vdwg.mxu0
    %1119 = vmatpush.msra.mxu0 %v1046
    %1120 = vmatpush.msra.mxu0 %v1042
    %1121 = vmatpush.msra.mxu0 %v1038
    %1122 = vmatpush.msra.mxu0 %v1034
    %1123 = vmatpush.msra.mxu0 %v1030
    %1124 = vmatpush.msra.mxu0 %v1026
    %1125 = vmatpush.msra.mxu0 %v1022
    %1126 = vmatpush.msra.mxu0 %v1018
    %1127 = vmatpush.msra.mxu0 %v1014
    %1128 = vmatpush.msra.mxu0 %v1010
    %1129 = vmatpush.msra.mxu0 %v1006
    %1130 = vmatpush.msra.mxu0 %v1002
    %1131 = vmatpush.msra.mxu0 %v998
    %1132 = vmatpush.msra.mxu0 %v994
    %1133 = vmatpush.msra.mxu0 %v990
    %1134 = vmatpush.msra.mxu0 %v986
    %1135 = vmatmul.f32.gmra.mxu0 %v506
    %v1136 = vpop.f32.mrf.mxu0
    %v1137 = vadd.f32 %v1117, %v1136
    %1138 = vdwg.mxu0
    %1139 = vmatpush.msra.mxu0 %v983
    %1140 = vmatpush.msra.mxu0 %v979
    %1141 = vmatpush.msra.mxu0 %v975
    %1142 = vmatpush.msra.mxu0 %v971
    %1143 = vmatpush.msra.mxu0 %v967
    %1144 = vmatpush.msra.mxu0 %v963
    %1145 = vmatpush.msra.mxu0 %v959
    %1146 = vmatpush.msra.mxu0 %v955
    %1147 = vmatpush.msra.mxu0 %v951
    %1148 = vmatpush.msra.mxu0 %v947
    %1149 = vmatpush.msra.mxu0 %v943
    %1150 = vmatpush.msra.mxu0 %v939
    %1151 = vmatpush.msra.mxu0 %v935
    %1152 = vmatpush.msra.mxu0 %v931
    %1153 = vmatpush.msra.mxu0 %v927
    %1154 = vmatpush.msra.mxu0 %v923
    %1155 = vmatmul.f32.gmra.mxu0 %v920
    %v1156 = vpop.f32.mrf.mxu0
    %v1157 = vadd.f32 %v1053, %v1156
    %1158 = vdwg.mxu0
    %1159 = vmatpush.msra.mxu0 %v1047
    %1160 = vmatpush.msra.mxu0 %v1043
    %1161 = vmatpush.msra.mxu0 %v1039
    %1162 = vmatpush.msra.mxu0 %v1035
    %1163 = vmatpush.msra.mxu0 %v1031
    %1164 = vmatpush.msra.mxu0 %v1027
    %1165 = vmatpush.msra.mxu0 %v1023
    %1166 = vmatpush.msra.mxu0 %v1019
    %1167 = vmatpush.msra.mxu0 %v1015
    %1168 = vmatpush.msra.mxu0 %v1011
    %1169 = vmatpush.msra.mxu0 %v1007
    %1170 = vmatpush.msra.mxu0 %v1003
    %1171 = vmatpush.msra.mxu0 %v999
    %1172 = vmatpush.msra.mxu0 %v995
    %1173 = vmatpush.msra.mxu0 %v991
    %1174 = vmatpush.msra.mxu0 %v987
    %1175 = vmatmul.f32.gmra.mxu0 %v506
    %v1176 = vpop.f32.mrf.mxu0
    %v1177 = vadd.f32 %v1157, %v1176
    %1178 = vdwg.mxu0
    %1179 = vmatpush.msra.mxu0 %v984
    %1180 = vmatpush.msra.mxu0 %v980
    %1181 = vmatpush.msra.mxu0 %v976
    %1182 = vmatpush.msra.mxu0 %v972
    %1183 = vmatpush.msra.mxu0 %v968
    %1184 = vmatpush.msra.mxu0 %v964
    %1185 = vmatpush.msra.mxu0 %v960
    %1186 = vmatpush.msra.mxu0 %v956
    %1187 = vmatpush.msra.mxu0 %v952
    %1188 = vmatpush.msra.mxu0 %v948
    %1189 = vmatpush.msra.mxu0 %v944
    %1190 = vmatpush.msra.mxu0 %v940
    %1191 = vmatpush.msra.mxu0 %v936
    %1192 = vmatpush.msra.mxu0 %v932
    %1193 = vmatpush.msra.mxu0 %v928
    %1194 = vmatpush.msra.mxu0 %v924
    %1195 = vmatmul.f32.gmra.mxu0 %v920
    %v1196 = vpop.f32.mrf.mxu0
    %v1197 = vadd.f32 %v1054, %v1196
    %1198 = vdwg.mxu0
    %1199 = vmatpush.msra.mxu0 %v1048
    %1200 = vmatpush.msra.mxu0 %v1044
    %1201 = vmatpush.msra.mxu0 %v1040
    %1202 = vmatpush.msra.mxu0 %v1036
    %1203 = vmatpush.msra.mxu0 %v1032
    %1204 = vmatpush.msra.mxu0 %v1028
    %1205 = vmatpush.msra.mxu0 %v1024
    %1206 = vmatpush.msra.mxu0 %v1020
    %1207 = vmatpush.msra.mxu0 %v1016
    %1208 = vmatpush.msra.mxu0 %v1012
    %1209 = vmatpush.msra.mxu0 %v1008
    %1210 = vmatpush.msra.mxu0 %v1004
    %1211 = vmatpush.msra.mxu0 %v1000
    %1212 = vmatpush.msra.mxu0 %v996
    %1213 = vmatpush.msra.mxu0 %v992
    %1214 = vmatpush.msra.mxu0 %v988
    %1215 = vmatmul.f32.gmra.mxu0 %v506
    %v1216 = vpop.f32.mrf.mxu0
    %v1217 = vadd.f32 %v1197, %v1216
    %1218 = vdwg.mxu0
    %v1219 = vxor.u32 %v1097, 2147483648
    %v1220 = vmul.f32 %v1219, 1.442695
    %v1221 = vpow.pop %v1220
    %v1222 = vadd.f32 %v1221, 1.0
    %v1223 = vrcp.pop %v1222
    %v1224 = vmul.f32 %v1222, %v1223
    %v1225 = vsub.f32 1.0, %v1224
    %v1226 = vmul.f32 %v1223, %v1225
    %v1227 = vadd.f32 %v1223, %v1226
    %vm1228 = vweird.f32 %v1222
    %vm1229 = vweird.f32 %v1223
    %vm1230 = vmor %vm1228, %vm1229
    %v1231 = vsel %vm1230, %v1223, %v1227
    %v1232 = vand.u32 2147483647, %v1222
    %vm1233 = vcmp.eq.f32.partialorder %v1232, 8.507059e+37
    %v1234 = vand.u32 %v1222, 2147483648
    %v1235 = vor.u32 1.1754944e-38, %v1234
    %v1236 = vsel %vm1233, %v1235, %v1231
    %v1237 = vmul.f32 1.0, %v1236
    %v1238 = vxor.u32 %v1137, 2147483648
    %v1239 = vmul.f32 %v1238, 1.442695
    %v1240 = vpow.pop %v1239
    %v1241 = vadd.f32 %v1240, 1.0
    %v1242 = vrcp.pop %v1241
    %v1243 = vmul.f32 %v1241, %v1242
    %v1244 = vsub.f32 1.0, %v1243
    %v1245 = vmul.f32 %v1242, %v1244
    %v1246 = vadd.f32 %v1242, %v1245
    %vm1247 = vweird.f32 %v1241
    %vm1248 = vweird.f32 %v1242
    %vm1249 = vmor %vm1247, %vm1248
    %v1250 = vsel %vm1249, %v1242, %v1246
    %v1251 = vand.u32 2147483647, %v1241
    %vm1252 = vcmp.eq.f32.partialorder %v1251, 8.507059e+37
    %v1253 = vand.u32 %v1241, 2147483648
    %v1254 = vor.u32 1.1754944e-38, %v1253
    %v1255 = vsel %vm1252, %v1254, %v1250
    %v1256 = vmul.f32 1.0, %v1255
    %v1257 = vtanh.pop %v1177
    %v1258 = vxor.u32 %v1217, 2147483648
    %v1259 = vmul.f32 %v1258, 1.442695
    %v1260 = vpow.pop %v1259
    %v1261 = vadd.f32 %v1260, 1.0
    %v1262 = vrcp.pop %v1261
    %v1263 = vmul.f32 %v1261, %v1262
    %v1264 = vsub.f32 1.0, %v1263
    %v1265 = vmul.f32 %v1262, %v1264
    %v1266 = vadd.f32 %v1262, %v1265
    %vm1267 = vweird.f32 %v1261
    %vm1268 = vweird.f32 %v1262
    %vm1269 = vmor %vm1267, %vm1268
    %v1270 = vsel %vm1269, %v1262, %v1266
    %v1271 = vand.u32 2147483647, %v1261
    %vm1272 = vcmp.eq.f32.partialorder %v1271, 8.507059e+37
    %v1273 = vand.u32 %v1261, 2147483648
    %v1274 = vor.u32 1.1754944e-38, %v1273
    %v1275 = vsel %vm1272, %v1274, %v1270
    %v1276 = vmul.f32 1.0, %v1275
    %v1277 = vmul.f32 %v1256, %v504
    %v1278 = vmul.f32 %v1237, %v1257
    %v1279 = vadd.f32 %v1277, %v1278
    %v1280 = vtanh.pop %v1279
    %v1281 = vmul.f32 %v1276, %v1280
    %v1282 = vld [vmem:[#allocation10] sm:$0xff]
    %v1283 = vld [vmem:[#allocation10 + $0x8] sm:$0xff]
    %v1284 = vld [vmem:[#allocation10 + $0x10] sm:$0xff]
    %v1285 = vld [vmem:[#allocation10 + $0x18] sm:$0xff]
    %v1286 = vld [vmem:[#allocation10 + $0x20] sm:$0xff]
    %v1287 = vld [vmem:[#allocation10 + $0x28] sm:$0xff]
    %v1288 = vld [vmem:[#allocation10 + $0x30] sm:$0xff]
    %v1289 = vld [vmem:[#allocation10 + $0x38] sm:$0xff]
    %v1290 = vld [vmem:[#allocation10 + $0x40] sm:$0xff]
    %v1291 = vld [vmem:[#allocation10 + $0x48] sm:$0xff]
    %v1292 = vld [vmem:[#allocation10 + $0x50] sm:$0xff]
    %v1293 = vld [vmem:[#allocation10 + $0x58] sm:$0xff]
    %v1294 = vld [vmem:[#allocation10 + $0x60] sm:$0xff]
    %v1295 = vld [vmem:[#allocation10 + $0x68] sm:$0xff]
    %v1296 = vld [vmem:[#allocation10 + $0x70] sm:$0xff]
    %v1297 = vld [vmem:[#allocation10 + $0x78] sm:$0xff]
    %v1298 = vld [vmem:[#allocation10 + $0x80] sm:$0xff]
    %v1299 = vld [vmem:[#allocation10 + $0x88] sm:$0xff]
    %v1300 = vld [vmem:[#allocation10 + $0x90] sm:$0xff]
    %v1301 = vld [vmem:[#allocation10 + $0x98] sm:$0xff]
    %v1302 = vld [vmem:[#allocation10 + $0xa0] sm:$0xff]
    %v1303 = vld [vmem:[#allocation10 + $0xa8] sm:$0xff]
    %v1304 = vld [vmem:[#allocation10 + $0xb0] sm:$0xff]
    %v1305 = vld [vmem:[#allocation10 + $0xb8] sm:$0xff]
    %v1306 = vld [vmem:[#allocation10 + $0xc0] sm:$0xff]
    %v1307 = vld [vmem:[#allocation10 + $0xc8] sm:$0xff]
    %v1308 = vld [vmem:[#allocation10 + $0xd0] sm:$0xff]
    %v1309 = vld [vmem:[#allocation10 + $0xd8] sm:$0xff]
    %v1310 = vld [vmem:[#allocation10 + $0xe0] sm:$0xff]
    %v1311 = vld [vmem:[#allocation10 + $0xe8] sm:$0xff]
    %v1312 = vld [vmem:[#allocation10 + $0xf0] sm:$0xff]
    %v1313 = vld [vmem:[#allocation10 + $0xf8] sm:$0xff]
    %v1314 = vld [vmem:[#allocation10 + $0x100] sm:$0xff]
    %v1315 = vld [vmem:[#allocation10 + $0x108] sm:$0xff]
    %v1316 = vld [vmem:[#allocation10 + $0x110] sm:$0xff]
    %v1317 = vld [vmem:[#allocation10 + $0x118] sm:$0xff]
    %v1318 = vld [vmem:[#allocation10 + $0x120] sm:$0xff]
    %v1319 = vld [vmem:[#allocation10 + $0x128] sm:$0xff]
    %v1320 = vld [vmem:[#allocation10 + $0x130] sm:$0xff]
    %v1321 = vld [vmem:[#allocation10 + $0x138] sm:$0xff]
    %v1322 = vld [vmem:[#allocation10 + $0x140] sm:$0xff]
    %v1323 = vld [vmem:[#allocation10 + $0x148] sm:$0xff]
    %v1324 = vld [vmem:[#allocation10 + $0x150] sm:$0xff]
    %v1325 = vld [vmem:[#allocation10 + $0x158] sm:$0xff]
    %v1326 = vld [vmem:[#allocation10 + $0x160] sm:$0xff]
    %v1327 = vld [vmem:[#allocation10 + $0x168] sm:$0xff]
    %v1328 = vld [vmem:[#allocation10 + $0x170] sm:$0xff]
    %v1329 = vld [vmem:[#allocation10 + $0x178] sm:$0xff]
    %v1330 = vld [vmem:[#allocation10 + $0x180] sm:$0xff]
    %v1331 = vld [vmem:[#allocation10 + $0x188] sm:$0xff]
    %v1332 = vld [vmem:[#allocation10 + $0x190] sm:$0xff]
    %v1333 = vld [vmem:[#allocation10 + $0x198] sm:$0xff]
    %v1334 = vld [vmem:[#allocation10 + $0x1a0] sm:$0xff]
    %v1335 = vld [vmem:[#allocation10 + $0x1a8] sm:$0xff]
    %v1336 = vld [vmem:[#allocation10 + $0x1b0] sm:$0xff]
    %v1337 = vld [vmem:[#allocation10 + $0x1b8] sm:$0xff]
    %v1338 = vld [vmem:[#allocation10 + $0x1c0] sm:$0xff]
    %v1339 = vld [vmem:[#allocation10 + $0x1c8] sm:$0xff]
    %v1340 = vld [vmem:[#allocation10 + $0x1d0] sm:$0xff]
    %v1341 = vld [vmem:[#allocation10 + $0x1d8] sm:$0xff]
    %v1342 = vld [vmem:[#allocation10 + $0x1e0] sm:$0xff]
    %v1343 = vld [vmem:[#allocation10 + $0x1e8] sm:$0xff]
    %v1344 = vld [vmem:[#allocation10 + $0x1f0] sm:$0xff]
    %v1345 = vld [vmem:[#allocation10 + $0x1f8] sm:$0xff]
    %v1346 = vld [vmem:[#allocation10 + $0x200] sm:$0xff]
    %v1347 = vld [vmem:[#allocation10 + $0x208] sm:$0xff]
    %v1348 = vld [vmem:[#allocation10 + $0x210] sm:$0xff]
    %v1349 = vld [vmem:[#allocation10 + $0x218] sm:$0xff]
    %v1350 = vld [vmem:[#allocation10 + $0x220] sm:$0xff]
    %v1351 = vld [vmem:[#allocation10 + $0x228] sm:$0xff]
    %v1352 = vld [vmem:[#allocation10 + $0x230] sm:$0xff]
    %v1353 = vld [vmem:[#allocation10 + $0x238] sm:$0xff]
    %v1354 = vld [vmem:[#allocation10 + $0x240] sm:$0xff]
    %v1355 = vld [vmem:[#allocation10 + $0x248] sm:$0xff]
    %v1356 = vld [vmem:[#allocation10 + $0x250] sm:$0xff]
    %v1357 = vld [vmem:[#allocation10 + $0x258] sm:$0xff]
    %v1358 = vld [vmem:[#allocation10 + $0x260] sm:$0xff]
    %v1359 = vld [vmem:[#allocation10 + $0x268] sm:$0xff]
    %v1360 = vld [vmem:[#allocation10 + $0x270] sm:$0xff]
    %v1361 = vld [vmem:[#allocation10 + $0x278] sm:$0xff]
    %v1362 = vld [vmem:[#allocation10 + $0x280] sm:$0xff]
    %v1363 = vld [vmem:[#allocation10 + $0x288] sm:$0xff]
    %v1364 = vld [vmem:[#allocation10 + $0x290] sm:$0xff]
    %v1365 = vld [vmem:[#allocation10 + $0x298] sm:$0xff]
    %v1366 = vld [vmem:[#allocation10 + $0x2a0] sm:$0xff]
    %v1367 = vld [vmem:[#allocation10 + $0x2a8] sm:$0xff]
    %v1368 = vld [vmem:[#allocation10 + $0x2b0] sm:$0xff]
    %v1369 = vld [vmem:[#allocation10 + $0x2b8] sm:$0xff]
    %v1370 = vld [vmem:[#allocation10 + $0x2c0] sm:$0xff]
    %v1371 = vld [vmem:[#allocation10 + $0x2c8] sm:$0xff]
    %v1372 = vld [vmem:[#allocation10 + $0x2d0] sm:$0xff]
    %v1373 = vld [vmem:[#allocation10 + $0x2d8] sm:$0xff]
    %v1374 = vld [vmem:[#allocation10 + $0x2e0] sm:$0xff]
    %v1375 = vld [vmem:[#allocation10 + $0x2e8] sm:$0xff]
    %v1376 = vld [vmem:[#allocation10 + $0x2f0] sm:$0xff]
    %v1377 = vld [vmem:[#allocation10 + $0x2f8] sm:$0xff]
    %v1378 = vld [vmem:[#allocation10 + $0x300] sm:$0xff]
    %v1379 = vld [vmem:[#allocation10 + $0x308] sm:$0xff]
    %v1380 = vld [vmem:[#allocation10 + $0x310] sm:$0xff]
    %v1381 = vld [vmem:[#allocation10 + $0x318] sm:$0xff]
    %v1382 = vld [vmem:[#allocation10 + $0x320] sm:$0xff]
    %v1383 = vld [vmem:[#allocation10 + $0x328] sm:$0xff]
    %v1384 = vld [vmem:[#allocation10 + $0x330] sm:$0xff]
    %v1385 = vld [vmem:[#allocation10 + $0x338] sm:$0xff]
    %v1386 = vld [vmem:[#allocation10 + $0x340] sm:$0xff]
    %v1387 = vld [vmem:[#allocation10 + $0x348] sm:$0xff]
    %v1388 = vld [vmem:[#allocation10 + $0x350] sm:$0xff]
    %v1389 = vld [vmem:[#allocation10 + $0x358] sm:$0xff]
    %v1390 = vld [vmem:[#allocation10 + $0x360] sm:$0xff]
    %v1391 = vld [vmem:[#allocation10 + $0x368] sm:$0xff]
    %v1392 = vld [vmem:[#allocation10 + $0x370] sm:$0xff]
    %v1393 = vld [vmem:[#allocation10 + $0x378] sm:$0xff]
    %v1394 = vld [vmem:[#allocation10 + $0x380] sm:$0xff]
    %v1395 = vld [vmem:[#allocation10 + $0x388] sm:$0xff]
    %v1396 = vld [vmem:[#allocation10 + $0x390] sm:$0xff]
    %v1397 = vld [vmem:[#allocation10 + $0x398] sm:$0xff]
    %v1398 = vld [vmem:[#allocation10 + $0x3a0] sm:$0xff]
    %v1399 = vld [vmem:[#allocation10 + $0x3a8] sm:$0xff]
    %v1400 = vld [vmem:[#allocation10 + $0x3b0] sm:$0xff]
    %v1401 = vld [vmem:[#allocation10 + $0x3b8] sm:$0xff]
    %v1402 = vld [vmem:[#allocation10 + $0x3c0] sm:$0xff]
    %v1403 = vld [vmem:[#allocation10 + $0x3c8] sm:$0xff]
    %v1404 = vld [vmem:[#allocation10 + $0x3d0] sm:$0xff]
    %v1405 = vld [vmem:[#allocation10 + $0x3d8] sm:$0xff]
    %v1406 = vld [vmem:[#allocation10 + $0x3e0] sm:$0xff]
    %v1407 = vld [vmem:[#allocation10 + $0x3e8] sm:$0xff]
    %v1408 = vld [vmem:[#allocation10 + $0x3f0] sm:$0xff]
    %v1409 = vld [vmem:[#allocation10 + $0x3f8] sm:$0xff]
    %v1410 = vld [vmem:[%s635] sm:$0xf]
    %v1412 = vperm.slane %v1410, 0
    %v1413 = vperm.slane %v1410, 1
    %v1414 = vperm.slane %v1410, 2
    %v1415 = vperm.slane %v1410, 3
    %1420 = vmatpush.msra.mxu0 %v1342
    %1421 = vmatpush.msra.mxu0 %v1338
    %1422 = vmatpush.msra.mxu0 %v1334
    %1423 = vmatpush.msra.mxu0 %v1330
    %1424 = vmatpush.msra.mxu0 %v1326
    %1425 = vmatpush.msra.mxu0 %v1322
    %1426 = vmatpush.msra.mxu0 %v1318
    %1427 = vmatpush.msra.mxu0 %v1314
    %1428 = vmatpush.msra.mxu0 %v1310
    %1429 = vmatpush.msra.mxu0 %v1306
    %1430 = vmatpush.msra.mxu0 %v1302
    %1431 = vmatpush.msra.mxu0 %v1298
    %1432 = vmatpush.msra.mxu0 %v1294
    %1433 = vmatpush.msra.mxu0 %v1290
    %1434 = vmatpush.msra.mxu0 %v1286
    %1435 = vmatpush.msra.mxu0 %v1282
    %1436 = vmatmul.f32.gmra.mxu0 %v1281
    %v1437 = vpop.f32.mrf.mxu0
    %v1438 = vadd.f32 %v1412, %v1437
    %1439 = vdwg.mxu0
    %1440 = vmatpush.msra.mxu0 %v1406
    %1441 = vmatpush.msra.mxu0 %v1402
    %1442 = vmatpush.msra.mxu0 %v1398
    %1443 = vmatpush.msra.mxu0 %v1394
    %1444 = vmatpush.msra.mxu0 %v1390
    %1445 = vmatpush.msra.mxu0 %v1386
    %1446 = vmatpush.msra.mxu0 %v1382
    %1447 = vmatpush.msra.mxu0 %v1378
    %1448 = vmatpush.msra.mxu0 %v1374
    %1449 = vmatpush.msra.mxu0 %v1370
    %1450 = vmatpush.msra.mxu0 %v1366
    %1451 = vmatpush.msra.mxu0 %v1362
    %1452 = vmatpush.msra.mxu0 %v1358
    %1453 = vmatpush.msra.mxu0 %v1354
    %1454 = vmatpush.msra.mxu0 %v1350
    %1455 = vmatpush.msra.mxu0 %v1346
    %1456 = vmatmul.f32.gmra.mxu0 %v868
    %v1457 = vpop.f32.mrf.mxu0
    %v1458 = vadd.f32 %v1438, %v1457
    %1459 = vdwg.mxu0
    %1460 = vmatpush.msra.mxu0 %v1343
    %1461 = vmatpush.msra.mxu0 %v1339
    %1462 = vmatpush.msra.mxu0 %v1335
    %1463 = vmatpush.msra.mxu0 %v1331
    %1464 = vmatpush.msra.mxu0 %v1327
    %1465 = vmatpush.msra.mxu0 %v1323
    %1466 = vmatpush.msra.mxu0 %v1319
    %1467 = vmatpush.msra.mxu0 %v1315
    %1468 = vmatpush.msra.mxu0 %v1311
    %1469 = vmatpush.msra.mxu0 %v1307
    %1470 = vmatpush.msra.mxu0 %v1303
    %1471 = vmatpush.msra.mxu0 %v1299
    %1472 = vmatpush.msra.mxu0 %v1295
    %1473 = vmatpush.msra.mxu0 %v1291
    %1474 = vmatpush.msra.mxu0 %v1287
    %1475 = vmatpush.msra.mxu0 %v1283
    %1476 = vmatmul.f32.gmra.mxu0 %v1281
    %v1477 = vpop.f32.mrf.mxu0
    %v1478 = vadd.f32 %v1413, %v1477
    %1479 = vdwg.mxu0
    %1480 = vmatpush.msra.mxu0 %v1407
    %1481 = vmatpush.msra.mxu0 %v1403
    %1482 = vmatpush.msra.mxu0 %v1399
    %1483 = vmatpush.msra.mxu0 %v1395
    %1484 = vmatpush.msra.mxu0 %v1391
    %1485 = vmatpush.msra.mxu0 %v1387
    %1486 = vmatpush.msra.mxu0 %v1383
    %1487 = vmatpush.msra.mxu0 %v1379
    %1488 = vmatpush.msra.mxu0 %v1375
    %1489 = vmatpush.msra.mxu0 %v1371
    %1490 = vmatpush.msra.mxu0 %v1367
    %1491 = vmatpush.msra.mxu0 %v1363
    %1492 = vmatpush.msra.mxu0 %v1359
    %1493 = vmatpush.msra.mxu0 %v1355
    %1494 = vmatpush.msra.mxu0 %v1351
    %1495 = vmatpush.msra.mxu0 %v1347
    %1496 = vmatmul.f32.gmra.mxu0 %v868
    %v1497 = vpop.f32.mrf.mxu0
    %v1498 = vadd.f32 %v1478, %v1497
    %1499 = vdwg.mxu0
    %1500 = vmatpush.msra.mxu0 %v1344
    %1501 = vmatpush.msra.mxu0 %v1340
    %1502 = vmatpush.msra.mxu0 %v1336
    %1503 = vmatpush.msra.mxu0 %v1332
    %1504 = vmatpush.msra.mxu0 %v1328
    %1505 = vmatpush.msra.mxu0 %v1324
    %1506 = vmatpush.msra.mxu0 %v1320
    %1507 = vmatpush.msra.mxu0 %v1316
    %1508 = vmatpush.msra.mxu0 %v1312
    %1509 = vmatpush.msra.mxu0 %v1308
    %1510 = vmatpush.msra.mxu0 %v1304
    %1511 = vmatpush.msra.mxu0 %v1300
    %1512 = vmatpush.msra.mxu0 %v1296
    %1513 = vmatpush.msra.mxu0 %v1292
    %1514 = vmatpush.msra.mxu0 %v1288
    %1515 = vmatpush.msra.mxu0 %v1284
    %1516 = vmatmul.f32.gmra.mxu0 %v1281
    %v1517 = vpop.f32.mrf.mxu0
    %v1518 = vadd.f32 %v1414, %v1517
    %1519 = vdwg.mxu0
    %1520 = vmatpush.msra.mxu0 %v1408
    %1521 = vmatpush.msra.mxu0 %v1404
    %1522 = vmatpush.msra.mxu0 %v1400
    %1523 = vmatpush.msra.mxu0 %v1396
    %1524 = vmatpush.msra.mxu0 %v1392
    %1525 = vmatpush.msra.mxu0 %v1388
    %1526 = vmatpush.msra.mxu0 %v1384
    %1527 = vmatpush.msra.mxu0 %v1380
    %1528 = vmatpush.msra.mxu0 %v1376
    %1529 = vmatpush.msra.mxu0 %v1372
    %1530 = vmatpush.msra.mxu0 %v1368
    %1531 = vmatpush.msra.mxu0 %v1364
    %1532 = vmatpush.msra.mxu0 %v1360
    %1533 = vmatpush.msra.mxu0 %v1356
    %1534 = vmatpush.msra.mxu0 %v1352
    %1535 = vmatpush.msra.mxu0 %v1348
    %1536 = vmatmul.f32.gmra.mxu0 %v868
    %v1537 = vpop.f32.mrf.mxu0
    %v1538 = vadd.f32 %v1518, %v1537
    %1539 = vdwg.mxu0
    %1540 = vmatpush.msra.mxu0 %v1345
    %1541 = vmatpush.msra.mxu0 %v1341
    %1542 = vmatpush.msra.mxu0 %v1337
    %1543 = vmatpush.msra.mxu0 %v1333
    %1544 = vmatpush.msra.mxu0 %v1329
    %1545 = vmatpush.msra.mxu0 %v1325
    %1546 = vmatpush.msra.mxu0 %v1321
    %1547 = vmatpush.msra.mxu0 %v1317
    %1548 = vmatpush.msra.mxu0 %v1313
    %1549 = vmatpush.msra.mxu0 %v1309
    %1550 = vmatpush.msra.mxu0 %v1305
    %1551 = vmatpush.msra.mxu0 %v1301
    %1552 = vmatpush.msra.mxu0 %v1297
    %1553 = vmatpush.msra.mxu0 %v1293
    %1554 = vmatpush.msra.mxu0 %v1289
    %1555 = vmatpush.msra.mxu0 %v1285
    %1556 = vmatmul.f32.gmra.mxu0 %v1281
    %v1557 = vpop.f32.mrf.mxu0
    %v1558 = vadd.f32 %v1415, %v1557
    %1559 = vdwg.mxu0
    %1560 = vmatpush.msra.mxu0 %v1409
    %1561 = vmatpush.msra.mxu0 %v1405
    %1562 = vmatpush.msra.mxu0 %v1401
    %1563 = vmatpush.msra.mxu0 %v1397
    %1564 = vmatpush.msra.mxu0 %v1393
    %1565 = vmatpush.msra.mxu0 %v1389
    %1566 = vmatpush.msra.mxu0 %v1385
    %1567 = vmatpush.msra.mxu0 %v1381
    %1568 = vmatpush.msra.mxu0 %v1377
    %1569 = vmatpush.msra.mxu0 %v1373
    %1570 = vmatpush.msra.mxu0 %v1369
    %1571 = vmatpush.msra.mxu0 %v1365
    %1572 = vmatpush.msra.mxu0 %v1361
    %1573 = vmatpush.msra.mxu0 %v1357
    %1574 = vmatpush.msra.mxu0 %v1353
    %1575 = vmatpush.msra.mxu0 %v1349
    %1576 = vmatmul.f32.gmra.mxu0 %v868
    %v1577 = vpop.f32.mrf.mxu0
    %v1578 = vadd.f32 %v1558, %v1577
    %1579 = vdwg.mxu0
    %v1580 = vxor.u32 %v1458, 2147483648
    %v1581 = vmul.f32 %v1580, 1.442695
    %v1582 = vpow.pop %v1581
    %v1583 = vadd.f32 %v1582, 1.0
    %v1584 = vrcp.pop %v1583
    %v1585 = vmul.f32 %v1583, %v1584
    %v1586 = vsub.f32 1.0, %v1585
    %v1587 = vmul.f32 %v1584, %v1586
    %v1588 = vadd.f32 %v1584, %v1587
    %vm1589 = vweird.f32 %v1583
    %vm1590 = vweird.f32 %v1584
    %vm1591 = vmor %vm1589, %vm1590
    %v1592 = vsel %vm1591, %v1584, %v1588
    %v1593 = vand.u32 2147483647, %v1583
    %vm1594 = vcmp.eq.f32.partialorder %v1593, 8.507059e+37
    %v1595 = vand.u32 %v1583, 2147483648
    %v1596 = vor.u32 1.1754944e-38, %v1595
    %v1597 = vsel %vm1594, %v1596, %v1592
    %v1598 = vmul.f32 1.0, %v1597
    %v1599 = vxor.u32 %v1498, 2147483648
    %v1600 = vmul.f32 %v1599, 1.442695
    %v1601 = vpow.pop %v1600
    %v1602 = vadd.f32 %v1601, 1.0
    %v1603 = vrcp.pop %v1602
    %v1604 = vmul.f32 %v1602, %v1603
    %v1605 = vsub.f32 1.0, %v1604
    %v1606 = vmul.f32 %v1603, %v1605
    %v1607 = vadd.f32 %v1603, %v1606
    %vm1608 = vweird.f32 %v1602
    %vm1609 = vweird.f32 %v1603
    %vm1610 = vmor %vm1608, %vm1609
    %v1611 = vsel %vm1610, %v1603, %v1607
    %v1612 = vand.u32 2147483647, %v1602
    %vm1613 = vcmp.eq.f32.partialorder %v1612, 8.507059e+37
    %v1614 = vand.u32 %v1602, 2147483648
    %v1615 = vor.u32 1.1754944e-38, %v1614
    %v1616 = vsel %vm1613, %v1615, %v1611
    %v1617 = vmul.f32 1.0, %v1616
    %v1618 = vtanh.pop %v1538
    %v1619 = vxor.u32 %v1578, 2147483648
    %v1620 = vmul.f32 %v1619, 1.442695
    %v1621 = vpow.pop %v1620
    %v1622 = vadd.f32 %v1621, 1.0
    %v1623 = vrcp.pop %v1622
    %v1624 = vmul.f32 %v1622, %v1623
    %v1625 = vsub.f32 1.0, %v1624
    %v1626 = vmul.f32 %v1623, %v1625
    %v1627 = vadd.f32 %v1623, %v1626
    %vm1628 = vweird.f32 %v1622
    %vm1629 = vweird.f32 %v1623
    %vm1630 = vmor %vm1628, %vm1629
    %v1631 = vsel %vm1630, %v1623, %v1627
    %v1632 = vand.u32 2147483647, %v1622
    %vm1633 = vcmp.eq.f32.partialorder %v1632, 8.507059e+37
    %v1634 = vand.u32 %v1622, 2147483648
    %v1635 = vor.u32 1.1754944e-38, %v1634
    %v1636 = vsel %vm1633, %v1635, %v1631
    %v1637 = vmul.f32 1.0, %v1636
    %v1638 = vmul.f32 %v1617, %v866
    %v1639 = vmul.f32 %v1598, %v1618
    %v1640 = vadd.f32 %v1638, %v1639
    %v1641 = vtanh.pop %v1640
    %v1642 = vmul.f32 %v1637, %v1641
    %v1643 = vld [vmem:[#allocation13] sm:$0xff]
    %v1644 = vld [vmem:[#allocation13 + $0x8] sm:$0xff]
    %v1645 = vld [vmem:[#allocation13 + $0x10] sm:$0xff]
    %v1646 = vld [vmem:[#allocation13 + $0x18] sm:$0xff]
    %v1647 = vld [vmem:[#allocation13 + $0x20] sm:$0xff]
    %v1648 = vld [vmem:[#allocation13 + $0x28] sm:$0xff]
    %v1649 = vld [vmem:[#allocation13 + $0x30] sm:$0xff]
    %v1650 = vld [vmem:[#allocation13 + $0x38] sm:$0xff]
    %v1651 = vld [vmem:[#allocation13 + $0x40] sm:$0xff]
    %v1652 = vld [vmem:[#allocation13 + $0x48] sm:$0xff]
    %v1653 = vld [vmem:[#allocation13 + $0x50] sm:$0xff]
    %v1654 = vld [vmem:[#allocation13 + $0x58] sm:$0xff]
    %v1655 = vld [vmem:[#allocation13 + $0x60] sm:$0xff]
    %v1656 = vld [vmem:[#allocation13 + $0x68] sm:$0xff]
    %v1657 = vld [vmem:[#allocation13 + $0x70] sm:$0xff]
    %v1658 = vld [vmem:[#allocation13 + $0x78] sm:$0xff]
    %v1659 = vld [vmem:[%s7] sm:$0x1]
    %v1661 = vperm.slane %v1659, 0
    %1663 = vmatpush.msra.mxu0 %v1658
    %1664 = vmatpush.msra.mxu0 %v1657
    %1665 = vmatpush.msra.mxu0 %v1656
    %1666 = vmatpush.msra.mxu0 %v1655
    %1667 = vmatpush.msra.mxu0 %v1654
    %1668 = vmatpush.msra.mxu0 %v1653
    %1669 = vmatpush.msra.mxu0 %v1652
    %1670 = vmatpush.msra.mxu0 %v1651
    %1671 = vmatpush.msra.mxu0 %v1650
    %1672 = vmatpush.msra.mxu0 %v1649
    %1673 = vmatpush.msra.mxu0 %v1648
    %1674 = vmatpush.msra.mxu0 %v1647
    %1675 = vmatpush.msra.mxu0 %v1646
    %1676 = vmatpush.msra.mxu0 %v1645
    %1677 = vmatpush.msra.mxu0 %v1644
    %1678 = vmatpush.msra.mxu0 %v1643
    %1679 = vmatmul.f32.gmra.mxu0 %v1642
    %v1680 = vpop.f32.mrf.mxu0
    %v1681 = vadd.f32 %v1661, %v1680
    %1682 = vdwg.mxu0
    %1683 = vmax.xlane.f32.xlu0 %v1681
    %v1684 = vpop.xlane.xlu0 %1683
    %v1685 = vsub.f32 %v1681, %v1684
    %v1686 = vmul.f32 %v1685, 1.442695
    %v1687 = vpow.pop %v1686
    %1688 = vadd.xlane.f32.xlu0 %v1687
    %v1689 = vpop.xlane.xlu0 %1688
    %v1690 = vrcp.pop %v1689
    %v1691 = vmul.f32 %v1687, %v1690
    %s1692 = scalar_lea.vmem [#allocation14], 8
    %1693 = vst [vmem:[%s1692] sm:$0xff] %v1691
    %s1694 = scalar_lea.vmem [#allocation2], 16
    %v1695 = vld [vmem:[%s1694] sm:$0xff]
    %v1696 = vld [vmem:[#allocation8] sm:$0xff]
    %v1697 = vld [vmem:[#allocation8 + $0x8] sm:$0xff]
    %v1698 = vld [vmem:[#allocation8 + $0x10] sm:$0xff]
    %v1699 = vld [vmem:[#allocation8 + $0x18] sm:$0xff]
    %v1700 = vld [vmem:[#allocation8 + $0x20] sm:$0xff]
    %v1701 = vld [vmem:[#allocation8 + $0x28] sm:$0xff]
    %v1702 = vld [vmem:[#allocation8 + $0x30] sm:$0xff]
    %v1703 = vld [vmem:[#allocation8 + $0x38] sm:$0xff]
    %v1704 = vld [vmem:[#allocation8 + $0x40] sm:$0xff]
    %v1705 = vld [vmem:[#allocation8 + $0x48] sm:$0xff]
    %v1706 = vld [vmem:[#allocation8 + $0x50] sm:$0xff]
    %v1707 = vld [vmem:[#allocation8 + $0x58] sm:$0xff]
    %v1708 = vld [vmem:[#allocation8 + $0x60] sm:$0xff]
    %v1709 = vld [vmem:[#allocation8 + $0x68] sm:$0xff]
    %v1710 = vld [vmem:[#allocation8 + $0x70] sm:$0xff]
    %v1711 = vld [vmem:[#allocation8 + $0x78] sm:$0xff]
    %v1712 = vld [vmem:[#allocation8 + $0x80] sm:$0xff]
    %v1713 = vld [vmem:[#allocation8 + $0x88] sm:$0xff]
    %v1714 = vld [vmem:[#allocation8 + $0x90] sm:$0xff]
    %v1715 = vld [vmem:[#allocation8 + $0x98] sm:$0xff]
    %v1716 = vld [vmem:[#allocation8 + $0xa0] sm:$0xff]
    %v1717 = vld [vmem:[#allocation8 + $0xa8] sm:$0xff]
    %v1718 = vld [vmem:[#allocation8 + $0xb0] sm:$0xff]
    %v1719 = vld [vmem:[#allocation8 + $0xb8] sm:$0xff]
    %v1720 = vld [vmem:[#allocation8 + $0xc0] sm:$0xff]
    %v1721 = vld [vmem:[#allocation8 + $0xc8] sm:$0xff]
    %v1722 = vld [vmem:[#allocation8 + $0xd0] sm:$0xff]
    %v1723 = vld [vmem:[#allocation8 + $0xd8] sm:$0xff]
    %v1724 = vld [vmem:[#allocation8 + $0xe0] sm:$0xff]
    %v1725 = vld [vmem:[#allocation8 + $0xe8] sm:$0xff]
    %v1726 = vld [vmem:[#allocation8 + $0xf0] sm:$0xff]
    %v1727 = vld [vmem:[#allocation8 + $0xf8] sm:$0xff]
    %v1728 = vld [vmem:[#allocation8 + $0x100] sm:$0xff]
    %v1729 = vld [vmem:[#allocation8 + $0x108] sm:$0xff]
    %v1730 = vld [vmem:[#allocation8 + $0x110] sm:$0xff]
    %v1731 = vld [vmem:[#allocation8 + $0x118] sm:$0xff]
    %v1732 = vld [vmem:[#allocation8 + $0x120] sm:$0xff]
    %v1733 = vld [vmem:[#allocation8 + $0x128] sm:$0xff]
    %v1734 = vld [vmem:[#allocation8 + $0x130] sm:$0xff]
    %v1735 = vld [vmem:[#allocation8 + $0x138] sm:$0xff]
    %v1736 = vld [vmem:[#allocation8 + $0x140] sm:$0xff]
    %v1737 = vld [vmem:[#allocation8 + $0x148] sm:$0xff]
    %v1738 = vld [vmem:[#allocation8 + $0x150] sm:$0xff]
    %v1739 = vld [vmem:[#allocation8 + $0x158] sm:$0xff]
    %v1740 = vld [vmem:[#allocation8 + $0x160] sm:$0xff]
    %v1741 = vld [vmem:[#allocation8 + $0x168] sm:$0xff]
    %v1742 = vld [vmem:[#allocation8 + $0x170] sm:$0xff]
    %v1743 = vld [vmem:[#allocation8 + $0x178] sm:$0xff]
    %v1744 = vld [vmem:[#allocation8 + $0x180] sm:$0xff]
    %v1745 = vld [vmem:[#allocation8 + $0x188] sm:$0xff]
    %v1746 = vld [vmem:[#allocation8 + $0x190] sm:$0xff]
    %v1747 = vld [vmem:[#allocation8 + $0x198] sm:$0xff]
    %v1748 = vld [vmem:[#allocation8 + $0x1a0] sm:$0xff]
    %v1749 = vld [vmem:[#allocation8 + $0x1a8] sm:$0xff]
    %v1750 = vld [vmem:[#allocation8 + $0x1b0] sm:$0xff]
    %v1751 = vld [vmem:[#allocation8 + $0x1b8] sm:$0xff]
    %v1752 = vld [vmem:[#allocation8 + $0x1c0] sm:$0xff]
    %v1753 = vld [vmem:[#allocation8 + $0x1c8] sm:$0xff]
    %v1754 = vld [vmem:[#allocation8 + $0x1d0] sm:$0xff]
    %v1755 = vld [vmem:[#allocation8 + $0x1d8] sm:$0xff]
    %v1756 = vld [vmem:[#allocation8 + $0x1e0] sm:$0xff]
    %v1757 = vld [vmem:[#allocation8 + $0x1e8] sm:$0xff]
    %v1758 = vld [vmem:[#allocation8 + $0x1f0] sm:$0xff]
    %v1759 = vld [vmem:[#allocation8 + $0x1f8] sm:$0xff]
    %v1760 = vld [vmem:[#allocation8 + $0x200] sm:$0xff]
    %v1761 = vld [vmem:[#allocation8 + $0x208] sm:$0xff]
    %v1762 = vld [vmem:[#allocation8 + $0x210] sm:$0xff]
    %v1763 = vld [vmem:[#allocation8 + $0x218] sm:$0xff]
    %v1764 = vld [vmem:[#allocation8 + $0x220] sm:$0xff]
    %v1765 = vld [vmem:[#allocation8 + $0x228] sm:$0xff]
    %v1766 = vld [vmem:[#allocation8 + $0x230] sm:$0xff]
    %v1767 = vld [vmem:[#allocation8 + $0x238] sm:$0xff]
    %v1768 = vld [vmem:[#allocation8 + $0x240] sm:$0xff]
    %v1769 = vld [vmem:[#allocation8 + $0x248] sm:$0xff]
    %v1770 = vld [vmem:[#allocation8 + $0x250] sm:$0xff]
    %v1771 = vld [vmem:[#allocation8 + $0x258] sm:$0xff]
    %v1772 = vld [vmem:[#allocation8 + $0x260] sm:$0xff]
    %v1773 = vld [vmem:[#allocation8 + $0x268] sm:$0xff]
    %v1774 = vld [vmem:[#allocation8 + $0x270] sm:$0xff]
    %v1775 = vld [vmem:[#allocation8 + $0x278] sm:$0xff]
    %v1776 = vld [vmem:[#allocation8 + $0x280] sm:$0xff]
    %v1777 = vld [vmem:[#allocation8 + $0x288] sm:$0xff]
    %v1778 = vld [vmem:[#allocation8 + $0x290] sm:$0xff]
    %v1779 = vld [vmem:[#allocation8 + $0x298] sm:$0xff]
    %v1780 = vld [vmem:[#allocation8 + $0x2a0] sm:$0xff]
    %v1781 = vld [vmem:[#allocation8 + $0x2a8] sm:$0xff]
    %v1782 = vld [vmem:[#allocation8 + $0x2b0] sm:$0xff]
    %v1783 = vld [vmem:[#allocation8 + $0x2b8] sm:$0xff]
    %v1784 = vld [vmem:[#allocation8 + $0x2c0] sm:$0xff]
    %v1785 = vld [vmem:[#allocation8 + $0x2c8] sm:$0xff]
    %v1786 = vld [vmem:[#allocation8 + $0x2d0] sm:$0xff]
    %v1787 = vld [vmem:[#allocation8 + $0x2d8] sm:$0xff]
    %v1788 = vld [vmem:[#allocation8 + $0x2e0] sm:$0xff]
    %v1789 = vld [vmem:[#allocation8 + $0x2e8] sm:$0xff]
    %v1790 = vld [vmem:[#allocation8 + $0x2f0] sm:$0xff]
    %v1791 = vld [vmem:[#allocation8 + $0x2f8] sm:$0xff]
    %v1792 = vld [vmem:[#allocation8 + $0x300] sm:$0xff]
    %v1793 = vld [vmem:[#allocation8 + $0x308] sm:$0xff]
    %v1794 = vld [vmem:[#allocation8 + $0x310] sm:$0xff]
    %v1795 = vld [vmem:[#allocation8 + $0x318] sm:$0xff]
    %v1796 = vld [vmem:[#allocation8 + $0x320] sm:$0xff]
    %v1797 = vld [vmem:[#allocation8 + $0x328] sm:$0xff]
    %v1798 = vld [vmem:[#allocation8 + $0x330] sm:$0xff]
    %v1799 = vld [vmem:[#allocation8 + $0x338] sm:$0xff]
    %v1800 = vld [vmem:[#allocation8 + $0x340] sm:$0xff]
    %v1801 = vld [vmem:[#allocation8 + $0x348] sm:$0xff]
    %v1802 = vld [vmem:[#allocation8 + $0x350] sm:$0xff]
    %v1803 = vld [vmem:[#allocation8 + $0x358] sm:$0xff]
    %v1804 = vld [vmem:[#allocation8 + $0x360] sm:$0xff]
    %v1805 = vld [vmem:[#allocation8 + $0x368] sm:$0xff]
    %v1806 = vld [vmem:[#allocation8 + $0x370] sm:$0xff]
    %v1807 = vld [vmem:[#allocation8 + $0x378] sm:$0xff]
    %v1808 = vld [vmem:[#allocation8 + $0x380] sm:$0xff]
    %v1809 = vld [vmem:[#allocation8 + $0x388] sm:$0xff]
    %v1810 = vld [vmem:[#allocation8 + $0x390] sm:$0xff]
    %v1811 = vld [vmem:[#allocation8 + $0x398] sm:$0xff]
    %v1812 = vld [vmem:[#allocation8 + $0x3a0] sm:$0xff]
    %v1813 = vld [vmem:[#allocation8 + $0x3a8] sm:$0xff]
    %v1814 = vld [vmem:[#allocation8 + $0x3b0] sm:$0xff]
    %v1815 = vld [vmem:[#allocation8 + $0x3b8] sm:$0xff]
    %v1816 = vld [vmem:[#allocation8 + $0x3c0] sm:$0xff]
    %v1817 = vld [vmem:[#allocation8 + $0x3c8] sm:$0xff]
    %v1818 = vld [vmem:[#allocation8 + $0x3d0] sm:$0xff]
    %v1819 = vld [vmem:[#allocation8 + $0x3d8] sm:$0xff]
    %v1820 = vld [vmem:[#allocation8 + $0x3e0] sm:$0xff]
    %v1821 = vld [vmem:[#allocation8 + $0x3e8] sm:$0xff]
    %v1822 = vld [vmem:[#allocation8 + $0x3f0] sm:$0xff]
    %v1823 = vld [vmem:[#allocation8 + $0x3f8] sm:$0xff]
    %v1824 = vld [vmem:[#allocation11] sm:$0xf]
    %v1826 = vperm.slane %v1824, 0
    %v1827 = vperm.slane %v1824, 1
    %v1828 = vperm.slane %v1824, 2
    %v1829 = vperm.slane %v1824, 3
    %1834 = vmatpush.msra.mxu0 %v1756
    %1835 = vmatpush.msra.mxu0 %v1752
    %1836 = vmatpush.msra.mxu0 %v1748
    %1837 = vmatpush.msra.mxu0 %v1744
    %1838 = vmatpush.msra.mxu0 %v1740
    %1839 = vmatpush.msra.mxu0 %v1736
    %1840 = vmatpush.msra.mxu0 %v1732
    %1841 = vmatpush.msra.mxu0 %v1728
    %1842 = vmatpush.msra.mxu0 %v1724
    %1843 = vmatpush.msra.mxu0 %v1720
    %1844 = vmatpush.msra.mxu0 %v1716
    %1845 = vmatpush.msra.mxu0 %v1712
    %1846 = vmatpush.msra.mxu0 %v1708
    %1847 = vmatpush.msra.mxu0 %v1704
    %1848 = vmatpush.msra.mxu0 %v1700
    %1849 = vmatpush.msra.mxu0 %v1696
    %1850 = vmatmul.f32.gmra.mxu0 %v1695
    %v1851 = vpop.f32.mrf.mxu0
    %v1852 = vadd.f32 %v1826, %v1851
    %1853 = vdwg.mxu0
    %1854 = vmatpush.msra.mxu0 %v1820
    %1855 = vmatpush.msra.mxu0 %v1816
    %1856 = vmatpush.msra.mxu0 %v1812
    %1857 = vmatpush.msra.mxu0 %v1808
    %1858 = vmatpush.msra.mxu0 %v1804
    %1859 = vmatpush.msra.mxu0 %v1800
    %1860 = vmatpush.msra.mxu0 %v1796
    %1861 = vmatpush.msra.mxu0 %v1792
    %1862 = vmatpush.msra.mxu0 %v1788
    %1863 = vmatpush.msra.mxu0 %v1784
    %1864 = vmatpush.msra.mxu0 %v1780
    %1865 = vmatpush.msra.mxu0 %v1776
    %1866 = vmatpush.msra.mxu0 %v1772
    %1867 = vmatpush.msra.mxu0 %v1768
    %1868 = vmatpush.msra.mxu0 %v1764
    %1869 = vmatpush.msra.mxu0 %v1760
    %1870 = vmatmul.f32.gmra.mxu0 %v1281
    %v1871 = vpop.f32.mrf.mxu0
    %v1872 = vadd.f32 %v1852, %v1871
    %1873 = vdwg.mxu0
    %1874 = vmatpush.msra.mxu0 %v1757
    %1875 = vmatpush.msra.mxu0 %v1753
    %1876 = vmatpush.msra.mxu0 %v1749
    %1877 = vmatpush.msra.mxu0 %v1745
    %1878 = vmatpush.msra.mxu0 %v1741
    %1879 = vmatpush.msra.mxu0 %v1737
    %1880 = vmatpush.msra.mxu0 %v1733
    %1881 = vmatpush.msra.mxu0 %v1729
    %1882 = vmatpush.msra.mxu0 %v1725
    %1883 = vmatpush.msra.mxu0 %v1721
    %1884 = vmatpush.msra.mxu0 %v1717
    %1885 = vmatpush.msra.mxu0 %v1713
    %1886 = vmatpush.msra.mxu0 %v1709
    %1887 = vmatpush.msra.mxu0 %v1705
    %1888 = vmatpush.msra.mxu0 %v1701
    %1889 = vmatpush.msra.mxu0 %v1697
    %1890 = vmatmul.f32.gmra.mxu0 %v1695
    %v1891 = vpop.f32.mrf.mxu0
    %v1892 = vadd.f32 %v1827, %v1891
    %1893 = vdwg.mxu0
    %1894 = vmatpush.msra.mxu0 %v1821
    %1895 = vmatpush.msra.mxu0 %v1817
    %1896 = vmatpush.msra.mxu0 %v1813
    %1897 = vmatpush.msra.mxu0 %v1809
    %1898 = vmatpush.msra.mxu0 %v1805
    %1899 = vmatpush.msra.mxu0 %v1801
    %1900 = vmatpush.msra.mxu0 %v1797
    %1901 = vmatpush.msra.mxu0 %v1793
    %1902 = vmatpush.msra.mxu0 %v1789
    %1903 = vmatpush.msra.mxu0 %v1785
    %1904 = vmatpush.msra.mxu0 %v1781
    %1905 = vmatpush.msra.mxu0 %v1777
    %1906 = vmatpush.msra.mxu0 %v1773
    %1907 = vmatpush.msra.mxu0 %v1769
    %1908 = vmatpush.msra.mxu0 %v1765
    %1909 = vmatpush.msra.mxu0 %v1761
    %1910 = vmatmul.f32.gmra.mxu0 %v1281
    %v1911 = vpop.f32.mrf.mxu0
    %v1912 = vadd.f32 %v1892, %v1911
    %1913 = vdwg.mxu0
    %1914 = vmatpush.msra.mxu0 %v1758
    %1915 = vmatpush.msra.mxu0 %v1754
    %1916 = vmatpush.msra.mxu0 %v1750
    %1917 = vmatpush.msra.mxu0 %v1746
    %1918 = vmatpush.msra.mxu0 %v1742
    %1919 = vmatpush.msra.mxu0 %v1738
    %1920 = vmatpush.msra.mxu0 %v1734
    %1921 = vmatpush.msra.mxu0 %v1730
    %1922 = vmatpush.msra.mxu0 %v1726
    %1923 = vmatpush.msra.mxu0 %v1722
    %1924 = vmatpush.msra.mxu0 %v1718
    %1925 = vmatpush.msra.mxu0 %v1714
    %1926 = vmatpush.msra.mxu0 %v1710
    %1927 = vmatpush.msra.mxu0 %v1706
    %1928 = vmatpush.msra.mxu0 %v1702
    %1929 = vmatpush.msra.mxu0 %v1698
    %1930 = vmatmul.f32.gmra.mxu0 %v1695
    %v1931 = vpop.f32.mrf.mxu0
    %v1932 = vadd.f32 %v1828, %v1931
    %1933 = vdwg.mxu0
    %1934 = vmatpush.msra.mxu0 %v1822
    %1935 = vmatpush.msra.mxu0 %v1818
    %1936 = vmatpush.msra.mxu0 %v1814
    %1937 = vmatpush.msra.mxu0 %v1810
    %1938 = vmatpush.msra.mxu0 %v1806
    %1939 = vmatpush.msra.mxu0 %v1802
    %1940 = vmatpush.msra.mxu0 %v1798
    %1941 = vmatpush.msra.mxu0 %v1794
    %1942 = vmatpush.msra.mxu0 %v1790
    %1943 = vmatpush.msra.mxu0 %v1786
    %1944 = vmatpush.msra.mxu0 %v1782
    %1945 = vmatpush.msra.mxu0 %v1778
    %1946 = vmatpush.msra.mxu0 %v1774
    %1947 = vmatpush.msra.mxu0 %v1770
    %1948 = vmatpush.msra.mxu0 %v1766
    %1949 = vmatpush.msra.mxu0 %v1762
    %1950 = vmatmul.f32.gmra.mxu0 %v1281
    %v1951 = vpop.f32.mrf.mxu0
    %v1952 = vadd.f32 %v1932, %v1951
    %1953 = vdwg.mxu0
    %1954 = vmatpush.msra.mxu0 %v1759
    %1955 = vmatpush.msra.mxu0 %v1755
    %1956 = vmatpush.msra.mxu0 %v1751
    %1957 = vmatpush.msra.mxu0 %v1747
    %1958 = vmatpush.msra.mxu0 %v1743
    %1959 = vmatpush.msra.mxu0 %v1739
    %1960 = vmatpush.msra.mxu0 %v1735
    %1961 = vmatpush.msra.mxu0 %v1731
    %1962 = vmatpush.msra.mxu0 %v1727
    %1963 = vmatpush.msra.mxu0 %v1723
    %1964 = vmatpush.msra.mxu0 %v1719
    %1965 = vmatpush.msra.mxu0 %v1715
    %1966 = vmatpush.msra.mxu0 %v1711
    %1967 = vmatpush.msra.mxu0 %v1707
    %1968 = vmatpush.msra.mxu0 %v1703
    %1969 = vmatpush.msra.mxu0 %v1699
    %1970 = vmatmul.f32.gmra.mxu0 %v1695
    %v1971 = vpop.f32.mrf.mxu0
    %v1972 = vadd.f32 %v1829, %v1971
    %1973 = vdwg.mxu0
    %1974 = vmatpush.msra.mxu0 %v1823
    %1975 = vmatpush.msra.mxu0 %v1819
    %1976 = vmatpush.msra.mxu0 %v1815
    %1977 = vmatpush.msra.mxu0 %v1811
    %1978 = vmatpush.msra.mxu0 %v1807
    %1979 = vmatpush.msra.mxu0 %v1803
    %1980 = vmatpush.msra.mxu0 %v1799
    %1981 = vmatpush.msra.mxu0 %v1795
    %1982 = vmatpush.msra.mxu0 %v1791
    %1983 = vmatpush.msra.mxu0 %v1787
    %1984 = vmatpush.msra.mxu0 %v1783
    %1985 = vmatpush.msra.mxu0 %v1779
    %1986 = vmatpush.msra.mxu0 %v1775
    %1987 = vmatpush.msra.mxu0 %v1771
    %1988 = vmatpush.msra.mxu0 %v1767
    %1989 = vmatpush.msra.mxu0 %v1763
    %1990 = vmatmul.f32.gmra.mxu0 %v1281
    %v1991 = vpop.f32.mrf.mxu0
    %v1992 = vadd.f32 %v1972, %v1991
    %1993 = vdwg.mxu0
    %v1994 = vxor.u32 %v1872, 2147483648
    %v1995 = vmul.f32 %v1994, 1.442695
    %v1996 = vpow.pop %v1995
    %v1997 = vadd.f32 %v1996, 1.0
    %v1998 = vrcp.pop %v1997
    %v1999 = vmul.f32 %v1997, %v1998
    %v2000 = vsub.f32 1.0, %v1999
    %v2001 = vmul.f32 %v1998, %v2000
    %v2002 = vadd.f32 %v1998, %v2001
    %vm2003 = vweird.f32 %v1997
    %vm2004 = vweird.f32 %v1998
    %vm2005 = vmor %vm2003, %vm2004
    %v2006 = vsel %vm2005, %v1998, %v2002
    %v2007 = vand.u32 2147483647, %v1997
    %vm2008 = vcmp.eq.f32.partialorder %v2007, 8.507059e+37
    %v2009 = vand.u32 %v1997, 2147483648
    %v2010 = vor.u32 1.1754944e-38, %v2009
    %v2011 = vsel %vm2008, %v2010, %v2006
    %v2012 = vmul.f32 1.0, %v2011
    %v2013 = vxor.u32 %v1912, 2147483648
    %v2014 = vmul.f32 %v2013, 1.442695
    %v2015 = vpow.pop %v2014
    %v2016 = vadd.f32 %v2015, 1.0
    %v2017 = vrcp.pop %v2016
    %v2018 = vmul.f32 %v2016, %v2017
    %v2019 = vsub.f32 1.0, %v2018
    %v2020 = vmul.f32 %v2017, %v2019
    %v2021 = vadd.f32 %v2017, %v2020
    %vm2022 = vweird.f32 %v2016
    %vm2023 = vweird.f32 %v2017
    %vm2024 = vmor %vm2022, %vm2023
    %v2025 = vsel %vm2024, %v2017, %v2021
    %v2026 = vand.u32 2147483647, %v2016
    %vm2027 = vcmp.eq.f32.partialorder %v2026, 8.507059e+37
    %v2028 = vand.u32 %v2016, 2147483648
    %v2029 = vor.u32 1.1754944e-38, %v2028
    %v2030 = vsel %vm2027, %v2029, %v2025
    %v2031 = vmul.f32 1.0, %v2030
    %v2032 = vtanh.pop %v1952
    %v2033 = vxor.u32 %v1992, 2147483648
    %v2034 = vmul.f32 %v2033, 1.442695
    %v2035 = vpow.pop %v2034
    %v2036 = vadd.f32 %v2035, 1.0
    %v2037 = vrcp.pop %v2036
    %v2038 = vmul.f32 %v2036, %v2037
    %v2039 = vsub.f32 1.0, %v2038
    %v2040 = vmul.f32 %v2037, %v2039
    %v2041 = vadd.f32 %v2037, %v2040
    %vm2042 = vweird.f32 %v2036
    %vm2043 = vweird.f32 %v2037
    %vm2044 = vmor %vm2042, %vm2043
    %v2045 = vsel %vm2044, %v2037, %v2041
    %v2046 = vand.u32 2147483647, %v2036
    %vm2047 = vcmp.eq.f32.partialorder %v2046, 8.507059e+37
    %v2048 = vand.u32 %v2036, 2147483648
    %v2049 = vor.u32 1.1754944e-38, %v2048
    %v2050 = vsel %vm2047, %v2049, %v2045
    %v2051 = vmul.f32 1.0, %v2050
    %v2052 = vmul.f32 %v2031, %v1279
    %v2053 = vmul.f32 %v2012, %v2032
    %v2054 = vadd.f32 %v2052, %v2053
    %v2055 = vtanh.pop %v2054
    %v2056 = vmul.f32 %v2051, %v2055
    %v2057 = vld [vmem:[#allocation10] sm:$0xff]
    %v2058 = vld [vmem:[#allocation10 + $0x8] sm:$0xff]
    %v2059 = vld [vmem:[#allocation10 + $0x10] sm:$0xff]
    %v2060 = vld [vmem:[#allocation10 + $0x18] sm:$0xff]
    %v2061 = vld [vmem:[#allocation10 + $0x20] sm:$0xff]
    %v2062 = vld [vmem:[#allocation10 + $0x28] sm:$0xff]
    %v2063 = vld [vmem:[#allocation10 + $0x30] sm:$0xff]
    %v2064 = vld [vmem:[#allocation10 + $0x38] sm:$0xff]
    %v2065 = vld [vmem:[#allocation10 + $0x40] sm:$0xff]
    %v2066 = vld [vmem:[#allocation10 + $0x48] sm:$0xff]
    %v2067 = vld [vmem:[#allocation10 + $0x50] sm:$0xff]
    %v2068 = vld [vmem:[#allocation10 + $0x58] sm:$0xff]
    %v2069 = vld [vmem:[#allocation10 + $0x60] sm:$0xff]
    %v2070 = vld [vmem:[#allocation10 + $0x68] sm:$0xff]
    %v2071 = vld [vmem:[#allocation10 + $0x70] sm:$0xff]
    %v2072 = vld [vmem:[#allocation10 + $0x78] sm:$0xff]
    %v2073 = vld [vmem:[#allocation10 + $0x80] sm:$0xff]
    %v2074 = vld [vmem:[#allocation10 + $0x88] sm:$0xff]
    %v2075 = vld [vmem:[#allocation10 + $0x90] sm:$0xff]
    %v2076 = vld [vmem:[#allocation10 + $0x98] sm:$0xff]
    %v2077 = vld [vmem:[#allocation10 + $0xa0] sm:$0xff]
    %v2078 = vld [vmem:[#allocation10 + $0xa8] sm:$0xff]
    %v2079 = vld [vmem:[#allocation10 + $0xb0] sm:$0xff]
    %v2080 = vld [vmem:[#allocation10 + $0xb8] sm:$0xff]
    %v2081 = vld [vmem:[#allocation10 + $0xc0] sm:$0xff]
    %v2082 = vld [vmem:[#allocation10 + $0xc8] sm:$0xff]
    %v2083 = vld [vmem:[#allocation10 + $0xd0] sm:$0xff]
    %v2084 = vld [vmem:[#allocation10 + $0xd8] sm:$0xff]
    %v2085 = vld [vmem:[#allocation10 + $0xe0] sm:$0xff]
    %v2086 = vld [vmem:[#allocation10 + $0xe8] sm:$0xff]
    %v2087 = vld [vmem:[#allocation10 + $0xf0] sm:$0xff]
    %v2088 = vld [vmem:[#allocation10 + $0xf8] sm:$0xff]
    %v2089 = vld [vmem:[#allocation10 + $0x100] sm:$0xff]
    %v2090 = vld [vmem:[#allocation10 + $0x108] sm:$0xff]
    %v2091 = vld [vmem:[#allocation10 + $0x110] sm:$0xff]
    %v2092 = vld [vmem:[#allocation10 + $0x118] sm:$0xff]
    %v2093 = vld [vmem:[#allocation10 + $0x120] sm:$0xff]
    %v2094 = vld [vmem:[#allocation10 + $0x128] sm:$0xff]
    %v2095 = vld [vmem:[#allocation10 + $0x130] sm:$0xff]
    %v2096 = vld [vmem:[#allocation10 + $0x138] sm:$0xff]
    %v2097 = vld [vmem:[#allocation10 + $0x140] sm:$0xff]
    %v2098 = vld [vmem:[#allocation10 + $0x148] sm:$0xff]
    %v2099 = vld [vmem:[#allocation10 + $0x150] sm:$0xff]
    %v2100 = vld [vmem:[#allocation10 + $0x158] sm:$0xff]
    %v2101 = vld [vmem:[#allocation10 + $0x160] sm:$0xff]
    %v2102 = vld [vmem:[#allocation10 + $0x168] sm:$0xff]
    %v2103 = vld [vmem:[#allocation10 + $0x170] sm:$0xff]
    %v2104 = vld [vmem:[#allocation10 + $0x178] sm:$0xff]
    %v2105 = vld [vmem:[#allocation10 + $0x180] sm:$0xff]
    %v2106 = vld [vmem:[#allocation10 + $0x188] sm:$0xff]
    %v2107 = vld [vmem:[#allocation10 + $0x190] sm:$0xff]
    %v2108 = vld [vmem:[#allocation10 + $0x198] sm:$0xff]
    %v2109 = vld [vmem:[#allocation10 + $0x1a0] sm:$0xff]
    %v2110 = vld [vmem:[#allocation10 + $0x1a8] sm:$0xff]
    %v2111 = vld [vmem:[#allocation10 + $0x1b0] sm:$0xff]
    %v2112 = vld [vmem:[#allocation10 + $0x1b8] sm:$0xff]
    %v2113 = vld [vmem:[#allocation10 + $0x1c0] sm:$0xff]
    %v2114 = vld [vmem:[#allocation10 + $0x1c8] sm:$0xff]
    %v2115 = vld [vmem:[#allocation10 + $0x1d0] sm:$0xff]
    %v2116 = vld [vmem:[#allocation10 + $0x1d8] sm:$0xff]
    %v2117 = vld [vmem:[#allocation10 + $0x1e0] sm:$0xff]
    %v2118 = vld [vmem:[#allocation10 + $0x1e8] sm:$0xff]
    %v2119 = vld [vmem:[#allocation10 + $0x1f0] sm:$0xff]
    %v2120 = vld [vmem:[#allocation10 + $0x1f8] sm:$0xff]
    %v2121 = vld [vmem:[#allocation10 + $0x200] sm:$0xff]
    %v2122 = vld [vmem:[#allocation10 + $0x208] sm:$0xff]
    %v2123 = vld [vmem:[#allocation10 + $0x210] sm:$0xff]
    %v2124 = vld [vmem:[#allocation10 + $0x218] sm:$0xff]
    %v2125 = vld [vmem:[#allocation10 + $0x220] sm:$0xff]
    %v2126 = vld [vmem:[#allocation10 + $0x228] sm:$0xff]
    %v2127 = vld [vmem:[#allocation10 + $0x230] sm:$0xff]
    %v2128 = vld [vmem:[#allocation10 + $0x238] sm:$0xff]
    %v2129 = vld [vmem:[#allocation10 + $0x240] sm:$0xff]
    %v2130 = vld [vmem:[#allocation10 + $0x248] sm:$0xff]
    %v2131 = vld [vmem:[#allocation10 + $0x250] sm:$0xff]
    %v2132 = vld [vmem:[#allocation10 + $0x258] sm:$0xff]
    %v2133 = vld [vmem:[#allocation10 + $0x260] sm:$0xff]
    %v2134 = vld [vmem:[#allocation10 + $0x268] sm:$0xff]
    %v2135 = vld [vmem:[#allocation10 + $0x270] sm:$0xff]
    %v2136 = vld [vmem:[#allocation10 + $0x278] sm:$0xff]
    %v2137 = vld [vmem:[#allocation10 + $0x280] sm:$0xff]
    %v2138 = vld [vmem:[#allocation10 + $0x288] sm:$0xff]
    %v2139 = vld [vmem:[#allocation10 + $0x290] sm:$0xff]
    %v2140 = vld [vmem:[#allocation10 + $0x298] sm:$0xff]
    %v2141 = vld [vmem:[#allocation10 + $0x2a0] sm:$0xff]
    %v2142 = vld [vmem:[#allocation10 + $0x2a8] sm:$0xff]
    %v2143 = vld [vmem:[#allocation10 + $0x2b0] sm:$0xff]
    %v2144 = vld [vmem:[#allocation10 + $0x2b8] sm:$0xff]
    %v2145 = vld [vmem:[#allocation10 + $0x2c0] sm:$0xff]
    %v2146 = vld [vmem:[#allocation10 + $0x2c8] sm:$0xff]
    %v2147 = vld [vmem:[#allocation10 + $0x2d0] sm:$0xff]
    %v2148 = vld [vmem:[#allocation10 + $0x2d8] sm:$0xff]
    %v2149 = vld [vmem:[#allocation10 + $0x2e0] sm:$0xff]
    %v2150 = vld [vmem:[#allocation10 + $0x2e8] sm:$0xff]
    %v2151 = vld [vmem:[#allocation10 + $0x2f0] sm:$0xff]
    %v2152 = vld [vmem:[#allocation10 + $0x2f8] sm:$0xff]
    %v2153 = vld [vmem:[#allocation10 + $0x300] sm:$0xff]
    %v2154 = vld [vmem:[#allocation10 + $0x308] sm:$0xff]
    %v2155 = vld [vmem:[#allocation10 + $0x310] sm:$0xff]
    %v2156 = vld [vmem:[#allocation10 + $0x318] sm:$0xff]
    %v2157 = vld [vmem:[#allocation10 + $0x320] sm:$0xff]
    %v2158 = vld [vmem:[#allocation10 + $0x328] sm:$0xff]
    %v2159 = vld [vmem:[#allocation10 + $0x330] sm:$0xff]
    %v2160 = vld [vmem:[#allocation10 + $0x338] sm:$0xff]
    %v2161 = vld [vmem:[#allocation10 + $0x340] sm:$0xff]
    %v2162 = vld [vmem:[#allocation10 + $0x348] sm:$0xff]
    %v2163 = vld [vmem:[#allocation10 + $0x350] sm:$0xff]
    %v2164 = vld [vmem:[#allocation10 + $0x358] sm:$0xff]
    %v2165 = vld [vmem:[#allocation10 + $0x360] sm:$0xff]
    %v2166 = vld [vmem:[#allocation10 + $0x368] sm:$0xff]
    %v2167 = vld [vmem:[#allocation10 + $0x370] sm:$0xff]
    %v2168 = vld [vmem:[#allocation10 + $0x378] sm:$0xff]
    %v2169 = vld [vmem:[#allocation10 + $0x380] sm:$0xff]
    %v2170 = vld [vmem:[#allocation10 + $0x388] sm:$0xff]
    %v2171 = vld [vmem:[#allocation10 + $0x390] sm:$0xff]
    %v2172 = vld [vmem:[#allocation10 + $0x398] sm:$0xff]
    %v2173 = vld [vmem:[#allocation10 + $0x3a0] sm:$0xff]
    %v2174 = vld [vmem:[#allocation10 + $0x3a8] sm:$0xff]
    %v2175 = vld [vmem:[#allocation10 + $0x3b0] sm:$0xff]
    %v2176 = vld [vmem:[#allocation10 + $0x3b8] sm:$0xff]
    %v2177 = vld [vmem:[#allocation10 + $0x3c0] sm:$0xff]
    %v2178 = vld [vmem:[#allocation10 + $0x3c8] sm:$0xff]
    %v2179 = vld [vmem:[#allocation10 + $0x3d0] sm:$0xff]
    %v2180 = vld [vmem:[#allocation10 + $0x3d8] sm:$0xff]
    %v2181 = vld [vmem:[#allocation10 + $0x3e0] sm:$0xff]
    %v2182 = vld [vmem:[#allocation10 + $0x3e8] sm:$0xff]
    %v2183 = vld [vmem:[#allocation10 + $0x3f0] sm:$0xff]
    %v2184 = vld [vmem:[#allocation10 + $0x3f8] sm:$0xff]
    %v2185 = vld [vmem:[%s635] sm:$0xf]
    %v2187 = vperm.slane %v2185, 0
    %v2188 = vperm.slane %v2185, 1
    %v2189 = vperm.slane %v2185, 2
    %v2190 = vperm.slane %v2185, 3
    %2195 = vmatpush.msra.mxu0 %v2117
    %2196 = vmatpush.msra.mxu0 %v2113
    %2197 = vmatpush.msra.mxu0 %v2109
    %2198 = vmatpush.msra.mxu0 %v2105
    %2199 = vmatpush.msra.mxu0 %v2101
    %2200 = vmatpush.msra.mxu0 %v2097
    %2201 = vmatpush.msra.mxu0 %v2093
    %2202 = vmatpush.msra.mxu0 %v2089
    %2203 = vmatpush.msra.mxu0 %v2085
    %2204 = vmatpush.msra.mxu0 %v2081
    %2205 = vmatpush.msra.mxu0 %v2077
    %2206 = vmatpush.msra.mxu0 %v2073
    %2207 = vmatpush.msra.mxu0 %v2069
    %2208 = vmatpush.msra.mxu0 %v2065
    %2209 = vmatpush.msra.mxu0 %v2061
    %2210 = vmatpush.msra.mxu0 %v2057
    %2211 = vmatmul.f32.gmra.mxu0 %v2056
    %v2212 = vpop.f32.mrf.mxu0
    %v2213 = vadd.f32 %v2187, %v2212
    %2214 = vdwg.mxu0
    %2215 = vmatpush.msra.mxu0 %v2181
    %2216 = vmatpush.msra.mxu0 %v2177
    %2217 = vmatpush.msra.mxu0 %v2173
    %2218 = vmatpush.msra.mxu0 %v2169
    %2219 = vmatpush.msra.mxu0 %v2165
    %2220 = vmatpush.msra.mxu0 %v2161
    %2221 = vmatpush.msra.mxu0 %v2157
    %2222 = vmatpush.msra.mxu0 %v2153
    %2223 = vmatpush.msra.mxu0 %v2149
    %2224 = vmatpush.msra.mxu0 %v2145
    %2225 = vmatpush.msra.mxu0 %v2141
    %2226 = vmatpush.msra.mxu0 %v2137
    %2227 = vmatpush.msra.mxu0 %v2133
    %2228 = vmatpush.msra.mxu0 %v2129
    %2229 = vmatpush.msra.mxu0 %v2125
    %2230 = vmatpush.msra.mxu0 %v2121
    %2231 = vmatmul.f32.gmra.mxu0 %v1642
    %v2232 = vpop.f32.mrf.mxu0
    %v2233 = vadd.f32 %v2213, %v2232
    %2234 = vdwg.mxu0
    %2235 = vmatpush.msra.mxu0 %v2118
    %2236 = vmatpush.msra.mxu0 %v2114
    %2237 = vmatpush.msra.mxu0 %v2110
    %2238 = vmatpush.msra.mxu0 %v2106
    %2239 = vmatpush.msra.mxu0 %v2102
    %2240 = vmatpush.msra.mxu0 %v2098
    %2241 = vmatpush.msra.mxu0 %v2094
    %2242 = vmatpush.msra.mxu0 %v2090
    %2243 = vmatpush.msra.mxu0 %v2086
    %2244 = vmatpush.msra.mxu0 %v2082
    %2245 = vmatpush.msra.mxu0 %v2078
    %2246 = vmatpush.msra.mxu0 %v2074
    %2247 = vmatpush.msra.mxu0 %v2070
    %2248 = vmatpush.msra.mxu0 %v2066
    %2249 = vmatpush.msra.mxu0 %v2062
    %2250 = vmatpush.msra.mxu0 %v2058
    %2251 = vmatmul.f32.gmra.mxu0 %v2056
    %v2252 = vpop.f32.mrf.mxu0
    %v2253 = vadd.f32 %v2188, %v2252
    %2254 = vdwg.mxu0
    %2255 = vmatpush.msra.mxu0 %v2182
    %2256 = vmatpush.msra.mxu0 %v2178
    %2257 = vmatpush.msra.mxu0 %v2174
    %2258 = vmatpush.msra.mxu0 %v2170
    %2259 = vmatpush.msra.mxu0 %v2166
    %2260 = vmatpush.msra.mxu0 %v2162
    %2261 = vmatpush.msra.mxu0 %v2158
    %2262 = vmatpush.msra.mxu0 %v2154
    %2263 = vmatpush.msra.mxu0 %v2150
    %2264 = vmatpush.msra.mxu0 %v2146
    %2265 = vmatpush.msra.mxu0 %v2142
    %2266 = vmatpush.msra.mxu0 %v2138
    %2267 = vmatpush.msra.mxu0 %v2134
    %2268 = vmatpush.msra.mxu0 %v2130
    %2269 = vmatpush.msra.mxu0 %v2126
    %2270 = vmatpush.msra.mxu0 %v2122
    %2271 = vmatmul.f32.gmra.mxu0 %v1642
    %v2272 = vpop.f32.mrf.mxu0
    %v2273 = vadd.f32 %v2253, %v2272
    %2274 = vdwg.mxu0
    %2275 = vmatpush.msra.mxu0 %v2119
    %2276 = vmatpush.msra.mxu0 %v2115
    %2277 = vmatpush.msra.mxu0 %v2111
    %2278 = vmatpush.msra.mxu0 %v2107
    %2279 = vmatpush.msra.mxu0 %v2103
    %2280 = vmatpush.msra.mxu0 %v2099
    %2281 = vmatpush.msra.mxu0 %v2095
    %2282 = vmatpush.msra.mxu0 %v2091
    %2283 = vmatpush.msra.mxu0 %v2087
    %2284 = vmatpush.msra.mxu0 %v2083
    %2285 = vmatpush.msra.mxu0 %v2079
    %2286 = vmatpush.msra.mxu0 %v2075
    %2287 = vmatpush.msra.mxu0 %v2071
    %2288 = vmatpush.msra.mxu0 %v2067
    %2289 = vmatpush.msra.mxu0 %v2063
    %2290 = vmatpush.msra.mxu0 %v2059
    %2291 = vmatmul.f32.gmra.mxu0 %v2056
    %v2292 = vpop.f32.mrf.mxu0
    %v2293 = vadd.f32 %v2189, %v2292
    %2294 = vdwg.mxu0
    %2295 = vmatpush.msra.mxu0 %v2183
    %2296 = vmatpush.msra.mxu0 %v2179
    %2297 = vmatpush.msra.mxu0 %v2175
    %2298 = vmatpush.msra.mxu0 %v2171
    %2299 = vmatpush.msra.mxu0 %v2167
    %2300 = vmatpush.msra.mxu0 %v2163
    %2301 = vmatpush.msra.mxu0 %v2159
    %2302 = vmatpush.msra.mxu0 %v2155
    %2303 = vmatpush.msra.mxu0 %v2151
    %2304 = vmatpush.msra.mxu0 %v2147
    %2305 = vmatpush.msra.mxu0 %v2143
    %2306 = vmatpush.msra.mxu0 %v2139
    %2307 = vmatpush.msra.mxu0 %v2135
    %2308 = vmatpush.msra.mxu0 %v2131
    %2309 = vmatpush.msra.mxu0 %v2127
    %2310 = vmatpush.msra.mxu0 %v2123
    %2311 = vmatmul.f32.gmra.mxu0 %v1642
    %v2312 = vpop.f32.mrf.mxu0
    %v2313 = vadd.f32 %v2293, %v2312
    %2314 = vdwg.mxu0
    %2315 = vmatpush.msra.mxu0 %v2120
    %2316 = vmatpush.msra.mxu0 %v2116
    %2317 = vmatpush.msra.mxu0 %v2112
    %2318 = vmatpush.msra.mxu0 %v2108
    %2319 = vmatpush.msra.mxu0 %v2104
    %2320 = vmatpush.msra.mxu0 %v2100
    %2321 = vmatpush.msra.mxu0 %v2096
    %2322 = vmatpush.msra.mxu0 %v2092
    %2323 = vmatpush.msra.mxu0 %v2088
    %2324 = vmatpush.msra.mxu0 %v2084
    %2325 = vmatpush.msra.mxu0 %v2080
    %2326 = vmatpush.msra.mxu0 %v2076
    %2327 = vmatpush.msra.mxu0 %v2072
    %2328 = vmatpush.msra.mxu0 %v2068
    %2329 = vmatpush.msra.mxu0 %v2064
    %2330 = vmatpush.msra.mxu0 %v2060
    %2331 = vmatmul.f32.gmra.mxu0 %v2056
    %v2332 = vpop.f32.mrf.mxu0
    %v2333 = vadd.f32 %v2190, %v2332
    %2334 = vdwg.mxu0
    %2335 = vmatpush.msra.mxu0 %v2184
    %2336 = vmatpush.msra.mxu0 %v2180
    %2337 = vmatpush.msra.mxu0 %v2176
    %2338 = vmatpush.msra.mxu0 %v2172
    %2339 = vmatpush.msra.mxu0 %v2168
    %2340 = vmatpush.msra.mxu0 %v2164
    %2341 = vmatpush.msra.mxu0 %v2160
    %2342 = vmatpush.msra.mxu0 %v2156
    %2343 = vmatpush.msra.mxu0 %v2152
    %2344 = vmatpush.msra.mxu0 %v2148
    %2345 = vmatpush.msra.mxu0 %v2144
    %2346 = vmatpush.msra.mxu0 %v2140
    %2347 = vmatpush.msra.mxu0 %v2136
    %2348 = vmatpush.msra.mxu0 %v2132
    %2349 = vmatpush.msra.mxu0 %v2128
    %2350 = vmatpush.msra.mxu0 %v2124
    %2351 = vmatmul.f32.gmra.mxu0 %v1642
    %v2352 = vpop.f32.mrf.mxu0
    %v2353 = vadd.f32 %v2333, %v2352
    %2354 = vdwg.mxu0
    %v2355 = vxor.u32 %v2233, 2147483648
    %v2356 = vmul.f32 %v2355, 1.442695
    %v2357 = vpow.pop %v2356
    %v2358 = vadd.f32 %v2357, 1.0
    %v2359 = vrcp.pop %v2358
    %v2360 = vmul.f32 %v2358, %v2359
    %v2361 = vsub.f32 1.0, %v2360
    %v2362 = vmul.f32 %v2359, %v2361
    %v2363 = vadd.f32 %v2359, %v2362
    %vm2364 = vweird.f32 %v2358
    %vm2365 = vweird.f32 %v2359
    %vm2366 = vmor %vm2364, %vm2365
    %v2367 = vsel %vm2366, %v2359, %v2363
    %v2368 = vand.u32 2147483647, %v2358
    %vm2369 = vcmp.eq.f32.partialorder %v2368, 8.507059e+37
    %v2370 = vand.u32 %v2358, 2147483648
    %v2371 = vor.u32 1.1754944e-38, %v2370
    %v2372 = vsel %vm2369, %v2371, %v2367
    %v2373 = vmul.f32 1.0, %v2372
    %v2374 = vxor.u32 %v2273, 2147483648
    %v2375 = vmul.f32 %v2374, 1.442695
    %v2376 = vpow.pop %v2375
    %v2377 = vadd.f32 %v2376, 1.0
    %v2378 = vrcp.pop %v2377
    %v2379 = vmul.f32 %v2377, %v2378
    %v2380 = vsub.f32 1.0, %v2379
    %v2381 = vmul.f32 %v2378, %v2380
    %v2382 = vadd.f32 %v2378, %v2381
    %vm2383 = vweird.f32 %v2377
    %vm2384 = vweird.f32 %v2378
    %vm2385 = vmor %vm2383, %vm2384
    %v2386 = vsel %vm2385, %v2378, %v2382
    %v2387 = vand.u32 2147483647, %v2377
    %vm2388 = vcmp.eq.f32.partialorder %v2387, 8.507059e+37
    %v2389 = vand.u32 %v2377, 2147483648
    %v2390 = vor.u32 1.1754944e-38, %v2389
    %v2391 = vsel %vm2388, %v2390, %v2386
    %v2392 = vmul.f32 1.0, %v2391
    %v2393 = vtanh.pop %v2313
    %v2394 = vxor.u32 %v2353, 2147483648
    %v2395 = vmul.f32 %v2394, 1.442695
    %v2396 = vpow.pop %v2395
    %v2397 = vadd.f32 %v2396, 1.0
    %v2398 = vrcp.pop %v2397
    %v2399 = vmul.f32 %v2397, %v2398
    %v2400 = vsub.f32 1.0, %v2399
    %v2401 = vmul.f32 %v2398, %v2400
    %v2402 = vadd.f32 %v2398, %v2401
    %vm2403 = vweird.f32 %v2397
    %vm2404 = vweird.f32 %v2398
    %vm2405 = vmor %vm2403, %vm2404
    %v2406 = vsel %vm2405, %v2398, %v2402
    %v2407 = vand.u32 2147483647, %v2397
    %vm2408 = vcmp.eq.f32.partialorder %v2407, 8.507059e+37
    %v2409 = vand.u32 %v2397, 2147483648
    %v2410 = vor.u32 1.1754944e-38, %v2409
    %v2411 = vsel %vm2408, %v2410, %v2406
    %v2412 = vmul.f32 1.0, %v2411
    %v2413 = vmul.f32 %v2392, %v1640
    %v2414 = vmul.f32 %v2373, %v2393
    %v2415 = vadd.f32 %v2413, %v2414
    %v2416 = vtanh.pop %v2415
    %v2417 = vmul.f32 %v2412, %v2416
    %v2418 = vld [vmem:[#allocation13] sm:$0xff]
    %v2419 = vld [vmem:[#allocation13 + $0x8] sm:$0xff]
    %v2420 = vld [vmem:[#allocation13 + $0x10] sm:$0xff]
    %v2421 = vld [vmem:[#allocation13 + $0x18] sm:$0xff]
    %v2422 = vld [vmem:[#allocation13 + $0x20] sm:$0xff]
    %v2423 = vld [vmem:[#allocation13 + $0x28] sm:$0xff]
    %v2424 = vld [vmem:[#allocation13 + $0x30] sm:$0xff]
    %v2425 = vld [vmem:[#allocation13 + $0x38] sm:$0xff]
    %v2426 = vld [vmem:[#allocation13 + $0x40] sm:$0xff]
    %v2427 = vld [vmem:[#allocation13 + $0x48] sm:$0xff]
    %v2428 = vld [vmem:[#allocation13 + $0x50] sm:$0xff]
    %v2429 = vld [vmem:[#allocation13 + $0x58] sm:$0xff]
    %v2430 = vld [vmem:[#allocation13 + $0x60] sm:$0xff]
    %v2431 = vld [vmem:[#allocation13 + $0x68] sm:$0xff]
    %v2432 = vld [vmem:[#allocation13 + $0x70] sm:$0xff]
    %v2433 = vld [vmem:[#allocation13 + $0x78] sm:$0xff]
    %v2434 = vld [vmem:[%s7] sm:$0x1]
    %v2436 = vperm.slane %v2434, 0
    %2438 = vmatpush.msra.mxu0 %v2433
    %2439 = vmatpush.msra.mxu0 %v2432
    %2440 = vmatpush.msra.mxu0 %v2431
    %2441 = vmatpush.msra.mxu0 %v2430
    %2442 = vmatpush.msra.mxu0 %v2429
    %2443 = vmatpush.msra.mxu0 %v2428
    %2444 = vmatpush.msra.mxu0 %v2427
    %2445 = vmatpush.msra.mxu0 %v2426
    %2446 = vmatpush.msra.mxu0 %v2425
    %2447 = vmatpush.msra.mxu0 %v2424
    %2448 = vmatpush.msra.mxu0 %v2423
    %2449 = vmatpush.msra.mxu0 %v2422
    %2450 = vmatpush.msra.mxu0 %v2421
    %2451 = vmatpush.msra.mxu0 %v2420
    %2452 = vmatpush.msra.mxu0 %v2419
    %2453 = vmatpush.msra.mxu0 %v2418
    %2454 = vmatmul.f32.gmra.mxu0 %v2417
    %v2455 = vpop.f32.mrf.mxu0
    %v2456 = vadd.f32 %v2436, %v2455
    %2457 = vdwg.mxu0
    %2458 = vmax.xlane.f32.xlu0 %v2456
    %v2459 = vpop.xlane.xlu0 %2458
    %v2460 = vsub.f32 %v2456, %v2459
    %v2461 = vmul.f32 %v2460, 1.442695
    %v2462 = vpow.pop %v2461
    %2463 = vadd.xlane.f32.xlu0 %v2462
    %v2464 = vpop.xlane.xlu0 %2463
    %v2465 = vrcp.pop %v2464
    %v2466 = vmul.f32 %v2462, %v2465
    %s2467 = scalar_lea.vmem [#allocation14], 16
    %2468 = vst [vmem:[%s2467] sm:$0xff] %v2466
    %s2469 = scalar_lea.vmem [#allocation2], 24
    %v2470 = vld [vmem:[%s2469] sm:$0xff]
    %v2471 = vld [vmem:[#allocation8] sm:$0xff]
    %v2472 = vld [vmem:[#allocation8 + $0x8] sm:$0xff]
    %v2473 = vld [vmem:[#allocation8 + $0x10] sm:$0xff]
    %v2474 = vld [vmem:[#allocation8 + $0x18] sm:$0xff]
    %v2475 = vld [vmem:[#allocation8 + $0x20] sm:$0xff]
    %v2476 = vld [vmem:[#allocation8 + $0x28] sm:$0xff]
    %v2477 = vld [vmem:[#allocation8 + $0x30] sm:$0xff]
    %v2478 = vld [vmem:[#allocation8 + $0x38] sm:$0xff]
    %v2479 = vld [vmem:[#allocation8 + $0x40] sm:$0xff]
    %v2480 = vld [vmem:[#allocation8 + $0x48] sm:$0xff]
    %v2481 = vld [vmem:[#allocation8 + $0x50] sm:$0xff]
    %v2482 = vld [vmem:[#allocation8 + $0x58] sm:$0xff]
    %v2483 = vld [vmem:[#allocation8 + $0x60] sm:$0xff]
    %v2484 = vld [vmem:[#allocation8 + $0x68] sm:$0xff]
    %v2485 = vld [vmem:[#allocation8 + $0x70] sm:$0xff]
    %v2486 = vld [vmem:[#allocation8 + $0x78] sm:$0xff]
    %v2487 = vld [vmem:[#allocation8 + $0x80] sm:$0xff]
    %v2488 = vld [vmem:[#allocation8 + $0x88] sm:$0xff]
    %v2489 = vld [vmem:[#allocation8 + $0x90] sm:$0xff]
    %v2490 = vld [vmem:[#allocation8 + $0x98] sm:$0xff]
    %v2491 = vld [vmem:[#allocation8 + $0xa0] sm:$0xff]
    %v2492 = vld [vmem:[#allocation8 + $0xa8] sm:$0xff]
    %v2493 = vld [vmem:[#allocation8 + $0xb0] sm:$0xff]
    %v2494 = vld [vmem:[#allocation8 + $0xb8] sm:$0xff]
    %v2495 = vld [vmem:[#allocation8 + $0xc0] sm:$0xff]
    %v2496 = vld [vmem:[#allocation8 + $0xc8] sm:$0xff]
    %v2497 = vld [vmem:[#allocation8 + $0xd0] sm:$0xff]
    %v2498 = vld [vmem:[#allocation8 + $0xd8] sm:$0xff]
    %v2499 = vld [vmem:[#allocation8 + $0xe0] sm:$0xff]
    %v2500 = vld [vmem:[#allocation8 + $0xe8] sm:$0xff]
    %v2501 = vld [vmem:[#allocation8 + $0xf0] sm:$0xff]
    %v2502 = vld [vmem:[#allocation8 + $0xf8] sm:$0xff]
    %v2503 = vld [vmem:[#allocation8 + $0x100] sm:$0xff]
    %v2504 = vld [vmem:[#allocation8 + $0x108] sm:$0xff]
    %v2505 = vld [vmem:[#allocation8 + $0x110] sm:$0xff]
    %v2506 = vld [vmem:[#allocation8 + $0x118] sm:$0xff]
    %v2507 = vld [vmem:[#allocation8 + $0x120] sm:$0xff]
    %v2508 = vld [vmem:[#allocation8 + $0x128] sm:$0xff]
    %v2509 = vld [vmem:[#allocation8 + $0x130] sm:$0xff]
    %v2510 = vld [vmem:[#allocation8 + $0x138] sm:$0xff]
    %v2511 = vld [vmem:[#allocation8 + $0x140] sm:$0xff]
    %v2512 = vld [vmem:[#allocation8 + $0x148] sm:$0xff]
    %v2513 = vld [vmem:[#allocation8 + $0x150] sm:$0xff]
    %v2514 = vld [vmem:[#allocation8 + $0x158] sm:$0xff]
    %v2515 = vld [vmem:[#allocation8 + $0x160] sm:$0xff]
    %v2516 = vld [vmem:[#allocation8 + $0x168] sm:$0xff]
    %v2517 = vld [vmem:[#allocation8 + $0x170] sm:$0xff]
    %v2518 = vld [vmem:[#allocation8 + $0x178] sm:$0xff]
    %v2519 = vld [vmem:[#allocation8 + $0x180] sm:$0xff]
    %v2520 = vld [vmem:[#allocation8 + $0x188] sm:$0xff]
    %v2521 = vld [vmem:[#allocation8 + $0x190] sm:$0xff]
    %v2522 = vld [vmem:[#allocation8 + $0x198] sm:$0xff]
    %v2523 = vld [vmem:[#allocation8 + $0x1a0] sm:$0xff]
    %v2524 = vld [vmem:[#allocation8 + $0x1a8] sm:$0xff]
    %v2525 = vld [vmem:[#allocation8 + $0x1b0] sm:$0xff]
    %v2526 = vld [vmem:[#allocation8 + $0x1b8] sm:$0xff]
    %v2527 = vld [vmem:[#allocation8 + $0x1c0] sm:$0xff]
    %v2528 = vld [vmem:[#allocation8 + $0x1c8] sm:$0xff]
    %v2529 = vld [vmem:[#allocation8 + $0x1d0] sm:$0xff]
    %v2530 = vld [vmem:[#allocation8 + $0x1d8] sm:$0xff]
    %v2531 = vld [vmem:[#allocation8 + $0x1e0] sm:$0xff]
    %v2532 = vld [vmem:[#allocation8 + $0x1e8] sm:$0xff]
    %v2533 = vld [vmem:[#allocation8 + $0x1f0] sm:$0xff]
    %v2534 = vld [vmem:[#allocation8 + $0x1f8] sm:$0xff]
    %v2535 = vld [vmem:[#allocation8 + $0x200] sm:$0xff]
    %v2536 = vld [vmem:[#allocation8 + $0x208] sm:$0xff]
    %v2537 = vld [vmem:[#allocation8 + $0x210] sm:$0xff]
    %v2538 = vld [vmem:[#allocation8 + $0x218] sm:$0xff]
    %v2539 = vld [vmem:[#allocation8 + $0x220] sm:$0xff]
    %v2540 = vld [vmem:[#allocation8 + $0x228] sm:$0xff]
    %v2541 = vld [vmem:[#allocation8 + $0x230] sm:$0xff]
    %v2542 = vld [vmem:[#allocation8 + $0x238] sm:$0xff]
    %v2543 = vld [vmem:[#allocation8 + $0x240] sm:$0xff]
    %v2544 = vld [vmem:[#allocation8 + $0x248] sm:$0xff]
    %v2545 = vld [vmem:[#allocation8 + $0x250] sm:$0xff]
    %v2546 = vld [vmem:[#allocation8 + $0x258] sm:$0xff]
    %v2547 = vld [vmem:[#allocation8 + $0x260] sm:$0xff]
    %v2548 = vld [vmem:[#allocation8 + $0x268] sm:$0xff]
    %v2549 = vld [vmem:[#allocation8 + $0x270] sm:$0xff]
    %v2550 = vld [vmem:[#allocation8 + $0x278] sm:$0xff]
    %v2551 = vld [vmem:[#allocation8 + $0x280] sm:$0xff]
    %v2552 = vld [vmem:[#allocation8 + $0x288] sm:$0xff]
    %v2553 = vld [vmem:[#allocation8 + $0x290] sm:$0xff]
    %v2554 = vld [vmem:[#allocation8 + $0x298] sm:$0xff]
    %v2555 = vld [vmem:[#allocation8 + $0x2a0] sm:$0xff]
    %v2556 = vld [vmem:[#allocation8 + $0x2a8] sm:$0xff]
    %v2557 = vld [vmem:[#allocation8 + $0x2b0] sm:$0xff]
    %v2558 = vld [vmem:[#allocation8 + $0x2b8] sm:$0xff]
    %v2559 = vld [vmem:[#allocation8 + $0x2c0] sm:$0xff]
    %v2560 = vld [vmem:[#allocation8 + $0x2c8] sm:$0xff]
    %v2561 = vld [vmem:[#allocation8 + $0x2d0] sm:$0xff]
    %v2562 = vld [vmem:[#allocation8 + $0x2d8] sm:$0xff]
    %v2563 = vld [vmem:[#allocation8 + $0x2e0] sm:$0xff]
    %v2564 = vld [vmem:[#allocation8 + $0x2e8] sm:$0xff]
    %v2565 = vld [vmem:[#allocation8 + $0x2f0] sm:$0xff]
    %v2566 = vld [vmem:[#allocation8 + $0x2f8] sm:$0xff]
    %v2567 = vld [vmem:[#allocation8 + $0x300] sm:$0xff]
    %v2568 = vld [vmem:[#allocation8 + $0x308] sm:$0xff]
    %v2569 = vld [vmem:[#allocation8 + $0x310] sm:$0xff]
    %v2570 = vld [vmem:[#allocation8 + $0x318] sm:$0xff]
    %v2571 = vld [vmem:[#allocation8 + $0x320] sm:$0xff]
    %v2572 = vld [vmem:[#allocation8 + $0x328] sm:$0xff]
    %v2573 = vld [vmem:[#allocation8 + $0x330] sm:$0xff]
    %v2574 = vld [vmem:[#allocation8 + $0x338] sm:$0xff]
    %v2575 = vld [vmem:[#allocation8 + $0x340] sm:$0xff]
    %v2576 = vld [vmem:[#allocation8 + $0x348] sm:$0xff]
    %v2577 = vld [vmem:[#allocation8 + $0x350] sm:$0xff]
    %v2578 = vld [vmem:[#allocation8 + $0x358] sm:$0xff]
    %v2579 = vld [vmem:[#allocation8 + $0x360] sm:$0xff]
    %v2580 = vld [vmem:[#allocation8 + $0x368] sm:$0xff]
    %v2581 = vld [vmem:[#allocation8 + $0x370] sm:$0xff]
    %v2582 = vld [vmem:[#allocation8 + $0x378] sm:$0xff]
    %v2583 = vld [vmem:[#allocation8 + $0x380] sm:$0xff]
    %v2584 = vld [vmem:[#allocation8 + $0x388] sm:$0xff]
    %v2585 = vld [vmem:[#allocation8 + $0x390] sm:$0xff]
    %v2586 = vld [vmem:[#allocation8 + $0x398] sm:$0xff]
    %v2587 = vld [vmem:[#allocation8 + $0x3a0] sm:$0xff]
    %v2588 = vld [vmem:[#allocation8 + $0x3a8] sm:$0xff]
    %v2589 = vld [vmem:[#allocation8 + $0x3b0] sm:$0xff]
    %v2590 = vld [vmem:[#allocation8 + $0x3b8] sm:$0xff]
    %v2591 = vld [vmem:[#allocation8 + $0x3c0] sm:$0xff]
    %v2592 = vld [vmem:[#allocation8 + $0x3c8] sm:$0xff]
    %v2593 = vld [vmem:[#allocation8 + $0x3d0] sm:$0xff]
    %v2594 = vld [vmem:[#allocation8 + $0x3d8] sm:$0xff]
    %v2595 = vld [vmem:[#allocation8 + $0x3e0] sm:$0xff]
    %v2596 = vld [vmem:[#allocation8 + $0x3e8] sm:$0xff]
    %v2597 = vld [vmem:[#allocation8 + $0x3f0] sm:$0xff]
    %v2598 = vld [vmem:[#allocation8 + $0x3f8] sm:$0xff]
    %v2599 = vld [vmem:[#allocation11] sm:$0xf]
    %v2601 = vperm.slane %v2599, 0
    %v2602 = vperm.slane %v2599, 1
    %v2603 = vperm.slane %v2599, 2
    %v2604 = vperm.slane %v2599, 3
    %2609 = vmatpush.msra.mxu0 %v2531
    %2610 = vmatpush.msra.mxu0 %v2527
    %2611 = vmatpush.msra.mxu0 %v2523
    %2612 = vmatpush.msra.mxu0 %v2519
    %2613 = vmatpush.msra.mxu0 %v2515
    %2614 = vmatpush.msra.mxu0 %v2511
    %2615 = vmatpush.msra.mxu0 %v2507
    %2616 = vmatpush.msra.mxu0 %v2503
    %2617 = vmatpush.msra.mxu0 %v2499
    %2618 = vmatpush.msra.mxu0 %v2495
    %2619 = vmatpush.msra.mxu0 %v2491
    %2620 = vmatpush.msra.mxu0 %v2487
    %2621 = vmatpush.msra.mxu0 %v2483
    %2622 = vmatpush.msra.mxu0 %v2479
    %2623 = vmatpush.msra.mxu0 %v2475
    %2624 = vmatpush.msra.mxu0 %v2471
    %2625 = vmatmul.f32.gmra.mxu0 %v2470
    %v2626 = vpop.f32.mrf.mxu0
    %v2627 = vadd.f32 %v2601, %v2626
    %2628 = vdwg.mxu0
    %2629 = vmatpush.msra.mxu0 %v2595
    %2630 = vmatpush.msra.mxu0 %v2591
    %2631 = vmatpush.msra.mxu0 %v2587
    %2632 = vmatpush.msra.mxu0 %v2583
    %2633 = vmatpush.msra.mxu0 %v2579
    %2634 = vmatpush.msra.mxu0 %v2575
    %2635 = vmatpush.msra.mxu0 %v2571
    %2636 = vmatpush.msra.mxu0 %v2567
    %2637 = vmatpush.msra.mxu0 %v2563
    %2638 = vmatpush.msra.mxu0 %v2559
    %2639 = vmatpush.msra.mxu0 %v2555
    %2640 = vmatpush.msra.mxu0 %v2551
    %2641 = vmatpush.msra.mxu0 %v2547
    %2642 = vmatpush.msra.mxu0 %v2543
    %2643 = vmatpush.msra.mxu0 %v2539
    %2644 = vmatpush.msra.mxu0 %v2535
    %2645 = vmatmul.f32.gmra.mxu0 %v2056
    %v2646 = vpop.f32.mrf.mxu0
    %v2647 = vadd.f32 %v2627, %v2646
    %2648 = vdwg.mxu0
    %2649 = vmatpush.msra.mxu0 %v2532
    %2650 = vmatpush.msra.mxu0 %v2528
    %2651 = vmatpush.msra.mxu0 %v2524
    %2652 = vmatpush.msra.mxu0 %v2520
    %2653 = vmatpush.msra.mxu0 %v2516
    %2654 = vmatpush.msra.mxu0 %v2512
    %2655 = vmatpush.msra.mxu0 %v2508
    %2656 = vmatpush.msra.mxu0 %v2504
    %2657 = vmatpush.msra.mxu0 %v2500
    %2658 = vmatpush.msra.mxu0 %v2496
    %2659 = vmatpush.msra.mxu0 %v2492
    %2660 = vmatpush.msra.mxu0 %v2488
    %2661 = vmatpush.msra.mxu0 %v2484
    %2662 = vmatpush.msra.mxu0 %v2480
    %2663 = vmatpush.msra.mxu0 %v2476
    %2664 = vmatpush.msra.mxu0 %v2472
    %2665 = vmatmul.f32.gmra.mxu0 %v2470
    %v2666 = vpop.f32.mrf.mxu0
    %v2667 = vadd.f32 %v2602, %v2666
    %2668 = vdwg.mxu0
    %2669 = vmatpush.msra.mxu0 %v2596
    %2670 = vmatpush.msra.mxu0 %v2592
    %2671 = vmatpush.msra.mxu0 %v2588
    %2672 = vmatpush.msra.mxu0 %v2584
    %2673 = vmatpush.msra.mxu0 %v2580
    %2674 = vmatpush.msra.mxu0 %v2576
    %2675 = vmatpush.msra.mxu0 %v2572
    %2676 = vmatpush.msra.mxu0 %v2568
    %2677 = vmatpush.msra.mxu0 %v2564
    %2678 = vmatpush.msra.mxu0 %v2560
    %2679 = vmatpush.msra.mxu0 %v2556
    %2680 = vmatpush.msra.mxu0 %v2552
    %2681 = vmatpush.msra.mxu0 %v2548
    %2682 = vmatpush.msra.mxu0 %v2544
    %2683 = vmatpush.msra.mxu0 %v2540
    %2684 = vmatpush.msra.mxu0 %v2536
    %2685 = vmatmul.f32.gmra.mxu0 %v2056
    %v2686 = vpop.f32.mrf.mxu0
    %v2687 = vadd.f32 %v2667, %v2686
    %2688 = vdwg.mxu0
    %2689 = vmatpush.msra.mxu0 %v2533
    %2690 = vmatpush.msra.mxu0 %v2529
    %2691 = vmatpush.msra.mxu0 %v2525
    %2692 = vmatpush.msra.mxu0 %v2521
    %2693 = vmatpush.msra.mxu0 %v2517
    %2694 = vmatpush.msra.mxu0 %v2513
    %2695 = vmatpush.msra.mxu0 %v2509
    %2696 = vmatpush.msra.mxu0 %v2505
    %2697 = vmatpush.msra.mxu0 %v2501
    %2698 = vmatpush.msra.mxu0 %v2497
    %2699 = vmatpush.msra.mxu0 %v2493
    %2700 = vmatpush.msra.mxu0 %v2489
    %2701 = vmatpush.msra.mxu0 %v2485
    %2702 = vmatpush.msra.mxu0 %v2481
    %2703 = vmatpush.msra.mxu0 %v2477
    %2704 = vmatpush.msra.mxu0 %v2473
    %2705 = vmatmul.f32.gmra.mxu0 %v2470
    %v2706 = vpop.f32.mrf.mxu0
    %v2707 = vadd.f32 %v2603, %v2706
    %2708 = vdwg.mxu0
    %2709 = vmatpush.msra.mxu0 %v2597
    %2710 = vmatpush.msra.mxu0 %v2593
    %2711 = vmatpush.msra.mxu0 %v2589
    %2712 = vmatpush.msra.mxu0 %v2585
    %2713 = vmatpush.msra.mxu0 %v2581
    %2714 = vmatpush.msra.mxu0 %v2577
    %2715 = vmatpush.msra.mxu0 %v2573
    %2716 = vmatpush.msra.mxu0 %v2569
    %2717 = vmatpush.msra.mxu0 %v2565
    %2718 = vmatpush.msra.mxu0 %v2561
    %2719 = vmatpush.msra.mxu0 %v2557
    %2720 = vmatpush.msra.mxu0 %v2553
    %2721 = vmatpush.msra.mxu0 %v2549
    %2722 = vmatpush.msra.mxu0 %v2545
    %2723 = vmatpush.msra.mxu0 %v2541
    %2724 = vmatpush.msra.mxu0 %v2537
    %2725 = vmatmul.f32.gmra.mxu0 %v2056
    %v2726 = vpop.f32.mrf.mxu0
    %v2727 = vadd.f32 %v2707, %v2726
    %2728 = vdwg.mxu0
    %2729 = vmatpush.msra.mxu0 %v2534
    %2730 = vmatpush.msra.mxu0 %v2530
    %2731 = vmatpush.msra.mxu0 %v2526
    %2732 = vmatpush.msra.mxu0 %v2522
    %2733 = vmatpush.msra.mxu0 %v2518
    %2734 = vmatpush.msra.mxu0 %v2514
    %2735 = vmatpush.msra.mxu0 %v2510
    %2736 = vmatpush.msra.mxu0 %v2506
    %2737 = vmatpush.msra.mxu0 %v2502
    %2738 = vmatpush.msra.mxu0 %v2498
    %2739 = vmatpush.msra.mxu0 %v2494
    %2740 = vmatpush.msra.mxu0 %v2490
    %2741 = vmatpush.msra.mxu0 %v2486
    %2742 = vmatpush.msra.mxu0 %v2482
    %2743 = vmatpush.msra.mxu0 %v2478
    %2744 = vmatpush.msra.mxu0 %v2474
    %2745 = vmatmul.f32.gmra.mxu0 %v2470
    %v2746 = vpop.f32.mrf.mxu0
    %v2747 = vadd.f32 %v2604, %v2746
    %2748 = vdwg.mxu0
    %2749 = vmatpush.msra.mxu0 %v2598
    %2750 = vmatpush.msra.mxu0 %v2594
    %2751 = vmatpush.msra.mxu0 %v2590
    %2752 = vmatpush.msra.mxu0 %v2586
    %2753 = vmatpush.msra.mxu0 %v2582
    %2754 = vmatpush.msra.mxu0 %v2578
    %2755 = vmatpush.msra.mxu0 %v2574
    %2756 = vmatpush.msra.mxu0 %v2570
    %2757 = vmatpush.msra.mxu0 %v2566
    %2758 = vmatpush.msra.mxu0 %v2562
    %2759 = vmatpush.msra.mxu0 %v2558
    %2760 = vmatpush.msra.mxu0 %v2554
    %2761 = vmatpush.msra.mxu0 %v2550
    %2762 = vmatpush.msra.mxu0 %v2546
    %2763 = vmatpush.msra.mxu0 %v2542
    %2764 = vmatpush.msra.mxu0 %v2538
    %2765 = vmatmul.f32.gmra.mxu0 %v2056
    %v2766 = vpop.f32.mrf.mxu0
    %v2767 = vadd.f32 %v2747, %v2766
    %2768 = vdwg.mxu0
    %v2769 = vxor.u32 %v2647, 2147483648
    %v2770 = vmul.f32 %v2769, 1.442695
    %v2771 = vpow.pop %v2770
    %v2772 = vadd.f32 %v2771, 1.0
    %v2773 = vrcp.pop %v2772
    %v2774 = vmul.f32 %v2772, %v2773
    %v2775 = vsub.f32 1.0, %v2774
    %v2776 = vmul.f32 %v2773, %v2775
    %v2777 = vadd.f32 %v2773, %v2776
    %vm2778 = vweird.f32 %v2772
    %vm2779 = vweird.f32 %v2773
    %vm2780 = vmor %vm2778, %vm2779
    %v2781 = vsel %vm2780, %v2773, %v2777
    %v2782 = vand.u32 2147483647, %v2772
    %vm2783 = vcmp.eq.f32.partialorder %v2782, 8.507059e+37
    %v2784 = vand.u32 %v2772, 2147483648
    %v2785 = vor.u32 1.1754944e-38, %v2784
    %v2786 = vsel %vm2783, %v2785, %v2781
    %v2787 = vmul.f32 1.0, %v2786
    %v2788 = vxor.u32 %v2687, 2147483648
    %v2789 = vmul.f32 %v2788, 1.442695
    %v2790 = vpow.pop %v2789
    %v2791 = vadd.f32 %v2790, 1.0
    %v2792 = vrcp.pop %v2791
    %v2793 = vmul.f32 %v2791, %v2792
    %v2794 = vsub.f32 1.0, %v2793
    %v2795 = vmul.f32 %v2792, %v2794
    %v2796 = vadd.f32 %v2792, %v2795
    %vm2797 = vweird.f32 %v2791
    %vm2798 = vweird.f32 %v2792
    %vm2799 = vmor %vm2797, %vm2798
    %v2800 = vsel %vm2799, %v2792, %v2796
    %v2801 = vand.u32 2147483647, %v2791
    %vm2802 = vcmp.eq.f32.partialorder %v2801, 8.507059e+37
    %v2803 = vand.u32 %v2791, 2147483648
    %v2804 = vor.u32 1.1754944e-38, %v2803
    %v2805 = vsel %vm2802, %v2804, %v2800
    %v2806 = vmul.f32 1.0, %v2805
    %v2807 = vtanh.pop %v2727
    %v2808 = vxor.u32 %v2767, 2147483648
    %v2809 = vmul.f32 %v2808, 1.442695
    %v2810 = vpow.pop %v2809
    %v2811 = vadd.f32 %v2810, 1.0
    %v2812 = vrcp.pop %v2811
    %v2813 = vmul.f32 %v2811, %v2812
    %v2814 = vsub.f32 1.0, %v2813
    %v2815 = vmul.f32 %v2812, %v2814
    %v2816 = vadd.f32 %v2812, %v2815
    %vm2817 = vweird.f32 %v2811
    %vm2818 = vweird.f32 %v2812
    %vm2819 = vmor %vm2817, %vm2818
    %v2820 = vsel %vm2819, %v2812, %v2816
    %v2821 = vand.u32 2147483647, %v2811
    %vm2822 = vcmp.eq.f32.partialorder %v2821, 8.507059e+37
    %v2823 = vand.u32 %v2811, 2147483648
    %v2824 = vor.u32 1.1754944e-38, %v2823
    %v2825 = vsel %vm2822, %v2824, %v2820
    %v2826 = vmul.f32 1.0, %v2825
    %v2827 = vmul.f32 %v2806, %v2054
    %v2828 = vmul.f32 %v2787, %v2807
    %v2829 = vadd.f32 %v2827, %v2828
    %v2830 = vtanh.pop %v2829
    %v2831 = vmul.f32 %v2826, %v2830
    %v2832 = vld [vmem:[#allocation10] sm:$0xff]
    %v2833 = vld [vmem:[#allocation10 + $0x8] sm:$0xff]
    %v2834 = vld [vmem:[#allocation10 + $0x10] sm:$0xff]
    %v2835 = vld [vmem:[#allocation10 + $0x18] sm:$0xff]
    %v2836 = vld [vmem:[#allocation10 + $0x20] sm:$0xff]
    %v2837 = vld [vmem:[#allocation10 + $0x28] sm:$0xff]
    %v2838 = vld [vmem:[#allocation10 + $0x30] sm:$0xff]
    %v2839 = vld [vmem:[#allocation10 + $0x38] sm:$0xff]
    %v2840 = vld [vmem:[#allocation10 + $0x40] sm:$0xff]
    %v2841 = vld [vmem:[#allocation10 + $0x48] sm:$0xff]
    %v2842 = vld [vmem:[#allocation10 + $0x50] sm:$0xff]
    %v2843 = vld [vmem:[#allocation10 + $0x58] sm:$0xff]
    %v2844 = vld [vmem:[#allocation10 + $0x60] sm:$0xff]
    %v2845 = vld [vmem:[#allocation10 + $0x68] sm:$0xff]
    %v2846 = vld [vmem:[#allocation10 + $0x70] sm:$0xff]
    %v2847 = vld [vmem:[#allocation10 + $0x78] sm:$0xff]
    %v2848 = vld [vmem:[#allocation10 + $0x80] sm:$0xff]
    %v2849 = vld [vmem:[#allocation10 + $0x88] sm:$0xff]
    %v2850 = vld [vmem:[#allocation10 + $0x90] sm:$0xff]
    %v2851 = vld [vmem:[#allocation10 + $0x98] sm:$0xff]
    %v2852 = vld [vmem:[#allocation10 + $0xa0] sm:$0xff]
    %v2853 = vld [vmem:[#allocation10 + $0xa8] sm:$0xff]
    %v2854 = vld [vmem:[#allocation10 + $0xb0] sm:$0xff]
    %v2855 = vld [vmem:[#allocation10 + $0xb8] sm:$0xff]
    %v2856 = vld [vmem:[#allocation10 + $0xc0] sm:$0xff]
    %v2857 = vld [vmem:[#allocation10 + $0xc8] sm:$0xff]
    %v2858 = vld [vmem:[#allocation10 + $0xd0] sm:$0xff]
    %v2859 = vld [vmem:[#allocation10 + $0xd8] sm:$0xff]
    %v2860 = vld [vmem:[#allocation10 + $0xe0] sm:$0xff]
    %v2861 = vld [vmem:[#allocation10 + $0xe8] sm:$0xff]
    %v2862 = vld [vmem:[#allocation10 + $0xf0] sm:$0xff]
    %v2863 = vld [vmem:[#allocation10 + $0xf8] sm:$0xff]
    %v2864 = vld [vmem:[#allocation10 + $0x100] sm:$0xff]
    %v2865 = vld [vmem:[#allocation10 + $0x108] sm:$0xff]
    %v2866 = vld [vmem:[#allocation10 + $0x110] sm:$0xff]
    %v2867 = vld [vmem:[#allocation10 + $0x118] sm:$0xff]
    %v2868 = vld [vmem:[#allocation10 + $0x120] sm:$0xff]
    %v2869 = vld [vmem:[#allocation10 + $0x128] sm:$0xff]
    %v2870 = vld [vmem:[#allocation10 + $0x130] sm:$0xff]
    %v2871 = vld [vmem:[#allocation10 + $0x138] sm:$0xff]
    %v2872 = vld [vmem:[#allocation10 + $0x140] sm:$0xff]
    %v2873 = vld [vmem:[#allocation10 + $0x148] sm:$0xff]
    %v2874 = vld [vmem:[#allocation10 + $0x150] sm:$0xff]
    %v2875 = vld [vmem:[#allocation10 + $0x158] sm:$0xff]
    %v2876 = vld [vmem:[#allocation10 + $0x160] sm:$0xff]
    %v2877 = vld [vmem:[#allocation10 + $0x168] sm:$0xff]
    %v2878 = vld [vmem:[#allocation10 + $0x170] sm:$0xff]
    %v2879 = vld [vmem:[#allocation10 + $0x178] sm:$0xff]
    %v2880 = vld [vmem:[#allocation10 + $0x180] sm:$0xff]
    %v2881 = vld [vmem:[#allocation10 + $0x188] sm:$0xff]
    %v2882 = vld [vmem:[#allocation10 + $0x190] sm:$0xff]
    %v2883 = vld [vmem:[#allocation10 + $0x198] sm:$0xff]
    %v2884 = vld [vmem:[#allocation10 + $0x1a0] sm:$0xff]
    %v2885 = vld [vmem:[#allocation10 + $0x1a8] sm:$0xff]
    %v2886 = vld [vmem:[#allocation10 + $0x1b0] sm:$0xff]
    %v2887 = vld [vmem:[#allocation10 + $0x1b8] sm:$0xff]
    %v2888 = vld [vmem:[#allocation10 + $0x1c0] sm:$0xff]
    %v2889 = vld [vmem:[#allocation10 + $0x1c8] sm:$0xff]
    %v2890 = vld [vmem:[#allocation10 + $0x1d0] sm:$0xff]
    %v2891 = vld [vmem:[#allocation10 + $0x1d8] sm:$0xff]
    %v2892 = vld [vmem:[#allocation10 + $0x1e0] sm:$0xff]
    %v2893 = vld [vmem:[#allocation10 + $0x1e8] sm:$0xff]
    %v2894 = vld [vmem:[#allocation10 + $0x1f0] sm:$0xff]
    %v2895 = vld [vmem:[#allocation10 + $0x1f8] sm:$0xff]
    %v2896 = vld [vmem:[#allocation10 + $0x200] sm:$0xff]
    %v2897 = vld [vmem:[#allocation10 + $0x208] sm:$0xff]
    %v2898 = vld [vmem:[#allocation10 + $0x210] sm:$0xff]
    %v2899 = vld [vmem:[#allocation10 + $0x218] sm:$0xff]
    %v2900 = vld [vmem:[#allocation10 + $0x220] sm:$0xff]
    %v2901 = vld [vmem:[#allocation10 + $0x228] sm:$0xff]
    %v2902 = vld [vmem:[#allocation10 + $0x230] sm:$0xff]
    %v2903 = vld [vmem:[#allocation10 + $0x238] sm:$0xff]
    %v2904 = vld [vmem:[#allocation10 + $0x240] sm:$0xff]
    %v2905 = vld [vmem:[#allocation10 + $0x248] sm:$0xff]
    %v2906 = vld [vmem:[#allocation10 + $0x250] sm:$0xff]
    %v2907 = vld [vmem:[#allocation10 + $0x258] sm:$0xff]
    %v2908 = vld [vmem:[#allocation10 + $0x260] sm:$0xff]
    %v2909 = vld [vmem:[#allocation10 + $0x268] sm:$0xff]
    %v2910 = vld [vmem:[#allocation10 + $0x270] sm:$0xff]
    %v2911 = vld [vmem:[#allocation10 + $0x278] sm:$0xff]
    %v2912 = vld [vmem:[#allocation10 + $0x280] sm:$0xff]
    %v2913 = vld [vmem:[#allocation10 + $0x288] sm:$0xff]
    %v2914 = vld [vmem:[#allocation10 + $0x290] sm:$0xff]
    %v2915 = vld [vmem:[#allocation10 + $0x298] sm:$0xff]
    %v2916 = vld [vmem:[#allocation10 + $0x2a0] sm:$0xff]
    %v2917 = vld [vmem:[#allocation10 + $0x2a8] sm:$0xff]
    %v2918 = vld [vmem:[#allocation10 + $0x2b0] sm:$0xff]
    %v2919 = vld [vmem:[#allocation10 + $0x2b8] sm:$0xff]
    %v2920 = vld [vmem:[#allocation10 + $0x2c0] sm:$0xff]
    %v2921 = vld [vmem:[#allocation10 + $0x2c8] sm:$0xff]
    %v2922 = vld [vmem:[#allocation10 + $0x2d0] sm:$0xff]
    %v2923 = vld [vmem:[#allocation10 + $0x2d8] sm:$0xff]
    %v2924 = vld [vmem:[#allocation10 + $0x2e0] sm:$0xff]
    %v2925 = vld [vmem:[#allocation10 + $0x2e8] sm:$0xff]
    %v2926 = vld [vmem:[#allocation10 + $0x2f0] sm:$0xff]
    %v2927 = vld [vmem:[#allocation10 + $0x2f8] sm:$0xff]
    %v2928 = vld [vmem:[#allocation10 + $0x300] sm:$0xff]
    %v2929 = vld [vmem:[#allocation10 + $0x308] sm:$0xff]
    %v2930 = vld [vmem:[#allocation10 + $0x310] sm:$0xff]
    %v2931 = vld [vmem:[#allocation10 + $0x318] sm:$0xff]
    %v2932 = vld [vmem:[#allocation10 + $0x320] sm:$0xff]
    %v2933 = vld [vmem:[#allocation10 + $0x328] sm:$0xff]
    %v2934 = vld [vmem:[#allocation10 + $0x330] sm:$0xff]
    %v2935 = vld [vmem:[#allocation10 + $0x338] sm:$0xff]
    %v2936 = vld [vmem:[#allocation10 + $0x340] sm:$0xff]
    %v2937 = vld [vmem:[#allocation10 + $0x348] sm:$0xff]
    %v2938 = vld [vmem:[#allocation10 + $0x350] sm:$0xff]
    %v2939 = vld [vmem:[#allocation10 + $0x358] sm:$0xff]
    %v2940 = vld [vmem:[#allocation10 + $0x360] sm:$0xff]
    %v2941 = vld [vmem:[#allocation10 + $0x368] sm:$0xff]
    %v2942 = vld [vmem:[#allocation10 + $0x370] sm:$0xff]
    %v2943 = vld [vmem:[#allocation10 + $0x378] sm:$0xff]
    %v2944 = vld [vmem:[#allocation10 + $0x380] sm:$0xff]
    %v2945 = vld [vmem:[#allocation10 + $0x388] sm:$0xff]
    %v2946 = vld [vmem:[#allocation10 + $0x390] sm:$0xff]
    %v2947 = vld [vmem:[#allocation10 + $0x398] sm:$0xff]
    %v2948 = vld [vmem:[#allocation10 + $0x3a0] sm:$0xff]
    %v2949 = vld [vmem:[#allocation10 + $0x3a8] sm:$0xff]
    %v2950 = vld [vmem:[#allocation10 + $0x3b0] sm:$0xff]
    %v2951 = vld [vmem:[#allocation10 + $0x3b8] sm:$0xff]
    %v2952 = vld [vmem:[#allocation10 + $0x3c0] sm:$0xff]
    %v2953 = vld [vmem:[#allocation10 + $0x3c8] sm:$0xff]
    %v2954 = vld [vmem:[#allocation10 + $0x3d0] sm:$0xff]
    %v2955 = vld [vmem:[#allocation10 + $0x3d8] sm:$0xff]
    %v2956 = vld [vmem:[#allocation10 + $0x3e0] sm:$0xff]
    %v2957 = vld [vmem:[#allocation10 + $0x3e8] sm:$0xff]
    %v2958 = vld [vmem:[#allocation10 + $0x3f0] sm:$0xff]
    %v2959 = vld [vmem:[#allocation10 + $0x3f8] sm:$0xff]
    %v2960 = vld [vmem:[%s635] sm:$0xf]
    %v2962 = vperm.slane %v2960, 0
    %v2963 = vperm.slane %v2960, 1
    %v2964 = vperm.slane %v2960, 2
    %v2965 = vperm.slane %v2960, 3
    %2970 = vmatpush.msra.mxu0 %v2892
    %2971 = vmatpush.msra.mxu0 %v2888
    %2972 = vmatpush.msra.mxu0 %v2884
    %2973 = vmatpush.msra.mxu0 %v2880
    %2974 = vmatpush.msra.mxu0 %v2876
    %2975 = vmatpush.msra.mxu0 %v2872
    %2976 = vmatpush.msra.mxu0 %v2868
    %2977 = vmatpush.msra.mxu0 %v2864
    %2978 = vmatpush.msra.mxu0 %v2860
    %2979 = vmatpush.msra.mxu0 %v2856
    %2980 = vmatpush.msra.mxu0 %v2852
    %2981 = vmatpush.msra.mxu0 %v2848
    %2982 = vmatpush.msra.mxu0 %v2844
    %2983 = vmatpush.msra.mxu0 %v2840
    %2984 = vmatpush.msra.mxu0 %v2836
    %2985 = vmatpush.msra.mxu0 %v2832
    %2986 = vmatmul.f32.gmra.mxu0 %v2831
    %v2987 = vpop.f32.mrf.mxu0
    %v2988 = vadd.f32 %v2962, %v2987
    %2989 = vdwg.mxu0
    %2990 = vmatpush.msra.mxu0 %v2956
    %2991 = vmatpush.msra.mxu0 %v2952
    %2992 = vmatpush.msra.mxu0 %v2948
    %2993 = vmatpush.msra.mxu0 %v2944
    %2994 = vmatpush.msra.mxu0 %v2940
    %2995 = vmatpush.msra.mxu0 %v2936
    %2996 = vmatpush.msra.mxu0 %v2932
    %2997 = vmatpush.msra.mxu0 %v2928
    %2998 = vmatpush.msra.mxu0 %v2924
    %2999 = vmatpush.msra.mxu0 %v2920
    %3000 = vmatpush.msra.mxu0 %v2916
    %3001 = vmatpush.msra.mxu0 %v2912
    %3002 = vmatpush.msra.mxu0 %v2908
    %3003 = vmatpush.msra.mxu0 %v2904
    %3004 = vmatpush.msra.mxu0 %v2900
    %3005 = vmatpush.msra.mxu0 %v2896
    %3006 = vmatmul.f32.gmra.mxu0 %v2417
    %v3007 = vpop.f32.mrf.mxu0
    %v3008 = vadd.f32 %v2988, %v3007
    %3009 = vdwg.mxu0
    %3010 = vmatpush.msra.mxu0 %v2893
    %3011 = vmatpush.msra.mxu0 %v2889
    %3012 = vmatpush.msra.mxu0 %v2885
    %3013 = vmatpush.msra.mxu0 %v2881
    %3014 = vmatpush.msra.mxu0 %v2877
    %3015 = vmatpush.msra.mxu0 %v2873
    %3016 = vmatpush.msra.mxu0 %v2869
    %3017 = vmatpush.msra.mxu0 %v2865
    %3018 = vmatpush.msra.mxu0 %v2861
    %3019 = vmatpush.msra.mxu0 %v2857
    %3020 = vmatpush.msra.mxu0 %v2853
    %3021 = vmatpush.msra.mxu0 %v2849
    %3022 = vmatpush.msra.mxu0 %v2845
    %3023 = vmatpush.msra.mxu0 %v2841
    %3024 = vmatpush.msra.mxu0 %v2837
    %3025 = vmatpush.msra.mxu0 %v2833
    %3026 = vmatmul.f32.gmra.mxu0 %v2831
    %v3027 = vpop.f32.mrf.mxu0
    %v3028 = vadd.f32 %v2963, %v3027
    %3029 = vdwg.mxu0
    %3030 = vmatpush.msra.mxu0 %v2957
    %3031 = vmatpush.msra.mxu0 %v2953
    %3032 = vmatpush.msra.mxu0 %v2949
    %3033 = vmatpush.msra.mxu0 %v2945
    %3034 = vmatpush.msra.mxu0 %v2941
    %3035 = vmatpush.msra.mxu0 %v2937
    %3036 = vmatpush.msra.mxu0 %v2933
    %3037 = vmatpush.msra.mxu0 %v2929
    %3038 = vmatpush.msra.mxu0 %v2925
    %3039 = vmatpush.msra.mxu0 %v2921
    %3040 = vmatpush.msra.mxu0 %v2917
    %3041 = vmatpush.msra.mxu0 %v2913
    %3042 = vmatpush.msra.mxu0 %v2909
    %3043 = vmatpush.msra.mxu0 %v2905
    %3044 = vmatpush.msra.mxu0 %v2901
    %3045 = vmatpush.msra.mxu0 %v2897
    %3046 = vmatmul.f32.gmra.mxu0 %v2417
    %v3047 = vpop.f32.mrf.mxu0
    %v3048 = vadd.f32 %v3028, %v3047
    %3049 = vdwg.mxu0
    %3050 = vmatpush.msra.mxu0 %v2894
    %3051 = vmatpush.msra.mxu0 %v2890
    %3052 = vmatpush.msra.mxu0 %v2886
    %3053 = vmatpush.msra.mxu0 %v2882
    %3054 = vmatpush.msra.mxu0 %v2878
    %3055 = vmatpush.msra.mxu0 %v2874
    %3056 = vmatpush.msra.mxu0 %v2870
    %3057 = vmatpush.msra.mxu0 %v2866
    %3058 = vmatpush.msra.mxu0 %v2862
    %3059 = vmatpush.msra.mxu0 %v2858
    %3060 = vmatpush.msra.mxu0 %v2854
    %3061 = vmatpush.msra.mxu0 %v2850
    %3062 = vmatpush.msra.mxu0 %v2846
    %3063 = vmatpush.msra.mxu0 %v2842
    %3064 = vmatpush.msra.mxu0 %v2838
    %3065 = vmatpush.msra.mxu0 %v2834
    %3066 = vmatmul.f32.gmra.mxu0 %v2831
    %v3067 = vpop.f32.mrf.mxu0
    %v3068 = vadd.f32 %v2964, %v3067
    %3069 = vdwg.mxu0
    %3070 = vmatpush.msra.mxu0 %v2958
    %3071 = vmatpush.msra.mxu0 %v2954
    %3072 = vmatpush.msra.mxu0 %v2950
    %3073 = vmatpush.msra.mxu0 %v2946
    %3074 = vmatpush.msra.mxu0 %v2942
    %3075 = vmatpush.msra.mxu0 %v2938
    %3076 = vmatpush.msra.mxu0 %v2934
    %3077 = vmatpush.msra.mxu0 %v2930
    %3078 = vmatpush.msra.mxu0 %v2926
    %3079 = vmatpush.msra.mxu0 %v2922
    %3080 = vmatpush.msra.mxu0 %v2918
    %3081 = vmatpush.msra.mxu0 %v2914
    %3082 = vmatpush.msra.mxu0 %v2910
    %3083 = vmatpush.msra.mxu0 %v2906
    %3084 = vmatpush.msra.mxu0 %v2902
    %3085 = vmatpush.msra.mxu0 %v2898
    %3086 = vmatmul.f32.gmra.mxu0 %v2417
    %v3087 = vpop.f32.mrf.mxu0
    %v3088 = vadd.f32 %v3068, %v3087
    %3089 = vdwg.mxu0
    %3090 = vmatpush.msra.mxu0 %v2895
    %3091 = vmatpush.msra.mxu0 %v2891
    %3092 = vmatpush.msra.mxu0 %v2887
    %3093 = vmatpush.msra.mxu0 %v2883
    %3094 = vmatpush.msra.mxu0 %v2879
    %3095 = vmatpush.msra.mxu0 %v2875
    %3096 = vmatpush.msra.mxu0 %v2871
    %3097 = vmatpush.msra.mxu0 %v2867
    %3098 = vmatpush.msra.mxu0 %v2863
    %3099 = vmatpush.msra.mxu0 %v2859
    %3100 = vmatpush.msra.mxu0 %v2855
    %3101 = vmatpush.msra.mxu0 %v2851
    %3102 = vmatpush.msra.mxu0 %v2847
    %3103 = vmatpush.msra.mxu0 %v2843
    %3104 = vmatpush.msra.mxu0 %v2839
    %3105 = vmatpush.msra.mxu0 %v2835
    %3106 = vmatmul.f32.gmra.mxu0 %v2831
    %v3107 = vpop.f32.mrf.mxu0
    %v3108 = vadd.f32 %v2965, %v3107
    %3109 = vdwg.mxu0
    %3110 = vmatpush.msra.mxu0 %v2959
    %3111 = vmatpush.msra.mxu0 %v2955
    %3112 = vmatpush.msra.mxu0 %v2951
    %3113 = vmatpush.msra.mxu0 %v2947
    %3114 = vmatpush.msra.mxu0 %v2943
    %3115 = vmatpush.msra.mxu0 %v2939
    %3116 = vmatpush.msra.mxu0 %v2935
    %3117 = vmatpush.msra.mxu0 %v2931
    %3118 = vmatpush.msra.mxu0 %v2927
    %3119 = vmatpush.msra.mxu0 %v2923
    %3120 = vmatpush.msra.mxu0 %v2919
    %3121 = vmatpush.msra.mxu0 %v2915
    %3122 = vmatpush.msra.mxu0 %v2911
    %3123 = vmatpush.msra.mxu0 %v2907
    %3124 = vmatpush.msra.mxu0 %v2903
    %3125 = vmatpush.msra.mxu0 %v2899
    %3126 = vmatmul.f32.gmra.mxu0 %v2417
    %v3127 = vpop.f32.mrf.mxu0
    %v3128 = vadd.f32 %v3108, %v3127
    %3129 = vdwg.mxu0
    %v3130 = vxor.u32 %v3008, 2147483648
    %v3131 = vmul.f32 %v3130, 1.442695
    %v3132 = vpow.pop %v3131
    %v3133 = vadd.f32 %v3132, 1.0
    %v3134 = vrcp.pop %v3133
    %v3135 = vmul.f32 %v3133, %v3134
    %v3136 = vsub.f32 1.0, %v3135
    %v3137 = vmul.f32 %v3134, %v3136
    %v3138 = vadd.f32 %v3134, %v3137
    %vm3139 = vweird.f32 %v3133
    %vm3140 = vweird.f32 %v3134
    %vm3141 = vmor %vm3139, %vm3140
    %v3142 = vsel %vm3141, %v3134, %v3138
    %v3143 = vand.u32 2147483647, %v3133
    %vm3144 = vcmp.eq.f32.partialorder %v3143, 8.507059e+37
    %v3145 = vand.u32 %v3133, 2147483648
    %v3146 = vor.u32 1.1754944e-38, %v3145
    %v3147 = vsel %vm3144, %v3146, %v3142
    %v3148 = vmul.f32 1.0, %v3147
    %v3149 = vxor.u32 %v3048, 2147483648
    %v3150 = vmul.f32 %v3149, 1.442695
    %v3151 = vpow.pop %v3150
    %v3152 = vadd.f32 %v3151, 1.0
    %v3153 = vrcp.pop %v3152
    %v3154 = vmul.f32 %v3152, %v3153
    %v3155 = vsub.f32 1.0, %v3154
    %v3156 = vmul.f32 %v3153, %v3155
    %v3157 = vadd.f32 %v3153, %v3156
    %vm3158 = vweird.f32 %v3152
    %vm3159 = vweird.f32 %v3153
    %vm3160 = vmor %vm3158, %vm3159
    %v3161 = vsel %vm3160, %v3153, %v3157
    %v3162 = vand.u32 2147483647, %v3152
    %vm3163 = vcmp.eq.f32.partialorder %v3162, 8.507059e+37
    %v3164 = vand.u32 %v3152, 2147483648
    %v3165 = vor.u32 1.1754944e-38, %v3164
    %v3166 = vsel %vm3163, %v3165, %v3161
    %v3167 = vmul.f32 1.0, %v3166
    %v3168 = vtanh.pop %v3088
    %v3169 = vxor.u32 %v3128, 2147483648
    %v3170 = vmul.f32 %v3169, 1.442695
    %v3171 = vpow.pop %v3170
    %v3172 = vadd.f32 %v3171, 1.0
    %v3173 = vrcp.pop %v3172
    %v3174 = vmul.f32 %v3172, %v3173
    %v3175 = vsub.f32 1.0, %v3174
    %v3176 = vmul.f32 %v3173, %v3175
    %v3177 = vadd.f32 %v3173, %v3176
    %vm3178 = vweird.f32 %v3172
    %vm3179 = vweird.f32 %v3173
    %vm3180 = vmor %vm3178, %vm3179
    %v3181 = vsel %vm3180, %v3173, %v3177
    %v3182 = vand.u32 2147483647, %v3172
    %vm3183 = vcmp.eq.f32.partialorder %v3182, 8.507059e+37
    %v3184 = vand.u32 %v3172, 2147483648
    %v3185 = vor.u32 1.1754944e-38, %v3184
    %v3186 = vsel %vm3183, %v3185, %v3181
    %v3187 = vmul.f32 1.0, %v3186
    %v3188 = vmul.f32 %v3167, %v2415
    %v3189 = vmul.f32 %v3148, %v3168
    %v3190 = vadd.f32 %v3188, %v3189
    %v3191 = vtanh.pop %v3190
    %v3192 = vmul.f32 %v3187, %v3191
    %v3193 = vld [vmem:[#allocation13] sm:$0xff]
    %v3194 = vld [vmem:[#allocation13 + $0x8] sm:$0xff]
    %v3195 = vld [vmem:[#allocation13 + $0x10] sm:$0xff]
    %v3196 = vld [vmem:[#allocation13 + $0x18] sm:$0xff]
    %v3197 = vld [vmem:[#allocation13 + $0x20] sm:$0xff]
    %v3198 = vld [vmem:[#allocation13 + $0x28] sm:$0xff]
    %v3199 = vld [vmem:[#allocation13 + $0x30] sm:$0xff]
    %v3200 = vld [vmem:[#allocation13 + $0x38] sm:$0xff]
    %v3201 = vld [vmem:[#allocation13 + $0x40] sm:$0xff]
    %v3202 = vld [vmem:[#allocation13 + $0x48] sm:$0xff]
    %v3203 = vld [vmem:[#allocation13 + $0x50] sm:$0xff]
    %v3204 = vld [vmem:[#allocation13 + $0x58] sm:$0xff]
    %v3205 = vld [vmem:[#allocation13 + $0x60] sm:$0xff]
    %v3206 = vld [vmem:[#allocation13 + $0x68] sm:$0xff]
    %v3207 = vld [vmem:[#allocation13 + $0x70] sm:$0xff]
    %v3208 = vld [vmem:[#allocation13 + $0x78] sm:$0xff]
    %v3209 = vld [vmem:[%s7] sm:$0x1]
    %v3211 = vperm.slane %v3209, 0
    %3213 = vmatpush.msra.mxu0 %v3208
    %3214 = vmatpush.msra.mxu0 %v3207
    %3215 = vmatpush.msra.mxu0 %v3206
    %3216 = vmatpush.msra.mxu0 %v3205
    %3217 = vmatpush.msra.mxu0 %v3204
    %3218 = vmatpush.msra.mxu0 %v3203
    %3219 = vmatpush.msra.mxu0 %v3202
    %3220 = vmatpush.msra.mxu0 %v3201
    %3221 = vmatpush.msra.mxu0 %v3200
    %3222 = vmatpush.msra.mxu0 %v3199
    %3223 = vmatpush.msra.mxu0 %v3198
    %3224 = vmatpush.msra.mxu0 %v3197
    %3225 = vmatpush.msra.mxu0 %v3196
    %3226 = vmatpush.msra.mxu0 %v3195
    %3227 = vmatpush.msra.mxu0 %v3194
    %3228 = vmatpush.msra.mxu0 %v3193
    %3229 = vmatmul.f32.gmra.mxu0 %v3192
    %v3230 = vpop.f32.mrf.mxu0
    %v3231 = vadd.f32 %v3211, %v3230
    %3232 = vdwg.mxu0
    %3233 = vmax.xlane.f32.xlu0 %v3231
    %v3234 = vpop.xlane.xlu0 %3233
    %v3235 = vsub.f32 %v3231, %v3234
    %v3236 = vmul.f32 %v3235, 1.442695
    %v3237 = vpow.pop %v3236
    %3238 = vadd.xlane.f32.xlu0 %v3237
    %v3239 = vpop.xlane.xlu0 %3238
    %v3240 = vrcp.pop %v3239
    %v3241 = vmul.f32 %v3237, %v3240
    %s3242 = scalar_lea.vmem [#allocation14], 24
    %3243 = vst [vmem:[%s3242] sm:$0xff] %v3241
    %s3244 = scalar_lea.vmem [#allocation2], 32
    %v3245 = vld [vmem:[%s3244] sm:$0xff]
    %v3246 = vld [vmem:[#allocation8] sm:$0xff]
    %v3247 = vld [vmem:[#allocation8 + $0x8] sm:$0xff]
    %v3248 = vld [vmem:[#allocation8 + $0x10] sm:$0xff]
    %v3249 = vld [vmem:[#allocation8 + $0x18] sm:$0xff]
    %v3250 = vld [vmem:[#allocation8 + $0x20] sm:$0xff]
    %v3251 = vld [vmem:[#allocation8 + $0x28] sm:$0xff]
    %v3252 = vld [vmem:[#allocation8 + $0x30] sm:$0xff]
    %v3253 = vld [vmem:[#allocation8 + $0x38] sm:$0xff]
    %v3254 = vld [vmem:[#allocation8 + $0x40] sm:$0xff]
    %v3255 = vld [vmem:[#allocation8 + $0x48] sm:$0xff]
    %v3256 = vld [vmem:[#allocation8 + $0x50] sm:$0xff]
    %v3257 = vld [vmem:[#allocation8 + $0x58] sm:$0xff]
    %v3258 = vld [vmem:[#allocation8 + $0x60] sm:$0xff]
    %v3259 = vld [vmem:[#allocation8 + $0x68] sm:$0xff]
    %v3260 = vld [vmem:[#allocation8 + $0x70] sm:$0xff]
    %v3261 = vld [vmem:[#allocation8 + $0x78] sm:$0xff]
    %v3262 = vld [vmem:[#allocation8 + $0x80] sm:$0xff]
    %v3263 = vld [vmem:[#allocation8 + $0x88] sm:$0xff]
    %v3264 = vld [vmem:[#allocation8 + $0x90] sm:$0xff]
    %v3265 = vld [vmem:[#allocation8 + $0x98] sm:$0xff]
    %v3266 = vld [vmem:[#allocation8 + $0xa0] sm:$0xff]
    %v3267 = vld [vmem:[#allocation8 + $0xa8] sm:$0xff]
    %v3268 = vld [vmem:[#allocation8 + $0xb0] sm:$0xff]
    %v3269 = vld [vmem:[#allocation8 + $0xb8] sm:$0xff]
    %v3270 = vld [vmem:[#allocation8 + $0xc0] sm:$0xff]
    %v3271 = vld [vmem:[#allocation8 + $0xc8] sm:$0xff]
    %v3272 = vld [vmem:[#allocation8 + $0xd0] sm:$0xff]
    %v3273 = vld [vmem:[#allocation8 + $0xd8] sm:$0xff]
    %v3274 = vld [vmem:[#allocation8 + $0xe0] sm:$0xff]
    %v3275 = vld [vmem:[#allocation8 + $0xe8] sm:$0xff]
    %v3276 = vld [vmem:[#allocation8 + $0xf0] sm:$0xff]
    %v3277 = vld [vmem:[#allocation8 + $0xf8] sm:$0xff]
    %v3278 = vld [vmem:[#allocation8 + $0x100] sm:$0xff]
    %v3279 = vld [vmem:[#allocation8 + $0x108] sm:$0xff]
    %v3280 = vld [vmem:[#allocation8 + $0x110] sm:$0xff]
    %v3281 = vld [vmem:[#allocation8 + $0x118] sm:$0xff]
    %v3282 = vld [vmem:[#allocation8 + $0x120] sm:$0xff]
    %v3283 = vld [vmem:[#allocation8 + $0x128] sm:$0xff]
    %v3284 = vld [vmem:[#allocation8 + $0x130] sm:$0xff]
    %v3285 = vld [vmem:[#allocation8 + $0x138] sm:$0xff]
    %v3286 = vld [vmem:[#allocation8 + $0x140] sm:$0xff]
    %v3287 = vld [vmem:[#allocation8 + $0x148] sm:$0xff]
    %v3288 = vld [vmem:[#allocation8 + $0x150] sm:$0xff]
    %v3289 = vld [vmem:[#allocation8 + $0x158] sm:$0xff]
    %v3290 = vld [vmem:[#allocation8 + $0x160] sm:$0xff]
    %v3291 = vld [vmem:[#allocation8 + $0x168] sm:$0xff]
    %v3292 = vld [vmem:[#allocation8 + $0x170] sm:$0xff]
    %v3293 = vld [vmem:[#allocation8 + $0x178] sm:$0xff]
    %v3294 = vld [vmem:[#allocation8 + $0x180] sm:$0xff]
    %v3295 = vld [vmem:[#allocation8 + $0x188] sm:$0xff]
    %v3296 = vld [vmem:[#allocation8 + $0x190] sm:$0xff]
    %v3297 = vld [vmem:[#allocation8 + $0x198] sm:$0xff]
    %v3298 = vld [vmem:[#allocation8 + $0x1a0] sm:$0xff]
    %v3299 = vld [vmem:[#allocation8 + $0x1a8] sm:$0xff]
    %v3300 = vld [vmem:[#allocation8 + $0x1b0] sm:$0xff]
    %v3301 = vld [vmem:[#allocation8 + $0x1b8] sm:$0xff]
    %v3302 = vld [vmem:[#allocation8 + $0x1c0] sm:$0xff]
    %v3303 = vld [vmem:[#allocation8 + $0x1c8] sm:$0xff]
    %v3304 = vld [vmem:[#allocation8 + $0x1d0] sm:$0xff]
    %v3305 = vld [vmem:[#allocation8 + $0x1d8] sm:$0xff]
    %v3306 = vld [vmem:[#allocation8 + $0x1e0] sm:$0xff]
    %v3307 = vld [vmem:[#allocation8 + $0x1e8] sm:$0xff]
    %v3308 = vld [vmem:[#allocation8 + $0x1f0] sm:$0xff]
    %v3309 = vld [vmem:[#allocation8 + $0x1f8] sm:$0xff]
    %v3310 = vld [vmem:[#allocation8 + $0x200] sm:$0xff]
    %v3311 = vld [vmem:[#allocation8 + $0x208] sm:$0xff]
    %v3312 = vld [vmem:[#allocation8 + $0x210] sm:$0xff]
    %v3313 = vld [vmem:[#allocation8 + $0x218] sm:$0xff]
    %v3314 = vld [vmem:[#allocation8 + $0x220] sm:$0xff]
    %v3315 = vld [vmem:[#allocation8 + $0x228] sm:$0xff]
    %v3316 = vld [vmem:[#allocation8 + $0x230] sm:$0xff]
    %v3317 = vld [vmem:[#allocation8 + $0x238] sm:$0xff]
    %v3318 = vld [vmem:[#allocation8 + $0x240] sm:$0xff]
    %v3319 = vld [vmem:[#allocation8 + $0x248] sm:$0xff]
    %v3320 = vld [vmem:[#allocation8 + $0x250] sm:$0xff]
    %v3321 = vld [vmem:[#allocation8 + $0x258] sm:$0xff]
    %v3322 = vld [vmem:[#allocation8 + $0x260] sm:$0xff]
    %v3323 = vld [vmem:[#allocation8 + $0x268] sm:$0xff]
    %v3324 = vld [vmem:[#allocation8 + $0x270] sm:$0xff]
    %v3325 = vld [vmem:[#allocation8 + $0x278] sm:$0xff]
    %v3326 = vld [vmem:[#allocation8 + $0x280] sm:$0xff]
    %v3327 = vld [vmem:[#allocation8 + $0x288] sm:$0xff]
    %v3328 = vld [vmem:[#allocation8 + $0x290] sm:$0xff]
    %v3329 = vld [vmem:[#allocation8 + $0x298] sm:$0xff]
    %v3330 = vld [vmem:[#allocation8 + $0x2a0] sm:$0xff]
    %v3331 = vld [vmem:[#allocation8 + $0x2a8] sm:$0xff]
    %v3332 = vld [vmem:[#allocation8 + $0x2b0] sm:$0xff]
    %v3333 = vld [vmem:[#allocation8 + $0x2b8] sm:$0xff]
    %v3334 = vld [vmem:[#allocation8 + $0x2c0] sm:$0xff]
    %v3335 = vld [vmem:[#allocation8 + $0x2c8] sm:$0xff]
    %v3336 = vld [vmem:[#allocation8 + $0x2d0] sm:$0xff]
    %v3337 = vld [vmem:[#allocation8 + $0x2d8] sm:$0xff]
    %v3338 = vld [vmem:[#allocation8 + $0x2e0] sm:$0xff]
    %v3339 = vld [vmem:[#allocation8 + $0x2e8] sm:$0xff]
    %v3340 = vld [vmem:[#allocation8 + $0x2f0] sm:$0xff]
    %v3341 = vld [vmem:[#allocation8 + $0x2f8] sm:$0xff]
    %v3342 = vld [vmem:[#allocation8 + $0x300] sm:$0xff]
    %v3343 = vld [vmem:[#allocation8 + $0x308] sm:$0xff]
    %v3344 = vld [vmem:[#allocation8 + $0x310] sm:$0xff]
    %v3345 = vld [vmem:[#allocation8 + $0x318] sm:$0xff]
    %v3346 = vld [vmem:[#allocation8 + $0x320] sm:$0xff]
    %v3347 = vld [vmem:[#allocation8 + $0x328] sm:$0xff]
    %v3348 = vld [vmem:[#allocation8 + $0x330] sm:$0xff]
    %v3349 = vld [vmem:[#allocation8 + $0x338] sm:$0xff]
    %v3350 = vld [vmem:[#allocation8 + $0x340] sm:$0xff]
    %v3351 = vld [vmem:[#allocation8 + $0x348] sm:$0xff]
    %v3352 = vld [vmem:[#allocation8 + $0x350] sm:$0xff]
    %v3353 = vld [vmem:[#allocation8 + $0x358] sm:$0xff]
    %v3354 = vld [vmem:[#allocation8 + $0x360] sm:$0xff]
    %v3355 = vld [vmem:[#allocation8 + $0x368] sm:$0xff]
    %v3356 = vld [vmem:[#allocation8 + $0x370] sm:$0xff]
    %v3357 = vld [vmem:[#allocation8 + $0x378] sm:$0xff]
    %v3358 = vld [vmem:[#allocation8 + $0x380] sm:$0xff]
    %v3359 = vld [vmem:[#allocation8 + $0x388] sm:$0xff]
    %v3360 = vld [vmem:[#allocation8 + $0x390] sm:$0xff]
    %v3361 = vld [vmem:[#allocation8 + $0x398] sm:$0xff]
    %v3362 = vld [vmem:[#allocation8 + $0x3a0] sm:$0xff]
    %v3363 = vld [vmem:[#allocation8 + $0x3a8] sm:$0xff]
    %v3364 = vld [vmem:[#allocation8 + $0x3b0] sm:$0xff]
    %v3365 = vld [vmem:[#allocation8 + $0x3b8] sm:$0xff]
    %v3366 = vld [vmem:[#allocation8 + $0x3c0] sm:$0xff]
    %v3367 = vld [vmem:[#allocation8 + $0x3c8] sm:$0xff]
    %v3368 = vld [vmem:[#allocation8 + $0x3d0] sm:$0xff]
    %v3369 = vld [vmem:[#allocation8 + $0x3d8] sm:$0xff]
    %v3370 = vld [vmem:[#allocation8 + $0x3e0] sm:$0xff]
    %v3371 = vld [vmem:[#allocation8 + $0x3e8] sm:$0xff]
    %v3372 = vld [vmem:[#allocation8 + $0x3f0] sm:$0xff]
    %v3373 = vld [vmem:[#allocation8 + $0x3f8] sm:$0xff]
    %v3374 = vld [vmem:[#allocation11] sm:$0xf]
    %v3376 = vperm.slane %v3374, 0
    %v3377 = vperm.slane %v3374, 1
    %v3378 = vperm.slane %v3374, 2
    %v3379 = vperm.slane %v3374, 3
    %3384 = vmatpush.msra.mxu0 %v3306
    %3385 = vmatpush.msra.mxu0 %v3302
    %3386 = vmatpush.msra.mxu0 %v3298
    %3387 = vmatpush.msra.mxu0 %v3294
    %3388 = vmatpush.msra.mxu0 %v3290
    %3389 = vmatpush.msra.mxu0 %v3286
    %3390 = vmatpush.msra.mxu0 %v3282
    %3391 = vmatpush.msra.mxu0 %v3278
    %3392 = vmatpush.msra.mxu0 %v3274
    %3393 = vmatpush.msra.mxu0 %v3270
    %3394 = vmatpush.msra.mxu0 %v3266
    %3395 = vmatpush.msra.mxu0 %v3262
    %3396 = vmatpush.msra.mxu0 %v3258
    %3397 = vmatpush.msra.mxu0 %v3254
    %3398 = vmatpush.msra.mxu0 %v3250
    %3399 = vmatpush.msra.mxu0 %v3246
    %3400 = vmatmul.f32.gmra.mxu0 %v3245
    %v3401 = vpop.f32.mrf.mxu0
    %v3402 = vadd.f32 %v3376, %v3401
    %3403 = vdwg.mxu0
    %3404 = vmatpush.msra.mxu0 %v3370
    %3405 = vmatpush.msra.mxu0 %v3366
    %3406 = vmatpush.msra.mxu0 %v3362
    %3407 = vmatpush.msra.mxu0 %v3358
    %3408 = vmatpush.msra.mxu0 %v3354
    %3409 = vmatpush.msra.mxu0 %v3350
    %3410 = vmatpush.msra.mxu0 %v3346
    %3411 = vmatpush.msra.mxu0 %v3342
    %3412 = vmatpush.msra.mxu0 %v3338
    %3413 = vmatpush.msra.mxu0 %v3334
    %3414 = vmatpush.msra.mxu0 %v3330
    %3415 = vmatpush.msra.mxu0 %v3326
    %3416 = vmatpush.msra.mxu0 %v3322
    %3417 = vmatpush.msra.mxu0 %v3318
    %3418 = vmatpush.msra.mxu0 %v3314
    %3419 = vmatpush.msra.mxu0 %v3310
    %3420 = vmatmul.f32.gmra.mxu0 %v2831
    %v3421 = vpop.f32.mrf.mxu0
    %v3422 = vadd.f32 %v3402, %v3421
    %3423 = vdwg.mxu0
    %3424 = vmatpush.msra.mxu0 %v3307
    %3425 = vmatpush.msra.mxu0 %v3303
    %3426 = vmatpush.msra.mxu0 %v3299
    %3427 = vmatpush.msra.mxu0 %v3295
    %3428 = vmatpush.msra.mxu0 %v3291
    %3429 = vmatpush.msra.mxu0 %v3287
    %3430 = vmatpush.msra.mxu0 %v3283
    %3431 = vmatpush.msra.mxu0 %v3279
    %3432 = vmatpush.msra.mxu0 %v3275
    %3433 = vmatpush.msra.mxu0 %v3271
    %3434 = vmatpush.msra.mxu0 %v3267
    %3435 = vmatpush.msra.mxu0 %v3263
    %3436 = vmatpush.msra.mxu0 %v3259
    %3437 = vmatpush.msra.mxu0 %v3255
    %3438 = vmatpush.msra.mxu0 %v3251
    %3439 = vmatpush.msra.mxu0 %v3247
    %3440 = vmatmul.f32.gmra.mxu0 %v3245
    %v3441 = vpop.f32.mrf.mxu0
    %v3442 = vadd.f32 %v3377, %v3441
    %3443 = vdwg.mxu0
    %3444 = vmatpush.msra.mxu0 %v3371
    %3445 = vmatpush.msra.mxu0 %v3367
    %3446 = vmatpush.msra.mxu0 %v3363
    %3447 = vmatpush.msra.mxu0 %v3359
    %3448 = vmatpush.msra.mxu0 %v3355
    %3449 = vmatpush.msra.mxu0 %v3351
    %3450 = vmatpush.msra.mxu0 %v3347
    %3451 = vmatpush.msra.mxu0 %v3343
    %3452 = vmatpush.msra.mxu0 %v3339
    %3453 = vmatpush.msra.mxu0 %v3335
    %3454 = vmatpush.msra.mxu0 %v3331
    %3455 = vmatpush.msra.mxu0 %v3327
    %3456 = vmatpush.msra.mxu0 %v3323
    %3457 = vmatpush.msra.mxu0 %v3319
    %3458 = vmatpush.msra.mxu0 %v3315
    %3459 = vmatpush.msra.mxu0 %v3311
    %3460 = vmatmul.f32.gmra.mxu0 %v2831
    %v3461 = vpop.f32.mrf.mxu0
    %v3462 = vadd.f32 %v3442, %v3461
    %3463 = vdwg.mxu0
    %3464 = vmatpush.msra.mxu0 %v3308
    %3465 = vmatpush.msra.mxu0 %v3304
    %3466 = vmatpush.msra.mxu0 %v3300
    %3467 = vmatpush.msra.mxu0 %v3296
    %3468 = vmatpush.msra.mxu0 %v3292
    %3469 = vmatpush.msra.mxu0 %v3288
    %3470 = vmatpush.msra.mxu0 %v3284
    %3471 = vmatpush.msra.mxu0 %v3280
    %3472 = vmatpush.msra.mxu0 %v3276
    %3473 = vmatpush.msra.mxu0 %v3272
    %3474 = vmatpush.msra.mxu0 %v3268
    %3475 = vmatpush.msra.mxu0 %v3264
    %3476 = vmatpush.msra.mxu0 %v3260
    %3477 = vmatpush.msra.mxu0 %v3256
    %3478 = vmatpush.msra.mxu0 %v3252
    %3479 = vmatpush.msra.mxu0 %v3248
    %3480 = vmatmul.f32.gmra.mxu0 %v3245
    %v3481 = vpop.f32.mrf.mxu0
    %v3482 = vadd.f32 %v3378, %v3481
    %3483 = vdwg.mxu0
    %3484 = vmatpush.msra.mxu0 %v3372
    %3485 = vmatpush.msra.mxu0 %v3368
    %3486 = vmatpush.msra.mxu0 %v3364
    %3487 = vmatpush.msra.mxu0 %v3360
    %3488 = vmatpush.msra.mxu0 %v3356
    %3489 = vmatpush.msra.mxu0 %v3352
    %3490 = vmatpush.msra.mxu0 %v3348
    %3491 = vmatpush.msra.mxu0 %v3344
    %3492 = vmatpush.msra.mxu0 %v3340
    %3493 = vmatpush.msra.mxu0 %v3336
    %3494 = vmatpush.msra.mxu0 %v3332
    %3495 = vmatpush.msra.mxu0 %v3328
    %3496 = vmatpush.msra.mxu0 %v3324
    %3497 = vmatpush.msra.mxu0 %v3320
    %3498 = vmatpush.msra.mxu0 %v3316
    %3499 = vmatpush.msra.mxu0 %v3312
    %3500 = vmatmul.f32.gmra.mxu0 %v2831
    %v3501 = vpop.f32.mrf.mxu0
    %v3502 = vadd.f32 %v3482, %v3501
    %3503 = vdwg.mxu0
    %3504 = vmatpush.msra.mxu0 %v3309
    %3505 = vmatpush.msra.mxu0 %v3305
    %3506 = vmatpush.msra.mxu0 %v3301
    %3507 = vmatpush.msra.mxu0 %v3297
    %3508 = vmatpush.msra.mxu0 %v3293
    %3509 = vmatpush.msra.mxu0 %v3289
    %3510 = vmatpush.msra.mxu0 %v3285
    %3511 = vmatpush.msra.mxu0 %v3281
    %3512 = vmatpush.msra.mxu0 %v3277
    %3513 = vmatpush.msra.mxu0 %v3273
    %3514 = vmatpush.msra.mxu0 %v3269
    %3515 = vmatpush.msra.mxu0 %v3265
    %3516 = vmatpush.msra.mxu0 %v3261
    %3517 = vmatpush.msra.mxu0 %v3257
    %3518 = vmatpush.msra.mxu0 %v3253
    %3519 = vmatpush.msra.mxu0 %v3249
    %3520 = vmatmul.f32.gmra.mxu0 %v3245
    %v3521 = vpop.f32.mrf.mxu0
    %v3522 = vadd.f32 %v3379, %v3521
    %3523 = vdwg.mxu0
    %3524 = vmatpush.msra.mxu0 %v3373
    %3525 = vmatpush.msra.mxu0 %v3369
    %3526 = vmatpush.msra.mxu0 %v3365
    %3527 = vmatpush.msra.mxu0 %v3361
    %3528 = vmatpush.msra.mxu0 %v3357
    %3529 = vmatpush.msra.mxu0 %v3353
    %3530 = vmatpush.msra.mxu0 %v3349
    %3531 = vmatpush.msra.mxu0 %v3345
    %3532 = vmatpush.msra.mxu0 %v3341
    %3533 = vmatpush.msra.mxu0 %v3337
    %3534 = vmatpush.msra.mxu0 %v3333
    %3535 = vmatpush.msra.mxu0 %v3329
    %3536 = vmatpush.msra.mxu0 %v3325
    %3537 = vmatpush.msra.mxu0 %v3321
    %3538 = vmatpush.msra.mxu0 %v3317
    %3539 = vmatpush.msra.mxu0 %v3313
    %3540 = vmatmul.f32.gmra.mxu0 %v2831
    %v3541 = vpop.f32.mrf.mxu0
    %v3542 = vadd.f32 %v3522, %v3541
    %3543 = vdwg.mxu0
    %v3544 = vxor.u32 %v3422, 2147483648
    %v3545 = vmul.f32 %v3544, 1.442695
    %v3546 = vpow.pop %v3545
    %v3547 = vadd.f32 %v3546, 1.0
    %v3548 = vrcp.pop %v3547
    %v3549 = vmul.f32 %v3547, %v3548
    %v3550 = vsub.f32 1.0, %v3549
    %v3551 = vmul.f32 %v3548, %v3550
    %v3552 = vadd.f32 %v3548, %v3551
    %vm3553 = vweird.f32 %v3547
    %vm3554 = vweird.f32 %v3548
    %vm3555 = vmor %vm3553, %vm3554
    %v3556 = vsel %vm3555, %v3548, %v3552
    %v3557 = vand.u32 2147483647, %v3547
    %vm3558 = vcmp.eq.f32.partialorder %v3557, 8.507059e+37
    %v3559 = vand.u32 %v3547, 2147483648
    %v3560 = vor.u32 1.1754944e-38, %v3559
    %v3561 = vsel %vm3558, %v3560, %v3556
    %v3562 = vmul.f32 1.0, %v3561
    %v3563 = vxor.u32 %v3462, 2147483648
    %v3564 = vmul.f32 %v3563, 1.442695
    %v3565 = vpow.pop %v3564
    %v3566 = vadd.f32 %v3565, 1.0
    %v3567 = vrcp.pop %v3566
    %v3568 = vmul.f32 %v3566, %v3567
    %v3569 = vsub.f32 1.0, %v3568
    %v3570 = vmul.f32 %v3567, %v3569
    %v3571 = vadd.f32 %v3567, %v3570
    %vm3572 = vweird.f32 %v3566
    %vm3573 = vweird.f32 %v3567
    %vm3574 = vmor %vm3572, %vm3573
    %v3575 = vsel %vm3574, %v3567, %v3571
    %v3576 = vand.u32 2147483647, %v3566
    %vm3577 = vcmp.eq.f32.partialorder %v3576, 8.507059e+37
    %v3578 = vand.u32 %v3566, 2147483648
    %v3579 = vor.u32 1.1754944e-38, %v3578
    %v3580 = vsel %vm3577, %v3579, %v3575
    %v3581 = vmul.f32 1.0, %v3580
    %v3582 = vtanh.pop %v3502
    %v3583 = vxor.u32 %v3542, 2147483648
    %v3584 = vmul.f32 %v3583, 1.442695
    %v3585 = vpow.pop %v3584
    %v3586 = vadd.f32 %v3585, 1.0
    %v3587 = vrcp.pop %v3586
    %v3588 = vmul.f32 %v3586, %v3587
    %v3589 = vsub.f32 1.0, %v3588
    %v3590 = vmul.f32 %v3587, %v3589
    %v3591 = vadd.f32 %v3587, %v3590
    %vm3592 = vweird.f32 %v3586
    %vm3593 = vweird.f32 %v3587
    %vm3594 = vmor %vm3592, %vm3593
    %v3595 = vsel %vm3594, %v3587, %v3591
    %v3596 = vand.u32 2147483647, %v3586
    %vm3597 = vcmp.eq.f32.partialorder %v3596, 8.507059e+37
    %v3598 = vand.u32 %v3586, 2147483648
    %v3599 = vor.u32 1.1754944e-38, %v3598
    %v3600 = vsel %vm3597, %v3599, %v3595
    %v3601 = vmul.f32 1.0, %v3600
    %v3602 = vmul.f32 %v3581, %v2829
    %v3603 = vmul.f32 %v3562, %v3582
    %v3604 = vadd.f32 %v3602, %v3603
    %v3605 = vtanh.pop %v3604
    %v3606 = vmul.f32 %v3601, %v3605
    %v3607 = vld [vmem:[#allocation10] sm:$0xff]
    %v3608 = vld [vmem:[#allocation10 + $0x8] sm:$0xff]
    %v3609 = vld [vmem:[#allocation10 + $0x10] sm:$0xff]
    %v3610 = vld [vmem:[#allocation10 + $0x18] sm:$0xff]
    %v3611 = vld [vmem:[#allocation10 + $0x20] sm:$0xff]
    %v3612 = vld [vmem:[#allocation10 + $0x28] sm:$0xff]
    %v3613 = vld [vmem:[#allocation10 + $0x30] sm:$0xff]
    %v3614 = vld [vmem:[#allocation10 + $0x38] sm:$0xff]
    %v3615 = vld [vmem:[#allocation10 + $0x40] sm:$0xff]
    %v3616 = vld [vmem:[#allocation10 + $0x48] sm:$0xff]
    %v3617 = vld [vmem:[#allocation10 + $0x50] sm:$0xff]
    %v3618 = vld [vmem:[#allocation10 + $0x58] sm:$0xff]
    %v3619 = vld [vmem:[#allocation10 + $0x60] sm:$0xff]
    %v3620 = vld [vmem:[#allocation10 + $0x68] sm:$0xff]
    %v3621 = vld [vmem:[#allocation10 + $0x70] sm:$0xff]
    %v3622 = vld [vmem:[#allocation10 + $0x78] sm:$0xff]
    %v3623 = vld [vmem:[#allocation10 + $0x80] sm:$0xff]
    %v3624 = vld [vmem:[#allocation10 + $0x88] sm:$0xff]
    %v3625 = vld [vmem:[#allocation10 + $0x90] sm:$0xff]
    %v3626 = vld [vmem:[#allocation10 + $0x98] sm:$0xff]
    %v3627 = vld [vmem:[#allocation10 + $0xa0] sm:$0xff]
    %v3628 = vld [vmem:[#allocation10 + $0xa8] sm:$0xff]
    %v3629 = vld [vmem:[#allocation10 + $0xb0] sm:$0xff]
    %v3630 = vld [vmem:[#allocation10 + $0xb8] sm:$0xff]
    %v3631 = vld [vmem:[#allocation10 + $0xc0] sm:$0xff]
    %v3632 = vld [vmem:[#allocation10 + $0xc8] sm:$0xff]
    %v3633 = vld [vmem:[#allocation10 + $0xd0] sm:$0xff]
    %v3634 = vld [vmem:[#allocation10 + $0xd8] sm:$0xff]
    %v3635 = vld [vmem:[#allocation10 + $0xe0] sm:$0xff]
    %v3636 = vld [vmem:[#allocation10 + $0xe8] sm:$0xff]
    %v3637 = vld [vmem:[#allocation10 + $0xf0] sm:$0xff]
    %v3638 = vld [vmem:[#allocation10 + $0xf8] sm:$0xff]
    %v3639 = vld [vmem:[#allocation10 + $0x100] sm:$0xff]
    %v3640 = vld [vmem:[#allocation10 + $0x108] sm:$0xff]
    %v3641 = vld [vmem:[#allocation10 + $0x110] sm:$0xff]
    %v3642 = vld [vmem:[#allocation10 + $0x118] sm:$0xff]
    %v3643 = vld [vmem:[#allocation10 + $0x120] sm:$0xff]
    %v3644 = vld [vmem:[#allocation10 + $0x128] sm:$0xff]
    %v3645 = vld [vmem:[#allocation10 + $0x130] sm:$0xff]
    %v3646 = vld [vmem:[#allocation10 + $0x138] sm:$0xff]
    %v3647 = vld [vmem:[#allocation10 + $0x140] sm:$0xff]
    %v3648 = vld [vmem:[#allocation10 + $0x148] sm:$0xff]
    %v3649 = vld [vmem:[#allocation10 + $0x150] sm:$0xff]
    %v3650 = vld [vmem:[#allocation10 + $0x158] sm:$0xff]
    %v3651 = vld [vmem:[#allocation10 + $0x160] sm:$0xff]
    %v3652 = vld [vmem:[#allocation10 + $0x168] sm:$0xff]
    %v3653 = vld [vmem:[#allocation10 + $0x170] sm:$0xff]
    %v3654 = vld [vmem:[#allocation10 + $0x178] sm:$0xff]
    %v3655 = vld [vmem:[#allocation10 + $0x180] sm:$0xff]
    %v3656 = vld [vmem:[#allocation10 + $0x188] sm:$0xff]
    %v3657 = vld [vmem:[#allocation10 + $0x190] sm:$0xff]
    %v3658 = vld [vmem:[#allocation10 + $0x198] sm:$0xff]
    %v3659 = vld [vmem:[#allocation10 + $0x1a0] sm:$0xff]
    %v3660 = vld [vmem:[#allocation10 + $0x1a8] sm:$0xff]
    %v3661 = vld [vmem:[#allocation10 + $0x1b0] sm:$0xff]
    %v3662 = vld [vmem:[#allocation10 + $0x1b8] sm:$0xff]
    %v3663 = vld [vmem:[#allocation10 + $0x1c0] sm:$0xff]
    %v3664 = vld [vmem:[#allocation10 + $0x1c8] sm:$0xff]
    %v3665 = vld [vmem:[#allocation10 + $0x1d0] sm:$0xff]
    %v3666 = vld [vmem:[#allocation10 + $0x1d8] sm:$0xff]
    %v3667 = vld [vmem:[#allocation10 + $0x1e0] sm:$0xff]
    %v3668 = vld [vmem:[#allocation10 + $0x1e8] sm:$0xff]
    %v3669 = vld [vmem:[#allocation10 + $0x1f0] sm:$0xff]
    %v3670 = vld [vmem:[#allocation10 + $0x1f8] sm:$0xff]
    %v3671 = vld [vmem:[#allocation10 + $0x200] sm:$0xff]
    %v3672 = vld [vmem:[#allocation10 + $0x208] sm:$0xff]
    %v3673 = vld [vmem:[#allocation10 + $0x210] sm:$0xff]
    %v3674 = vld [vmem:[#allocation10 + $0x218] sm:$0xff]
    %v3675 = vld [vmem:[#allocation10 + $0x220] sm:$0xff]
    %v3676 = vld [vmem:[#allocation10 + $0x228] sm:$0xff]
    %v3677 = vld [vmem:[#allocation10 + $0x230] sm:$0xff]
    %v3678 = vld [vmem:[#allocation10 + $0x238] sm:$0xff]
    %v3679 = vld [vmem:[#allocation10 + $0x240] sm:$0xff]
    %v3680 = vld [vmem:[#allocation10 + $0x248] sm:$0xff]
    %v3681 = vld [vmem:[#allocation10 + $0x250] sm:$0xff]
    %v3682 = vld [vmem:[#allocation10 + $0x258] sm:$0xff]
    %v3683 = vld [vmem:[#allocation10 + $0x260] sm:$0xff]
    %v3684 = vld [vmem:[#allocation10 + $0x268] sm:$0xff]
    %v3685 = vld [vmem:[#allocation10 + $0x270] sm:$0xff]
    %v3686 = vld [vmem:[#allocation10 + $0x278] sm:$0xff]
    %v3687 = vld [vmem:[#allocation10 + $0x280] sm:$0xff]
    %v3688 = vld [vmem:[#allocation10 + $0x288] sm:$0xff]
    %v3689 = vld [vmem:[#allocation10 + $0x290] sm:$0xff]
    %v3690 = vld [vmem:[#allocation10 + $0x298] sm:$0xff]
    %v3691 = vld [vmem:[#allocation10 + $0x2a0] sm:$0xff]
    %v3692 = vld [vmem:[#allocation10 + $0x2a8] sm:$0xff]
    %v3693 = vld [vmem:[#allocation10 + $0x2b0] sm:$0xff]
    %v3694 = vld [vmem:[#allocation10 + $0x2b8] sm:$0xff]
    %v3695 = vld [vmem:[#allocation10 + $0x2c0] sm:$0xff]
    %v3696 = vld [vmem:[#allocation10 + $0x2c8] sm:$0xff]
    %v3697 = vld [vmem:[#allocation10 + $0x2d0] sm:$0xff]
    %v3698 = vld [vmem:[#allocation10 + $0x2d8] sm:$0xff]
    %v3699 = vld [vmem:[#allocation10 + $0x2e0] sm:$0xff]
    %v3700 = vld [vmem:[#allocation10 + $0x2e8] sm:$0xff]
    %v3701 = vld [vmem:[#allocation10 + $0x2f0] sm:$0xff]
    %v3702 = vld [vmem:[#allocation10 + $0x2f8] sm:$0xff]
    %v3703 = vld [vmem:[#allocation10 + $0x300] sm:$0xff]
    %v3704 = vld [vmem:[#allocation10 + $0x308] sm:$0xff]
    %v3705 = vld [vmem:[#allocation10 + $0x310] sm:$0xff]
    %v3706 = vld [vmem:[#allocation10 + $0x318] sm:$0xff]
    %v3707 = vld [vmem:[#allocation10 + $0x320] sm:$0xff]
    %v3708 = vld [vmem:[#allocation10 + $0x328] sm:$0xff]
    %v3709 = vld [vmem:[#allocation10 + $0x330] sm:$0xff]
    %v3710 = vld [vmem:[#allocation10 + $0x338] sm:$0xff]
    %v3711 = vld [vmem:[#allocation10 + $0x340] sm:$0xff]
    %v3712 = vld [vmem:[#allocation10 + $0x348] sm:$0xff]
    %v3713 = vld [vmem:[#allocation10 + $0x350] sm:$0xff]
    %v3714 = vld [vmem:[#allocation10 + $0x358] sm:$0xff]
    %v3715 = vld [vmem:[#allocation10 + $0x360] sm:$0xff]
    %v3716 = vld [vmem:[#allocation10 + $0x368] sm:$0xff]
    %v3717 = vld [vmem:[#allocation10 + $0x370] sm:$0xff]
    %v3718 = vld [vmem:[#allocation10 + $0x378] sm:$0xff]
    %v3719 = vld [vmem:[#allocation10 + $0x380] sm:$0xff]
    %v3720 = vld [vmem:[#allocation10 + $0x388] sm:$0xff]
    %v3721 = vld [vmem:[#allocation10 + $0x390] sm:$0xff]
    %v3722 = vld [vmem:[#allocation10 + $0x398] sm:$0xff]
    %v3723 = vld [vmem:[#allocation10 + $0x3a0] sm:$0xff]
    %v3724 = vld [vmem:[#allocation10 + $0x3a8] sm:$0xff]
    %v3725 = vld [vmem:[#allocation10 + $0x3b0] sm:$0xff]
    %v3726 = vld [vmem:[#allocation10 + $0x3b8] sm:$0xff]
    %v3727 = vld [vmem:[#allocation10 + $0x3c0] sm:$0xff]
    %v3728 = vld [vmem:[#allocation10 + $0x3c8] sm:$0xff]
    %v3729 = vld [vmem:[#allocation10 + $0x3d0] sm:$0xff]
    %v3730 = vld [vmem:[#allocation10 + $0x3d8] sm:$0xff]
    %v3731 = vld [vmem:[#allocation10 + $0x3e0] sm:$0xff]
    %v3732 = vld [vmem:[#allocation10 + $0x3e8] sm:$0xff]
    %v3733 = vld [vmem:[#allocation10 + $0x3f0] sm:$0xff]
    %v3734 = vld [vmem:[#allocation10 + $0x3f8] sm:$0xff]
    %v3735 = vld [vmem:[%s635] sm:$0xf]
    %v3737 = vperm.slane %v3735, 0
    %v3738 = vperm.slane %v3735, 1
    %v3739 = vperm.slane %v3735, 2
    %v3740 = vperm.slane %v3735, 3
    %3745 = vmatpush.msra.mxu0 %v3667
    %3746 = vmatpush.msra.mxu0 %v3663
    %3747 = vmatpush.msra.mxu0 %v3659
    %3748 = vmatpush.msra.mxu0 %v3655
    %3749 = vmatpush.msra.mxu0 %v3651
    %3750 = vmatpush.msra.mxu0 %v3647
    %3751 = vmatpush.msra.mxu0 %v3643
    %3752 = vmatpush.msra.mxu0 %v3639
    %3753 = vmatpush.msra.mxu0 %v3635
    %3754 = vmatpush.msra.mxu0 %v3631
    %3755 = vmatpush.msra.mxu0 %v3627
    %3756 = vmatpush.msra.mxu0 %v3623
    %3757 = vmatpush.msra.mxu0 %v3619
    %3758 = vmatpush.msra.mxu0 %v3615
    %3759 = vmatpush.msra.mxu0 %v3611
    %3760 = vmatpush.msra.mxu0 %v3607
    %3761 = vmatmul.f32.gmra.mxu0 %v3606
    %v3762 = vpop.f32.mrf.mxu0
    %v3763 = vadd.f32 %v3737, %v3762
    %3764 = vdwg.mxu0
    %3765 = vmatpush.msra.mxu0 %v3731
    %3766 = vmatpush.msra.mxu0 %v3727
    %3767 = vmatpush.msra.mxu0 %v3723
    %3768 = vmatpush.msra.mxu0 %v3719
    %3769 = vmatpush.msra.mxu0 %v3715
    %3770 = vmatpush.msra.mxu0 %v3711
    %3771 = vmatpush.msra.mxu0 %v3707
    %3772 = vmatpush.msra.mxu0 %v3703
    %3773 = vmatpush.msra.mxu0 %v3699
    %3774 = vmatpush.msra.mxu0 %v3695
    %3775 = vmatpush.msra.mxu0 %v3691
    %3776 = vmatpush.msra.mxu0 %v3687
    %3777 = vmatpush.msra.mxu0 %v3683
    %3778 = vmatpush.msra.mxu0 %v3679
    %3779 = vmatpush.msra.mxu0 %v3675
    %3780 = vmatpush.msra.mxu0 %v3671
    %3781 = vmatmul.f32.gmra.mxu0 %v3192
    %v3782 = vpop.f32.mrf.mxu0
    %v3783 = vadd.f32 %v3763, %v3782
    %3784 = vdwg.mxu0
    %3785 = vmatpush.msra.mxu0 %v3668
    %3786 = vmatpush.msra.mxu0 %v3664
    %3787 = vmatpush.msra.mxu0 %v3660
    %3788 = vmatpush.msra.mxu0 %v3656
    %3789 = vmatpush.msra.mxu0 %v3652
    %3790 = vmatpush.msra.mxu0 %v3648
    %3791 = vmatpush.msra.mxu0 %v3644
    %3792 = vmatpush.msra.mxu0 %v3640
    %3793 = vmatpush.msra.mxu0 %v3636
    %3794 = vmatpush.msra.mxu0 %v3632
    %3795 = vmatpush.msra.mxu0 %v3628
    %3796 = vmatpush.msra.mxu0 %v3624
    %3797 = vmatpush.msra.mxu0 %v3620
    %3798 = vmatpush.msra.mxu0 %v3616
    %3799 = vmatpush.msra.mxu0 %v3612
    %3800 = vmatpush.msra.mxu0 %v3608
    %3801 = vmatmul.f32.gmra.mxu0 %v3606
    %v3802 = vpop.f32.mrf.mxu0
    %v3803 = vadd.f32 %v3738, %v3802
    %3804 = vdwg.mxu0
    %3805 = vmatpush.msra.mxu0 %v3732
    %3806 = vmatpush.msra.mxu0 %v3728
    %3807 = vmatpush.msra.mxu0 %v3724
    %3808 = vmatpush.msra.mxu0 %v3720
    %3809 = vmatpush.msra.mxu0 %v3716
    %3810 = vmatpush.msra.mxu0 %v3712
    %3811 = vmatpush.msra.mxu0 %v3708
    %3812 = vmatpush.msra.mxu0 %v3704
    %3813 = vmatpush.msra.mxu0 %v3700
    %3814 = vmatpush.msra.mxu0 %v3696
    %3815 = vmatpush.msra.mxu0 %v3692
    %3816 = vmatpush.msra.mxu0 %v3688
    %3817 = vmatpush.msra.mxu0 %v3684
    %3818 = vmatpush.msra.mxu0 %v3680
    %3819 = vmatpush.msra.mxu0 %v3676
    %3820 = vmatpush.msra.mxu0 %v3672
    %3821 = vmatmul.f32.gmra.mxu0 %v3192
    %v3822 = vpop.f32.mrf.mxu0
    %v3823 = vadd.f32 %v3803, %v3822
    %3824 = vdwg.mxu0
    %3825 = vmatpush.msra.mxu0 %v3669
    %3826 = vmatpush.msra.mxu0 %v3665
    %3827 = vmatpush.msra.mxu0 %v3661
    %3828 = vmatpush.msra.mxu0 %v3657
    %3829 = vmatpush.msra.mxu0 %v3653
    %3830 = vmatpush.msra.mxu0 %v3649
    %3831 = vmatpush.msra.mxu0 %v3645
    %3832 = vmatpush.msra.mxu0 %v3641
    %3833 = vmatpush.msra.mxu0 %v3637
    %3834 = vmatpush.msra.mxu0 %v3633
    %3835 = vmatpush.msra.mxu0 %v3629
    %3836 = vmatpush.msra.mxu0 %v3625
    %3837 = vmatpush.msra.mxu0 %v3621
    %3838 = vmatpush.msra.mxu0 %v3617
    %3839 = vmatpush.msra.mxu0 %v3613
    %3840 = vmatpush.msra.mxu0 %v3609
    %3841 = vmatmul.f32.gmra.mxu0 %v3606
    %v3842 = vpop.f32.mrf.mxu0
    %v3843 = vadd.f32 %v3739, %v3842
    %3844 = vdwg.mxu0
    %3845 = vmatpush.msra.mxu0 %v3733
    %3846 = vmatpush.msra.mxu0 %v3729
    %3847 = vmatpush.msra.mxu0 %v3725
    %3848 = vmatpush.msra.mxu0 %v3721
    %3849 = vmatpush.msra.mxu0 %v3717
    %3850 = vmatpush.msra.mxu0 %v3713
    %3851 = vmatpush.msra.mxu0 %v3709
    %3852 = vmatpush.msra.mxu0 %v3705
    %3853 = vmatpush.msra.mxu0 %v3701
    %3854 = vmatpush.msra.mxu0 %v3697
    %3855 = vmatpush.msra.mxu0 %v3693
    %3856 = vmatpush.msra.mxu0 %v3689
    %3857 = vmatpush.msra.mxu0 %v3685
    %3858 = vmatpush.msra.mxu0 %v3681
    %3859 = vmatpush.msra.mxu0 %v3677
    %3860 = vmatpush.msra.mxu0 %v3673
    %3861 = vmatmul.f32.gmra.mxu0 %v3192
    %v3862 = vpop.f32.mrf.mxu0
    %v3863 = vadd.f32 %v3843, %v3862
    %3864 = vdwg.mxu0
    %3865 = vmatpush.msra.mxu0 %v3670
    %3866 = vmatpush.msra.mxu0 %v3666
    %3867 = vmatpush.msra.mxu0 %v3662
    %3868 = vmatpush.msra.mxu0 %v3658
    %3869 = vmatpush.msra.mxu0 %v3654
    %3870 = vmatpush.msra.mxu0 %v3650
    %3871 = vmatpush.msra.mxu0 %v3646
    %3872 = vmatpush.msra.mxu0 %v3642
    %3873 = vmatpush.msra.mxu0 %v3638
    %3874 = vmatpush.msra.mxu0 %v3634
    %3875 = vmatpush.msra.mxu0 %v3630
    %3876 = vmatpush.msra.mxu0 %v3626
    %3877 = vmatpush.msra.mxu0 %v3622
    %3878 = vmatpush.msra.mxu0 %v3618
    %3879 = vmatpush.msra.mxu0 %v3614
    %3880 = vmatpush.msra.mxu0 %v3610
    %3881 = vmatmul.f32.gmra.mxu0 %v3606
    %v3882 = vpop.f32.mrf.mxu0
    %v3883 = vadd.f32 %v3740, %v3882
    %3884 = vdwg.mxu0
    %3885 = vmatpush.msra.mxu0 %v3734
    %3886 = vmatpush.msra.mxu0 %v3730
    %3887 = vmatpush.msra.mxu0 %v3726
    %3888 = vmatpush.msra.mxu0 %v3722
    %3889 = vmatpush.msra.mxu0 %v3718
    %3890 = vmatpush.msra.mxu0 %v3714
    %3891 = vmatpush.msra.mxu0 %v3710
    %3892 = vmatpush.msra.mxu0 %v3706
    %3893 = vmatpush.msra.mxu0 %v3702
    %3894 = vmatpush.msra.mxu0 %v3698
    %3895 = vmatpush.msra.mxu0 %v3694
    %3896 = vmatpush.msra.mxu0 %v3690
    %3897 = vmatpush.msra.mxu0 %v3686
    %3898 = vmatpush.msra.mxu0 %v3682
    %3899 = vmatpush.msra.mxu0 %v3678
    %3900 = vmatpush.msra.mxu0 %v3674
    %3901 = vmatmul.f32.gmra.mxu0 %v3192
    %v3902 = vpop.f32.mrf.mxu0
    %v3903 = vadd.f32 %v3883, %v3902
    %3904 = vdwg.mxu0
    %v3905 = vxor.u32 %v3783, 2147483648
    %v3906 = vmul.f32 %v3905, 1.442695
    %v3907 = vpow.pop %v3906
    %v3908 = vadd.f32 %v3907, 1.0
    %v3909 = vrcp.pop %v3908
    %v3910 = vmul.f32 %v3908, %v3909
    %v3911 = vsub.f32 1.0, %v3910
    %v3912 = vmul.f32 %v3909, %v3911
    %v3913 = vadd.f32 %v3909, %v3912
    %vm3914 = vweird.f32 %v3908
    %vm3915 = vweird.f32 %v3909
    %vm3916 = vmor %vm3914, %vm3915
    %v3917 = vsel %vm3916, %v3909, %v3913
    %v3918 = vand.u32 2147483647, %v3908
    %vm3919 = vcmp.eq.f32.partialorder %v3918, 8.507059e+37
    %v3920 = vand.u32 %v3908, 2147483648
    %v3921 = vor.u32 1.1754944e-38, %v3920
    %v3922 = vsel %vm3919, %v3921, %v3917
    %v3923 = vmul.f32 1.0, %v3922
    %v3924 = vxor.u32 %v3823, 2147483648
    %v3925 = vmul.f32 %v3924, 1.442695
    %v3926 = vpow.pop %v3925
    %v3927 = vadd.f32 %v3926, 1.0
    %v3928 = vrcp.pop %v3927
    %v3929 = vmul.f32 %v3927, %v3928
    %v3930 = vsub.f32 1.0, %v3929
    %v3931 = vmul.f32 %v3928, %v3930
    %v3932 = vadd.f32 %v3928, %v3931
    %vm3933 = vweird.f32 %v3927
    %vm3934 = vweird.f32 %v3928
    %vm3935 = vmor %vm3933, %vm3934
    %v3936 = vsel %vm3935, %v3928, %v3932
    %v3937 = vand.u32 2147483647, %v3927
    %vm3938 = vcmp.eq.f32.partialorder %v3937, 8.507059e+37
    %v3939 = vand.u32 %v3927, 2147483648
    %v3940 = vor.u32 1.1754944e-38, %v3939
    %v3941 = vsel %vm3938, %v3940, %v3936
    %v3942 = vmul.f32 1.0, %v3941
    %v3943 = vtanh.pop %v3863
    %v3944 = vxor.u32 %v3903, 2147483648
    %v3945 = vmul.f32 %v3944, 1.442695
    %v3946 = vpow.pop %v3945
    %v3947 = vadd.f32 %v3946, 1.0
    %v3948 = vrcp.pop %v3947
    %v3949 = vmul.f32 %v3947, %v3948
    %v3950 = vsub.f32 1.0, %v3949
    %v3951 = vmul.f32 %v3948, %v3950
    %v3952 = vadd.f32 %v3948, %v3951
    %vm3953 = vweird.f32 %v3947
    %vm3954 = vweird.f32 %v3948
    %vm3955 = vmor %vm3953, %vm3954
    %v3956 = vsel %vm3955, %v3948, %v3952
    %v3957 = vand.u32 2147483647, %v3947
    %vm3958 = vcmp.eq.f32.partialorder %v3957, 8.507059e+37
    %v3959 = vand.u32 %v3947, 2147483648
    %v3960 = vor.u32 1.1754944e-38, %v3959
    %v3961 = vsel %vm3958, %v3960, %v3956
    %v3962 = vmul.f32 1.0, %v3961
    %v3963 = vmul.f32 %v3942, %v3190
    %v3964 = vmul.f32 %v3923, %v3943
    %v3965 = vadd.f32 %v3963, %v3964
    %v3966 = vtanh.pop %v3965
    %v3967 = vmul.f32 %v3962, %v3966
    %v3968 = vld [vmem:[#allocation13] sm:$0xff]
    %v3969 = vld [vmem:[#allocation13 + $0x8] sm:$0xff]
    %v3970 = vld [vmem:[#allocation13 + $0x10] sm:$0xff]
    %v3971 = vld [vmem:[#allocation13 + $0x18] sm:$0xff]
    %v3972 = vld [vmem:[#allocation13 + $0x20] sm:$0xff]
    %v3973 = vld [vmem:[#allocation13 + $0x28] sm:$0xff]
    %v3974 = vld [vmem:[#allocation13 + $0x30] sm:$0xff]
    %v3975 = vld [vmem:[#allocation13 + $0x38] sm:$0xff]
    %v3976 = vld [vmem:[#allocation13 + $0x40] sm:$0xff]
    %v3977 = vld [vmem:[#allocation13 + $0x48] sm:$0xff]
    %v3978 = vld [vmem:[#allocation13 + $0x50] sm:$0xff]
    %v3979 = vld [vmem:[#allocation13 + $0x58] sm:$0xff]
    %v3980 = vld [vmem:[#allocation13 + $0x60] sm:$0xff]
    %v3981 = vld [vmem:[#allocation13 + $0x68] sm:$0xff]
    %v3982 = vld [vmem:[#allocation13 + $0x70] sm:$0xff]
    %v3983 = vld [vmem:[#allocation13 + $0x78] sm:$0xff]
    %v3984 = vld [vmem:[%s7] sm:$0x1]
    %v3986 = vperm.slane %v3984, 0
    %3988 = vmatpush.msra.mxu0 %v3983
    %3989 = vmatpush.msra.mxu0 %v3982
    %3990 = vmatpush.msra.mxu0 %v3981
    %3991 = vmatpush.msra.mxu0 %v3980
    %3992 = vmatpush.msra.mxu0 %v3979
    %3993 = vmatpush.msra.mxu0 %v3978
    %3994 = vmatpush.msra.mxu0 %v3977
    %3995 = vmatpush.msra.mxu0 %v3976
    %3996 = vmatpush.msra.mxu0 %v3975
    %3997 = vmatpush.msra.mxu0 %v3974
    %3998 = vmatpush.msra.mxu0 %v3973
    %3999 = vmatpush.msra.mxu0 %v3972
    %4000 = vmatpush.msra.mxu0 %v3971
    %4001 = vmatpush.msra.mxu0 %v3970
    %4002 = vmatpush.msra.mxu0 %v3969
    %4003 = vmatpush.msra.mxu0 %v3968
    %4004 = vmatmul.f32.gmra.mxu0 %v3967
    %v4005 = vpop.f32.mrf.mxu0
    %v4006 = vadd.f32 %v3986, %v4005
    %4007 = vdwg.mxu0
    %4008 = vmax.xlane.f32.xlu0 %v4006
    %v4009 = vpop.xlane.xlu0 %4008
    %v4010 = vsub.f32 %v4006, %v4009
    %v4011 = vmul.f32 %v4010, 1.442695
    %v4012 = vpow.pop %v4011
    %4013 = vadd.xlane.f32.xlu0 %v4012
    %v4014 = vpop.xlane.xlu0 %4013
    %v4015 = vrcp.pop %v4014
    %v4016 = vmul.f32 %v4012, %v4015
    %s4017 = scalar_lea.vmem [#allocation14], 32
    %4018 = vst [vmem:[%s4017] sm:$0xff] %v4016
    %s4019 = scalar_lea.vmem [#allocation2], 40
    %v4020 = vld [vmem:[%s4019] sm:$0xff]
    %v4021 = vld [vmem:[#allocation8] sm:$0xff]
    %v4022 = vld [vmem:[#allocation8 + $0x8] sm:$0xff]
    %v4023 = vld [vmem:[#allocation8 + $0x10] sm:$0xff]
    %v4024 = vld [vmem:[#allocation8 + $0x18] sm:$0xff]
    %v4025 = vld [vmem:[#allocation8 + $0x20] sm:$0xff]
    %v4026 = vld [vmem:[#allocation8 + $0x28] sm:$0xff]
    %v4027 = vld [vmem:[#allocation8 + $0x30] sm:$0xff]
    %v4028 = vld [vmem:[#allocation8 + $0x38] sm:$0xff]
    %v4029 = vld [vmem:[#allocation8 + $0x40] sm:$0xff]
    %v4030 = vld [vmem:[#allocation8 + $0x48] sm:$0xff]
    %v4031 = vld [vmem:[#allocation8 + $0x50] sm:$0xff]
    %v4032 = vld [vmem:[#allocation8 + $0x58] sm:$0xff]
    %v4033 = vld [vmem:[#allocation8 + $0x60] sm:$0xff]
    %v4034 = vld [vmem:[#allocation8 + $0x68] sm:$0xff]
    %v4035 = vld [vmem:[#allocation8 + $0x70] sm:$0xff]
    %v4036 = vld [vmem:[#allocation8 + $0x78] sm:$0xff]
    %v4037 = vld [vmem:[#allocation8 + $0x80] sm:$0xff]
    %v4038 = vld [vmem:[#allocation8 + $0x88] sm:$0xff]
    %v4039 = vld [vmem:[#allocation8 + $0x90] sm:$0xff]
    %v4040 = vld [vmem:[#allocation8 + $0x98] sm:$0xff]
    %v4041 = vld [vmem:[#allocation8 + $0xa0] sm:$0xff]
    %v4042 = vld [vmem:[#allocation8 + $0xa8] sm:$0xff]
    %v4043 = vld [vmem:[#allocation8 + $0xb0] sm:$0xff]
    %v4044 = vld [vmem:[#allocation8 + $0xb8] sm:$0xff]
    %v4045 = vld [vmem:[#allocation8 + $0xc0] sm:$0xff]
    %v4046 = vld [vmem:[#allocation8 + $0xc8] sm:$0xff]
    %v4047 = vld [vmem:[#allocation8 + $0xd0] sm:$0xff]
    %v4048 = vld [vmem:[#allocation8 + $0xd8] sm:$0xff]
    %v4049 = vld [vmem:[#allocation8 + $0xe0] sm:$0xff]
    %v4050 = vld [vmem:[#allocation8 + $0xe8] sm:$0xff]
    %v4051 = vld [vmem:[#allocation8 + $0xf0] sm:$0xff]
    %v4052 = vld [vmem:[#allocation8 + $0xf8] sm:$0xff]
    %v4053 = vld [vmem:[#allocation8 + $0x100] sm:$0xff]
    %v4054 = vld [vmem:[#allocation8 + $0x108] sm:$0xff]
    %v4055 = vld [vmem:[#allocation8 + $0x110] sm:$0xff]
    %v4056 = vld [vmem:[#allocation8 + $0x118] sm:$0xff]
    %v4057 = vld [vmem:[#allocation8 + $0x120] sm:$0xff]
    %v4058 = vld [vmem:[#allocation8 + $0x128] sm:$0xff]
    %v4059 = vld [vmem:[#allocation8 + $0x130] sm:$0xff]
    %v4060 = vld [vmem:[#allocation8 + $0x138] sm:$0xff]
    %v4061 = vld [vmem:[#allocation8 + $0x140] sm:$0xff]
    %v4062 = vld [vmem:[#allocation8 + $0x148] sm:$0xff]
    %v4063 = vld [vmem:[#allocation8 + $0x150] sm:$0xff]
    %v4064 = vld [vmem:[#allocation8 + $0x158] sm:$0xff]
    %v4065 = vld [vmem:[#allocation8 + $0x160] sm:$0xff]
    %v4066 = vld [vmem:[#allocation8 + $0x168] sm:$0xff]
    %v4067 = vld [vmem:[#allocation8 + $0x170] sm:$0xff]
    %v4068 = vld [vmem:[#allocation8 + $0x178] sm:$0xff]
    %v4069 = vld [vmem:[#allocation8 + $0x180] sm:$0xff]
    %v4070 = vld [vmem:[#allocation8 + $0x188] sm:$0xff]
    %v4071 = vld [vmem:[#allocation8 + $0x190] sm:$0xff]
    %v4072 = vld [vmem:[#allocation8 + $0x198] sm:$0xff]
    %v4073 = vld [vmem:[#allocation8 + $0x1a0] sm:$0xff]
    %v4074 = vld [vmem:[#allocation8 + $0x1a8] sm:$0xff]
    %v4075 = vld [vmem:[#allocation8 + $0x1b0] sm:$0xff]
    %v4076 = vld [vmem:[#allocation8 + $0x1b8] sm:$0xff]
    %v4077 = vld [vmem:[#allocation8 + $0x1c0] sm:$0xff]
    %v4078 = vld [vmem:[#allocation8 + $0x1c8] sm:$0xff]
    %v4079 = vld [vmem:[#allocation8 + $0x1d0] sm:$0xff]
    %v4080 = vld [vmem:[#allocation8 + $0x1d8] sm:$0xff]
    %v4081 = vld [vmem:[#allocation8 + $0x1e0] sm:$0xff]
    %v4082 = vld [vmem:[#allocation8 + $0x1e8] sm:$0xff]
    %v4083 = vld [vmem:[#allocation8 + $0x1f0] sm:$0xff]
    %v4084 = vld [vmem:[#allocation8 + $0x1f8] sm:$0xff]
    %v4085 = vld [vmem:[#allocation8 + $0x200] sm:$0xff]
    %v4086 = vld [vmem:[#allocation8 + $0x208] sm:$0xff]
    %v4087 = vld [vmem:[#allocation8 + $0x210] sm:$0xff]
    %v4088 = vld [vmem:[#allocation8 + $0x218] sm:$0xff]
    %v4089 = vld [vmem:[#allocation8 + $0x220] sm:$0xff]
    %v4090 = vld [vmem:[#allocation8 + $0x228] sm:$0xff]
    %v4091 = vld [vmem:[#allocation8 + $0x230] sm:$0xff]
    %v4092 = vld [vmem:[#allocation8 + $0x238] sm:$0xff]
    %v4093 = vld [vmem:[#allocation8 + $0x240] sm:$0xff]
    %v4094 = vld [vmem:[#allocation8 + $0x248] sm:$0xff]
    %v4095 = vld [vmem:[#allocation8 + $0x250] sm:$0xff]
    %v4096 = vld [vmem:[#allocation8 + $0x258] sm:$0xff]
    %v4097 = vld [vmem:[#allocation8 + $0x260] sm:$0xff]
    %v4098 = vld [vmem:[#allocation8 + $0x268] sm:$0xff]
    %v4099 = vld [vmem:[#allocation8 + $0x270] sm:$0xff]
    %v4100 = vld [vmem:[#allocation8 + $0x278] sm:$0xff]
    %v4101 = vld [vmem:[#allocation8 + $0x280] sm:$0xff]
    %v4102 = vld [vmem:[#allocation8 + $0x288] sm:$0xff]
    %v4103 = vld [vmem:[#allocation8 + $0x290] sm:$0xff]
    %v4104 = vld [vmem:[#allocation8 + $0x298] sm:$0xff]
    %v4105 = vld [vmem:[#allocation8 + $0x2a0] sm:$0xff]
    %v4106 = vld [vmem:[#allocation8 + $0x2a8] sm:$0xff]
    %v4107 = vld [vmem:[#allocation8 + $0x2b0] sm:$0xff]
    %v4108 = vld [vmem:[#allocation8 + $0x2b8] sm:$0xff]
    %v4109 = vld [vmem:[#allocation8 + $0x2c0] sm:$0xff]
    %v4110 = vld [vmem:[#allocation8 + $0x2c8] sm:$0xff]
    %v4111 = vld [vmem:[#allocation8 + $0x2d0] sm:$0xff]
    %v4112 = vld [vmem:[#allocation8 + $0x2d8] sm:$0xff]
    %v4113 = vld [vmem:[#allocation8 + $0x2e0] sm:$0xff]
    %v4114 = vld [vmem:[#allocation8 + $0x2e8] sm:$0xff]
    %v4115 = vld [vmem:[#allocation8 + $0x2f0] sm:$0xff]
    %v4116 = vld [vmem:[#allocation8 + $0x2f8] sm:$0xff]
    %v4117 = vld [vmem:[#allocation8 + $0x300] sm:$0xff]
    %v4118 = vld [vmem:[#allocation8 + $0x308] sm:$0xff]
    %v4119 = vld [vmem:[#allocation8 + $0x310] sm:$0xff]
    %v4120 = vld [vmem:[#allocation8 + $0x318] sm:$0xff]
    %v4121 = vld [vmem:[#allocation8 + $0x320] sm:$0xff]
    %v4122 = vld [vmem:[#allocation8 + $0x328] sm:$0xff]
    %v4123 = vld [vmem:[#allocation8 + $0x330] sm:$0xff]
    %v4124 = vld [vmem:[#allocation8 + $0x338] sm:$0xff]
    %v4125 = vld [vmem:[#allocation8 + $0x340] sm:$0xff]
    %v4126 = vld [vmem:[#allocation8 + $0x348] sm:$0xff]
    %v4127 = vld [vmem:[#allocation8 + $0x350] sm:$0xff]
    %v4128 = vld [vmem:[#allocation8 + $0x358] sm:$0xff]
    %v4129 = vld [vmem:[#allocation8 + $0x360] sm:$0xff]
    %v4130 = vld [vmem:[#allocation8 + $0x368] sm:$0xff]
    %v4131 = vld [vmem:[#allocation8 + $0x370] sm:$0xff]
    %v4132 = vld [vmem:[#allocation8 + $0x378] sm:$0xff]
    %v4133 = vld [vmem:[#allocation8 + $0x380] sm:$0xff]
    %v4134 = vld [vmem:[#allocation8 + $0x388] sm:$0xff]
    %v4135 = vld [vmem:[#allocation8 + $0x390] sm:$0xff]
    %v4136 = vld [vmem:[#allocation8 + $0x398] sm:$0xff]
    %v4137 = vld [vmem:[#allocation8 + $0x3a0] sm:$0xff]
    %v4138 = vld [vmem:[#allocation8 + $0x3a8] sm:$0xff]
    %v4139 = vld [vmem:[#allocation8 + $0x3b0] sm:$0xff]
    %v4140 = vld [vmem:[#allocation8 + $0x3b8] sm:$0xff]
    %v4141 = vld [vmem:[#allocation8 + $0x3c0] sm:$0xff]
    %v4142 = vld [vmem:[#allocation8 + $0x3c8] sm:$0xff]
    %v4143 = vld [vmem:[#allocation8 + $0x3d0] sm:$0xff]
    %v4144 = vld [vmem:[#allocation8 + $0x3d8] sm:$0xff]
    %v4145 = vld [vmem:[#allocation8 + $0x3e0] sm:$0xff]
    %v4146 = vld [vmem:[#allocation8 + $0x3e8] sm:$0xff]
    %v4147 = vld [vmem:[#allocation8 + $0x3f0] sm:$0xff]
    %v4148 = vld [vmem:[#allocation8 + $0x3f8] sm:$0xff]
    %v4149 = vld [vmem:[#allocation11] sm:$0xf]
    %v4151 = vperm.slane %v4149, 0
    %v4152 = vperm.slane %v4149, 1
    %v4153 = vperm.slane %v4149, 2
    %v4154 = vperm.slane %v4149, 3
    %4159 = vmatpush.msra.mxu0 %v4081
    %4160 = vmatpush.msra.mxu0 %v4077
    %4161 = vmatpush.msra.mxu0 %v4073
    %4162 = vmatpush.msra.mxu0 %v4069
    %4163 = vmatpush.msra.mxu0 %v4065
    %4164 = vmatpush.msra.mxu0 %v4061
    %4165 = vmatpush.msra.mxu0 %v4057
    %4166 = vmatpush.msra.mxu0 %v4053
    %4167 = vmatpush.msra.mxu0 %v4049
    %4168 = vmatpush.msra.mxu0 %v4045
    %4169 = vmatpush.msra.mxu0 %v4041
    %4170 = vmatpush.msra.mxu0 %v4037
    %4171 = vmatpush.msra.mxu0 %v4033
    %4172 = vmatpush.msra.mxu0 %v4029
    %4173 = vmatpush.msra.mxu0 %v4025
    %4174 = vmatpush.msra.mxu0 %v4021
    %4175 = vmatmul.f32.gmra.mxu0 %v4020
    %v4176 = vpop.f32.mrf.mxu0
    %v4177 = vadd.f32 %v4151, %v4176
    %4178 = vdwg.mxu0
    %4179 = vmatpush.msra.mxu0 %v4145
    %4180 = vmatpush.msra.mxu0 %v4141
    %4181 = vmatpush.msra.mxu0 %v4137
    %4182 = vmatpush.msra.mxu0 %v4133
    %4183 = vmatpush.msra.mxu0 %v4129
    %4184 = vmatpush.msra.mxu0 %v4125
    %4185 = vmatpush.msra.mxu0 %v4121
    %4186 = vmatpush.msra.mxu0 %v4117
    %4187 = vmatpush.msra.mxu0 %v4113
    %4188 = vmatpush.msra.mxu0 %v4109
    %4189 = vmatpush.msra.mxu0 %v4105
    %4190 = vmatpush.msra.mxu0 %v4101
    %4191 = vmatpush.msra.mxu0 %v4097
    %4192 = vmatpush.msra.mxu0 %v4093
    %4193 = vmatpush.msra.mxu0 %v4089
    %4194 = vmatpush.msra.mxu0 %v4085
    %4195 = vmatmul.f32.gmra.mxu0 %v3606
    %v4196 = vpop.f32.mrf.mxu0
    %v4197 = vadd.f32 %v4177, %v4196
    %4198 = vdwg.mxu0
    %4199 = vmatpush.msra.mxu0 %v4082
    %4200 = vmatpush.msra.mxu0 %v4078
    %4201 = vmatpush.msra.mxu0 %v4074
    %4202 = vmatpush.msra.mxu0 %v4070
    %4203 = vmatpush.msra.mxu0 %v4066
    %4204 = vmatpush.msra.mxu0 %v4062
    %4205 = vmatpush.msra.mxu0 %v4058
    %4206 = vmatpush.msra.mxu0 %v4054
    %4207 = vmatpush.msra.mxu0 %v4050
    %4208 = vmatpush.msra.mxu0 %v4046
    %4209 = vmatpush.msra.mxu0 %v4042
    %4210 = vmatpush.msra.mxu0 %v4038
    %4211 = vmatpush.msra.mxu0 %v4034
    %4212 = vmatpush.msra.mxu0 %v4030
    %4213 = vmatpush.msra.mxu0 %v4026
    %4214 = vmatpush.msra.mxu0 %v4022
    %4215 = vmatmul.f32.gmra.mxu0 %v4020
    %v4216 = vpop.f32.mrf.mxu0
    %v4217 = vadd.f32 %v4152, %v4216
    %4218 = vdwg.mxu0
    %4219 = vmatpush.msra.mxu0 %v4146
    %4220 = vmatpush.msra.mxu0 %v4142
    %4221 = vmatpush.msra.mxu0 %v4138
    %4222 = vmatpush.msra.mxu0 %v4134
    %4223 = vmatpush.msra.mxu0 %v4130
    %4224 = vmatpush.msra.mxu0 %v4126
    %4225 = vmatpush.msra.mxu0 %v4122
    %4226 = vmatpush.msra.mxu0 %v4118
    %4227 = vmatpush.msra.mxu0 %v4114
    %4228 = vmatpush.msra.mxu0 %v4110
    %4229 = vmatpush.msra.mxu0 %v4106
    %4230 = vmatpush.msra.mxu0 %v4102
    %4231 = vmatpush.msra.mxu0 %v4098
    %4232 = vmatpush.msra.mxu0 %v4094
    %4233 = vmatpush.msra.mxu0 %v4090
    %4234 = vmatpush.msra.mxu0 %v4086
    %4235 = vmatmul.f32.gmra.mxu0 %v3606
    %v4236 = vpop.f32.mrf.mxu0
    %v4237 = vadd.f32 %v4217, %v4236
    %4238 = vdwg.mxu0
    %4239 = vmatpush.msra.mxu0 %v4083
    %4240 = vmatpush.msra.mxu0 %v4079
    %4241 = vmatpush.msra.mxu0 %v4075
    %4242 = vmatpush.msra.mxu0 %v4071
    %4243 = vmatpush.msra.mxu0 %v4067
    %4244 = vmatpush.msra.mxu0 %v4063
    %4245 = vmatpush.msra.mxu0 %v4059
    %4246 = vmatpush.msra.mxu0 %v4055
    %4247 = vmatpush.msra.mxu0 %v4051
    %4248 = vmatpush.msra.mxu0 %v4047
    %4249 = vmatpush.msra.mxu0 %v4043
    %4250 = vmatpush.msra.mxu0 %v4039
    %4251 = vmatpush.msra.mxu0 %v4035
    %4252 = vmatpush.msra.mxu0 %v4031
    %4253 = vmatpush.msra.mxu0 %v4027
    %4254 = vmatpush.msra.mxu0 %v4023
    %4255 = vmatmul.f32.gmra.mxu0 %v4020
    %v4256 = vpop.f32.mrf.mxu0
    %v4257 = vadd.f32 %v4153, %v4256
    %4258 = vdwg.mxu0
    %4259 = vmatpush.msra.mxu0 %v4147
    %4260 = vmatpush.msra.mxu0 %v4143
    %4261 = vmatpush.msra.mxu0 %v4139
    %4262 = vmatpush.msra.mxu0 %v4135
    %4263 = vmatpush.msra.mxu0 %v4131
    %4264 = vmatpush.msra.mxu0 %v4127
    %4265 = vmatpush.msra.mxu0 %v4123
    %4266 = vmatpush.msra.mxu0 %v4119
    %4267 = vmatpush.msra.mxu0 %v4115
    %4268 = vmatpush.msra.mxu0 %v4111
    %4269 = vmatpush.msra.mxu0 %v4107
    %4270 = vmatpush.msra.mxu0 %v4103
    %4271 = vmatpush.msra.mxu0 %v4099
    %4272 = vmatpush.msra.mxu0 %v4095
    %4273 = vmatpush.msra.mxu0 %v4091
    %4274 = vmatpush.msra.mxu0 %v4087
    %4275 = vmatmul.f32.gmra.mxu0 %v3606
    %v4276 = vpop.f32.mrf.mxu0
    %v4277 = vadd.f32 %v4257, %v4276
    %4278 = vdwg.mxu0
    %4279 = vmatpush.msra.mxu0 %v4084
    %4280 = vmatpush.msra.mxu0 %v4080
    %4281 = vmatpush.msra.mxu0 %v4076
    %4282 = vmatpush.msra.mxu0 %v4072
    %4283 = vmatpush.msra.mxu0 %v4068
    %4284 = vmatpush.msra.mxu0 %v4064
    %4285 = vmatpush.msra.mxu0 %v4060
    %4286 = vmatpush.msra.mxu0 %v4056
    %4287 = vmatpush.msra.mxu0 %v4052
    %4288 = vmatpush.msra.mxu0 %v4048
    %4289 = vmatpush.msra.mxu0 %v4044
    %4290 = vmatpush.msra.mxu0 %v4040
    %4291 = vmatpush.msra.mxu0 %v4036
    %4292 = vmatpush.msra.mxu0 %v4032
    %4293 = vmatpush.msra.mxu0 %v4028
    %4294 = vmatpush.msra.mxu0 %v4024
    %4295 = vmatmul.f32.gmra.mxu0 %v4020
    %v4296 = vpop.f32.mrf.mxu0
    %v4297 = vadd.f32 %v4154, %v4296
    %4298 = vdwg.mxu0
    %4299 = vmatpush.msra.mxu0 %v4148
    %4300 = vmatpush.msra.mxu0 %v4144
    %4301 = vmatpush.msra.mxu0 %v4140
    %4302 = vmatpush.msra.mxu0 %v4136
    %4303 = vmatpush.msra.mxu0 %v4132
    %4304 = vmatpush.msra.mxu0 %v4128
    %4305 = vmatpush.msra.mxu0 %v4124
    %4306 = vmatpush.msra.mxu0 %v4120
    %4307 = vmatpush.msra.mxu0 %v4116
    %4308 = vmatpush.msra.mxu0 %v4112
    %4309 = vmatpush.msra.mxu0 %v4108
    %4310 = vmatpush.msra.mxu0 %v4104
    %4311 = vmatpush.msra.mxu0 %v4100
    %4312 = vmatpush.msra.mxu0 %v4096
    %4313 = vmatpush.msra.mxu0 %v4092
    %4314 = vmatpush.msra.mxu0 %v4088
    %4315 = vmatmul.f32.gmra.mxu0 %v3606
    %v4316 = vpop.f32.mrf.mxu0
    %v4317 = vadd.f32 %v4297, %v4316
    %4318 = vdwg.mxu0
    %v4319 = vxor.u32 %v4197, 2147483648
    %v4320 = vmul.f32 %v4319, 1.442695
    %v4321 = vpow.pop %v4320
    %v4322 = vadd.f32 %v4321, 1.0
    %v4323 = vrcp.pop %v4322
    %v4324 = vmul.f32 %v4322, %v4323
    %v4325 = vsub.f32 1.0, %v4324
    %v4326 = vmul.f32 %v4323, %v4325
    %v4327 = vadd.f32 %v4323, %v4326
    %vm4328 = vweird.f32 %v4322
    %vm4329 = vweird.f32 %v4323
    %vm4330 = vmor %vm4328, %vm4329
    %v4331 = vsel %vm4330, %v4323, %v4327
    %v4332 = vand.u32 2147483647, %v4322
    %vm4333 = vcmp.eq.f32.partialorder %v4332, 8.507059e+37
    %v4334 = vand.u32 %v4322, 2147483648
    %v4335 = vor.u32 1.1754944e-38, %v4334
    %v4336 = vsel %vm4333, %v4335, %v4331
    %v4337 = vmul.f32 1.0, %v4336
    %v4338 = vxor.u32 %v4237, 2147483648
    %v4339 = vmul.f32 %v4338, 1.442695
    %v4340 = vpow.pop %v4339
    %v4341 = vadd.f32 %v4340, 1.0
    %v4342 = vrcp.pop %v4341
    %v4343 = vmul.f32 %v4341, %v4342
    %v4344 = vsub.f32 1.0, %v4343
    %v4345 = vmul.f32 %v4342, %v4344
    %v4346 = vadd.f32 %v4342, %v4345
    %vm4347 = vweird.f32 %v4341
    %vm4348 = vweird.f32 %v4342
    %vm4349 = vmor %vm4347, %vm4348
    %v4350 = vsel %vm4349, %v4342, %v4346
    %v4351 = vand.u32 2147483647, %v4341
    %vm4352 = vcmp.eq.f32.partialorder %v4351, 8.507059e+37
    %v4353 = vand.u32 %v4341, 2147483648
    %v4354 = vor.u32 1.1754944e-38, %v4353
    %v4355 = vsel %vm4352, %v4354, %v4350
    %v4356 = vmul.f32 1.0, %v4355
    %v4357 = vtanh.pop %v4277
    %v4358 = vxor.u32 %v4317, 2147483648
    %v4359 = vmul.f32 %v4358, 1.442695
    %v4360 = vpow.pop %v4359
    %v4361 = vadd.f32 %v4360, 1.0
    %v4362 = vrcp.pop %v4361
    %v4363 = vmul.f32 %v4361, %v4362
    %v4364 = vsub.f32 1.0, %v4363
    %v4365 = vmul.f32 %v4362, %v4364
    %v4366 = vadd.f32 %v4362, %v4365
    %vm4367 = vweird.f32 %v4361
    %vm4368 = vweird.f32 %v4362
    %vm4369 = vmor %vm4367, %vm4368
    %v4370 = vsel %vm4369, %v4362, %v4366
    %v4371 = vand.u32 2147483647, %v4361
    %vm4372 = vcmp.eq.f32.partialorder %v4371, 8.507059e+37
    %v4373 = vand.u32 %v4361, 2147483648
    %v4374 = vor.u32 1.1754944e-38, %v4373
    %v4375 = vsel %vm4372, %v4374, %v4370
    %v4376 = vmul.f32 1.0, %v4375
    %v4377 = vmul.f32 %v4356, %v3604
    %v4378 = vmul.f32 %v4337, %v4357
    %v4379 = vadd.f32 %v4377, %v4378
    %v4380 = vtanh.pop %v4379
    %v4381 = vmul.f32 %v4376, %v4380
    %v4382 = vld [vmem:[#allocation10] sm:$0xff]
    %v4383 = vld [vmem:[#allocation10 + $0x8] sm:$0xff]
    %v4384 = vld [vmem:[#allocation10 + $0x10] sm:$0xff]
    %v4385 = vld [vmem:[#allocation10 + $0x18] sm:$0xff]
    %v4386 = vld [vmem:[#allocation10 + $0x20] sm:$0xff]
    %v4387 = vld [vmem:[#allocation10 + $0x28] sm:$0xff]
    %v4388 = vld [vmem:[#allocation10 + $0x30] sm:$0xff]
    %v4389 = vld [vmem:[#allocation10 + $0x38] sm:$0xff]
    %v4390 = vld [vmem:[#allocation10 + $0x40] sm:$0xff]
    %v4391 = vld [vmem:[#allocation10 + $0x48] sm:$0xff]
    %v4392 = vld [vmem:[#allocation10 + $0x50] sm:$0xff]
    %v4393 = vld [vmem:[#allocation10 + $0x58] sm:$0xff]
    %v4394 = vld [vmem:[#allocation10 + $0x60] sm:$0xff]
    %v4395 = vld [vmem:[#allocation10 + $0x68] sm:$0xff]
    %v4396 = vld [vmem:[#allocation10 + $0x70] sm:$0xff]
    %v4397 = vld [vmem:[#allocation10 + $0x78] sm:$0xff]
    %v4398 = vld [vmem:[#allocation10 + $0x80] sm:$0xff]
    %v4399 = vld [vmem:[#allocation10 + $0x88] sm:$0xff]
    %v4400 = vld [vmem:[#allocation10 + $0x90] sm:$0xff]
    %v4401 = vld [vmem:[#allocation10 + $0x98] sm:$0xff]
    %v4402 = vld [vmem:[#allocation10 + $0xa0] sm:$0xff]
    %v4403 = vld [vmem:[#allocation10 + $0xa8] sm:$0xff]
    %v4404 = vld [vmem:[#allocation10 + $0xb0] sm:$0xff]
    %v4405 = vld [vmem:[#allocation10 + $0xb8] sm:$0xff]
    %v4406 = vld [vmem:[#allocation10 + $0xc0] sm:$0xff]
    %v4407 = vld [vmem:[#allocation10 + $0xc8] sm:$0xff]
    %v4408 = vld [vmem:[#allocation10 + $0xd0] sm:$0xff]
    %v4409 = vld [vmem:[#allocation10 + $0xd8] sm:$0xff]
    %v4410 = vld [vmem:[#allocation10 + $0xe0] sm:$0xff]
    %v4411 = vld [vmem:[#allocation10 + $0xe8] sm:$0xff]
    %v4412 = vld [vmem:[#allocation10 + $0xf0] sm:$0xff]
    %v4413 = vld [vmem:[#allocation10 + $0xf8] sm:$0xff]
    %v4414 = vld [vmem:[#allocation10 + $0x100] sm:$0xff]
    %v4415 = vld [vmem:[#allocation10 + $0x108] sm:$0xff]
    %v4416 = vld [vmem:[#allocation10 + $0x110] sm:$0xff]
    %v4417 = vld [vmem:[#allocation10 + $0x118] sm:$0xff]
    %v4418 = vld [vmem:[#allocation10 + $0x120] sm:$0xff]
    %v4419 = vld [vmem:[#allocation10 + $0x128] sm:$0xff]
    %v4420 = vld [vmem:[#allocation10 + $0x130] sm:$0xff]
    %v4421 = vld [vmem:[#allocation10 + $0x138] sm:$0xff]
    %v4422 = vld [vmem:[#allocation10 + $0x140] sm:$0xff]
    %v4423 = vld [vmem:[#allocation10 + $0x148] sm:$0xff]
    %v4424 = vld [vmem:[#allocation10 + $0x150] sm:$0xff]
    %v4425 = vld [vmem:[#allocation10 + $0x158] sm:$0xff]
    %v4426 = vld [vmem:[#allocation10 + $0x160] sm:$0xff]
    %v4427 = vld [vmem:[#allocation10 + $0x168] sm:$0xff]
    %v4428 = vld [vmem:[#allocation10 + $0x170] sm:$0xff]
    %v4429 = vld [vmem:[#allocation10 + $0x178] sm:$0xff]
    %v4430 = vld [vmem:[#allocation10 + $0x180] sm:$0xff]
    %v4431 = vld [vmem:[#allocation10 + $0x188] sm:$0xff]
    %v4432 = vld [vmem:[#allocation10 + $0x190] sm:$0xff]
    %v4433 = vld [vmem:[#allocation10 + $0x198] sm:$0xff]
    %v4434 = vld [vmem:[#allocation10 + $0x1a0] sm:$0xff]
    %v4435 = vld [vmem:[#allocation10 + $0x1a8] sm:$0xff]
    %v4436 = vld [vmem:[#allocation10 + $0x1b0] sm:$0xff]
    %v4437 = vld [vmem:[#allocation10 + $0x1b8] sm:$0xff]
    %v4438 = vld [vmem:[#allocation10 + $0x1c0] sm:$0xff]
    %v4439 = vld [vmem:[#allocation10 + $0x1c8] sm:$0xff]
    %v4440 = vld [vmem:[#allocation10 + $0x1d0] sm:$0xff]
    %v4441 = vld [vmem:[#allocation10 + $0x1d8] sm:$0xff]
    %v4442 = vld [vmem:[#allocation10 + $0x1e0] sm:$0xff]
    %v4443 = vld [vmem:[#allocation10 + $0x1e8] sm:$0xff]
    %v4444 = vld [vmem:[#allocation10 + $0x1f0] sm:$0xff]
    %v4445 = vld [vmem:[#allocation10 + $0x1f8] sm:$0xff]
    %v4446 = vld [vmem:[#allocation10 + $0x200] sm:$0xff]
    %v4447 = vld [vmem:[#allocation10 + $0x208] sm:$0xff]
    %v4448 = vld [vmem:[#allocation10 + $0x210] sm:$0xff]
    %v4449 = vld [vmem:[#allocation10 + $0x218] sm:$0xff]
    %v4450 = vld [vmem:[#allocation10 + $0x220] sm:$0xff]
    %v4451 = vld [vmem:[#allocation10 + $0x228] sm:$0xff]
    %v4452 = vld [vmem:[#allocation10 + $0x230] sm:$0xff]
    %v4453 = vld [vmem:[#allocation10 + $0x238] sm:$0xff]
    %v4454 = vld [vmem:[#allocation10 + $0x240] sm:$0xff]
    %v4455 = vld [vmem:[#allocation10 + $0x248] sm:$0xff]
    %v4456 = vld [vmem:[#allocation10 + $0x250] sm:$0xff]
    %v4457 = vld [vmem:[#allocation10 + $0x258] sm:$0xff]
    %v4458 = vld [vmem:[#allocation10 + $0x260] sm:$0xff]
    %v4459 = vld [vmem:[#allocation10 + $0x268] sm:$0xff]
    %v4460 = vld [vmem:[#allocation10 + $0x270] sm:$0xff]
    %v4461 = vld [vmem:[#allocation10 + $0x278] sm:$0xff]
    %v4462 = vld [vmem:[#allocation10 + $0x280] sm:$0xff]
    %v4463 = vld [vmem:[#allocation10 + $0x288] sm:$0xff]
    %v4464 = vld [vmem:[#allocation10 + $0x290] sm:$0xff]
    %v4465 = vld [vmem:[#allocation10 + $0x298] sm:$0xff]
    %v4466 = vld [vmem:[#allocation10 + $0x2a0] sm:$0xff]
    %v4467 = vld [vmem:[#allocation10 + $0x2a8] sm:$0xff]
    %v4468 = vld [vmem:[#allocation10 + $0x2b0] sm:$0xff]
    %v4469 = vld [vmem:[#allocation10 + $0x2b8] sm:$0xff]
    %v4470 = vld [vmem:[#allocation10 + $0x2c0] sm:$0xff]
    %v4471 = vld [vmem:[#allocation10 + $0x2c8] sm:$0xff]
    %v4472 = vld [vmem:[#allocation10 + $0x2d0] sm:$0xff]
    %v4473 = vld [vmem:[#allocation10 + $0x2d8] sm:$0xff]
    %v4474 = vld [vmem:[#allocation10 + $0x2e0] sm:$0xff]
    %v4475 = vld [vmem:[#allocation10 + $0x2e8] sm:$0xff]
    %v4476 = vld [vmem:[#allocation10 + $0x2f0] sm:$0xff]
    %v4477 = vld [vmem:[#allocation10 + $0x2f8] sm:$0xff]
    %v4478 = vld [vmem:[#allocation10 + $0x300] sm:$0xff]
    %v4479 = vld [vmem:[#allocation10 + $0x308] sm:$0xff]
    %v4480 = vld [vmem:[#allocation10 + $0x310] sm:$0xff]
    %v4481 = vld [vmem:[#allocation10 + $0x318] sm:$0xff]
    %v4482 = vld [vmem:[#allocation10 + $0x320] sm:$0xff]
    %v4483 = vld [vmem:[#allocation10 + $0x328] sm:$0xff]
    %v4484 = vld [vmem:[#allocation10 + $0x330] sm:$0xff]
    %v4485 = vld [vmem:[#allocation10 + $0x338] sm:$0xff]
    %v4486 = vld [vmem:[#allocation10 + $0x340] sm:$0xff]
    %v4487 = vld [vmem:[#allocation10 + $0x348] sm:$0xff]
    %v4488 = vld [vmem:[#allocation10 + $0x350] sm:$0xff]
    %v4489 = vld [vmem:[#allocation10 + $0x358] sm:$0xff]
    %v4490 = vld [vmem:[#allocation10 + $0x360] sm:$0xff]
    %v4491 = vld [vmem:[#allocation10 + $0x368] sm:$0xff]
    %v4492 = vld [vmem:[#allocation10 + $0x370] sm:$0xff]
    %v4493 = vld [vmem:[#allocation10 + $0x378] sm:$0xff]
    %v4494 = vld [vmem:[#allocation10 + $0x380] sm:$0xff]
    %v4495 = vld [vmem:[#allocation10 + $0x388] sm:$0xff]
    %v4496 = vld [vmem:[#allocation10 + $0x390] sm:$0xff]
    %v4497 = vld [vmem:[#allocation10 + $0x398] sm:$0xff]
    %v4498 = vld [vmem:[#allocation10 + $0x3a0] sm:$0xff]
    %v4499 = vld [vmem:[#allocation10 + $0x3a8] sm:$0xff]
    %v4500 = vld [vmem:[#allocation10 + $0x3b0] sm:$0xff]
    %v4501 = vld [vmem:[#allocation10 + $0x3b8] sm:$0xff]
    %v4502 = vld [vmem:[#allocation10 + $0x3c0] sm:$0xff]
    %v4503 = vld [vmem:[#allocation10 + $0x3c8] sm:$0xff]
    %v4504 = vld [vmem:[#allocation10 + $0x3d0] sm:$0xff]
    %v4505 = vld [vmem:[#allocation10 + $0x3d8] sm:$0xff]
    %v4506 = vld [vmem:[#allocation10 + $0x3e0] sm:$0xff]
    %v4507 = vld [vmem:[#allocation10 + $0x3e8] sm:$0xff]
    %v4508 = vld [vmem:[#allocation10 + $0x3f0] sm:$0xff]
    %v4509 = vld [vmem:[#allocation10 + $0x3f8] sm:$0xff]
    %v4510 = vld [vmem:[%s635] sm:$0xf]
    %v4512 = vperm.slane %v4510, 0
    %v4513 = vperm.slane %v4510, 1
    %v4514 = vperm.slane %v4510, 2
    %v4515 = vperm.slane %v4510, 3
    %4520 = vmatpush.msra.mxu0 %v4442
    %4521 = vmatpush.msra.mxu0 %v4438
    %4522 = vmatpush.msra.mxu0 %v4434
    %4523 = vmatpush.msra.mxu0 %v4430
    %4524 = vmatpush.msra.mxu0 %v4426
    %4525 = vmatpush.msra.mxu0 %v4422
    %4526 = vmatpush.msra.mxu0 %v4418
    %4527 = vmatpush.msra.mxu0 %v4414
    %4528 = vmatpush.msra.mxu0 %v4410
    %4529 = vmatpush.msra.mxu0 %v4406
    %4530 = vmatpush.msra.mxu0 %v4402
    %4531 = vmatpush.msra.mxu0 %v4398
    %4532 = vmatpush.msra.mxu0 %v4394
    %4533 = vmatpush.msra.mxu0 %v4390
    %4534 = vmatpush.msra.mxu0 %v4386
    %4535 = vmatpush.msra.mxu0 %v4382
    %4536 = vmatmul.f32.gmra.mxu0 %v4381
    %v4537 = vpop.f32.mrf.mxu0
    %v4538 = vadd.f32 %v4512, %v4537
    %4539 = vdwg.mxu0
    %4540 = vmatpush.msra.mxu0 %v4506
    %4541 = vmatpush.msra.mxu0 %v4502
    %4542 = vmatpush.msra.mxu0 %v4498
    %4543 = vmatpush.msra.mxu0 %v4494
    %4544 = vmatpush.msra.mxu0 %v4490
    %4545 = vmatpush.msra.mxu0 %v4486
    %4546 = vmatpush.msra.mxu0 %v4482
    %4547 = vmatpush.msra.mxu0 %v4478
    %4548 = vmatpush.msra.mxu0 %v4474
    %4549 = vmatpush.msra.mxu0 %v4470
    %4550 = vmatpush.msra.mxu0 %v4466
    %4551 = vmatpush.msra.mxu0 %v4462
    %4552 = vmatpush.msra.mxu0 %v4458
    %4553 = vmatpush.msra.mxu0 %v4454
    %4554 = vmatpush.msra.mxu0 %v4450
    %4555 = vmatpush.msra.mxu0 %v4446
    %4556 = vmatmul.f32.gmra.mxu0 %v3967
    %v4557 = vpop.f32.mrf.mxu0
    %v4558 = vadd.f32 %v4538, %v4557
    %4559 = vdwg.mxu0
    %4560 = vmatpush.msra.mxu0 %v4443
    %4561 = vmatpush.msra.mxu0 %v4439
    %4562 = vmatpush.msra.mxu0 %v4435
    %4563 = vmatpush.msra.mxu0 %v4431
    %4564 = vmatpush.msra.mxu0 %v4427
    %4565 = vmatpush.msra.mxu0 %v4423
    %4566 = vmatpush.msra.mxu0 %v4419
    %4567 = vmatpush.msra.mxu0 %v4415
    %4568 = vmatpush.msra.mxu0 %v4411
    %4569 = vmatpush.msra.mxu0 %v4407
    %4570 = vmatpush.msra.mxu0 %v4403
    %4571 = vmatpush.msra.mxu0 %v4399
    %4572 = vmatpush.msra.mxu0 %v4395
    %4573 = vmatpush.msra.mxu0 %v4391
    %4574 = vmatpush.msra.mxu0 %v4387
    %4575 = vmatpush.msra.mxu0 %v4383
    %4576 = vmatmul.f32.gmra.mxu0 %v4381
    %v4577 = vpop.f32.mrf.mxu0
    %v4578 = vadd.f32 %v4513, %v4577
    %4579 = vdwg.mxu0
    %4580 = vmatpush.msra.mxu0 %v4507
    %4581 = vmatpush.msra.mxu0 %v4503
    %4582 = vmatpush.msra.mxu0 %v4499
    %4583 = vmatpush.msra.mxu0 %v4495
    %4584 = vmatpush.msra.mxu0 %v4491
    %4585 = vmatpush.msra.mxu0 %v4487
    %4586 = vmatpush.msra.mxu0 %v4483
    %4587 = vmatpush.msra.mxu0 %v4479
    %4588 = vmatpush.msra.mxu0 %v4475
    %4589 = vmatpush.msra.mxu0 %v4471
    %4590 = vmatpush.msra.mxu0 %v4467
    %4591 = vmatpush.msra.mxu0 %v4463
    %4592 = vmatpush.msra.mxu0 %v4459
    %4593 = vmatpush.msra.mxu0 %v4455
    %4594 = vmatpush.msra.mxu0 %v4451
    %4595 = vmatpush.msra.mxu0 %v4447
    %4596 = vmatmul.f32.gmra.mxu0 %v3967
    %v4597 = vpop.f32.mrf.mxu0
    %v4598 = vadd.f32 %v4578, %v4597
    %4599 = vdwg.mxu0
    %4600 = vmatpush.msra.mxu0 %v4444
    %4601 = vmatpush.msra.mxu0 %v4440
    %4602 = vmatpush.msra.mxu0 %v4436
    %4603 = vmatpush.msra.mxu0 %v4432
    %4604 = vmatpush.msra.mxu0 %v4428
    %4605 = vmatpush.msra.mxu0 %v4424
    %4606 = vmatpush.msra.mxu0 %v4420
    %4607 = vmatpush.msra.mxu0 %v4416
    %4608 = vmatpush.msra.mxu0 %v4412
    %4609 = vmatpush.msra.mxu0 %v4408
    %4610 = vmatpush.msra.mxu0 %v4404
    %4611 = vmatpush.msra.mxu0 %v4400
    %4612 = vmatpush.msra.mxu0 %v4396
    %4613 = vmatpush.msra.mxu0 %v4392
    %4614 = vmatpush.msra.mxu0 %v4388
    %4615 = vmatpush.msra.mxu0 %v4384
    %4616 = vmatmul.f32.gmra.mxu0 %v4381
    %v4617 = vpop.f32.mrf.mxu0
    %v4618 = vadd.f32 %v4514, %v4617
    %4619 = vdwg.mxu0
    %4620 = vmatpush.msra.mxu0 %v4508
    %4621 = vmatpush.msra.mxu0 %v4504
    %4622 = vmatpush.msra.mxu0 %v4500
    %4623 = vmatpush.msra.mxu0 %v4496
    %4624 = vmatpush.msra.mxu0 %v4492
    %4625 = vmatpush.msra.mxu0 %v4488
    %4626 = vmatpush.msra.mxu0 %v4484
    %4627 = vmatpush.msra.mxu0 %v4480
    %4628 = vmatpush.msra.mxu0 %v4476
    %4629 = vmatpush.msra.mxu0 %v4472
    %4630 = vmatpush.msra.mxu0 %v4468
    %4631 = vmatpush.msra.mxu0 %v4464
    %4632 = vmatpush.msra.mxu0 %v4460
    %4633 = vmatpush.msra.mxu0 %v4456
    %4634 = vmatpush.msra.mxu0 %v4452
    %4635 = vmatpush.msra.mxu0 %v4448
    %4636 = vmatmul.f32.gmra.mxu0 %v3967
    %v4637 = vpop.f32.mrf.mxu0
    %v4638 = vadd.f32 %v4618, %v4637
    %4639 = vdwg.mxu0
    %4640 = vmatpush.msra.mxu0 %v4445
    %4641 = vmatpush.msra.mxu0 %v4441
    %4642 = vmatpush.msra.mxu0 %v4437
    %4643 = vmatpush.msra.mxu0 %v4433
    %4644 = vmatpush.msra.mxu0 %v4429
    %4645 = vmatpush.msra.mxu0 %v4425
    %4646 = vmatpush.msra.mxu0 %v4421
    %4647 = vmatpush.msra.mxu0 %v4417
    %4648 = vmatpush.msra.mxu0 %v4413
    %4649 = vmatpush.msra.mxu0 %v4409
    %4650 = vmatpush.msra.mxu0 %v4405
    %4651 = vmatpush.msra.mxu0 %v4401
    %4652 = vmatpush.msra.mxu0 %v4397
    %4653 = vmatpush.msra.mxu0 %v4393
    %4654 = vmatpush.msra.mxu0 %v4389
    %4655 = vmatpush.msra.mxu0 %v4385
    %4656 = vmatmul.f32.gmra.mxu0 %v4381
    %v4657 = vpop.f32.mrf.mxu0
    %v4658 = vadd.f32 %v4515, %v4657
    %4659 = vdwg.mxu0
    %4660 = vmatpush.msra.mxu0 %v4509
    %4661 = vmatpush.msra.mxu0 %v4505
    %4662 = vmatpush.msra.mxu0 %v4501
    %4663 = vmatpush.msra.mxu0 %v4497
    %4664 = vmatpush.msra.mxu0 %v4493
    %4665 = vmatpush.msra.mxu0 %v4489
    %4666 = vmatpush.msra.mxu0 %v4485
    %4667 = vmatpush.msra.mxu0 %v4481
    %4668 = vmatpush.msra.mxu0 %v4477
    %4669 = vmatpush.msra.mxu0 %v4473
    %4670 = vmatpush.msra.mxu0 %v4469
    %4671 = vmatpush.msra.mxu0 %v4465
    %4672 = vmatpush.msra.mxu0 %v4461
    %4673 = vmatpush.msra.mxu0 %v4457
    %4674 = vmatpush.msra.mxu0 %v4453
    %4675 = vmatpush.msra.mxu0 %v4449
    %4676 = vmatmul.f32.gmra.mxu0 %v3967
    %v4677 = vpop.f32.mrf.mxu0
    %v4678 = vadd.f32 %v4658, %v4677
    %4679 = vdwg.mxu0
    %v4680 = vxor.u32 %v4558, 2147483648
    %v4681 = vmul.f32 %v4680, 1.442695
    %v4682 = vpow.pop %v4681
    %v4683 = vadd.f32 %v4682, 1.0
    %v4684 = vrcp.pop %v4683
    %v4685 = vmul.f32 %v4683, %v4684
    %v4686 = vsub.f32 1.0, %v4685
    %v4687 = vmul.f32 %v4684, %v4686
    %v4688 = vadd.f32 %v4684, %v4687
    %vm4689 = vweird.f32 %v4683
    %vm4690 = vweird.f32 %v4684
    %vm4691 = vmor %vm4689, %vm4690
    %v4692 = vsel %vm4691, %v4684, %v4688
    %v4693 = vand.u32 2147483647, %v4683
    %vm4694 = vcmp.eq.f32.partialorder %v4693, 8.507059e+37
    %v4695 = vand.u32 %v4683, 2147483648
    %v4696 = vor.u32 1.1754944e-38, %v4695
    %v4697 = vsel %vm4694, %v4696, %v4692
    %v4698 = vmul.f32 1.0, %v4697
    %v4699 = vxor.u32 %v4598, 2147483648
    %v4700 = vmul.f32 %v4699, 1.442695
    %v4701 = vpow.pop %v4700
    %v4702 = vadd.f32 %v4701, 1.0
    %v4703 = vrcp.pop %v4702
    %v4704 = vmul.f32 %v4702, %v4703
    %v4705 = vsub.f32 1.0, %v4704
    %v4706 = vmul.f32 %v4703, %v4705
    %v4707 = vadd.f32 %v4703, %v4706
    %vm4708 = vweird.f32 %v4702
    %vm4709 = vweird.f32 %v4703
    %vm4710 = vmor %vm4708, %vm4709
    %v4711 = vsel %vm4710, %v4703, %v4707
    %v4712 = vand.u32 2147483647, %v4702
    %vm4713 = vcmp.eq.f32.partialorder %v4712, 8.507059e+37
    %v4714 = vand.u32 %v4702, 2147483648
    %v4715 = vor.u32 1.1754944e-38, %v4714
    %v4716 = vsel %vm4713, %v4715, %v4711
    %v4717 = vmul.f32 1.0, %v4716
    %v4718 = vtanh.pop %v4638
    %v4719 = vxor.u32 %v4678, 2147483648
    %v4720 = vmul.f32 %v4719, 1.442695
    %v4721 = vpow.pop %v4720
    %v4722 = vadd.f32 %v4721, 1.0
    %v4723 = vrcp.pop %v4722
    %v4724 = vmul.f32 %v4722, %v4723
    %v4725 = vsub.f32 1.0, %v4724
    %v4726 = vmul.f32 %v4723, %v4725
    %v4727 = vadd.f32 %v4723, %v4726
    %vm4728 = vweird.f32 %v4722
    %vm4729 = vweird.f32 %v4723
    %vm4730 = vmor %vm4728, %vm4729
    %v4731 = vsel %vm4730, %v4723, %v4727
    %v4732 = vand.u32 2147483647, %v4722
    %vm4733 = vcmp.eq.f32.partialorder %v4732, 8.507059e+37
    %v4734 = vand.u32 %v4722, 2147483648
    %v4735 = vor.u32 1.1754944e-38, %v4734
    %v4736 = vsel %vm4733, %v4735, %v4731
    %v4737 = vmul.f32 1.0, %v4736
    %v4738 = vmul.f32 %v4717, %v3965
    %v4739 = vmul.f32 %v4698, %v4718
    %v4740 = vadd.f32 %v4738, %v4739
    %v4741 = vtanh.pop %v4740
    %v4742 = vmul.f32 %v4737, %v4741
    %v4743 = vld [vmem:[#allocation13] sm:$0xff]
    %v4744 = vld [vmem:[#allocation13 + $0x8] sm:$0xff]
    %v4745 = vld [vmem:[#allocation13 + $0x10] sm:$0xff]
    %v4746 = vld [vmem:[#allocation13 + $0x18] sm:$0xff]
    %v4747 = vld [vmem:[#allocation13 + $0x20] sm:$0xff]
    %v4748 = vld [vmem:[#allocation13 + $0x28] sm:$0xff]
    %v4749 = vld [vmem:[#allocation13 + $0x30] sm:$0xff]
    %v4750 = vld [vmem:[#allocation13 + $0x38] sm:$0xff]
    %v4751 = vld [vmem:[#allocation13 + $0x40] sm:$0xff]
    %v4752 = vld [vmem:[#allocation13 + $0x48] sm:$0xff]
    %v4753 = vld [vmem:[#allocation13 + $0x50] sm:$0xff]
    %v4754 = vld [vmem:[#allocation13 + $0x58] sm:$0xff]
    %v4755 = vld [vmem:[#allocation13 + $0x60] sm:$0xff]
    %v4756 = vld [vmem:[#allocation13 + $0x68] sm:$0xff]
    %v4757 = vld [vmem:[#allocation13 + $0x70] sm:$0xff]
    %v4758 = vld [vmem:[#allocation13 + $0x78] sm:$0xff]
    %v4759 = vld [vmem:[%s7] sm:$0x1]
    %v4761 = vperm.slane %v4759, 0
    %4763 = vmatpush.msra.mxu0 %v4758
    %4764 = vmatpush.msra.mxu0 %v4757
    %4765 = vmatpush.msra.mxu0 %v4756
    %4766 = vmatpush.msra.mxu0 %v4755
    %4767 = vmatpush.msra.mxu0 %v4754
    %4768 = vmatpush.msra.mxu0 %v4753
    %4769 = vmatpush.msra.mxu0 %v4752
    %4770 = vmatpush.msra.mxu0 %v4751
    %4771 = vmatpush.msra.mxu0 %v4750
    %4772 = vmatpush.msra.mxu0 %v4749
    %4773 = vmatpush.msra.mxu0 %v4748
    %4774 = vmatpush.msra.mxu0 %v4747
    %4775 = vmatpush.msra.mxu0 %v4746
    %4776 = vmatpush.msra.mxu0 %v4745
    %4777 = vmatpush.msra.mxu0 %v4744
    %4778 = vmatpush.msra.mxu0 %v4743
    %4779 = vmatmul.f32.gmra.mxu0 %v4742
    %v4780 = vpop.f32.mrf.mxu0
    %v4781 = vadd.f32 %v4761, %v4780
    %4782 = vdwg.mxu0
    %4783 = vmax.xlane.f32.xlu0 %v4781
    %v4784 = vpop.xlane.xlu0 %4783
    %v4785 = vsub.f32 %v4781, %v4784
    %v4786 = vmul.f32 %v4785, 1.442695
    %v4787 = vpow.pop %v4786
    %4788 = vadd.xlane.f32.xlu0 %v4787
    %v4789 = vpop.xlane.xlu0 %4788
    %v4790 = vrcp.pop %v4789
    %v4791 = vmul.f32 %v4787, %v4790
    %s4792 = scalar_lea.vmem [#allocation14], 40
    %4793 = vst [vmem:[%s4792] sm:$0xff] %v4791
    %s4794 = scalar_lea.vmem [#allocation2], 48
    %v4795 = vld [vmem:[%s4794] sm:$0xff]
    %v4796 = vld [vmem:[#allocation8] sm:$0xff]
    %v4797 = vld [vmem:[#allocation8 + $0x8] sm:$0xff]
    %v4798 = vld [vmem:[#allocation8 + $0x10] sm:$0xff]
    %v4799 = vld [vmem:[#allocation8 + $0x18] sm:$0xff]
    %v4800 = vld [vmem:[#allocation8 + $0x20] sm:$0xff]
    %v4801 = vld [vmem:[#allocation8 + $0x28] sm:$0xff]
    %v4802 = vld [vmem:[#allocation8 + $0x30] sm:$0xff]
    %v4803 = vld [vmem:[#allocation8 + $0x38] sm:$0xff]
    %v4804 = vld [vmem:[#allocation8 + $0x40] sm:$0xff]
    %v4805 = vld [vmem:[#allocation8 + $0x48] sm:$0xff]
    %v4806 = vld [vmem:[#allocation8 + $0x50] sm:$0xff]
    %v4807 = vld [vmem:[#allocation8 + $0x58] sm:$0xff]
    %v4808 = vld [vmem:[#allocation8 + $0x60] sm:$0xff]
    %v4809 = vld [vmem:[#allocation8 + $0x68] sm:$0xff]
    %v4810 = vld [vmem:[#allocation8 + $0x70] sm:$0xff]
    %v4811 = vld [vmem:[#allocation8 + $0x78] sm:$0xff]
    %v4812 = vld [vmem:[#allocation8 + $0x80] sm:$0xff]
    %v4813 = vld [vmem:[#allocation8 + $0x88] sm:$0xff]
    %v4814 = vld [vmem:[#allocation8 + $0x90] sm:$0xff]
    %v4815 = vld [vmem:[#allocation8 + $0x98] sm:$0xff]
    %v4816 = vld [vmem:[#allocation8 + $0xa0] sm:$0xff]
    %v4817 = vld [vmem:[#allocation8 + $0xa8] sm:$0xff]
    %v4818 = vld [vmem:[#allocation8 + $0xb0] sm:$0xff]
    %v4819 = vld [vmem:[#allocation8 + $0xb8] sm:$0xff]
    %v4820 = vld [vmem:[#allocation8 + $0xc0] sm:$0xff]
    %v4821 = vld [vmem:[#allocation8 + $0xc8] sm:$0xff]
    %v4822 = vld [vmem:[#allocation8 + $0xd0] sm:$0xff]
    %v4823 = vld [vmem:[#allocation8 + $0xd8] sm:$0xff]
    %v4824 = vld [vmem:[#allocation8 + $0xe0] sm:$0xff]
    %v4825 = vld [vmem:[#allocation8 + $0xe8] sm:$0xff]
    %v4826 = vld [vmem:[#allocation8 + $0xf0] sm:$0xff]
    %v4827 = vld [vmem:[#allocation8 + $0xf8] sm:$0xff]
    %v4828 = vld [vmem:[#allocation8 + $0x100] sm:$0xff]
    %v4829 = vld [vmem:[#allocation8 + $0x108] sm:$0xff]
    %v4830 = vld [vmem:[#allocation8 + $0x110] sm:$0xff]
    %v4831 = vld [vmem:[#allocation8 + $0x118] sm:$0xff]
    %v4832 = vld [vmem:[#allocation8 + $0x120] sm:$0xff]
    %v4833 = vld [vmem:[#allocation8 + $0x128] sm:$0xff]
    %v4834 = vld [vmem:[#allocation8 + $0x130] sm:$0xff]
    %v4835 = vld [vmem:[#allocation8 + $0x138] sm:$0xff]
    %v4836 = vld [vmem:[#allocation8 + $0x140] sm:$0xff]
    %v4837 = vld [vmem:[#allocation8 + $0x148] sm:$0xff]
    %v4838 = vld [vmem:[#allocation8 + $0x150] sm:$0xff]
    %v4839 = vld [vmem:[#allocation8 + $0x158] sm:$0xff]
    %v4840 = vld [vmem:[#allocation8 + $0x160] sm:$0xff]
    %v4841 = vld [vmem:[#allocation8 + $0x168] sm:$0xff]
    %v4842 = vld [vmem:[#allocation8 + $0x170] sm:$0xff]
    %v4843 = vld [vmem:[#allocation8 + $0x178] sm:$0xff]
    %v4844 = vld [vmem:[#allocation8 + $0x180] sm:$0xff]
    %v4845 = vld [vmem:[#allocation8 + $0x188] sm:$0xff]
    %v4846 = vld [vmem:[#allocation8 + $0x190] sm:$0xff]
    %v4847 = vld [vmem:[#allocation8 + $0x198] sm:$0xff]
    %v4848 = vld [vmem:[#allocation8 + $0x1a0] sm:$0xff]
    %v4849 = vld [vmem:[#allocation8 + $0x1a8] sm:$0xff]
    %v4850 = vld [vmem:[#allocation8 + $0x1b0] sm:$0xff]
    %v4851 = vld [vmem:[#allocation8 + $0x1b8] sm:$0xff]
    %v4852 = vld [vmem:[#allocation8 + $0x1c0] sm:$0xff]
    %v4853 = vld [vmem:[#allocation8 + $0x1c8] sm:$0xff]
    %v4854 = vld [vmem:[#allocation8 + $0x1d0] sm:$0xff]
    %v4855 = vld [vmem:[#allocation8 + $0x1d8] sm:$0xff]
    %v4856 = vld [vmem:[#allocation8 + $0x1e0] sm:$0xff]
    %v4857 = vld [vmem:[#allocation8 + $0x1e8] sm:$0xff]
    %v4858 = vld [vmem:[#allocation8 + $0x1f0] sm:$0xff]
    %v4859 = vld [vmem:[#allocation8 + $0x1f8] sm:$0xff]
    %v4860 = vld [vmem:[#allocation8 + $0x200] sm:$0xff]
    %v4861 = vld [vmem:[#allocation8 + $0x208] sm:$0xff]
    %v4862 = vld [vmem:[#allocation8 + $0x210] sm:$0xff]
    %v4863 = vld [vmem:[#allocation8 + $0x218] sm:$0xff]
    %v4864 = vld [vmem:[#allocation8 + $0x220] sm:$0xff]
    %v4865 = vld [vmem:[#allocation8 + $0x228] sm:$0xff]
    %v4866 = vld [vmem:[#allocation8 + $0x230] sm:$0xff]
    %v4867 = vld [vmem:[#allocation8 + $0x238] sm:$0xff]
    %v4868 = vld [vmem:[#allocation8 + $0x240] sm:$0xff]
    %v4869 = vld [vmem:[#allocation8 + $0x248] sm:$0xff]
    %v4870 = vld [vmem:[#allocation8 + $0x250] sm:$0xff]
    %v4871 = vld [vmem:[#allocation8 + $0x258] sm:$0xff]
    %v4872 = vld [vmem:[#allocation8 + $0x260] sm:$0xff]
    %v4873 = vld [vmem:[#allocation8 + $0x268] sm:$0xff]
    %v4874 = vld [vmem:[#allocation8 + $0x270] sm:$0xff]
    %v4875 = vld [vmem:[#allocation8 + $0x278] sm:$0xff]
    %v4876 = vld [vmem:[#allocation8 + $0x280] sm:$0xff]
    %v4877 = vld [vmem:[#allocation8 + $0x288] sm:$0xff]
    %v4878 = vld [vmem:[#allocation8 + $0x290] sm:$0xff]
    %v4879 = vld [vmem:[#allocation8 + $0x298] sm:$0xff]
    %v4880 = vld [vmem:[#allocation8 + $0x2a0] sm:$0xff]
    %v4881 = vld [vmem:[#allocation8 + $0x2a8] sm:$0xff]
    %v4882 = vld [vmem:[#allocation8 + $0x2b0] sm:$0xff]
    %v4883 = vld [vmem:[#allocation8 + $0x2b8] sm:$0xff]
    %v4884 = vld [vmem:[#allocation8 + $0x2c0] sm:$0xff]
    %v4885 = vld [vmem:[#allocation8 + $0x2c8] sm:$0xff]
    %v4886 = vld [vmem:[#allocation8 + $0x2d0] sm:$0xff]
    %v4887 = vld [vmem:[#allocation8 + $0x2d8] sm:$0xff]
    %v4888 = vld [vmem:[#allocation8 + $0x2e0] sm:$0xff]
    %v4889 = vld [vmem:[#allocation8 + $0x2e8] sm:$0xff]
    %v4890 = vld [vmem:[#allocation8 + $0x2f0] sm:$0xff]
    %v4891 = vld [vmem:[#allocation8 + $0x2f8] sm:$0xff]
    %v4892 = vld [vmem:[#allocation8 + $0x300] sm:$0xff]
    %v4893 = vld [vmem:[#allocation8 + $0x308] sm:$0xff]
    %v4894 = vld [vmem:[#allocation8 + $0x310] sm:$0xff]
    %v4895 = vld [vmem:[#allocation8 + $0x318] sm:$0xff]
    %v4896 = vld [vmem:[#allocation8 + $0x320] sm:$0xff]
    %v4897 = vld [vmem:[#allocation8 + $0x328] sm:$0xff]
    %v4898 = vld [vmem:[#allocation8 + $0x330] sm:$0xff]
    %v4899 = vld [vmem:[#allocation8 + $0x338] sm:$0xff]
    %v4900 = vld [vmem:[#allocation8 + $0x340] sm:$0xff]
    %v4901 = vld [vmem:[#allocation8 + $0x348] sm:$0xff]
    %v4902 = vld [vmem:[#allocation8 + $0x350] sm:$0xff]
    %v4903 = vld [vmem:[#allocation8 + $0x358] sm:$0xff]
    %v4904 = vld [vmem:[#allocation8 + $0x360] sm:$0xff]
    %v4905 = vld [vmem:[#allocation8 + $0x368] sm:$0xff]
    %v4906 = vld [vmem:[#allocation8 + $0x370] sm:$0xff]
    %v4907 = vld [vmem:[#allocation8 + $0x378] sm:$0xff]
    %v4908 = vld [vmem:[#allocation8 + $0x380] sm:$0xff]
    %v4909 = vld [vmem:[#allocation8 + $0x388] sm:$0xff]
    %v4910 = vld [vmem:[#allocation8 + $0x390] sm:$0xff]
    %v4911 = vld [vmem:[#allocation8 + $0x398] sm:$0xff]
    %v4912 = vld [vmem:[#allocation8 + $0x3a0] sm:$0xff]
    %v4913 = vld [vmem:[#allocation8 + $0x3a8] sm:$0xff]
    %v4914 = vld [vmem:[#allocation8 + $0x3b0] sm:$0xff]
    %v4915 = vld [vmem:[#allocation8 + $0x3b8] sm:$0xff]
    %v4916 = vld [vmem:[#allocation8 + $0x3c0] sm:$0xff]
    %v4917 = vld [vmem:[#allocation8 + $0x3c8] sm:$0xff]
    %v4918 = vld [vmem:[#allocation8 + $0x3d0] sm:$0xff]
    %v4919 = vld [vmem:[#allocation8 + $0x3d8] sm:$0xff]
    %v4920 = vld [vmem:[#allocation8 + $0x3e0] sm:$0xff]
    %v4921 = vld [vmem:[#allocation8 + $0x3e8] sm:$0xff]
    %v4922 = vld [vmem:[#allocation8 + $0x3f0] sm:$0xff]
    %v4923 = vld [vmem:[#allocation8 + $0x3f8] sm:$0xff]
    %v4924 = vld [vmem:[#allocation11] sm:$0xf]
    %v4926 = vperm.slane %v4924, 0
    %v4927 = vperm.slane %v4924, 1
    %v4928 = vperm.slane %v4924, 2
    %v4929 = vperm.slane %v4924, 3
    %4934 = vmatpush.msra.mxu0 %v4856
    %4935 = vmatpush.msra.mxu0 %v4852
    %4936 = vmatpush.msra.mxu0 %v4848
    %4937 = vmatpush.msra.mxu0 %v4844
    %4938 = vmatpush.msra.mxu0 %v4840
    %4939 = vmatpush.msra.mxu0 %v4836
    %4940 = vmatpush.msra.mxu0 %v4832
    %4941 = vmatpush.msra.mxu0 %v4828
    %4942 = vmatpush.msra.mxu0 %v4824
    %4943 = vmatpush.msra.mxu0 %v4820
    %4944 = vmatpush.msra.mxu0 %v4816
    %4945 = vmatpush.msra.mxu0 %v4812
    %4946 = vmatpush.msra.mxu0 %v4808
    %4947 = vmatpush.msra.mxu0 %v4804
    %4948 = vmatpush.msra.mxu0 %v4800
    %4949 = vmatpush.msra.mxu0 %v4796
    %4950 = vmatmul.f32.gmra.mxu0 %v4795
    %v4951 = vpop.f32.mrf.mxu0
    %v4952 = vadd.f32 %v4926, %v4951
    %4953 = vdwg.mxu0
    %4954 = vmatpush.msra.mxu0 %v4920
    %4955 = vmatpush.msra.mxu0 %v4916
    %4956 = vmatpush.msra.mxu0 %v4912
    %4957 = vmatpush.msra.mxu0 %v4908
    %4958 = vmatpush.msra.mxu0 %v4904
    %4959 = vmatpush.msra.mxu0 %v4900
    %4960 = vmatpush.msra.mxu0 %v4896
    %4961 = vmatpush.msra.mxu0 %v4892
    %4962 = vmatpush.msra.mxu0 %v4888
    %4963 = vmatpush.msra.mxu0 %v4884
    %4964 = vmatpush.msra.mxu0 %v4880
    %4965 = vmatpush.msra.mxu0 %v4876
    %4966 = vmatpush.msra.mxu0 %v4872
    %4967 = vmatpush.msra.mxu0 %v4868
    %4968 = vmatpush.msra.mxu0 %v4864
    %4969 = vmatpush.msra.mxu0 %v4860
    %4970 = vmatmul.f32.gmra.mxu0 %v4381
    %v4971 = vpop.f32.mrf.mxu0
    %v4972 = vadd.f32 %v4952, %v4971
    %4973 = vdwg.mxu0
    %4974 = vmatpush.msra.mxu0 %v4857
    %4975 = vmatpush.msra.mxu0 %v4853
    %4976 = vmatpush.msra.mxu0 %v4849
    %4977 = vmatpush.msra.mxu0 %v4845
    %4978 = vmatpush.msra.mxu0 %v4841
    %4979 = vmatpush.msra.mxu0 %v4837
    %4980 = vmatpush.msra.mxu0 %v4833
    %4981 = vmatpush.msra.mxu0 %v4829
    %4982 = vmatpush.msra.mxu0 %v4825
    %4983 = vmatpush.msra.mxu0 %v4821
    %4984 = vmatpush.msra.mxu0 %v4817
    %4985 = vmatpush.msra.mxu0 %v4813
    %4986 = vmatpush.msra.mxu0 %v4809
    %4987 = vmatpush.msra.mxu0 %v4805
    %4988 = vmatpush.msra.mxu0 %v4801
    %4989 = vmatpush.msra.mxu0 %v4797
    %4990 = vmatmul.f32.gmra.mxu0 %v4795
    %v4991 = vpop.f32.mrf.mxu0
    %v4992 = vadd.f32 %v4927, %v4991
    %4993 = vdwg.mxu0
    %4994 = vmatpush.msra.mxu0 %v4921
    %4995 = vmatpush.msra.mxu0 %v4917
    %4996 = vmatpush.msra.mxu0 %v4913
    %4997 = vmatpush.msra.mxu0 %v4909
    %4998 = vmatpush.msra.mxu0 %v4905
    %4999 = vmatpush.msra.mxu0 %v4901
    %5000 = vmatpush.msra.mxu0 %v4897
    %5001 = vmatpush.msra.mxu0 %v4893
    %5002 = vmatpush.msra.mxu0 %v4889
    %5003 = vmatpush.msra.mxu0 %v4885
    %5004 = vmatpush.msra.mxu0 %v4881
    %5005 = vmatpush.msra.mxu0 %v4877
    %5006 = vmatpush.msra.mxu0 %v4873
    %5007 = vmatpush.msra.mxu0 %v4869
    %5008 = vmatpush.msra.mxu0 %v4865
    %5009 = vmatpush.msra.mxu0 %v4861
    %5010 = vmatmul.f32.gmra.mxu0 %v4381
    %v5011 = vpop.f32.mrf.mxu0
    %v5012 = vadd.f32 %v4992, %v5011
    %5013 = vdwg.mxu0
    %5014 = vmatpush.msra.mxu0 %v4858
    %5015 = vmatpush.msra.mxu0 %v4854
    %5016 = vmatpush.msra.mxu0 %v4850
    %5017 = vmatpush.msra.mxu0 %v4846
    %5018 = vmatpush.msra.mxu0 %v4842
    %5019 = vmatpush.msra.mxu0 %v4838
    %5020 = vmatpush.msra.mxu0 %v4834
    %5021 = vmatpush.msra.mxu0 %v4830
    %5022 = vmatpush.msra.mxu0 %v4826
    %5023 = vmatpush.msra.mxu0 %v4822
    %5024 = vmatpush.msra.mxu0 %v4818
    %5025 = vmatpush.msra.mxu0 %v4814
    %5026 = vmatpush.msra.mxu0 %v4810
    %5027 = vmatpush.msra.mxu0 %v4806
    %5028 = vmatpush.msra.mxu0 %v4802
    %5029 = vmatpush.msra.mxu0 %v4798
    %5030 = vmatmul.f32.gmra.mxu0 %v4795
    %v5031 = vpop.f32.mrf.mxu0
    %v5032 = vadd.f32 %v4928, %v5031
    %5033 = vdwg.mxu0
    %5034 = vmatpush.msra.mxu0 %v4922
    %5035 = vmatpush.msra.mxu0 %v4918
    %5036 = vmatpush.msra.mxu0 %v4914
    %5037 = vmatpush.msra.mxu0 %v4910
    %5038 = vmatpush.msra.mxu0 %v4906
    %5039 = vmatpush.msra.mxu0 %v4902
    %5040 = vmatpush.msra.mxu0 %v4898
    %5041 = vmatpush.msra.mxu0 %v4894
    %5042 = vmatpush.msra.mxu0 %v4890
    %5043 = vmatpush.msra.mxu0 %v4886
    %5044 = vmatpush.msra.mxu0 %v4882
    %5045 = vmatpush.msra.mxu0 %v4878
    %5046 = vmatpush.msra.mxu0 %v4874
    %5047 = vmatpush.msra.mxu0 %v4870
    %5048 = vmatpush.msra.mxu0 %v4866
    %5049 = vmatpush.msra.mxu0 %v4862
    %5050 = vmatmul.f32.gmra.mxu0 %v4381
    %v5051 = vpop.f32.mrf.mxu0
    %v5052 = vadd.f32 %v5032, %v5051
    %5053 = vdwg.mxu0
    %5054 = vmatpush.msra.mxu0 %v4859
    %5055 = vmatpush.msra.mxu0 %v4855
    %5056 = vmatpush.msra.mxu0 %v4851
    %5057 = vmatpush.msra.mxu0 %v4847
    %5058 = vmatpush.msra.mxu0 %v4843
    %5059 = vmatpush.msra.mxu0 %v4839
    %5060 = vmatpush.msra.mxu0 %v4835
    %5061 = vmatpush.msra.mxu0 %v4831
    %5062 = vmatpush.msra.mxu0 %v4827
    %5063 = vmatpush.msra.mxu0 %v4823
    %5064 = vmatpush.msra.mxu0 %v4819
    %5065 = vmatpush.msra.mxu0 %v4815
    %5066 = vmatpush.msra.mxu0 %v4811
    %5067 = vmatpush.msra.mxu0 %v4807
    %5068 = vmatpush.msra.mxu0 %v4803
    %5069 = vmatpush.msra.mxu0 %v4799
    %5070 = vmatmul.f32.gmra.mxu0 %v4795
    %v5071 = vpop.f32.mrf.mxu0
    %v5072 = vadd.f32 %v4929, %v5071
    %5073 = vdwg.mxu0
    %5074 = vmatpush.msra.mxu0 %v4923
    %5075 = vmatpush.msra.mxu0 %v4919
    %5076 = vmatpush.msra.mxu0 %v4915
    %5077 = vmatpush.msra.mxu0 %v4911
    %5078 = vmatpush.msra.mxu0 %v4907
    %5079 = vmatpush.msra.mxu0 %v4903
    %5080 = vmatpush.msra.mxu0 %v4899
    %5081 = vmatpush.msra.mxu0 %v4895
    %5082 = vmatpush.msra.mxu0 %v4891
    %5083 = vmatpush.msra.mxu0 %v4887
    %5084 = vmatpush.msra.mxu0 %v4883
    %5085 = vmatpush.msra.mxu0 %v4879
    %5086 = vmatpush.msra.mxu0 %v4875
    %5087 = vmatpush.msra.mxu0 %v4871
    %5088 = vmatpush.msra.mxu0 %v4867
    %5089 = vmatpush.msra.mxu0 %v4863
    %5090 = vmatmul.f32.gmra.mxu0 %v4381
    %v5091 = vpop.f32.mrf.mxu0
    %v5092 = vadd.f32 %v5072, %v5091
    %5093 = vdwg.mxu0
    %v5094 = vxor.u32 %v4972, 2147483648
    %v5095 = vmul.f32 %v5094, 1.442695
    %v5096 = vpow.pop %v5095
    %v5097 = vadd.f32 %v5096, 1.0
    %v5098 = vrcp.pop %v5097
    %v5099 = vmul.f32 %v5097, %v5098
    %v5100 = vsub.f32 1.0, %v5099
    %v5101 = vmul.f32 %v5098, %v5100
    %v5102 = vadd.f32 %v5098, %v5101
    %vm5103 = vweird.f32 %v5097
    %vm5104 = vweird.f32 %v5098
    %vm5105 = vmor %vm5103, %vm5104
    %v5106 = vsel %vm5105, %v5098, %v5102
    %v5107 = vand.u32 2147483647, %v5097
    %vm5108 = vcmp.eq.f32.partialorder %v5107, 8.507059e+37
    %v5109 = vand.u32 %v5097, 2147483648
    %v5110 = vor.u32 1.1754944e-38, %v5109
    %v5111 = vsel %vm5108, %v5110, %v5106
    %v5112 = vmul.f32 1.0, %v5111
    %v5113 = vxor.u32 %v5012, 2147483648
    %v5114 = vmul.f32 %v5113, 1.442695
    %v5115 = vpow.pop %v5114
    %v5116 = vadd.f32 %v5115, 1.0
    %v5117 = vrcp.pop %v5116
    %v5118 = vmul.f32 %v5116, %v5117
    %v5119 = vsub.f32 1.0, %v5118
    %v5120 = vmul.f32 %v5117, %v5119
    %v5121 = vadd.f32 %v5117, %v5120
    %vm5122 = vweird.f32 %v5116
    %vm5123 = vweird.f32 %v5117
    %vm5124 = vmor %vm5122, %vm5123
    %v5125 = vsel %vm5124, %v5117, %v5121
    %v5126 = vand.u32 2147483647, %v5116
    %vm5127 = vcmp.eq.f32.partialorder %v5126, 8.507059e+37
    %v5128 = vand.u32 %v5116, 2147483648
    %v5129 = vor.u32 1.1754944e-38, %v5128
    %v5130 = vsel %vm5127, %v5129, %v5125
    %v5131 = vmul.f32 1.0, %v5130
    %v5132 = vtanh.pop %v5052
    %v5133 = vxor.u32 %v5092, 2147483648
    %v5134 = vmul.f32 %v5133, 1.442695
    %v5135 = vpow.pop %v5134
    %v5136 = vadd.f32 %v5135, 1.0
    %v5137 = vrcp.pop %v5136
    %v5138 = vmul.f32 %v5136, %v5137
    %v5139 = vsub.f32 1.0, %v5138
    %v5140 = vmul.f32 %v5137, %v5139
    %v5141 = vadd.f32 %v5137, %v5140
    %vm5142 = vweird.f32 %v5136
    %vm5143 = vweird.f32 %v5137
    %vm5144 = vmor %vm5142, %vm5143
    %v5145 = vsel %vm5144, %v5137, %v5141
    %v5146 = vand.u32 2147483647, %v5136
    %vm5147 = vcmp.eq.f32.partialorder %v5146, 8.507059e+37
    %v5148 = vand.u32 %v5136, 2147483648
    %v5149 = vor.u32 1.1754944e-38, %v5148
    %v5150 = vsel %vm5147, %v5149, %v5145
    %v5151 = vmul.f32 1.0, %v5150
    %v5152 = vmul.f32 %v5131, %v4379
    %v5153 = vmul.f32 %v5112, %v5132
    %v5154 = vadd.f32 %v5152, %v5153
    %v5155 = vtanh.pop %v5154
    %v5156 = vmul.f32 %v5151, %v5155
    %v5157 = vld [vmem:[#allocation10] sm:$0xff]
    %v5158 = vld [vmem:[#allocation10 + $0x8] sm:$0xff]
    %v5159 = vld [vmem:[#allocation10 + $0x10] sm:$0xff]
    %v5160 = vld [vmem:[#allocation10 + $0x18] sm:$0xff]
    %v5161 = vld [vmem:[#allocation10 + $0x20] sm:$0xff]
    %v5162 = vld [vmem:[#allocation10 + $0x28] sm:$0xff]
    %v5163 = vld [vmem:[#allocation10 + $0x30] sm:$0xff]
    %v5164 = vld [vmem:[#allocation10 + $0x38] sm:$0xff]
    %v5165 = vld [vmem:[#allocation10 + $0x40] sm:$0xff]
    %v5166 = vld [vmem:[#allocation10 + $0x48] sm:$0xff]
    %v5167 = vld [vmem:[#allocation10 + $0x50] sm:$0xff]
    %v5168 = vld [vmem:[#allocation10 + $0x58] sm:$0xff]
    %v5169 = vld [vmem:[#allocation10 + $0x60] sm:$0xff]
    %v5170 = vld [vmem:[#allocation10 + $0x68] sm:$0xff]
    %v5171 = vld [vmem:[#allocation10 + $0x70] sm:$0xff]
    %v5172 = vld [vmem:[#allocation10 + $0x78] sm:$0xff]
    %v5173 = vld [vmem:[#allocation10 + $0x80] sm:$0xff]
    %v5174 = vld [vmem:[#allocation10 + $0x88] sm:$0xff]
    %v5175 = vld [vmem:[#allocation10 + $0x90] sm:$0xff]
    %v5176 = vld [vmem:[#allocation10 + $0x98] sm:$0xff]
    %v5177 = vld [vmem:[#allocation10 + $0xa0] sm:$0xff]
    %v5178 = vld [vmem:[#allocation10 + $0xa8] sm:$0xff]
    %v5179 = vld [vmem:[#allocation10 + $0xb0] sm:$0xff]
    %v5180 = vld [vmem:[#allocation10 + $0xb8] sm:$0xff]
    %v5181 = vld [vmem:[#allocation10 + $0xc0] sm:$0xff]
    %v5182 = vld [vmem:[#allocation10 + $0xc8] sm:$0xff]
    %v5183 = vld [vmem:[#allocation10 + $0xd0] sm:$0xff]
    %v5184 = vld [vmem:[#allocation10 + $0xd8] sm:$0xff]
    %v5185 = vld [vmem:[#allocation10 + $0xe0] sm:$0xff]
    %v5186 = vld [vmem:[#allocation10 + $0xe8] sm:$0xff]
    %v5187 = vld [vmem:[#allocation10 + $0xf0] sm:$0xff]
    %v5188 = vld [vmem:[#allocation10 + $0xf8] sm:$0xff]
    %v5189 = vld [vmem:[#allocation10 + $0x100] sm:$0xff]
    %v5190 = vld [vmem:[#allocation10 + $0x108] sm:$0xff]
    %v5191 = vld [vmem:[#allocation10 + $0x110] sm:$0xff]
    %v5192 = vld [vmem:[#allocation10 + $0x118] sm:$0xff]
    %v5193 = vld [vmem:[#allocation10 + $0x120] sm:$0xff]
    %v5194 = vld [vmem:[#allocation10 + $0x128] sm:$0xff]
    %v5195 = vld [vmem:[#allocation10 + $0x130] sm:$0xff]
    %v5196 = vld [vmem:[#allocation10 + $0x138] sm:$0xff]
    %v5197 = vld [vmem:[#allocation10 + $0x140] sm:$0xff]
    %v5198 = vld [vmem:[#allocation10 + $0x148] sm:$0xff]
    %v5199 = vld [vmem:[#allocation10 + $0x150] sm:$0xff]
    %v5200 = vld [vmem:[#allocation10 + $0x158] sm:$0xff]
    %v5201 = vld [vmem:[#allocation10 + $0x160] sm:$0xff]
    %v5202 = vld [vmem:[#allocation10 + $0x168] sm:$0xff]
    %v5203 = vld [vmem:[#allocation10 + $0x170] sm:$0xff]
    %v5204 = vld [vmem:[#allocation10 + $0x178] sm:$0xff]
    %v5205 = vld [vmem:[#allocation10 + $0x180] sm:$0xff]
    %v5206 = vld [vmem:[#allocation10 + $0x188] sm:$0xff]
    %v5207 = vld [vmem:[#allocation10 + $0x190] sm:$0xff]
    %v5208 = vld [vmem:[#allocation10 + $0x198] sm:$0xff]
    %v5209 = vld [vmem:[#allocation10 + $0x1a0] sm:$0xff]
    %v5210 = vld [vmem:[#allocation10 + $0x1a8] sm:$0xff]
    %v5211 = vld [vmem:[#allocation10 + $0x1b0] sm:$0xff]
    %v5212 = vld [vmem:[#allocation10 + $0x1b8] sm:$0xff]
    %v5213 = vld [vmem:[#allocation10 + $0x1c0] sm:$0xff]
    %v5214 = vld [vmem:[#allocation10 + $0x1c8] sm:$0xff]
    %v5215 = vld [vmem:[#allocation10 + $0x1d0] sm:$0xff]
    %v5216 = vld [vmem:[#allocation10 + $0x1d8] sm:$0xff]
    %v5217 = vld [vmem:[#allocation10 + $0x1e0] sm:$0xff]
    %v5218 = vld [vmem:[#allocation10 + $0x1e8] sm:$0xff]
    %v5219 = vld [vmem:[#allocation10 + $0x1f0] sm:$0xff]
    %v5220 = vld [vmem:[#allocation10 + $0x1f8] sm:$0xff]
    %v5221 = vld [vmem:[#allocation10 + $0x200] sm:$0xff]
    %v5222 = vld [vmem:[#allocation10 + $0x208] sm:$0xff]
    %v5223 = vld [vmem:[#allocation10 + $0x210] sm:$0xff]
    %v5224 = vld [vmem:[#allocation10 + $0x218] sm:$0xff]
    %v5225 = vld [vmem:[#allocation10 + $0x220] sm:$0xff]
    %v5226 = vld [vmem:[#allocation10 + $0x228] sm:$0xff]
    %v5227 = vld [vmem:[#allocation10 + $0x230] sm:$0xff]
    %v5228 = vld [vmem:[#allocation10 + $0x238] sm:$0xff]
    %v5229 = vld [vmem:[#allocation10 + $0x240] sm:$0xff]
    %v5230 = vld [vmem:[#allocation10 + $0x248] sm:$0xff]
    %v5231 = vld [vmem:[#allocation10 + $0x250] sm:$0xff]
    %v5232 = vld [vmem:[#allocation10 + $0x258] sm:$0xff]
    %v5233 = vld [vmem:[#allocation10 + $0x260] sm:$0xff]
    %v5234 = vld [vmem:[#allocation10 + $0x268] sm:$0xff]
    %v5235 = vld [vmem:[#allocation10 + $0x270] sm:$0xff]
    %v5236 = vld [vmem:[#allocation10 + $0x278] sm:$0xff]
    %v5237 = vld [vmem:[#allocation10 + $0x280] sm:$0xff]
    %v5238 = vld [vmem:[#allocation10 + $0x288] sm:$0xff]
    %v5239 = vld [vmem:[#allocation10 + $0x290] sm:$0xff]
    %v5240 = vld [vmem:[#allocation10 + $0x298] sm:$0xff]
    %v5241 = vld [vmem:[#allocation10 + $0x2a0] sm:$0xff]
    %v5242 = vld [vmem:[#allocation10 + $0x2a8] sm:$0xff]
    %v5243 = vld [vmem:[#allocation10 + $0x2b0] sm:$0xff]
    %v5244 = vld [vmem:[#allocation10 + $0x2b8] sm:$0xff]
    %v5245 = vld [vmem:[#allocation10 + $0x2c0] sm:$0xff]
    %v5246 = vld [vmem:[#allocation10 + $0x2c8] sm:$0xff]
    %v5247 = vld [vmem:[#allocation10 + $0x2d0] sm:$0xff]
    %v5248 = vld [vmem:[#allocation10 + $0x2d8] sm:$0xff]
    %v5249 = vld [vmem:[#allocation10 + $0x2e0] sm:$0xff]
    %v5250 = vld [vmem:[#allocation10 + $0x2e8] sm:$0xff]
    %v5251 = vld [vmem:[#allocation10 + $0x2f0] sm:$0xff]
    %v5252 = vld [vmem:[#allocation10 + $0x2f8] sm:$0xff]
    %v5253 = vld [vmem:[#allocation10 + $0x300] sm:$0xff]
    %v5254 = vld [vmem:[#allocation10 + $0x308] sm:$0xff]
    %v5255 = vld [vmem:[#allocation10 + $0x310] sm:$0xff]
    %v5256 = vld [vmem:[#allocation10 + $0x318] sm:$0xff]
    %v5257 = vld [vmem:[#allocation10 + $0x320] sm:$0xff]
    %v5258 = vld [vmem:[#allocation10 + $0x328] sm:$0xff]
    %v5259 = vld [vmem:[#allocation10 + $0x330] sm:$0xff]
    %v5260 = vld [vmem:[#allocation10 + $0x338] sm:$0xff]
    %v5261 = vld [vmem:[#allocation10 + $0x340] sm:$0xff]
    %v5262 = vld [vmem:[#allocation10 + $0x348] sm:$0xff]
    %v5263 = vld [vmem:[#allocation10 + $0x350] sm:$0xff]
    %v5264 = vld [vmem:[#allocation10 + $0x358] sm:$0xff]
    %v5265 = vld [vmem:[#allocation10 + $0x360] sm:$0xff]
    %v5266 = vld [vmem:[#allocation10 + $0x368] sm:$0xff]
    %v5267 = vld [vmem:[#allocation10 + $0x370] sm:$0xff]
    %v5268 = vld [vmem:[#allocation10 + $0x378] sm:$0xff]
    %v5269 = vld [vmem:[#allocation10 + $0x380] sm:$0xff]
    %v5270 = vld [vmem:[#allocation10 + $0x388] sm:$0xff]
    %v5271 = vld [vmem:[#allocation10 + $0x390] sm:$0xff]
    %v5272 = vld [vmem:[#allocation10 + $0x398] sm:$0xff]
    %v5273 = vld [vmem:[#allocation10 + $0x3a0] sm:$0xff]
    %v5274 = vld [vmem:[#allocation10 + $0x3a8] sm:$0xff]
    %v5275 = vld [vmem:[#allocation10 + $0x3b0] sm:$0xff]
    %v5276 = vld [vmem:[#allocation10 + $0x3b8] sm:$0xff]
    %v5277 = vld [vmem:[#allocation10 + $0x3c0] sm:$0xff]
    %v5278 = vld [vmem:[#allocation10 + $0x3c8] sm:$0xff]
    %v5279 = vld [vmem:[#allocation10 + $0x3d0] sm:$0xff]
    %v5280 = vld [vmem:[#allocation10 + $0x3d8] sm:$0xff]
    %v5281 = vld [vmem:[#allocation10 + $0x3e0] sm:$0xff]
    %v5282 = vld [vmem:[#allocation10 + $0x3e8] sm:$0xff]
    %v5283 = vld [vmem:[#allocation10 + $0x3f0] sm:$0xff]
    %v5284 = vld [vmem:[#allocation10 + $0x3f8] sm:$0xff]
    %v5285 = vld [vmem:[%s635] sm:$0xf]
    %v5287 = vperm.slane %v5285, 0
    %v5288 = vperm.slane %v5285, 1
    %v5289 = vperm.slane %v5285, 2
    %v5290 = vperm.slane %v5285, 3
    %5295 = vmatpush.msra.mxu0 %v5217
    %5296 = vmatpush.msra.mxu0 %v5213
    %5297 = vmatpush.msra.mxu0 %v5209
    %5298 = vmatpush.msra.mxu0 %v5205
    %5299 = vmatpush.msra.mxu0 %v5201
    %5300 = vmatpush.msra.mxu0 %v5197
    %5301 = vmatpush.msra.mxu0 %v5193
    %5302 = vmatpush.msra.mxu0 %v5189
    %5303 = vmatpush.msra.mxu0 %v5185
    %5304 = vmatpush.msra.mxu0 %v5181
    %5305 = vmatpush.msra.mxu0 %v5177
    %5306 = vmatpush.msra.mxu0 %v5173
    %5307 = vmatpush.msra.mxu0 %v5169
    %5308 = vmatpush.msra.mxu0 %v5165
    %5309 = vmatpush.msra.mxu0 %v5161
    %5310 = vmatpush.msra.mxu0 %v5157
    %5311 = vmatmul.f32.gmra.mxu0 %v5156
    %v5312 = vpop.f32.mrf.mxu0
    %v5313 = vadd.f32 %v5287, %v5312
    %5314 = vdwg.mxu0
    %5315 = vmatpush.msra.mxu0 %v5281
    %5316 = vmatpush.msra.mxu0 %v5277
    %5317 = vmatpush.msra.mxu0 %v5273
    %5318 = vmatpush.msra.mxu0 %v5269
    %5319 = vmatpush.msra.mxu0 %v5265
    %5320 = vmatpush.msra.mxu0 %v5261
    %5321 = vmatpush.msra.mxu0 %v5257
    %5322 = vmatpush.msra.mxu0 %v5253
    %5323 = vmatpush.msra.mxu0 %v5249
    %5324 = vmatpush.msra.mxu0 %v5245
    %5325 = vmatpush.msra.mxu0 %v5241
    %5326 = vmatpush.msra.mxu0 %v5237
    %5327 = vmatpush.msra.mxu0 %v5233
    %5328 = vmatpush.msra.mxu0 %v5229
    %5329 = vmatpush.msra.mxu0 %v5225
    %5330 = vmatpush.msra.mxu0 %v5221
    %5331 = vmatmul.f32.gmra.mxu0 %v4742
    %v5332 = vpop.f32.mrf.mxu0
    %v5333 = vadd.f32 %v5313, %v5332
    %5334 = vdwg.mxu0
    %5335 = vmatpush.msra.mxu0 %v5218
    %5336 = vmatpush.msra.mxu0 %v5214
    %5337 = vmatpush.msra.mxu0 %v5210
    %5338 = vmatpush.msra.mxu0 %v5206
    %5339 = vmatpush.msra.mxu0 %v5202
    %5340 = vmatpush.msra.mxu0 %v5198
    %5341 = vmatpush.msra.mxu0 %v5194
    %5342 = vmatpush.msra.mxu0 %v5190
    %5343 = vmatpush.msra.mxu0 %v5186
    %5344 = vmatpush.msra.mxu0 %v5182
    %5345 = vmatpush.msra.mxu0 %v5178
    %5346 = vmatpush.msra.mxu0 %v5174
    %5347 = vmatpush.msra.mxu0 %v5170
    %5348 = vmatpush.msra.mxu0 %v5166
    %5349 = vmatpush.msra.mxu0 %v5162
    %5350 = vmatpush.msra.mxu0 %v5158
    %5351 = vmatmul.f32.gmra.mxu0 %v5156
    %v5352 = vpop.f32.mrf.mxu0
    %v5353 = vadd.f32 %v5288, %v5352
    %5354 = vdwg.mxu0
    %5355 = vmatpush.msra.mxu0 %v5282
    %5356 = vmatpush.msra.mxu0 %v5278
    %5357 = vmatpush.msra.mxu0 %v5274
    %5358 = vmatpush.msra.mxu0 %v5270
    %5359 = vmatpush.msra.mxu0 %v5266
    %5360 = vmatpush.msra.mxu0 %v5262
    %5361 = vmatpush.msra.mxu0 %v5258
    %5362 = vmatpush.msra.mxu0 %v5254
    %5363 = vmatpush.msra.mxu0 %v5250
    %5364 = vmatpush.msra.mxu0 %v5246
    %5365 = vmatpush.msra.mxu0 %v5242
    %5366 = vmatpush.msra.mxu0 %v5238
    %5367 = vmatpush.msra.mxu0 %v5234
    %5368 = vmatpush.msra.mxu0 %v5230
    %5369 = vmatpush.msra.mxu0 %v5226
    %5370 = vmatpush.msra.mxu0 %v5222
    %5371 = vmatmul.f32.gmra.mxu0 %v4742
    %v5372 = vpop.f32.mrf.mxu0
    %v5373 = vadd.f32 %v5353, %v5372
    %5374 = vdwg.mxu0
    %5375 = vmatpush.msra.mxu0 %v5219
    %5376 = vmatpush.msra.mxu0 %v5215
    %5377 = vmatpush.msra.mxu0 %v5211
    %5378 = vmatpush.msra.mxu0 %v5207
    %5379 = vmatpush.msra.mxu0 %v5203
    %5380 = vmatpush.msra.mxu0 %v5199
    %5381 = vmatpush.msra.mxu0 %v5195
    %5382 = vmatpush.msra.mxu0 %v5191
    %5383 = vmatpush.msra.mxu0 %v5187
    %5384 = vmatpush.msra.mxu0 %v5183
    %5385 = vmatpush.msra.mxu0 %v5179
    %5386 = vmatpush.msra.mxu0 %v5175
    %5387 = vmatpush.msra.mxu0 %v5171
    %5388 = vmatpush.msra.mxu0 %v5167
    %5389 = vmatpush.msra.mxu0 %v5163
    %5390 = vmatpush.msra.mxu0 %v5159
    %5391 = vmatmul.f32.gmra.mxu0 %v5156
    %v5392 = vpop.f32.mrf.mxu0
    %v5393 = vadd.f32 %v5289, %v5392
    %5394 = vdwg.mxu0
    %5395 = vmatpush.msra.mxu0 %v5283
    %5396 = vmatpush.msra.mxu0 %v5279
    %5397 = vmatpush.msra.mxu0 %v5275
    %5398 = vmatpush.msra.mxu0 %v5271
    %5399 = vmatpush.msra.mxu0 %v5267
    %5400 = vmatpush.msra.mxu0 %v5263
    %5401 = vmatpush.msra.mxu0 %v5259
    %5402 = vmatpush.msra.mxu0 %v5255
    %5403 = vmatpush.msra.mxu0 %v5251
    %5404 = vmatpush.msra.mxu0 %v5247
    %5405 = vmatpush.msra.mxu0 %v5243
    %5406 = vmatpush.msra.mxu0 %v5239
    %5407 = vmatpush.msra.mxu0 %v5235
    %5408 = vmatpush.msra.mxu0 %v5231
    %5409 = vmatpush.msra.mxu0 %v5227
    %5410 = vmatpush.msra.mxu0 %v5223
    %5411 = vmatmul.f32.gmra.mxu0 %v4742
    %v5412 = vpop.f32.mrf.mxu0
    %v5413 = vadd.f32 %v5393, %v5412
    %5414 = vdwg.mxu0
    %5415 = vmatpush.msra.mxu0 %v5220
    %5416 = vmatpush.msra.mxu0 %v5216
    %5417 = vmatpush.msra.mxu0 %v5212
    %5418 = vmatpush.msra.mxu0 %v5208
    %5419 = vmatpush.msra.mxu0 %v5204
    %5420 = vmatpush.msra.mxu0 %v5200
    %5421 = vmatpush.msra.mxu0 %v5196
    %5422 = vmatpush.msra.mxu0 %v5192
    %5423 = vmatpush.msra.mxu0 %v5188
    %5424 = vmatpush.msra.mxu0 %v5184
    %5425 = vmatpush.msra.mxu0 %v5180
    %5426 = vmatpush.msra.mxu0 %v5176
    %5427 = vmatpush.msra.mxu0 %v5172
    %5428 = vmatpush.msra.mxu0 %v5168
    %5429 = vmatpush.msra.mxu0 %v5164
    %5430 = vmatpush.msra.mxu0 %v5160
    %5431 = vmatmul.f32.gmra.mxu0 %v5156
    %v5432 = vpop.f32.mrf.mxu0
    %v5433 = vadd.f32 %v5290, %v5432
    %5434 = vdwg.mxu0
    %5435 = vmatpush.msra.mxu0 %v5284
    %5436 = vmatpush.msra.mxu0 %v5280
    %5437 = vmatpush.msra.mxu0 %v5276
    %5438 = vmatpush.msra.mxu0 %v5272
    %5439 = vmatpush.msra.mxu0 %v5268
    %5440 = vmatpush.msra.mxu0 %v5264
    %5441 = vmatpush.msra.mxu0 %v5260
    %5442 = vmatpush.msra.mxu0 %v5256
    %5443 = vmatpush.msra.mxu0 %v5252
    %5444 = vmatpush.msra.mxu0 %v5248
    %5445 = vmatpush.msra.mxu0 %v5244
    %5446 = vmatpush.msra.mxu0 %v5240
    %5447 = vmatpush.msra.mxu0 %v5236
    %5448 = vmatpush.msra.mxu0 %v5232
    %5449 = vmatpush.msra.mxu0 %v5228
    %5450 = vmatpush.msra.mxu0 %v5224
    %5451 = vmatmul.f32.gmra.mxu0 %v4742
    %v5452 = vpop.f32.mrf.mxu0
    %v5453 = vadd.f32 %v5433, %v5452
    %5454 = vdwg.mxu0
    %v5455 = vxor.u32 %v5333, 2147483648
    %v5456 = vmul.f32 %v5455, 1.442695
    %v5457 = vpow.pop %v5456
    %v5458 = vadd.f32 %v5457, 1.0
    %v5459 = vrcp.pop %v5458
    %v5460 = vmul.f32 %v5458, %v5459
    %v5461 = vsub.f32 1.0, %v5460
    %v5462 = vmul.f32 %v5459, %v5461
    %v5463 = vadd.f32 %v5459, %v5462
    %vm5464 = vweird.f32 %v5458
    %vm5465 = vweird.f32 %v5459
    %vm5466 = vmor %vm5464, %vm5465
    %v5467 = vsel %vm5466, %v5459, %v5463
    %v5468 = vand.u32 2147483647, %v5458
    %vm5469 = vcmp.eq.f32.partialorder %v5468, 8.507059e+37
    %v5470 = vand.u32 %v5458, 2147483648
    %v5471 = vor.u32 1.1754944e-38, %v5470
    %v5472 = vsel %vm5469, %v5471, %v5467
    %v5473 = vmul.f32 1.0, %v5472
    %v5474 = vxor.u32 %v5373, 2147483648
    %v5475 = vmul.f32 %v5474, 1.442695
    %v5476 = vpow.pop %v5475
    %v5477 = vadd.f32 %v5476, 1.0
    %v5478 = vrcp.pop %v5477
    %v5479 = vmul.f32 %v5477, %v5478
    %v5480 = vsub.f32 1.0, %v5479
    %v5481 = vmul.f32 %v5478, %v5480
    %v5482 = vadd.f32 %v5478, %v5481
    %vm5483 = vweird.f32 %v5477
    %vm5484 = vweird.f32 %v5478
    %vm5485 = vmor %vm5483, %vm5484
    %v5486 = vsel %vm5485, %v5478, %v5482
    %v5487 = vand.u32 2147483647, %v5477
    %vm5488 = vcmp.eq.f32.partialorder %v5487, 8.507059e+37
    %v5489 = vand.u32 %v5477, 2147483648
    %v5490 = vor.u32 1.1754944e-38, %v5489
    %v5491 = vsel %vm5488, %v5490, %v5486
    %v5492 = vmul.f32 1.0, %v5491
    %v5493 = vtanh.pop %v5413
    %v5494 = vxor.u32 %v5453, 2147483648
    %v5495 = vmul.f32 %v5494, 1.442695
    %v5496 = vpow.pop %v5495
    %v5497 = vadd.f32 %v5496, 1.0
    %v5498 = vrcp.pop %v5497
    %v5499 = vmul.f32 %v5497, %v5498
    %v5500 = vsub.f32 1.0, %v5499
    %v5501 = vmul.f32 %v5498, %v5500
    %v5502 = vadd.f32 %v5498, %v5501
    %vm5503 = vweird.f32 %v5497
    %vm5504 = vweird.f32 %v5498
    %vm5505 = vmor %vm5503, %vm5504
    %v5506 = vsel %vm5505, %v5498, %v5502
    %v5507 = vand.u32 2147483647, %v5497
    %vm5508 = vcmp.eq.f32.partialorder %v5507, 8.507059e+37
    %v5509 = vand.u32 %v5497, 2147483648
    %v5510 = vor.u32 1.1754944e-38, %v5509
    %v5511 = vsel %vm5508, %v5510, %v5506
    %v5512 = vmul.f32 1.0, %v5511
    %v5513 = vmul.f32 %v5492, %v4740
    %v5514 = vmul.f32 %v5473, %v5493
    %v5515 = vadd.f32 %v5513, %v5514
    %v5516 = vtanh.pop %v5515
    %v5517 = vmul.f32 %v5512, %v5516
    %v5518 = vld [vmem:[#allocation13] sm:$0xff]
    %v5519 = vld [vmem:[#allocation13 + $0x8] sm:$0xff]
    %v5520 = vld [vmem:[#allocation13 + $0x10] sm:$0xff]
    %v5521 = vld [vmem:[#allocation13 + $0x18] sm:$0xff]
    %v5522 = vld [vmem:[#allocation13 + $0x20] sm:$0xff]
    %v5523 = vld [vmem:[#allocation13 + $0x28] sm:$0xff]
    %v5524 = vld [vmem:[#allocation13 + $0x30] sm:$0xff]
    %v5525 = vld [vmem:[#allocation13 + $0x38] sm:$0xff]
    %v5526 = vld [vmem:[#allocation13 + $0x40] sm:$0xff]
    %v5527 = vld [vmem:[#allocation13 + $0x48] sm:$0xff]
    %v5528 = vld [vmem:[#allocation13 + $0x50] sm:$0xff]
    %v5529 = vld [vmem:[#allocation13 + $0x58] sm:$0xff]
    %v5530 = vld [vmem:[#allocation13 + $0x60] sm:$0xff]
    %v5531 = vld [vmem:[#allocation13 + $0x68] sm:$0xff]
    %v5532 = vld [vmem:[#allocation13 + $0x70] sm:$0xff]
    %v5533 = vld [vmem:[#allocation13 + $0x78] sm:$0xff]
    %v5534 = vld [vmem:[%s7] sm:$0x1]
    %v5536 = vperm.slane %v5534, 0
    %5538 = vmatpush.msra.mxu0 %v5533
    %5539 = vmatpush.msra.mxu0 %v5532
    %5540 = vmatpush.msra.mxu0 %v5531
    %5541 = vmatpush.msra.mxu0 %v5530
    %5542 = vmatpush.msra.mxu0 %v5529
    %5543 = vmatpush.msra.mxu0 %v5528
    %5544 = vmatpush.msra.mxu0 %v5527
    %5545 = vmatpush.msra.mxu0 %v5526
    %5546 = vmatpush.msra.mxu0 %v5525
    %5547 = vmatpush.msra.mxu0 %v5524
    %5548 = vmatpush.msra.mxu0 %v5523
    %5549 = vmatpush.msra.mxu0 %v5522
    %5550 = vmatpush.msra.mxu0 %v5521
    %5551 = vmatpush.msra.mxu0 %v5520
    %5552 = vmatpush.msra.mxu0 %v5519
    %5553 = vmatpush.msra.mxu0 %v5518
    %5554 = vmatmul.f32.gmra.mxu0 %v5517
    %v5555 = vpop.f32.mrf.mxu0
    %v5556 = vadd.f32 %v5536, %v5555
    %5557 = vdwg.mxu0
    %5558 = vmax.xlane.f32.xlu0 %v5556
    %v5559 = vpop.xlane.xlu0 %5558
    %v5560 = vsub.f32 %v5556, %v5559
    %v5561 = vmul.f32 %v5560, 1.442695
    %v5562 = vpow.pop %v5561
    %5563 = vadd.xlane.f32.xlu0 %v5562
    %v5564 = vpop.xlane.xlu0 %5563
    %v5565 = vrcp.pop %v5564
    %v5566 = vmul.f32 %v5562, %v5565
    %s5567 = scalar_lea.vmem [#allocation14], 48
    %5568 = vst [vmem:[%s5567] sm:$0xff] %v5566
    %s5569 = scalar_lea.vmem [#allocation2], 56
    %v5570 = vld [vmem:[%s5569] sm:$0xff]
    %v5571 = vld [vmem:[#allocation8] sm:$0xff]
    %v5572 = vld [vmem:[#allocation8 + $0x8] sm:$0xff]
    %v5573 = vld [vmem:[#allocation8 + $0x10] sm:$0xff]
    %v5574 = vld [vmem:[#allocation8 + $0x18] sm:$0xff]
    %v5575 = vld [vmem:[#allocation8 + $0x20] sm:$0xff]
    %v5576 = vld [vmem:[#allocation8 + $0x28] sm:$0xff]
    %v5577 = vld [vmem:[#allocation8 + $0x30] sm:$0xff]
    %v5578 = vld [vmem:[#allocation8 + $0x38] sm:$0xff]
    %v5579 = vld [vmem:[#allocation8 + $0x40] sm:$0xff]
    %v5580 = vld [vmem:[#allocation8 + $0x48] sm:$0xff]
    %v5581 = vld [vmem:[#allocation8 + $0x50] sm:$0xff]
    %v5582 = vld [vmem:[#allocation8 + $0x58] sm:$0xff]
    %v5583 = vld [vmem:[#allocation8 + $0x60] sm:$0xff]
    %v5584 = vld [vmem:[#allocation8 + $0x68] sm:$0xff]
    %v5585 = vld [vmem:[#allocation8 + $0x70] sm:$0xff]
    %v5586 = vld [vmem:[#allocation8 + $0x78] sm:$0xff]
    %v5587 = vld [vmem:[#allocation8 + $0x80] sm:$0xff]
    %v5588 = vld [vmem:[#allocation8 + $0x88] sm:$0xff]
    %v5589 = vld [vmem:[#allocation8 + $0x90] sm:$0xff]
    %v5590 = vld [vmem:[#allocation8 + $0x98] sm:$0xff]
    %v5591 = vld [vmem:[#allocation8 + $0xa0] sm:$0xff]
    %v5592 = vld [vmem:[#allocation8 + $0xa8] sm:$0xff]
    %v5593 = vld [vmem:[#allocation8 + $0xb0] sm:$0xff]
    %v5594 = vld [vmem:[#allocation8 + $0xb8] sm:$0xff]
    %v5595 = vld [vmem:[#allocation8 + $0xc0] sm:$0xff]
    %v5596 = vld [vmem:[#allocation8 + $0xc8] sm:$0xff]
    %v5597 = vld [vmem:[#allocation8 + $0xd0] sm:$0xff]
    %v5598 = vld [vmem:[#allocation8 + $0xd8] sm:$0xff]
    %v5599 = vld [vmem:[#allocation8 + $0xe0] sm:$0xff]
    %v5600 = vld [vmem:[#allocation8 + $0xe8] sm:$0xff]
    %v5601 = vld [vmem:[#allocation8 + $0xf0] sm:$0xff]
    %v5602 = vld [vmem:[#allocation8 + $0xf8] sm:$0xff]
    %v5603 = vld [vmem:[#allocation8 + $0x100] sm:$0xff]
    %v5604 = vld [vmem:[#allocation8 + $0x108] sm:$0xff]
    %v5605 = vld [vmem:[#allocation8 + $0x110] sm:$0xff]
    %v5606 = vld [vmem:[#allocation8 + $0x118] sm:$0xff]
    %v5607 = vld [vmem:[#allocation8 + $0x120] sm:$0xff]
    %v5608 = vld [vmem:[#allocation8 + $0x128] sm:$0xff]
    %v5609 = vld [vmem:[#allocation8 + $0x130] sm:$0xff]
    %v5610 = vld [vmem:[#allocation8 + $0x138] sm:$0xff]
    %v5611 = vld [vmem:[#allocation8 + $0x140] sm:$0xff]
    %v5612 = vld [vmem:[#allocation8 + $0x148] sm:$0xff]
    %v5613 = vld [vmem:[#allocation8 + $0x150] sm:$0xff]
    %v5614 = vld [vmem:[#allocation8 + $0x158] sm:$0xff]
    %v5615 = vld [vmem:[#allocation8 + $0x160] sm:$0xff]
    %v5616 = vld [vmem:[#allocation8 + $0x168] sm:$0xff]
    %v5617 = vld [vmem:[#allocation8 + $0x170] sm:$0xff]
    %v5618 = vld [vmem:[#allocation8 + $0x178] sm:$0xff]
    %v5619 = vld [vmem:[#allocation8 + $0x180] sm:$0xff]
    %v5620 = vld [vmem:[#allocation8 + $0x188] sm:$0xff]
    %v5621 = vld [vmem:[#allocation8 + $0x190] sm:$0xff]
    %v5622 = vld [vmem:[#allocation8 + $0x198] sm:$0xff]
    %v5623 = vld [vmem:[#allocation8 + $0x1a0] sm:$0xff]
    %v5624 = vld [vmem:[#allocation8 + $0x1a8] sm:$0xff]
    %v5625 = vld [vmem:[#allocation8 + $0x1b0] sm:$0xff]
    %v5626 = vld [vmem:[#allocation8 + $0x1b8] sm:$0xff]
    %v5627 = vld [vmem:[#allocation8 + $0x1c0] sm:$0xff]
    %v5628 = vld [vmem:[#allocation8 + $0x1c8] sm:$0xff]
    %v5629 = vld [vmem:[#allocation8 + $0x1d0] sm:$0xff]
    %v5630 = vld [vmem:[#allocation8 + $0x1d8] sm:$0xff]
    %v5631 = vld [vmem:[#allocation8 + $0x1e0] sm:$0xff]
    %v5632 = vld [vmem:[#allocation8 + $0x1e8] sm:$0xff]
    %v5633 = vld [vmem:[#allocation8 + $0x1f0] sm:$0xff]
    %v5634 = vld [vmem:[#allocation8 + $0x1f8] sm:$0xff]
    %v5635 = vld [vmem:[#allocation8 + $0x200] sm:$0xff]
    %v5636 = vld [vmem:[#allocation8 + $0x208] sm:$0xff]
    %v5637 = vld [vmem:[#allocation8 + $0x210] sm:$0xff]
    %v5638 = vld [vmem:[#allocation8 + $0x218] sm:$0xff]
    %v5639 = vld [vmem:[#allocation8 + $0x220] sm:$0xff]
    %v5640 = vld [vmem:[#allocation8 + $0x228] sm:$0xff]
    %v5641 = vld [vmem:[#allocation8 + $0x230] sm:$0xff]
    %v5642 = vld [vmem:[#allocation8 + $0x238] sm:$0xff]
    %v5643 = vld [vmem:[#allocation8 + $0x240] sm:$0xff]
    %v5644 = vld [vmem:[#allocation8 + $0x248] sm:$0xff]
    %v5645 = vld [vmem:[#allocation8 + $0x250] sm:$0xff]
    %v5646 = vld [vmem:[#allocation8 + $0x258] sm:$0xff]
    %v5647 = vld [vmem:[#allocation8 + $0x260] sm:$0xff]
    %v5648 = vld [vmem:[#allocation8 + $0x268] sm:$0xff]
    %v5649 = vld [vmem:[#allocation8 + $0x270] sm:$0xff]
    %v5650 = vld [vmem:[#allocation8 + $0x278] sm:$0xff]
    %v5651 = vld [vmem:[#allocation8 + $0x280] sm:$0xff]
    %v5652 = vld [vmem:[#allocation8 + $0x288] sm:$0xff]
    %v5653 = vld [vmem:[#allocation8 + $0x290] sm:$0xff]
    %v5654 = vld [vmem:[#allocation8 + $0x298] sm:$0xff]
    %v5655 = vld [vmem:[#allocation8 + $0x2a0] sm:$0xff]
    %v5656 = vld [vmem:[#allocation8 + $0x2a8] sm:$0xff]
    %v5657 = vld [vmem:[#allocation8 + $0x2b0] sm:$0xff]
    %v5658 = vld [vmem:[#allocation8 + $0x2b8] sm:$0xff]
    %v5659 = vld [vmem:[#allocation8 + $0x2c0] sm:$0xff]
    %v5660 = vld [vmem:[#allocation8 + $0x2c8] sm:$0xff]
    %v5661 = vld [vmem:[#allocation8 + $0x2d0] sm:$0xff]
    %v5662 = vld [vmem:[#allocation8 + $0x2d8] sm:$0xff]
    %v5663 = vld [vmem:[#allocation8 + $0x2e0] sm:$0xff]
    %v5664 = vld [vmem:[#allocation8 + $0x2e8] sm:$0xff]
    %v5665 = vld [vmem:[#allocation8 + $0x2f0] sm:$0xff]
    %v5666 = vld [vmem:[#allocation8 + $0x2f8] sm:$0xff]
    %v5667 = vld [vmem:[#allocation8 + $0x300] sm:$0xff]
    %v5668 = vld [vmem:[#allocation8 + $0x308] sm:$0xff]
    %v5669 = vld [vmem:[#allocation8 + $0x310] sm:$0xff]
    %v5670 = vld [vmem:[#allocation8 + $0x318] sm:$0xff]
    %v5671 = vld [vmem:[#allocation8 + $0x320] sm:$0xff]
    %v5672 = vld [vmem:[#allocation8 + $0x328] sm:$0xff]
    %v5673 = vld [vmem:[#allocation8 + $0x330] sm:$0xff]
    %v5674 = vld [vmem:[#allocation8 + $0x338] sm:$0xff]
    %v5675 = vld [vmem:[#allocation8 + $0x340] sm:$0xff]
    %v5676 = vld [vmem:[#allocation8 + $0x348] sm:$0xff]
    %v5677 = vld [vmem:[#allocation8 + $0x350] sm:$0xff]
    %v5678 = vld [vmem:[#allocation8 + $0x358] sm:$0xff]
    %v5679 = vld [vmem:[#allocation8 + $0x360] sm:$0xff]
    %v5680 = vld [vmem:[#allocation8 + $0x368] sm:$0xff]
    %v5681 = vld [vmem:[#allocation8 + $0x370] sm:$0xff]
    %v5682 = vld [vmem:[#allocation8 + $0x378] sm:$0xff]
    %v5683 = vld [vmem:[#allocation8 + $0x380] sm:$0xff]
    %v5684 = vld [vmem:[#allocation8 + $0x388] sm:$0xff]
    %v5685 = vld [vmem:[#allocation8 + $0x390] sm:$0xff]
    %v5686 = vld [vmem:[#allocation8 + $0x398] sm:$0xff]
    %v5687 = vld [vmem:[#allocation8 + $0x3a0] sm:$0xff]
    %v5688 = vld [vmem:[#allocation8 + $0x3a8] sm:$0xff]
    %v5689 = vld [vmem:[#allocation8 + $0x3b0] sm:$0xff]
    %v5690 = vld [vmem:[#allocation8 + $0x3b8] sm:$0xff]
    %v5691 = vld [vmem:[#allocation8 + $0x3c0] sm:$0xff]
    %v5692 = vld [vmem:[#allocation8 + $0x3c8] sm:$0xff]
    %v5693 = vld [vmem:[#allocation8 + $0x3d0] sm:$0xff]
    %v5694 = vld [vmem:[#allocation8 + $0x3d8] sm:$0xff]
    %v5695 = vld [vmem:[#allocation8 + $0x3e0] sm:$0xff]
    %v5696 = vld [vmem:[#allocation8 + $0x3e8] sm:$0xff]
    %v5697 = vld [vmem:[#allocation8 + $0x3f0] sm:$0xff]
    %v5698 = vld [vmem:[#allocation8 + $0x3f8] sm:$0xff]
    %v5699 = vld [vmem:[#allocation11] sm:$0xf]
    %v5701 = vperm.slane %v5699, 0
    %v5702 = vperm.slane %v5699, 1
    %v5703 = vperm.slane %v5699, 2
    %v5704 = vperm.slane %v5699, 3
    %5709 = vmatpush.msra.mxu0 %v5631
    %5710 = vmatpush.msra.mxu0 %v5627
    %5711 = vmatpush.msra.mxu0 %v5623
    %5712 = vmatpush.msra.mxu0 %v5619
    %5713 = vmatpush.msra.mxu0 %v5615
    %5714 = vmatpush.msra.mxu0 %v5611
    %5715 = vmatpush.msra.mxu0 %v5607
    %5716 = vmatpush.msra.mxu0 %v5603
    %5717 = vmatpush.msra.mxu0 %v5599
    %5718 = vmatpush.msra.mxu0 %v5595
    %5719 = vmatpush.msra.mxu0 %v5591
    %5720 = vmatpush.msra.mxu0 %v5587
    %5721 = vmatpush.msra.mxu0 %v5583
    %5722 = vmatpush.msra.mxu0 %v5579
    %5723 = vmatpush.msra.mxu0 %v5575
    %5724 = vmatpush.msra.mxu0 %v5571
    %5725 = vmatmul.f32.gmra.mxu0 %v5570
    %v5726 = vpop.f32.mrf.mxu0
    %v5727 = vadd.f32 %v5701, %v5726
    %5728 = vdwg.mxu0
    %5729 = vmatpush.msra.mxu0 %v5695
    %5730 = vmatpush.msra.mxu0 %v5691
    %5731 = vmatpush.msra.mxu0 %v5687
    %5732 = vmatpush.msra.mxu0 %v5683
    %5733 = vmatpush.msra.mxu0 %v5679
    %5734 = vmatpush.msra.mxu0 %v5675
    %5735 = vmatpush.msra.mxu0 %v5671
    %5736 = vmatpush.msra.mxu0 %v5667
    %5737 = vmatpush.msra.mxu0 %v5663
    %5738 = vmatpush.msra.mxu0 %v5659
    %5739 = vmatpush.msra.mxu0 %v5655
    %5740 = vmatpush.msra.mxu0 %v5651
    %5741 = vmatpush.msra.mxu0 %v5647
    %5742 = vmatpush.msra.mxu0 %v5643
    %5743 = vmatpush.msra.mxu0 %v5639
    %5744 = vmatpush.msra.mxu0 %v5635
    %5745 = vmatmul.f32.gmra.mxu0 %v5156
    %v5746 = vpop.f32.mrf.mxu0
    %v5747 = vadd.f32 %v5727, %v5746
    %5748 = vdwg.mxu0
    %5749 = vmatpush.msra.mxu0 %v5632
    %5750 = vmatpush.msra.mxu0 %v5628
    %5751 = vmatpush.msra.mxu0 %v5624
    %5752 = vmatpush.msra.mxu0 %v5620
    %5753 = vmatpush.msra.mxu0 %v5616
    %5754 = vmatpush.msra.mxu0 %v5612
    %5755 = vmatpush.msra.mxu0 %v5608
    %5756 = vmatpush.msra.mxu0 %v5604
    %5757 = vmatpush.msra.mxu0 %v5600
    %5758 = vmatpush.msra.mxu0 %v5596
    %5759 = vmatpush.msra.mxu0 %v5592
    %5760 = vmatpush.msra.mxu0 %v5588
    %5761 = vmatpush.msra.mxu0 %v5584
    %5762 = vmatpush.msra.mxu0 %v5580
    %5763 = vmatpush.msra.mxu0 %v5576
    %5764 = vmatpush.msra.mxu0 %v5572
    %5765 = vmatmul.f32.gmra.mxu0 %v5570
    %v5766 = vpop.f32.mrf.mxu0
    %v5767 = vadd.f32 %v5702, %v5766
    %5768 = vdwg.mxu0
    %5769 = vmatpush.msra.mxu0 %v5696
    %5770 = vmatpush.msra.mxu0 %v5692
    %5771 = vmatpush.msra.mxu0 %v5688
    %5772 = vmatpush.msra.mxu0 %v5684
    %5773 = vmatpush.msra.mxu0 %v5680
    %5774 = vmatpush.msra.mxu0 %v5676
    %5775 = vmatpush.msra.mxu0 %v5672
    %5776 = vmatpush.msra.mxu0 %v5668
    %5777 = vmatpush.msra.mxu0 %v5664
    %5778 = vmatpush.msra.mxu0 %v5660
    %5779 = vmatpush.msra.mxu0 %v5656
    %5780 = vmatpush.msra.mxu0 %v5652
    %5781 = vmatpush.msra.mxu0 %v5648
    %5782 = vmatpush.msra.mxu0 %v5644
    %5783 = vmatpush.msra.mxu0 %v5640
    %5784 = vmatpush.msra.mxu0 %v5636
    %5785 = vmatmul.f32.gmra.mxu0 %v5156
    %v5786 = vpop.f32.mrf.mxu0
    %v5787 = vadd.f32 %v5767, %v5786
    %5788 = vdwg.mxu0
    %5789 = vmatpush.msra.mxu0 %v5633
    %5790 = vmatpush.msra.mxu0 %v5629
    %5791 = vmatpush.msra.mxu0 %v5625
    %5792 = vmatpush.msra.mxu0 %v5621
    %5793 = vmatpush.msra.mxu0 %v5617
    %5794 = vmatpush.msra.mxu0 %v5613
    %5795 = vmatpush.msra.mxu0 %v5609
    %5796 = vmatpush.msra.mxu0 %v5605
    %5797 = vmatpush.msra.mxu0 %v5601
    %5798 = vmatpush.msra.mxu0 %v5597
    %5799 = vmatpush.msra.mxu0 %v5593
    %5800 = vmatpush.msra.mxu0 %v5589
    %5801 = vmatpush.msra.mxu0 %v5585
    %5802 = vmatpush.msra.mxu0 %v5581
    %5803 = vmatpush.msra.mxu0 %v5577
    %5804 = vmatpush.msra.mxu0 %v5573
    %5805 = vmatmul.f32.gmra.mxu0 %v5570
    %v5806 = vpop.f32.mrf.mxu0
    %v5807 = vadd.f32 %v5703, %v5806
    %5808 = vdwg.mxu0
    %5809 = vmatpush.msra.mxu0 %v5697
    %5810 = vmatpush.msra.mxu0 %v5693
    %5811 = vmatpush.msra.mxu0 %v5689
    %5812 = vmatpush.msra.mxu0 %v5685
    %5813 = vmatpush.msra.mxu0 %v5681
    %5814 = vmatpush.msra.mxu0 %v5677
    %5815 = vmatpush.msra.mxu0 %v5673
    %5816 = vmatpush.msra.mxu0 %v5669
    %5817 = vmatpush.msra.mxu0 %v5665
    %5818 = vmatpush.msra.mxu0 %v5661
    %5819 = vmatpush.msra.mxu0 %v5657
    %5820 = vmatpush.msra.mxu0 %v5653
    %5821 = vmatpush.msra.mxu0 %v5649
    %5822 = vmatpush.msra.mxu0 %v5645
    %5823 = vmatpush.msra.mxu0 %v5641
    %5824 = vmatpush.msra.mxu0 %v5637
    %5825 = vmatmul.f32.gmra.mxu0 %v5156
    %v5826 = vpop.f32.mrf.mxu0
    %v5827 = vadd.f32 %v5807, %v5826
    %5828 = vdwg.mxu0
    %5829 = vmatpush.msra.mxu0 %v5634
    %5830 = vmatpush.msra.mxu0 %v5630
    %5831 = vmatpush.msra.mxu0 %v5626
    %5832 = vmatpush.msra.mxu0 %v5622
    %5833 = vmatpush.msra.mxu0 %v5618
    %5834 = vmatpush.msra.mxu0 %v5614
    %5835 = vmatpush.msra.mxu0 %v5610
    %5836 = vmatpush.msra.mxu0 %v5606
    %5837 = vmatpush.msra.mxu0 %v5602
    %5838 = vmatpush.msra.mxu0 %v5598
    %5839 = vmatpush.msra.mxu0 %v5594
    %5840 = vmatpush.msra.mxu0 %v5590
    %5841 = vmatpush.msra.mxu0 %v5586
    %5842 = vmatpush.msra.mxu0 %v5582
    %5843 = vmatpush.msra.mxu0 %v5578
    %5844 = vmatpush.msra.mxu0 %v5574
    %5845 = vmatmul.f32.gmra.mxu0 %v5570
    %v5846 = vpop.f32.mrf.mxu0
    %v5847 = vadd.f32 %v5704, %v5846
    %5848 = vdwg.mxu0
    %5849 = vmatpush.msra.mxu0 %v5698
    %5850 = vmatpush.msra.mxu0 %v5694
    %5851 = vmatpush.msra.mxu0 %v5690
    %5852 = vmatpush.msra.mxu0 %v5686
    %5853 = vmatpush.msra.mxu0 %v5682
    %5854 = vmatpush.msra.mxu0 %v5678
    %5855 = vmatpush.msra.mxu0 %v5674
    %5856 = vmatpush.msra.mxu0 %v5670
    %5857 = vmatpush.msra.mxu0 %v5666
    %5858 = vmatpush.msra.mxu0 %v5662
    %5859 = vmatpush.msra.mxu0 %v5658
    %5860 = vmatpush.msra.mxu0 %v5654
    %5861 = vmatpush.msra.mxu0 %v5650
    %5862 = vmatpush.msra.mxu0 %v5646
    %5863 = vmatpush.msra.mxu0 %v5642
    %5864 = vmatpush.msra.mxu0 %v5638
    %5865 = vmatmul.f32.gmra.mxu0 %v5156
    %v5866 = vpop.f32.mrf.mxu0
    %v5867 = vadd.f32 %v5847, %v5866
    %5868 = vdwg.mxu0
    %v5869 = vxor.u32 %v5747, 2147483648
    %v5870 = vmul.f32 %v5869, 1.442695
    %v5871 = vpow.pop %v5870
    %v5872 = vadd.f32 %v5871, 1.0
    %v5873 = vrcp.pop %v5872
    %v5874 = vmul.f32 %v5872, %v5873
    %v5875 = vsub.f32 1.0, %v5874
    %v5876 = vmul.f32 %v5873, %v5875
    %v5877 = vadd.f32 %v5873, %v5876
    %vm5878 = vweird.f32 %v5872
    %vm5879 = vweird.f32 %v5873
    %vm5880 = vmor %vm5878, %vm5879
    %v5881 = vsel %vm5880, %v5873, %v5877
    %v5882 = vand.u32 2147483647, %v5872
    %vm5883 = vcmp.eq.f32.partialorder %v5882, 8.507059e+37
    %v5884 = vand.u32 %v5872, 2147483648
    %v5885 = vor.u32 1.1754944e-38, %v5884
    %v5886 = vsel %vm5883, %v5885, %v5881
    %v5887 = vmul.f32 1.0, %v5886
    %v5888 = vxor.u32 %v5787, 2147483648
    %v5889 = vmul.f32 %v5888, 1.442695
    %v5890 = vpow.pop %v5889
    %v5891 = vadd.f32 %v5890, 1.0
    %v5892 = vrcp.pop %v5891
    %v5893 = vmul.f32 %v5891, %v5892
    %v5894 = vsub.f32 1.0, %v5893
    %v5895 = vmul.f32 %v5892, %v5894
    %v5896 = vadd.f32 %v5892, %v5895
    %vm5897 = vweird.f32 %v5891
    %vm5898 = vweird.f32 %v5892
    %vm5899 = vmor %vm5897, %vm5898
    %v5900 = vsel %vm5899, %v5892, %v5896
    %v5901 = vand.u32 2147483647, %v5891
    %vm5902 = vcmp.eq.f32.partialorder %v5901, 8.507059e+37
    %v5903 = vand.u32 %v5891, 2147483648
    %v5904 = vor.u32 1.1754944e-38, %v5903
    %v5905 = vsel %vm5902, %v5904, %v5900
    %v5906 = vmul.f32 1.0, %v5905
    %v5907 = vtanh.pop %v5827
    %v5908 = vxor.u32 %v5867, 2147483648
    %v5909 = vmul.f32 %v5908, 1.442695
    %v5910 = vpow.pop %v5909
    %v5911 = vadd.f32 %v5910, 1.0
    %v5912 = vrcp.pop %v5911
    %v5913 = vmul.f32 %v5911, %v5912
    %v5914 = vsub.f32 1.0, %v5913
    %v5915 = vmul.f32 %v5912, %v5914
    %v5916 = vadd.f32 %v5912, %v5915
    %vm5917 = vweird.f32 %v5911
    %vm5918 = vweird.f32 %v5912
    %vm5919 = vmor %vm5917, %vm5918
    %v5920 = vsel %vm5919, %v5912, %v5916
    %v5921 = vand.u32 2147483647, %v5911
    %vm5922 = vcmp.eq.f32.partialorder %v5921, 8.507059e+37
    %v5923 = vand.u32 %v5911, 2147483648
    %v5924 = vor.u32 1.1754944e-38, %v5923
    %v5925 = vsel %vm5922, %v5924, %v5920
    %v5926 = vmul.f32 1.0, %v5925
    %v5927 = vmul.f32 %v5906, %v5154
    %v5928 = vmul.f32 %v5887, %v5907
    %v5929 = vadd.f32 %v5927, %v5928
    %v5930 = vtanh.pop %v5929
    %v5931 = vmul.f32 %v5926, %v5930
    %v5932 = vld [vmem:[#allocation10] sm:$0xff]
    %v5933 = vld [vmem:[#allocation10 + $0x8] sm:$0xff]
    %v5934 = vld [vmem:[#allocation10 + $0x10] sm:$0xff]
    %v5935 = vld [vmem:[#allocation10 + $0x18] sm:$0xff]
    %v5936 = vld [vmem:[#allocation10 + $0x20] sm:$0xff]
    %v5937 = vld [vmem:[#allocation10 + $0x28] sm:$0xff]
    %v5938 = vld [vmem:[#allocation10 + $0x30] sm:$0xff]
    %v5939 = vld [vmem:[#allocation10 + $0x38] sm:$0xff]
    %v5940 = vld [vmem:[#allocation10 + $0x40] sm:$0xff]
    %v5941 = vld [vmem:[#allocation10 + $0x48] sm:$0xff]
    %v5942 = vld [vmem:[#allocation10 + $0x50] sm:$0xff]
    %v5943 = vld [vmem:[#allocation10 + $0x58] sm:$0xff]
    %v5944 = vld [vmem:[#allocation10 + $0x60] sm:$0xff]
    %v5945 = vld [vmem:[#allocation10 + $0x68] sm:$0xff]
    %v5946 = vld [vmem:[#allocation10 + $0x70] sm:$0xff]
    %v5947 = vld [vmem:[#allocation10 + $0x78] sm:$0xff]
    %v5948 = vld [vmem:[#allocation10 + $0x80] sm:$0xff]
    %v5949 = vld [vmem:[#allocation10 + $0x88] sm:$0xff]
    %v5950 = vld [vmem:[#allocation10 + $0x90] sm:$0xff]
    %v5951 = vld [vmem:[#allocation10 + $0x98] sm:$0xff]
    %v5952 = vld [vmem:[#allocation10 + $0xa0] sm:$0xff]
    %v5953 = vld [vmem:[#allocation10 + $0xa8] sm:$0xff]
    %v5954 = vld [vmem:[#allocation10 + $0xb0] sm:$0xff]
    %v5955 = vld [vmem:[#allocation10 + $0xb8] sm:$0xff]
    %v5956 = vld [vmem:[#allocation10 + $0xc0] sm:$0xff]
    %v5957 = vld [vmem:[#allocation10 + $0xc8] sm:$0xff]
    %v5958 = vld [vmem:[#allocation10 + $0xd0] sm:$0xff]
    %v5959 = vld [vmem:[#allocation10 + $0xd8] sm:$0xff]
    %v5960 = vld [vmem:[#allocation10 + $0xe0] sm:$0xff]
    %v5961 = vld [vmem:[#allocation10 + $0xe8] sm:$0xff]
    %v5962 = vld [vmem:[#allocation10 + $0xf0] sm:$0xff]
    %v5963 = vld [vmem:[#allocation10 + $0xf8] sm:$0xff]
    %v5964 = vld [vmem:[#allocation10 + $0x100] sm:$0xff]
    %v5965 = vld [vmem:[#allocation10 + $0x108] sm:$0xff]
    %v5966 = vld [vmem:[#allocation10 + $0x110] sm:$0xff]
    %v5967 = vld [vmem:[#allocation10 + $0x118] sm:$0xff]
    %v5968 = vld [vmem:[#allocation10 + $0x120] sm:$0xff]
    %v5969 = vld [vmem:[#allocation10 + $0x128] sm:$0xff]
    %v5970 = vld [vmem:[#allocation10 + $0x130] sm:$0xff]
    %v5971 = vld [vmem:[#allocation10 + $0x138] sm:$0xff]
    %v5972 = vld [vmem:[#allocation10 + $0x140] sm:$0xff]
    %v5973 = vld [vmem:[#allocation10 + $0x148] sm:$0xff]
    %v5974 = vld [vmem:[#allocation10 + $0x150] sm:$0xff]
    %v5975 = vld [vmem:[#allocation10 + $0x158] sm:$0xff]
    %v5976 = vld [vmem:[#allocation10 + $0x160] sm:$0xff]
    %v5977 = vld [vmem:[#allocation10 + $0x168] sm:$0xff]
    %v5978 = vld [vmem:[#allocation10 + $0x170] sm:$0xff]
    %v5979 = vld [vmem:[#allocation10 + $0x178] sm:$0xff]
    %v5980 = vld [vmem:[#allocation10 + $0x180] sm:$0xff]
    %v5981 = vld [vmem:[#allocation10 + $0x188] sm:$0xff]
    %v5982 = vld [vmem:[#allocation10 + $0x190] sm:$0xff]
    %v5983 = vld [vmem:[#allocation10 + $0x198] sm:$0xff]
    %v5984 = vld [vmem:[#allocation10 + $0x1a0] sm:$0xff]
    %v5985 = vld [vmem:[#allocation10 + $0x1a8] sm:$0xff]
    %v5986 = vld [vmem:[#allocation10 + $0x1b0] sm:$0xff]
    %v5987 = vld [vmem:[#allocation10 + $0x1b8] sm:$0xff]
    %v5988 = vld [vmem:[#allocation10 + $0x1c0] sm:$0xff]
    %v5989 = vld [vmem:[#allocation10 + $0x1c8] sm:$0xff]
    %v5990 = vld [vmem:[#allocation10 + $0x1d0] sm:$0xff]
    %v5991 = vld [vmem:[#allocation10 + $0x1d8] sm:$0xff]
    %v5992 = vld [vmem:[#allocation10 + $0x1e0] sm:$0xff]
    %v5993 = vld [vmem:[#allocation10 + $0x1e8] sm:$0xff]
    %v5994 = vld [vmem:[#allocation10 + $0x1f0] sm:$0xff]
    %v5995 = vld [vmem:[#allocation10 + $0x1f8] sm:$0xff]
    %v5996 = vld [vmem:[#allocation10 + $0x200] sm:$0xff]
    %v5997 = vld [vmem:[#allocation10 + $0x208] sm:$0xff]
    %v5998 = vld [vmem:[#allocation10 + $0x210] sm:$0xff]
    %v5999 = vld [vmem:[#allocation10 + $0x218] sm:$0xff]
    %v6000 = vld [vmem:[#allocation10 + $0x220] sm:$0xff]
    %v6001 = vld [vmem:[#allocation10 + $0x228] sm:$0xff]
    %v6002 = vld [vmem:[#allocation10 + $0x230] sm:$0xff]
    %v6003 = vld [vmem:[#allocation10 + $0x238] sm:$0xff]
    %v6004 = vld [vmem:[#allocation10 + $0x240] sm:$0xff]
    %v6005 = vld [vmem:[#allocation10 + $0x248] sm:$0xff]
    %v6006 = vld [vmem:[#allocation10 + $0x250] sm:$0xff]
    %v6007 = vld [vmem:[#allocation10 + $0x258] sm:$0xff]
    %v6008 = vld [vmem:[#allocation10 + $0x260] sm:$0xff]
    %v6009 = vld [vmem:[#allocation10 + $0x268] sm:$0xff]
    %v6010 = vld [vmem:[#allocation10 + $0x270] sm:$0xff]
    %v6011 = vld [vmem:[#allocation10 + $0x278] sm:$0xff]
    %v6012 = vld [vmem:[#allocation10 + $0x280] sm:$0xff]
    %v6013 = vld [vmem:[#allocation10 + $0x288] sm:$0xff]
    %v6014 = vld [vmem:[#allocation10 + $0x290] sm:$0xff]
    %v6015 = vld [vmem:[#allocation10 + $0x298] sm:$0xff]
    %v6016 = vld [vmem:[#allocation10 + $0x2a0] sm:$0xff]
    %v6017 = vld [vmem:[#allocation10 + $0x2a8] sm:$0xff]
    %v6018 = vld [vmem:[#allocation10 + $0x2b0] sm:$0xff]
    %v6019 = vld [vmem:[#allocation10 + $0x2b8] sm:$0xff]
    %v6020 = vld [vmem:[#allocation10 + $0x2c0] sm:$0xff]
    %v6021 = vld [vmem:[#allocation10 + $0x2c8] sm:$0xff]
    %v6022 = vld [vmem:[#allocation10 + $0x2d0] sm:$0xff]
    %v6023 = vld [vmem:[#allocation10 + $0x2d8] sm:$0xff]
    %v6024 = vld [vmem:[#allocation10 + $0x2e0] sm:$0xff]
    %v6025 = vld [vmem:[#allocation10 + $0x2e8] sm:$0xff]
    %v6026 = vld [vmem:[#allocation10 + $0x2f0] sm:$0xff]
    %v6027 = vld [vmem:[#allocation10 + $0x2f8] sm:$0xff]
    %v6028 = vld [vmem:[#allocation10 + $0x300] sm:$0xff]
    %v6029 = vld [vmem:[#allocation10 + $0x308] sm:$0xff]
    %v6030 = vld [vmem:[#allocation10 + $0x310] sm:$0xff]
    %v6031 = vld [vmem:[#allocation10 + $0x318] sm:$0xff]
    %v6032 = vld [vmem:[#allocation10 + $0x320] sm:$0xff]
    %v6033 = vld [vmem:[#allocation10 + $0x328] sm:$0xff]
    %v6034 = vld [vmem:[#allocation10 + $0x330] sm:$0xff]
    %v6035 = vld [vmem:[#allocation10 + $0x338] sm:$0xff]
    %v6036 = vld [vmem:[#allocation10 + $0x340] sm:$0xff]
    %v6037 = vld [vmem:[#allocation10 + $0x348] sm:$0xff]
    %v6038 = vld [vmem:[#allocation10 + $0x350] sm:$0xff]
    %v6039 = vld [vmem:[#allocation10 + $0x358] sm:$0xff]
    %v6040 = vld [vmem:[#allocation10 + $0x360] sm:$0xff]
    %v6041 = vld [vmem:[#allocation10 + $0x368] sm:$0xff]
    %v6042 = vld [vmem:[#allocation10 + $0x370] sm:$0xff]
    %v6043 = vld [vmem:[#allocation10 + $0x378] sm:$0xff]
    %v6044 = vld [vmem:[#allocation10 + $0x380] sm:$0xff]
    %v6045 = vld [vmem:[#allocation10 + $0x388] sm:$0xff]
    %v6046 = vld [vmem:[#allocation10 + $0x390] sm:$0xff]
    %v6047 = vld [vmem:[#allocation10 + $0x398] sm:$0xff]
    %v6048 = vld [vmem:[#allocation10 + $0x3a0] sm:$0xff]
    %v6049 = vld [vmem:[#allocation10 + $0x3a8] sm:$0xff]
    %v6050 = vld [vmem:[#allocation10 + $0x3b0] sm:$0xff]
    %v6051 = vld [vmem:[#allocation10 + $0x3b8] sm:$0xff]
    %v6052 = vld [vmem:[#allocation10 + $0x3c0] sm:$0xff]
    %v6053 = vld [vmem:[#allocation10 + $0x3c8] sm:$0xff]
    %v6054 = vld [vmem:[#allocation10 + $0x3d0] sm:$0xff]
    %v6055 = vld [vmem:[#allocation10 + $0x3d8] sm:$0xff]
    %v6056 = vld [vmem:[#allocation10 + $0x3e0] sm:$0xff]
    %v6057 = vld [vmem:[#allocation10 + $0x3e8] sm:$0xff]
    %v6058 = vld [vmem:[#allocation10 + $0x3f0] sm:$0xff]
    %v6059 = vld [vmem:[#allocation10 + $0x3f8] sm:$0xff]
    %v6060 = vld [vmem:[%s635] sm:$0xf]
    %v6062 = vperm.slane %v6060, 0
    %v6063 = vperm.slane %v6060, 1
    %v6064 = vperm.slane %v6060, 2
    %v6065 = vperm.slane %v6060, 3
    %6070 = vmatpush.msra.mxu0 %v5992
    %6071 = vmatpush.msra.mxu0 %v5988
    %6072 = vmatpush.msra.mxu0 %v5984
    %6073 = vmatpush.msra.mxu0 %v5980
    %6074 = vmatpush.msra.mxu0 %v5976
    %6075 = vmatpush.msra.mxu0 %v5972
    %6076 = vmatpush.msra.mxu0 %v5968
    %6077 = vmatpush.msra.mxu0 %v5964
    %6078 = vmatpush.msra.mxu0 %v5960
    %6079 = vmatpush.msra.mxu0 %v5956
    %6080 = vmatpush.msra.mxu0 %v5952
    %6081 = vmatpush.msra.mxu0 %v5948
    %6082 = vmatpush.msra.mxu0 %v5944
    %6083 = vmatpush.msra.mxu0 %v5940
    %6084 = vmatpush.msra.mxu0 %v5936
    %6085 = vmatpush.msra.mxu0 %v5932
    %6086 = vmatmul.f32.gmra.mxu0 %v5931
    %v6087 = vpop.f32.mrf.mxu0
    %v6088 = vadd.f32 %v6062, %v6087
    %6089 = vdwg.mxu0
    %6090 = vmatpush.msra.mxu0 %v6056
    %6091 = vmatpush.msra.mxu0 %v6052
    %6092 = vmatpush.msra.mxu0 %v6048
    %6093 = vmatpush.msra.mxu0 %v6044
    %6094 = vmatpush.msra.mxu0 %v6040
    %6095 = vmatpush.msra.mxu0 %v6036
    %6096 = vmatpush.msra.mxu0 %v6032
    %6097 = vmatpush.msra.mxu0 %v6028
    %6098 = vmatpush.msra.mxu0 %v6024
    %6099 = vmatpush.msra.mxu0 %v6020
    %6100 = vmatpush.msra.mxu0 %v6016
    %6101 = vmatpush.msra.mxu0 %v6012
    %6102 = vmatpush.msra.mxu0 %v6008
    %6103 = vmatpush.msra.mxu0 %v6004
    %6104 = vmatpush.msra.mxu0 %v6000
    %6105 = vmatpush.msra.mxu0 %v5996
    %6106 = vmatmul.f32.gmra.mxu0 %v5517
    %v6107 = vpop.f32.mrf.mxu0
    %v6108 = vadd.f32 %v6088, %v6107
    %6109 = vdwg.mxu0
    %6110 = vmatpush.msra.mxu0 %v5993
    %6111 = vmatpush.msra.mxu0 %v5989
    %6112 = vmatpush.msra.mxu0 %v5985
    %6113 = vmatpush.msra.mxu0 %v5981
    %6114 = vmatpush.msra.mxu0 %v5977
    %6115 = vmatpush.msra.mxu0 %v5973
    %6116 = vmatpush.msra.mxu0 %v5969
    %6117 = vmatpush.msra.mxu0 %v5965
    %6118 = vmatpush.msra.mxu0 %v5961
    %6119 = vmatpush.msra.mxu0 %v5957
    %6120 = vmatpush.msra.mxu0 %v5953
    %6121 = vmatpush.msra.mxu0 %v5949
    %6122 = vmatpush.msra.mxu0 %v5945
    %6123 = vmatpush.msra.mxu0 %v5941
    %6124 = vmatpush.msra.mxu0 %v5937
    %6125 = vmatpush.msra.mxu0 %v5933
    %6126 = vmatmul.f32.gmra.mxu0 %v5931
    %v6127 = vpop.f32.mrf.mxu0
    %v6128 = vadd.f32 %v6063, %v6127
    %6129 = vdwg.mxu0
    %6130 = vmatpush.msra.mxu0 %v6057
    %6131 = vmatpush.msra.mxu0 %v6053
    %6132 = vmatpush.msra.mxu0 %v6049
    %6133 = vmatpush.msra.mxu0 %v6045
    %6134 = vmatpush.msra.mxu0 %v6041
    %6135 = vmatpush.msra.mxu0 %v6037
    %6136 = vmatpush.msra.mxu0 %v6033
    %6137 = vmatpush.msra.mxu0 %v6029
    %6138 = vmatpush.msra.mxu0 %v6025
    %6139 = vmatpush.msra.mxu0 %v6021
    %6140 = vmatpush.msra.mxu0 %v6017
    %6141 = vmatpush.msra.mxu0 %v6013
    %6142 = vmatpush.msra.mxu0 %v6009
    %6143 = vmatpush.msra.mxu0 %v6005
    %6144 = vmatpush.msra.mxu0 %v6001
    %6145 = vmatpush.msra.mxu0 %v5997
    %6146 = vmatmul.f32.gmra.mxu0 %v5517
    %v6147 = vpop.f32.mrf.mxu0
    %v6148 = vadd.f32 %v6128, %v6147
    %6149 = vdwg.mxu0
    %6150 = vmatpush.msra.mxu0 %v5994
    %6151 = vmatpush.msra.mxu0 %v5990
    %6152 = vmatpush.msra.mxu0 %v5986
    %6153 = vmatpush.msra.mxu0 %v5982
    %6154 = vmatpush.msra.mxu0 %v5978
    %6155 = vmatpush.msra.mxu0 %v5974
    %6156 = vmatpush.msra.mxu0 %v5970
    %6157 = vmatpush.msra.mxu0 %v5966
    %6158 = vmatpush.msra.mxu0 %v5962
    %6159 = vmatpush.msra.mxu0 %v5958
    %6160 = vmatpush.msra.mxu0 %v5954
    %6161 = vmatpush.msra.mxu0 %v5950
    %6162 = vmatpush.msra.mxu0 %v5946
    %6163 = vmatpush.msra.mxu0 %v5942
    %6164 = vmatpush.msra.mxu0 %v5938
    %6165 = vmatpush.msra.mxu0 %v5934
    %6166 = vmatmul.f32.gmra.mxu0 %v5931
    %v6167 = vpop.f32.mrf.mxu0
    %v6168 = vadd.f32 %v6064, %v6167
    %6169 = vdwg.mxu0
    %6170 = vmatpush.msra.mxu0 %v6058
    %6171 = vmatpush.msra.mxu0 %v6054
    %6172 = vmatpush.msra.mxu0 %v6050
    %6173 = vmatpush.msra.mxu0 %v6046
    %6174 = vmatpush.msra.mxu0 %v6042
    %6175 = vmatpush.msra.mxu0 %v6038
    %6176 = vmatpush.msra.mxu0 %v6034
    %6177 = vmatpush.msra.mxu0 %v6030
    %6178 = vmatpush.msra.mxu0 %v6026
    %6179 = vmatpush.msra.mxu0 %v6022
    %6180 = vmatpush.msra.mxu0 %v6018
    %6181 = vmatpush.msra.mxu0 %v6014
    %6182 = vmatpush.msra.mxu0 %v6010
    %6183 = vmatpush.msra.mxu0 %v6006
    %6184 = vmatpush.msra.mxu0 %v6002
    %6185 = vmatpush.msra.mxu0 %v5998
    %6186 = vmatmul.f32.gmra.mxu0 %v5517
    %v6187 = vpop.f32.mrf.mxu0
    %v6188 = vadd.f32 %v6168, %v6187
    %6189 = vdwg.mxu0
    %6190 = vmatpush.msra.mxu0 %v5995
    %6191 = vmatpush.msra.mxu0 %v5991
    %6192 = vmatpush.msra.mxu0 %v5987
    %6193 = vmatpush.msra.mxu0 %v5983
    %6194 = vmatpush.msra.mxu0 %v5979
    %6195 = vmatpush.msra.mxu0 %v5975
    %6196 = vmatpush.msra.mxu0 %v5971
    %6197 = vmatpush.msra.mxu0 %v5967
    %6198 = vmatpush.msra.mxu0 %v5963
    %6199 = vmatpush.msra.mxu0 %v5959
    %6200 = vmatpush.msra.mxu0 %v5955
    %6201 = vmatpush.msra.mxu0 %v5951
    %6202 = vmatpush.msra.mxu0 %v5947
    %6203 = vmatpush.msra.mxu0 %v5943
    %6204 = vmatpush.msra.mxu0 %v5939
    %6205 = vmatpush.msra.mxu0 %v5935
    %6206 = vmatmul.f32.gmra.mxu0 %v5931
    %v6207 = vpop.f32.mrf.mxu0
    %v6208 = vadd.f32 %v6065, %v6207
    %6209 = vdwg.mxu0
    %6210 = vmatpush.msra.mxu0 %v6059
    %6211 = vmatpush.msra.mxu0 %v6055
    %6212 = vmatpush.msra.mxu0 %v6051
    %6213 = vmatpush.msra.mxu0 %v6047
    %6214 = vmatpush.msra.mxu0 %v6043
    %6215 = vmatpush.msra.mxu0 %v6039
    %6216 = vmatpush.msra.mxu0 %v6035
    %6217 = vmatpush.msra.mxu0 %v6031
    %6218 = vmatpush.msra.mxu0 %v6027
    %6219 = vmatpush.msra.mxu0 %v6023
    %6220 = vmatpush.msra.mxu0 %v6019
    %6221 = vmatpush.msra.mxu0 %v6015
    %6222 = vmatpush.msra.mxu0 %v6011
    %6223 = vmatpush.msra.mxu0 %v6007
    %6224 = vmatpush.msra.mxu0 %v6003
    %6225 = vmatpush.msra.mxu0 %v5999
    %6226 = vmatmul.f32.gmra.mxu0 %v5517
    %v6227 = vpop.f32.mrf.mxu0
    %v6228 = vadd.f32 %v6208, %v6227
    %6229 = vdwg.mxu0
    %v6230 = vxor.u32 %v6108, 2147483648
    %v6231 = vmul.f32 %v6230, 1.442695
    %v6232 = vpow.pop %v6231
    %v6233 = vadd.f32 %v6232, 1.0
    %v6234 = vrcp.pop %v6233
    %v6235 = vmul.f32 %v6233, %v6234
    %v6236 = vsub.f32 1.0, %v6235
    %v6237 = vmul.f32 %v6234, %v6236
    %v6238 = vadd.f32 %v6234, %v6237
    %vm6239 = vweird.f32 %v6233
    %vm6240 = vweird.f32 %v6234
    %vm6241 = vmor %vm6239, %vm6240
    %v6242 = vsel %vm6241, %v6234, %v6238
    %v6243 = vand.u32 2147483647, %v6233
    %vm6244 = vcmp.eq.f32.partialorder %v6243, 8.507059e+37
    %v6245 = vand.u32 %v6233, 2147483648
    %v6246 = vor.u32 1.1754944e-38, %v6245
    %v6247 = vsel %vm6244, %v6246, %v6242
    %v6248 = vmul.f32 1.0, %v6247
    %v6249 = vxor.u32 %v6148, 2147483648
    %v6250 = vmul.f32 %v6249, 1.442695
    %v6251 = vpow.pop %v6250
    %v6252 = vadd.f32 %v6251, 1.0
    %v6253 = vrcp.pop %v6252
    %v6254 = vmul.f32 %v6252, %v6253
    %v6255 = vsub.f32 1.0, %v6254
    %v6256 = vmul.f32 %v6253, %v6255
    %v6257 = vadd.f32 %v6253, %v6256
    %vm6258 = vweird.f32 %v6252
    %vm6259 = vweird.f32 %v6253
    %vm6260 = vmor %vm6258, %vm6259
    %v6261 = vsel %vm6260, %v6253, %v6257
    %v6262 = vand.u32 2147483647, %v6252
    %vm6263 = vcmp.eq.f32.partialorder %v6262, 8.507059e+37
    %v6264 = vand.u32 %v6252, 2147483648
    %v6265 = vor.u32 1.1754944e-38, %v6264
    %v6266 = vsel %vm6263, %v6265, %v6261
    %v6267 = vmul.f32 1.0, %v6266
    %v6268 = vtanh.pop %v6188
    %v6269 = vxor.u32 %v6228, 2147483648
    %v6270 = vmul.f32 %v6269, 1.442695
    %v6271 = vpow.pop %v6270
    %v6272 = vadd.f32 %v6271, 1.0
    %v6273 = vrcp.pop %v6272
    %v6274 = vmul.f32 %v6272, %v6273
    %v6275 = vsub.f32 1.0, %v6274
    %v6276 = vmul.f32 %v6273, %v6275
    %v6277 = vadd.f32 %v6273, %v6276
    %vm6278 = vweird.f32 %v6272
    %vm6279 = vweird.f32 %v6273
    %vm6280 = vmor %vm6278, %vm6279
    %v6281 = vsel %vm6280, %v6273, %v6277
    %v6282 = vand.u32 2147483647, %v6272
    %vm6283 = vcmp.eq.f32.partialorder %v6282, 8.507059e+37
    %v6284 = vand.u32 %v6272, 2147483648
    %v6285 = vor.u32 1.1754944e-38, %v6284
    %v6286 = vsel %vm6283, %v6285, %v6281
    %v6287 = vmul.f32 1.0, %v6286
    %v6288 = vmul.f32 %v6267, %v5515
    %v6289 = vmul.f32 %v6248, %v6268
    %v6290 = vadd.f32 %v6288, %v6289
    %v6291 = vtanh.pop %v6290
    %v6292 = vmul.f32 %v6287, %v6291
    %v6293 = vld [vmem:[#allocation13] sm:$0xff]
    %v6294 = vld [vmem:[#allocation13 + $0x8] sm:$0xff]
    %v6295 = vld [vmem:[#allocation13 + $0x10] sm:$0xff]
    %v6296 = vld [vmem:[#allocation13 + $0x18] sm:$0xff]
    %v6297 = vld [vmem:[#allocation13 + $0x20] sm:$0xff]
    %v6298 = vld [vmem:[#allocation13 + $0x28] sm:$0xff]
    %v6299 = vld [vmem:[#allocation13 + $0x30] sm:$0xff]
    %v6300 = vld [vmem:[#allocation13 + $0x38] sm:$0xff]
    %v6301 = vld [vmem:[#allocation13 + $0x40] sm:$0xff]
    %v6302 = vld [vmem:[#allocation13 + $0x48] sm:$0xff]
    %v6303 = vld [vmem:[#allocation13 + $0x50] sm:$0xff]
    %v6304 = vld [vmem:[#allocation13 + $0x58] sm:$0xff]
    %v6305 = vld [vmem:[#allocation13 + $0x60] sm:$0xff]
    %v6306 = vld [vmem:[#allocation13 + $0x68] sm:$0xff]
    %v6307 = vld [vmem:[#allocation13 + $0x70] sm:$0xff]
    %v6308 = vld [vmem:[#allocation13 + $0x78] sm:$0xff]
    %v6309 = vld [vmem:[%s7] sm:$0x1]
    %v6311 = vperm.slane %v6309, 0
    %6313 = vmatpush.msra.mxu0 %v6308
    %6314 = vmatpush.msra.mxu0 %v6307
    %6315 = vmatpush.msra.mxu0 %v6306
    %6316 = vmatpush.msra.mxu0 %v6305
    %6317 = vmatpush.msra.mxu0 %v6304
    %6318 = vmatpush.msra.mxu0 %v6303
    %6319 = vmatpush.msra.mxu0 %v6302
    %6320 = vmatpush.msra.mxu0 %v6301
    %6321 = vmatpush.msra.mxu0 %v6300
    %6322 = vmatpush.msra.mxu0 %v6299
    %6323 = vmatpush.msra.mxu0 %v6298
    %6324 = vmatpush.msra.mxu0 %v6297
    %6325 = vmatpush.msra.mxu0 %v6296
    %6326 = vmatpush.msra.mxu0 %v6295
    %6327 = vmatpush.msra.mxu0 %v6294
    %6328 = vmatpush.msra.mxu0 %v6293
    %6329 = vmatmul.f32.gmra.mxu0 %v6292
    %v6330 = vpop.f32.mrf.mxu0
    %v6331 = vadd.f32 %v6311, %v6330
    %6332 = vdwg.mxu0
    %6333 = vmax.xlane.f32.xlu0 %v6331
    %v6334 = vpop.xlane.xlu0 %6333
    %v6335 = vsub.f32 %v6331, %v6334
    %v6336 = vmul.f32 %v6335, 1.442695
    %v6337 = vpow.pop %v6336
    %6338 = vadd.xlane.f32.xlu0 %v6337
    %v6339 = vpop.xlane.xlu0 %6338
    %v6340 = vrcp.pop %v6339
    %v6341 = vmul.f32 %v6337, %v6340
    %s6342 = scalar_lea.vmem [#allocation14], 56
    %6343 = vst [vmem:[%s6342] sm:$0xff] %v6341
    // Predicated region
    $region62: #{tpu_custom_call.1} parent=1 // pred_check
      _
    $region63: #{tpu_custom_call.1} parent=1 // pred_check_branch
      %6345 = sbr.rel (0) target = $region65
    $region64: #{tpu_custom_call.1} parent=1 // pred_region
      %6347 = vsyncadd [#allocation4], 0
      %s6348 = sshll.u32 [#allocation14], 4
      %s6349 = int_to_ptr.vmem [resolvable:$true] %s6348
      %s6350 = sshll.u32 %s8, 4
      %s6351 = int_to_ptr.hbm [resolvable:$true] %s6350
      %6356 = dma.vmem_to_hbm [thread:$0]  %s6349, 1024, %s6351, [#allocation4], 128, 128, 8
    $region65: #{tpu_custom_call.1} parent=1 // pred_fallthru
      _
    // Predicated region
    $region66: #{tpu_custom_call.1} parent=1 // pred_check
      _
    $region67: #{tpu_custom_call.1} parent=1 // pred_check_branch
      %6358 = sbr.rel (0) target = $region69
    $region68: #{tpu_custom_call.1} parent=1 // pred_region
      %6360 = dma.done [#allocation4], 1024
    $region69: #{tpu_custom_call.1} parent=1 // pred_fallthru
      _
    %6361 = vsyncpa [#allocation3], 1
    %6362 = vsyncpa [#allocation6], 1
    %6363 = vsyncpa [#allocation9], 1
    %6364 = vsyncpa [#allocation12], 1
    %6365 = vsyncpa [#allocation4], 1

</llo_original>
